<compile_context>
chip_gen: v5e
topology: v5e:2x2
jax: 0.10.0
libtpu: 0.0.40
codegen_flags: <defaults>
</compile_context>

<pallas_src>
import math
import jax
import jax.numpy as jnp
from jax.experimental import pallas as pl
from jax.experimental.pallas import tpu as pltpu

F32 = jnp.float32
BF16 = jnp.bfloat16
NEG = -65504.0          # masked_fill value used by the PyTorch reference
LN_EPS = 1e-5
HEAD = 8


# ----------------------------- in-kernel building blocks -----------------------------

def _mm(x, w_ref):
    """x @ W with bf16 MXU operands and f32 accumulation (W is a bf16 VMEM ref)."""
    return jnp.dot(x.astype(BF16), w_ref[...], preferred_element_type=F32)


def _linear(x, w_ref, b_ref):
    return _mm(x, w_ref) + b_ref[...]


def _ffn(x, w1, b1, w2, b2):
    """PositionWiseFFN: dense2(relu(dense1(x))); dropout = identity (eval)."""
    return _linear(jnp.maximum(_linear(x, w1, b1), 0.0), w2, b2)


def _layernorm(x, g, b):
    mu = jnp.mean(x, axis=-1, keepdims=True)
    var = jnp.mean((x - mu) ** 2, axis=-1, keepdims=True)
    return (x - mu) * jax.lax.rsqrt(var + LN_EPS) * g[...] + b[...]


def _softmax_rows(s, approx=False):
    """Softmax along the last (lane) axis, f32. approx only for MHA-internal use."""
    s = s - jnp.max(s, axis=-1, keepdims=True)
    e = jnp.exp(s)
    d = jnp.sum(e, axis=-1, keepdims=True)
    if approx:
        return e * pl.reciprocal(d, approx=True)
    return e / d


def _softmax_cols(s):
    """Softmax along axis 0 (sequence axis). Exact: its output feeds the loss."""
    s = s - jnp.max(s, axis=0, keepdims=True)
    e = jnp.exp(s)
    return e / jnp.sum(e, axis=0, keepdims=True)


_DN_QKT = (((1,), (1,)), ((), ()))      # contract last axes of both operands (q @ k^T)


def _mha(xq, xkv, bias_row, w_qkv, b_qkv, w_m, b_m, head=HEAD):
    """MHAtt with lane-dense packed weights.

    xq (Nq,H), xkv (Nk,H); bias_row (1,Nk) additive mask bias (0 / NEG).
    w_qkv: (H, 3H) bf16 ref (Q|K|V), b_qkv: (1, 3H) f32 ref,
    w_m: (H, H) bf16 ref, b_m: (1, H) f32 ref.  Returns (Nq, H) f32.
    """
    H = xq.shape[-1]
    hs = H // head
    scale = 1.0 / math.sqrt(hs)
    w = w_qkv[...]
    b = b_qkv[...]
    if xq is xkv:
        # Self-attention: one (N,H)@(H,3H) projection.
        qkv = jnp.dot(xq.astype(BF16), w, preferred_element_type=F32) + b
        q_all, k_all, v_all = qkv[:, :H], qkv[:, H:2 * H], qkv[:, 2 * H:]
    else:
        # Cross-attention: Q from xq, K|V from xkv.
        q_all = jnp.dot(xq.astype(BF16), w[:, :H], preferred_element_type=F32) + b[:, :H]
        kv = jnp.dot(xkv.astype(BF16), w[:, H:], preferred_element_type=F32) + b[:, H:]
        k_all, v_all = kv[:, :H], kv[:, H:]

    q_b = q_all.astype(BF16)
    k_b = k_all.astype(BF16)
    v_b = v_all.astype(BF16)
    outs = []
    for h in range(head):
        sl = slice(h * hs, (h + 1) * hs)
        s = jax.lax.dot_general(q_b[:, sl], k_b[:, sl], _DN_QKT,
                                preferred_element_type=F32) * scale
        p = _softmax_rows(s + bias_row, approx=True)
        outs.append(jnp.dot(p.astype(BF16), v_b[:, sl], preferred_element_type=F32))
    ctx = jnp.concatenate(outs, axis=-1)            # (Nq, H), heads in order
    return _mm(ctx, w_m) + b_m[...]


def _qkv_attention(q, k, v, bias_row):
    """BiAttention.qkv_attention (single head over the full hidden dim)."""
    s = jax.lax.dot_general(q.astype(BF16), k.astype(BF16), _DN_QKT,
                            preferred_element_type=F32) * (1.0 / math.sqrt(q.shape[-1]))
    p = _softmax_rows(s + bias_row, approx=False)
    return jnp.dot(p.astype(BF16), v.astype(BF16), preferred_element_type=F32)


def _attflat(x, bias_col, w1, b1, w2, b2, wm, bm):
    """AttFlat (glimpses=1). x (N,H), bias_col (N,1). Returns ((1,out), att (N,1))."""
    lg = _ffn(x, w1, b1, w2, b2)                      # (N, 1)
    att = _softmax_cols(lg + bias_col)                # (N, 1), exact
    pooled = jnp.sum(att * x, axis=0, keepdims=True)  # (1, H)
    return _linear(pooled, wm, bm), att


# ----------------------------- fused forward kernel -----------------------------

def _take(it, n):
    return [next(it) for _ in range(n)]


def _fused_kernel(img_ref, que_ref, imr_ref, imc_ref, qmr_ref, qmc_ref, *rest):
    out_ref = rest[-1]
    it = iter(rest[:-1])
    # -- consume weight refs in the canonical flatten order --
    e_mha = _take(it, 4); e_n1 = _take(it, 2); e_ffn = _take(it, 4); e_n2 = _take(it, 2)
    d_mha1 = _take(it, 4); d_n1 = _take(it, 2)
    d_mha2 = _take(it, 4); d_n2 = _take(it, 2)
    d_ffn = _take(it, 4); d_n3 = _take(it, 2)
    lf_ffn = _take(it, 4); lf_mg = _take(it, 2)
    if_ffn = _take(it, 4); if_mg = _take(it, 2)
    bf_wl, bf_wi, bf_b = _take(it, 3)
    aq_ffn = _take(it, 4); aq_mg = _take(it, 2)
    lq = _take(it, 2)
    av = _take(it, 4); gq = _take(it, 4); al = _take(it, 4)
    fn = _take(it, 2); pn = _take(it, 2); pr = _take(it, 2)
    assert not list(it), "weight flatten / consume order mismatch"

    img = img_ref[0]                 # (Ni, H) original image features
    que = que_ref[0]                 # (Nq, H) question features
    n_img = float(img.shape[0])
    Hd = img.shape[-1]

    # masks (1.0 = padded) -> additive biases, hoisted out of all head loops
    im_col = imc_ref[0]                                   # (Ni, 1)
    im_bias_r = jnp.where(imr_ref[0] > 0.5, NEG, 0.0)     # (1, Ni)
    qm_bias_r = jnp.where(qmr_ref[0] > 0.5, NEG, 0.0)     # (1, Nq)
    im_bias_c = jnp.where(im_col > 0.5, NEG, 0.0)         # (Ni, 1)
    qm_bias_c = jnp.where(qmc_ref[0] > 0.5, NEG, 0.0)     # (Nq, 1)

    # ---- Encoder layer (question) ----
    q1 = _layernorm(que + _mha(que, que, qm_bias_r, *e_mha), *e_n1)
    que_enc = _layernorm(q1 + _ffn(q1, *e_ffn), *e_n2)

    # ---- Decoder layer (image) ----
    x1 = _layernorm(img + _mha(img, img, im_bias_r, *d_mha1), *d_n1)
    x2 = _layernorm(x1 + _mha(x1, que_enc, qm_bias_r, *d_mha2), *d_n2)
    img_dec = _layernorm(x2 + _ffn(x2, *d_ffn), *d_n3)

    # ---- BiAttention ----
    i_feat = _qkv_attention(img_dec, que_enc, que_enc, qm_bias_r)        # (Ni, H)
    i_pool, i_att = _attflat(i_feat, im_bias_c, *lf_ffn, *lf_mg)         # (1,H),(Ni,1)
    l_feat = _qkv_attention(que_enc, img_dec, img_dec, im_bias_r)        # (Nq, H)
    l_pool, _ = _attflat(l_feat, qm_bias_c, *if_ffn, *if_mg)             # (1, H)
    proj_feat = _mm(l_pool, bf_wl) + _mm(i_pool, bf_wi) + bf_b[...]      # (1, H)

    # ---- AttFlat over encoder output + linear_que ----
    q_pool, _ = _attflat(que_enc, qm_bias_c, *aq_ffn, *aq_mg)            # (1, 2H)
    q_in = proj_feat + _linear(q_pool, *lq)                              # (1, H)

    # ---- AGAttention (reconstruction weights, uses ORIGINAL image feats) ----
    v_ag = _ffn(img, *av)                                                # (Ni, H)
    q_ag = _ffn(q_in, *gq)                                               # (1, H)
    lg = _ffn(v_ag * q_ag, *al)                                          # (Ni, 1)
    recon_w = _softmax_cols(lg + im_bias_c)                              # (Ni, 1)

    # ---- entropy-gated reconstruction loss (per-batch partial; * temp outside) ----
    obj_num = jnp.maximum(n_img - jnp.sum(im_col, axis=0, keepdims=True), 1.0)  # (1,1)
    avg_w = 1.0 / obj_num
    ent_avg = n_img * (-avg_w * jnp.log(avg_w))                          # (1, 1)
    a_safe = jnp.maximum(i_att, 1e-9)                                    # robust 0-guard
    ent_att = jnp.sum(-a_safe * jnp.log(a_safe), axis=0, keepdims=True)  # (1, 1)
    rate = jnp.where(ent_att > ent_avg, 1.0, 0.0)                        # sign test, no div
    err = jnp.sum((i_att - recon_w) ** 2, axis=0, keepdims=True)         # (1, 1)
    recon = err * rate                                                   # (1, 1)

    # ---- output projection: final -> LayerNorm -> proj ----
    pf = _layernorm(_linear(proj_feat, *fn), *pn)                        # (1, 2H)
    proj = _linear(pf, *pr)                                              # (1, H)

    # ---- lane-dense packed output row: [proj | recon | zero pad] ----
    pad = out_ref.shape[-1] - Hd - 1
    out_ref[0] = jnp.concatenate(
        [proj, recon, jnp.zeros((1, pad), F32)], axis=-1).astype(F32)


# ----------------------------- pallas_call wrapper -----------------------------

def _rep_spec(a):
    nd = a.ndim
    return pl.BlockSpec(a.shape, lambda i, _n=nd: (0,) * _n)


def _batch_spec(shape):
    tail = tuple(shape[1:])
    zeros = (0,) * len(tail)
    return pl.BlockSpec((1,) + tail, lambda i, _z=zeros: (i,) + _z)


def _lin_args(p):
    return [p['w'], p['b']]


def _ffn_args(p):
    return _lin_args(p['l1']) + _lin_args(p['l2'])


def _ln_args(p):
    return [p['g'], p['b']]


def _mha_args(p):
    return [p['w_qkv'], p['b_qkv'], p['w_m'], p['b_m']]


def _flatten_weights(p):
    enc, dec, bi = p['enc'], p['dec'], p['bi']
    w = []
    w += _mha_args(enc['mhatt']) + _ln_args(enc['norm1'])
    w += _ffn_args(enc['ffn']) + _ln_args(enc['norm2'])
    w += _mha_args(dec['mhatt1']) + _ln_args(dec['norm1'])
    w += _mha_args(dec['mhatt2']) + _ln_args(dec['norm2'])
    w += _ffn_args(dec['ffn']) + _ln_args(dec['norm3'])
    w += _ffn_args(bi['l_flatten']['mlp']) + _lin_args(bi['l_flatten']['merge'])
    w += _ffn_args(bi['i_flatten']['mlp']) + _lin_args(bi['i_flatten']['merge'])
    w += [bi['final']['wl'], bi['final']['wi'], bi['final']['b']]
    w += _ffn_args(p['attflat_que']['mlp']) + _lin_args(p['attflat_que']['merge'])
    w += _lin_args(p['linear_que'])
    w += _ffn_args(p['ag']['lin_v']) + _ffn_args(p['ag']['lin_q']) + _ffn_args(p['ag']['lin'])
    w += _lin_args(p['final']) + _ln_args(p['proj_norm']) + _lin_args(p['proj'])
    return w


def _round_up(x, m):
    return ((x + m - 1) // m) * m


def transformer_forward(params, img, que, img_mask, que_mask):
    B, Ni, H = img.shape
    Nq = que.shape[1]
    out_w = _round_up(H + 1, 128)

    # 1.0 = masked/padded position (PyTorch masked_fill convention)
    im_row = img_mask.reshape(B, 1, Ni).astype(F32)
    im_col = img_mask.reshape(B, Ni, 1).astype(F32)
    qm_row = que_mask.reshape(B, 1, Nq).astype(F32)
    qm_col = que_mask.reshape(B, Nq, 1).astype(F32)

    acts = [img, que, im_row, im_col, qm_row, qm_col]
    weights = _flatten_weights(params)

    packed = pl.pallas_call(
        _fused_kernel,
        grid=(B,),
        out_shape=jax.ShapeDtypeStruct((B, 1, out_w), F32),
        in_specs=[_batch_spec(a.shape) for a in acts]
                 + [_rep_spec(a) for a in weights],
        out_specs=_batch_spec((B, 1, out_w)),
        compiler_params=pltpu.CompilerParams(dimension_semantics=("parallel",)),
    )(*acts, *weights)

    proj_feat = packed[:, 0, :H]                              # (B, H)
    recon_loss = jnp.sum(packed[:, 0, H]) * params['temp']    # scalar
    return proj_feat, recon_loss


# ----------------------------- deterministic parameter init (kernel layout) ---------

def _init_dense(key, din, dout, scale=0.05):
    kw, kb = jax.random.split(key)
    w = scale * jax.random.normal(kw, (din, dout), F32)
    b = scale * jax.random.normal(kb, (dout,), F32)
    return w, b


def init_linear(key, din, dout):
    w, b = _init_dense(key, din, dout)
    return {'w': w.astype(BF16), 'b': b.reshape(1, dout)}


def init_ffn(key, din, dout):
    k1, k2 = jax.random.split(key)
    return {'l1': init_linear(k1, din, 2 * din), 'l2': init_linear(k2, 2 * din, dout)}


def init_ln(dim):
    return {'g': jnp.ones((1, dim), F32), 'b': jnp.zeros((1, dim), F32)}


def init_mhatt(key, h):
    """Lane-dense packed layout: Q|K|V as one (H, 3H) bf16 weight."""
    ks = jax.random.split(key, 4)
    wq, bq = _init_dense(ks[0], h, h)
    wk, bk = _init_dense(ks[1], h, h)
    wv, bv = _init_dense(ks[2], h, h)
    wm, bm = _init_dense(ks[3], h, h)
    return {'w_qkv': jnp.concatenate([wq, wk, wv], axis=1).astype(BF16),   # (H, 3H)
            'b_qkv': jnp.concatenate([bq, bk, bv]).reshape(1, 3 * h),      # (1, 3H)
            'w_m': wm.astype(BF16),                                        # (H, H)
            'b_m': bm.reshape(1, h)}                                       # (1, H)


def init_attflat(key, h, out_dim):
    k1, k2 = jax.random.split(key)
    return {'mlp': init_ffn(k1, h, 1), 'merge': init_linear(k2, h, out_dim)}


def init_bi(key, h):
    k1, k2, k3 = jax.random.split(key, 3)
    wf, bf = _init_dense(k3, 2 * h, h)
    return {'l_flatten': init_attflat(k1, h, h),
            'i_flatten': init_attflat(k2, h, h),
            'final': {'wl': wf[:h].astype(BF16), 'wi': wf[h:].astype(BF16),
                      'b': bf.reshape(1, h)}}


def init_encoder(key, h):
    k1, k2 = jax.random.split(key)
    return {'mhatt': init_mhatt(k1, h), 'ffn': init_ffn(k2, h, h),
            'norm1': init_ln(h), 'norm2': init_ln(h)}


def init_decoder(key, h):
    k1, k2, k3 = jax.random.split(key, 3)
    return {'mhatt1': init_mhatt(k1, h), 'mhatt2': init_mhatt(k2, h),
            'ffn': init_ffn(k3, h, h),
            'norm1': init_ln(h), 'norm2': init_ln(h), 'norm3': init_ln(h)}


def init_ag(key, h):
    k1, k2, k3 = jax.random.split(key, 3)
    return {'lin_v': init_ffn(k1, h, h), 'lin_q': init_ffn(k2, h, h),
            'lin': init_ffn(k3, h, 1)}


def init_transformer(key, h):
    ks = jax.random.split(key, 8)
    return {'enc': init_encoder(ks[0], h),
            'dec': init_decoder(ks[1], h),
            'bi': init_bi(ks[2], h),
            'attflat_que': init_attflat(ks[3], h, 2 * h),
            'linear_que': init_linear(ks[4], 2 * h, h),
            'ag': init_ag(ks[5], h),
            'final': init_linear(ks[6], h, 2 * h),
            'proj_norm': init_ln(2 * h),
            'proj': init_linear(ks[7], 2 * h, h),
            'temp': jnp.asarray(100.0, F32)}


# ----------------------------- main -----------------------------

if __name__ == "__main__":
    hidden = 64
    b, n_img, n_que = 2, 8, 8

    key = jax.random.PRNGKey(0)
    kp, ki, kq = jax.random.split(key, 3)
    params = init_transformer(kp, hidden)

    img = jax.random.normal(ki, (b, n_img, hidden), F32)
    que = jax.random.normal(kq, (b, n_que, hidden), F32)
    # boolean masks: True = padded/masked position (PyTorch masked_fill convention)
    img_mask = jnp.zeros((b, 1, 1, n_img), dtype=jnp.bool_).at[:, :, :, -2:].set(True)
    que_mask = jnp.zeros((b, 1, 1, n_que), dtype=jnp.bool_).at[:, :, :, -1:].set(True)

    fwd = jax.jit(transformer_forward)
    proj_feat, recon_loss = fwd(params, img, que, img_mask, que_mask)
    jax.block_until_ready((proj_feat, recon_loss))

    assert proj_feat.shape == (b, hidden)
    assert recon_loss.shape == ()
    assert bool(jnp.all(jnp.isfinite(proj_feat))) and bool(jnp.isfinite(recon_loss))
    print("KERNEL_OK")
</pallas_src>

<mosaic_0001>
module attributes {stable_mosaic.version = 11 : i64} {
  func.func @_fused_kernel(%arg0: i32, %arg1: memref<1x8x64xf32, #tpu.memory_space<vmem>>, %arg2: memref<1x8x64xf32, #tpu.memory_space<vmem>>, %arg3: memref<1x1x8xf32, #tpu.memory_space<vmem>>, %arg4: memref<1x8x1xf32, #tpu.memory_space<vmem>>, %arg5: memref<1x1x8xf32, #tpu.memory_space<vmem>>, %arg6: memref<1x8x1xf32, #tpu.memory_space<vmem>>, %arg7: memref<64x192xbf16, #tpu.memory_space<vmem>>, %arg8: memref<1x192xf32, #tpu.memory_space<vmem>>, %arg9: memref<64x64xbf16, #tpu.memory_space<vmem>>, %arg10: memref<1x64xf32, #tpu.memory_space<vmem>>, %arg11: memref<1x64xf32, #tpu.memory_space<vmem>>, %arg12: memref<1x64xf32, #tpu.memory_space<vmem>>, %arg13: memref<64x128xbf16, #tpu.memory_space<vmem>>, %arg14: memref<1x128xf32, #tpu.memory_space<vmem>>, %arg15: memref<128x64xbf16, #tpu.memory_space<vmem>>, %arg16: memref<1x64xf32, #tpu.memory_space<vmem>>, %arg17: memref<1x64xf32, #tpu.memory_space<vmem>>, %arg18: memref<1x64xf32, #tpu.memory_space<vmem>>, %arg19: memref<64x192xbf16, #tpu.memory_space<vmem>>, %arg20: memref<1x192xf32, #tpu.memory_space<vmem>>, %arg21: memref<64x64xbf16, #tpu.memory_space<vmem>>, %arg22: memref<1x64xf32, #tpu.memory_space<vmem>>, %arg23: memref<1x64xf32, #tpu.memory_space<vmem>>, %arg24: memref<1x64xf32, #tpu.memory_space<vmem>>, %arg25: memref<64x192xbf16, #tpu.memory_space<vmem>>, %arg26: memref<1x192xf32, #tpu.memory_space<vmem>>, %arg27: memref<64x64xbf16, #tpu.memory_space<vmem>>, %arg28: memref<1x64xf32, #tpu.memory_space<vmem>>, %arg29: memref<1x64xf32, #tpu.memory_space<vmem>>, %arg30: memref<1x64xf32, #tpu.memory_space<vmem>>, %arg31: memref<64x128xbf16, #tpu.memory_space<vmem>>, %arg32: memref<1x128xf32, #tpu.memory_space<vmem>>, %arg33: memref<128x64xbf16, #tpu.memory_space<vmem>>, %arg34: memref<1x64xf32, #tpu.memory_space<vmem>>, %arg35: memref<1x64xf32, #tpu.memory_space<vmem>>, %arg36: memref<1x64xf32, #tpu.memory_space<vmem>>, %arg37: memref<64x128xbf16, #tpu.memory_space<vmem>>, %arg38: memref<1x128xf32, #tpu.memory_space<vmem>>, %arg39: memref<128x1xbf16, #tpu.memory_space<vmem>>, %arg40: memref<1x1xf32, #tpu.memory_space<vmem>>, %arg41: memref<64x64xbf16, #tpu.memory_space<vmem>>, %arg42: memref<1x64xf32, #tpu.memory_space<vmem>>, %arg43: memref<64x128xbf16, #tpu.memory_space<vmem>>, %arg44: memref<1x128xf32, #tpu.memory_space<vmem>>, %arg45: memref<128x1xbf16, #tpu.memory_space<vmem>>, %arg46: memref<1x1xf32, #tpu.memory_space<vmem>>, %arg47: memref<64x64xbf16, #tpu.memory_space<vmem>>, %arg48: memref<1x64xf32, #tpu.memory_space<vmem>>, %arg49: memref<64x64xbf16, #tpu.memory_space<vmem>>, %arg50: memref<64x64xbf16, #tpu.memory_space<vmem>>, %arg51: memref<1x64xf32, #tpu.memory_space<vmem>>, %arg52: memref<64x128xbf16, #tpu.memory_space<vmem>>, %arg53: memref<1x128xf32, #tpu.memory_space<vmem>>, %arg54: memref<128x1xbf16, #tpu.memory_space<vmem>>, %arg55: memref<1x1xf32, #tpu.memory_space<vmem>>, %arg56: memref<64x128xbf16, #tpu.memory_space<vmem>>, %arg57: memref<1x128xf32, #tpu.memory_space<vmem>>, %arg58: memref<128x64xbf16, #tpu.memory_space<vmem>>, %arg59: memref<1x64xf32, #tpu.memory_space<vmem>>, %arg60: memref<64x128xbf16, #tpu.memory_space<vmem>>, %arg61: memref<1x128xf32, #tpu.memory_space<vmem>>, %arg62: memref<128x64xbf16, #tpu.memory_space<vmem>>, %arg63: memref<1x64xf32, #tpu.memory_space<vmem>>, %arg64: memref<64x128xbf16, #tpu.memory_space<vmem>>, %arg65: memref<1x128xf32, #tpu.memory_space<vmem>>, %arg66: memref<128x64xbf16, #tpu.memory_space<vmem>>, %arg67: memref<1x64xf32, #tpu.memory_space<vmem>>, %arg68: memref<64x128xbf16, #tpu.memory_space<vmem>>, %arg69: memref<1x128xf32, #tpu.memory_space<vmem>>, %arg70: memref<128x1xbf16, #tpu.memory_space<vmem>>, %arg71: memref<1x1xf32, #tpu.memory_space<vmem>>, %arg72: memref<64x128xbf16, #tpu.memory_space<vmem>>, %arg73: memref<1x128xf32, #tpu.memory_space<vmem>>, %arg74: memref<1x128xf32, #tpu.memory_space<vmem>>, %arg75: memref<1x128xf32, #tpu.memory_space<vmem>>, %arg76: memref<128x64xbf16, #tpu.memory_space<vmem>>, %arg77: memref<1x64xf32, #tpu.memory_space<vmem>>, %arg78: memref<1x1x128xf32, #tpu.memory_space<vmem>>) attributes {dimension_semantics = [#tpu.dimension_semantics<parallel>], iteration_bounds = array<i64: 2>, scalar_prefetch = 0 : i64, scratch_operands = 0 : i64, tpu.core_type = #tpu.core_type<tc>, window_params = [{transform_indices = @transform_0, window_bounds = array<i64: 1, 8, 64>}, {transform_indices = @transform_1, window_bounds = array<i64: 1, 8, 64>}, {transform_indices = @transform_2, window_bounds = array<i64: 1, 1, 8>}, {transform_indices = @transform_3, window_bounds = array<i64: 1, 8, 1>}, {transform_indices = @transform_4, window_bounds = array<i64: 1, 1, 8>}, {transform_indices = @transform_5, window_bounds = array<i64: 1, 8, 1>}, {pipeline_mode = #tpu.pipeline_mode<synchronous>, transform_indices = @transform_6, window_bounds = array<i64: 64, 192>}, {pipeline_mode = #tpu.pipeline_mode<synchronous>, transform_indices = @transform_7, window_bounds = array<i64: 1, 192>}, {pipeline_mode = #tpu.pipeline_mode<synchronous>, transform_indices = @transform_8, window_bounds = array<i64: 64, 64>}, {pipeline_mode = #tpu.pipeline_mode<synchronous>, transform_indices = @transform_9, window_bounds = array<i64: 1, 64>}, {pipeline_mode = #tpu.pipeline_mode<synchronous>, transform_indices = @transform_10, window_bounds = array<i64: 1, 64>}, {pipeline_mode = #tpu.pipeline_mode<synchronous>, transform_indices = @transform_11, window_bounds = array<i64: 1, 64>}, {pipeline_mode = #tpu.pipeline_mode<synchronous>, transform_indices = @transform_12, window_bounds = array<i64: 64, 128>}, {pipeline_mode = #tpu.pipeline_mode<synchronous>, transform_indices = @transform_13, window_bounds = array<i64: 1, 128>}, {pipeline_mode = #tpu.pipeline_mode<synchronous>, transform_indices = @transform_14, window_bounds = array<i64: 128, 64>}, {pipeline_mode = #tpu.pipeline_mode<synchronous>, transform_indices = @transform_15, window_bounds = array<i64: 1, 64>}, {pipeline_mode = #tpu.pipeline_mode<synchronous>, transform_indices = @transform_16, window_bounds = array<i64: 1, 64>}, {pipeline_mode = #tpu.pipeline_mode<synchronous>, transform_indices = @transform_17, window_bounds = array<i64: 1, 64>}, {pipeline_mode = #tpu.pipeline_mode<synchronous>, transform_indices = @transform_18, window_bounds = array<i64: 64, 192>}, {pipeline_mode = #tpu.pipeline_mode<synchronous>, transform_indices = @transform_19, window_bounds = array<i64: 1, 192>}, {pipeline_mode = #tpu.pipeline_mode<synchronous>, transform_indices = @transform_20, window_bounds = array<i64: 64, 64>}, {pipeline_mode = #tpu.pipeline_mode<synchronous>, transform_indices = @transform_21, window_bounds = array<i64: 1, 64>}, {pipeline_mode = #tpu.pipeline_mode<synchronous>, transform_indices = @transform_22, window_bounds = array<i64: 1, 64>}, {pipeline_mode = #tpu.pipeline_mode<synchronous>, transform_indices = @transform_23, window_bounds = array<i64: 1, 64>}, {pipeline_mode = #tpu.pipeline_mode<synchronous>, transform_indices = @transform_24, window_bounds = array<i64: 64, 192>}, {pipeline_mode = #tpu.pipeline_mode<synchronous>, transform_indices = @transform_25, window_bounds = array<i64: 1, 192>}, {pipeline_mode = #tpu.pipeline_mode<synchronous>, transform_indices = @transform_26, window_bounds = array<i64: 64, 64>}, {pipeline_mode = #tpu.pipeline_mode<synchronous>, transform_indices = @transform_27, window_bounds = array<i64: 1, 64>}, {pipeline_mode = #tpu.pipeline_mode<synchronous>, transform_indices = @transform_28, window_bounds = array<i64: 1, 64>}, {pipeline_mode = #tpu.pipeline_mode<synchronous>, transform_indices = @transform_29, window_bounds = array<i64: 1, 64>}, {pipeline_mode = #tpu.pipeline_mode<synchronous>, transform_indices = @transform_30, window_bounds = array<i64: 64, 128>}, {pipeline_mode = #tpu.pipeline_mode<synchronous>, transform_indices = @transform_31, window_bounds = array<i64: 1, 128>}, {pipeline_mode = #tpu.pipeline_mode<synchronous>, transform_indices = @transform_32, window_bounds = array<i64: 128, 64>}, {pipeline_mode = #tpu.pipeline_mode<synchronous>, transform_indices = @transform_33, window_bounds = array<i64: 1, 64>}, {pipeline_mode = #tpu.pipeline_mode<synchronous>, transform_indices = @transform_34, window_bounds = array<i64: 1, 64>}, {pipeline_mode = #tpu.pipeline_mode<synchronous>, transform_indices = @transform_35, window_bounds = array<i64: 1, 64>}, {pipeline_mode = #tpu.pipeline_mode<synchronous>, transform_indices = @transform_36, window_bounds = array<i64: 64, 128>}, {pipeline_mode = #tpu.pipeline_mode<synchronous>, transform_indices = @transform_37, window_bounds = array<i64: 1, 128>}, {pipeline_mode = #tpu.pipeline_mode<synchronous>, transform_indices = @transform_38, window_bounds = array<i64: 128, 1>}, {pipeline_mode = #tpu.pipeline_mode<synchronous>, transform_indices = @transform_39, window_bounds = array<i64: 1, 1>}, {pipeline_mode = #tpu.pipeline_mode<synchronous>, transform_indices = @transform_40, window_bounds = array<i64: 64, 64>}, {pipeline_mode = #tpu.pipeline_mode<synchronous>, transform_indices = @transform_41, window_bounds = array<i64: 1, 64>}, {pipeline_mode = #tpu.pipeline_mode<synchronous>, transform_indices = @transform_42, window_bounds = array<i64: 64, 128>}, {pipeline_mode = #tpu.pipeline_mode<synchronous>, transform_indices = @transform_43, window_bounds = array<i64: 1, 128>}, {pipeline_mode = #tpu.pipeline_mode<synchronous>, transform_indices = @transform_44, window_bounds = array<i64: 128, 1>}, {pipeline_mode = #tpu.pipeline_mode<synchronous>, transform_indices = @transform_45, window_bounds = array<i64: 1, 1>}, {pipeline_mode = #tpu.pipeline_mode<synchronous>, transform_indices = @transform_46, window_bounds = array<i64: 64, 64>}, {pipeline_mode = #tpu.pipeline_mode<synchronous>, transform_indices = @transform_47, window_bounds = array<i64: 1, 64>}, {pipeline_mode = #tpu.pipeline_mode<synchronous>, transform_indices = @transform_48, window_bounds = array<i64: 64, 64>}, {pipeline_mode = #tpu.pipeline_mode<synchronous>, transform_indices = @transform_49, window_bounds = array<i64: 64, 64>}, {pipeline_mode = #tpu.pipeline_mode<synchronous>, transform_indices = @transform_50, window_bounds = array<i64: 1, 64>}, {pipeline_mode = #tpu.pipeline_mode<synchronous>, transform_indices = @transform_51, window_bounds = array<i64: 64, 128>}, {pipeline_mode = #tpu.pipeline_mode<synchronous>, transform_indices = @transform_52, window_bounds = array<i64: 1, 128>}, {pipeline_mode = #tpu.pipeline_mode<synchronous>, transform_indices = @transform_53, window_bounds = array<i64: 128, 1>}, {pipeline_mode = #tpu.pipeline_mode<synchronous>, transform_indices = @transform_54, window_bounds = array<i64: 1, 1>}, {pipeline_mode = #tpu.pipeline_mode<synchronous>, transform_indices = @transform_55, window_bounds = array<i64: 64, 128>}, {pipeline_mode = #tpu.pipeline_mode<synchronous>, transform_indices = @transform_56, window_bounds = array<i64: 1, 128>}, {pipeline_mode = #tpu.pipeline_mode<synchronous>, transform_indices = @transform_57, window_bounds = array<i64: 128, 64>}, {pipeline_mode = #tpu.pipeline_mode<synchronous>, transform_indices = @transform_58, window_bounds = array<i64: 1, 64>}, {pipeline_mode = #tpu.pipeline_mode<synchronous>, transform_indices = @transform_59, window_bounds = array<i64: 64, 128>}, {pipeline_mode = #tpu.pipeline_mode<synchronous>, transform_indices = @transform_60, window_bounds = array<i64: 1, 128>}, {pipeline_mode = #tpu.pipeline_mode<synchronous>, transform_indices = @transform_61, window_bounds = array<i64: 128, 64>}, {pipeline_mode = #tpu.pipeline_mode<synchronous>, transform_indices = @transform_62, window_bounds = array<i64: 1, 64>}, {pipeline_mode = #tpu.pipeline_mode<synchronous>, transform_indices = @transform_63, window_bounds = array<i64: 64, 128>}, {pipeline_mode = #tpu.pipeline_mode<synchronous>, transform_indices = @transform_64, window_bounds = array<i64: 1, 128>}, {pipeline_mode = #tpu.pipeline_mode<synchronous>, transform_indices = @transform_65, window_bounds = array<i64: 128, 64>}, {pipeline_mode = #tpu.pipeline_mode<synchronous>, transform_indices = @transform_66, window_bounds = array<i64: 1, 64>}, {pipeline_mode = #tpu.pipeline_mode<synchronous>, transform_indices = @transform_67, window_bounds = array<i64: 64, 128>}, {pipeline_mode = #tpu.pipeline_mode<synchronous>, transform_indices = @transform_68, window_bounds = array<i64: 1, 128>}, {pipeline_mode = #tpu.pipeline_mode<synchronous>, transform_indices = @transform_69, window_bounds = array<i64: 128, 1>}, {pipeline_mode = #tpu.pipeline_mode<synchronous>, transform_indices = @transform_70, window_bounds = array<i64: 1, 1>}, {pipeline_mode = #tpu.pipeline_mode<synchronous>, transform_indices = @transform_71, window_bounds = array<i64: 64, 128>}, {pipeline_mode = #tpu.pipeline_mode<synchronous>, transform_indices = @transform_72, window_bounds = array<i64: 1, 128>}, {pipeline_mode = #tpu.pipeline_mode<synchronous>, transform_indices = @transform_73, window_bounds = array<i64: 1, 128>}, {pipeline_mode = #tpu.pipeline_mode<synchronous>, transform_indices = @transform_74, window_bounds = array<i64: 1, 128>}, {pipeline_mode = #tpu.pipeline_mode<synchronous>, transform_indices = @transform_75, window_bounds = array<i64: 128, 64>}, {pipeline_mode = #tpu.pipeline_mode<synchronous>, transform_indices = @transform_76, window_bounds = array<i64: 1, 64>}, {transform_indices = @transform_77, window_bounds = array<i64: 1, 1, 128>}]} {
    %c0 = arith.constant 0 : index
    %c0_0 = arith.constant 0 : index
    %c0_1 = arith.constant 0 : index
    %0 = vector.load %arg1[%c0, %c0_0, %c0_1] : memref<1x8x64xf32, #tpu.memory_space<vmem>>, vector<1x8x64xf32>
    %1 = vector.shape_cast %0 : vector<1x8x64xf32> to vector<8x64xf32>
    %c0_2 = arith.constant 0 : index
    %c0_3 = arith.constant 0 : index
    %c0_4 = arith.constant 0 : index
    %2 = vector.load %arg2[%c0_2, %c0_3, %c0_4] : memref<1x8x64xf32, #tpu.memory_space<vmem>>, vector<1x8x64xf32>
    %3 = vector.shape_cast %2 : vector<1x8x64xf32> to vector<8x64xf32>
    %c0_5 = arith.constant 0 : index
    %c0_6 = arith.constant 0 : index
    %c0_7 = arith.constant 0 : index
    %4 = vector.load %arg4[%c0_5, %c0_6, %c0_7] : memref<1x8x1xf32, #tpu.memory_space<vmem>>, vector<1x8x1xf32>
    %5 = vector.shape_cast %4 : vector<1x8x1xf32> to vector<8x1xf32>
    %c0_8 = arith.constant 0 : index
    %c0_9 = arith.constant 0 : index
    %c0_10 = arith.constant 0 : index
    %6 = vector.load %arg3[%c0_8, %c0_9, %c0_10] : memref<1x1x8xf32, #tpu.memory_space<vmem>>, vector<1x1x8xf32>
    %7 = vector.shape_cast %6 : vector<1x1x8xf32> to vector<1x8xf32>
    %cst = arith.constant 5.000000e-01 : f32
    %8 = vector.broadcast %cst : f32 to vector<1x8xf32>
    %9 = arith.cmpf ogt, %7, %8 : vector<1x8xf32>
    %cst_11 = arith.constant -6.550400e+04 : f32
    %cst_12 = arith.constant 0.000000e+00 : f32
    %10 = vector.broadcast %cst_11 : f32 to vector<1x8xf32>
    %11 = vector.broadcast %cst_12 : f32 to vector<1x8xf32>
    %12 = arith.select %9, %10, %11 : vector<1x8xi1>, vector<1x8xf32>
    %c0_13 = arith.constant 0 : index
    %c0_14 = arith.constant 0 : index
    %c0_15 = arith.constant 0 : index
    %13 = vector.load %arg5[%c0_13, %c0_14, %c0_15] : memref<1x1x8xf32, #tpu.memory_space<vmem>>, vector<1x1x8xf32>
    %14 = vector.shape_cast %13 : vector<1x1x8xf32> to vector<1x8xf32>
    %cst_16 = arith.constant 5.000000e-01 : f32
    %15 = vector.broadcast %cst_16 : f32 to vector<1x8xf32>
    %16 = arith.cmpf ogt, %14, %15 : vector<1x8xf32>
    %cst_17 = arith.constant -6.550400e+04 : f32
    %cst_18 = arith.constant 0.000000e+00 : f32
    %17 = vector.broadcast %cst_17 : f32 to vector<1x8xf32>
    %18 = vector.broadcast %cst_18 : f32 to vector<1x8xf32>
    %19 = arith.select %16, %17, %18 : vector<1x8xi1>, vector<1x8xf32>
    %cst_19 = arith.constant 5.000000e-01 : f32
    %20 = vector.broadcast %cst_19 : f32 to vector<8x1xf32>
    %21 = arith.cmpf ogt, %5, %20 : vector<8x1xf32>
    %cst_20 = arith.constant -6.550400e+04 : f32
    %cst_21 = arith.constant 0.000000e+00 : f32
    %22 = vector.broadcast %cst_20 : f32 to vector<8x1xf32>
    %23 = vector.broadcast %cst_21 : f32 to vector<8x1xf32>
    %24 = arith.select %21, %22, %23 : vector<8x1xi1>, vector<8x1xf32>
    %c0_22 = arith.constant 0 : index
    %c0_23 = arith.constant 0 : index
    %c0_24 = arith.constant 0 : index
    %25 = vector.load %arg6[%c0_22, %c0_23, %c0_24] : memref<1x8x1xf32, #tpu.memory_space<vmem>>, vector<1x8x1xf32>
    %26 = vector.shape_cast %25 : vector<1x8x1xf32> to vector<8x1xf32>
    %cst_25 = arith.constant 5.000000e-01 : f32
    %27 = vector.broadcast %cst_25 : f32 to vector<8x1xf32>
    %28 = arith.cmpf ogt, %26, %27 : vector<8x1xf32>
    %cst_26 = arith.constant -6.550400e+04 : f32
    %cst_27 = arith.constant 0.000000e+00 : f32
    %29 = vector.broadcast %cst_26 : f32 to vector<8x1xf32>
    %30 = vector.broadcast %cst_27 : f32 to vector<8x1xf32>
    %31 = arith.select %28, %29, %30 : vector<8x1xi1>, vector<8x1xf32>
    %c0_28 = arith.constant 0 : index
    %c0_29 = arith.constant 0 : index
    %32 = vector.load %arg7[%c0_28, %c0_29] : memref<64x192xbf16, #tpu.memory_space<vmem>>, vector<64x192xbf16>
    %c0_30 = arith.constant 0 : index
    %c0_31 = arith.constant 0 : index
    %33 = vector.load %arg8[%c0_30, %c0_31] : memref<1x192xf32, #tpu.memory_space<vmem>>, vector<1x192xf32>
    %34 = arith.truncf %3 : vector<8x64xf32> to vector<8x64xbf16>
    %cst_32 = arith.constant dense<0.000000e+00> : vector<8x192xf32>
    %35 = tpu.matmul %34, %32, %cst_32 {dimension_numbers = #tpu.dot_dimension_numbers<[1], [0], [0], [1], [0, 0, 1, 1], [], []>} : vector<8x64xbf16>, vector<64x192xbf16>, vector<8x192xf32> -> vector<8x192xf32>
    %36 = vector.broadcast %33 : vector<1x192xf32> to vector<8x192xf32>
    %37 = arith.addf %35, %36 : vector<8x192xf32>
    %38 = vector.extract_strided_slice %37 {offsets = [0, 0], sizes = [8, 64], strides = [1, 1]} : vector<8x192xf32> to vector<8x64xf32>
    %39 = vector.extract_strided_slice %37 {offsets = [0, 64], sizes = [8, 64], strides = [1, 1]} : vector<8x192xf32> to vector<8x64xf32>
    %40 = vector.extract_strided_slice %37 {offsets = [0, 128], sizes = [8, 64], strides = [1, 1]} : vector<8x192xf32> to vector<8x64xf32>
    %41 = arith.truncf %38 : vector<8x64xf32> to vector<8x64xbf16>
    %42 = arith.truncf %39 : vector<8x64xf32> to vector<8x64xbf16>
    %43 = arith.truncf %40 : vector<8x64xf32> to vector<8x64xbf16>
    %44 = vector.extract_strided_slice %41 {offsets = [0, 0], sizes = [8, 8], strides = [1, 1]} : vector<8x64xbf16> to vector<8x8xbf16>
    %45 = vector.extract_strided_slice %42 {offsets = [0, 0], sizes = [8, 8], strides = [1, 1]} : vector<8x64xbf16> to vector<8x8xbf16>
    %cst_33 = arith.constant dense<0.000000e+00> : vector<8x8xf32>
    %46 = tpu.matmul %44, %45, %cst_33 {dimension_numbers = #tpu.dot_dimension_numbers<[1], [1], [0], [0], [0, 0, 1, 0], [], []>} : vector<8x8xbf16>, vector<8x8xbf16>, vector<8x8xf32> -> vector<8x8xf32>
    %cst_34 = arith.constant 0.353553385 : f32
    %47 = vector.broadcast %cst_34 : f32 to vector<8x8xf32>
    %48 = arith.mulf %46, %47 : vector<8x8xf32>
    %49 = vector.broadcast %19 : vector<1x8xf32> to vector<8x8xf32>
    %50 = arith.addf %48, %49 : vector<8x8xf32>
    %cst_35 = arith.constant dense<0xFF800000> : vector<8xf32>
    %51 = vector.multi_reduction <maximumf>, %50, %cst_35 [1] : vector<8x8xf32> to vector<8xf32>
    %52 = vector.shape_cast %51 : vector<8xf32> to vector<8x1xf32>
    %53 = vector.broadcast %52 : vector<8x1xf32> to vector<8x8xf32>
    %54 = arith.subf %50, %53 : vector<8x8xf32>
    %55 = math.exp %54 : vector<8x8xf32>
    %cst_36 = arith.constant dense<0.000000e+00> : vector<8xf32>
    %56 = vector.multi_reduction <add>, %55, %cst_36 [1] : vector<8x8xf32> to vector<8xf32>
    %57 = vector.shape_cast %56 : vector<8xf32> to vector<8x1xf32>
    %58 = tpu.reciprocal %57 {approx = true} : vector<8x1xf32> -> vector<8x1xf32>
    %59 = vector.broadcast %58 : vector<8x1xf32> to vector<8x8xf32>
    %60 = arith.mulf %55, %59 : vector<8x8xf32>
    %61 = arith.truncf %60 : vector<8x8xf32> to vector<8x8xbf16>
    %62 = vector.extract_strided_slice %43 {offsets = [0, 0], sizes = [8, 8], strides = [1, 1]} : vector<8x64xbf16> to vector<8x8xbf16>
    %cst_37 = arith.constant dense<0.000000e+00> : vector<8x8xf32>
    %63 = tpu.matmul %61, %62, %cst_37 {dimension_numbers = #tpu.dot_dimension_numbers<[1], [0], [0], [1], [0, 0, 1, 1], [], []>} : vector<8x8xbf16>, vector<8x8xbf16>, vector<8x8xf32> -> vector<8x8xf32>
    %64 = vector.extract_strided_slice %41 {offsets = [0, 8], sizes = [8, 8], strides = [1, 1]} : vector<8x64xbf16> to vector<8x8xbf16>
    %65 = vector.extract_strided_slice %42 {offsets = [0, 8], sizes = [8, 8], strides = [1, 1]} : vector<8x64xbf16> to vector<8x8xbf16>
    %cst_38 = arith.constant dense<0.000000e+00> : vector<8x8xf32>
    %66 = tpu.matmul %64, %65, %cst_38 {dimension_numbers = #tpu.dot_dimension_numbers<[1], [1], [0], [0], [0, 0, 1, 0], [], []>} : vector<8x8xbf16>, vector<8x8xbf16>, vector<8x8xf32> -> vector<8x8xf32>
    %cst_39 = arith.constant 0.353553385 : f32
    %67 = vector.broadcast %cst_39 : f32 to vector<8x8xf32>
    %68 = arith.mulf %66, %67 : vector<8x8xf32>
    %69 = vector.broadcast %19 : vector<1x8xf32> to vector<8x8xf32>
    %70 = arith.addf %68, %69 : vector<8x8xf32>
    %cst_40 = arith.constant dense<0xFF800000> : vector<8xf32>
    %71 = vector.multi_reduction <maximumf>, %70, %cst_40 [1] : vector<8x8xf32> to vector<8xf32>
    %72 = vector.shape_cast %71 : vector<8xf32> to vector<8x1xf32>
    %73 = vector.broadcast %72 : vector<8x1xf32> to vector<8x8xf32>
    %74 = arith.subf %70, %73 : vector<8x8xf32>
    %75 = math.exp %74 : vector<8x8xf32>
    %cst_41 = arith.constant dense<0.000000e+00> : vector<8xf32>
    %76 = vector.multi_reduction <add>, %75, %cst_41 [1] : vector<8x8xf32> to vector<8xf32>
    %77 = vector.shape_cast %76 : vector<8xf32> to vector<8x1xf32>
    %78 = tpu.reciprocal %77 {approx = true} : vector<8x1xf32> -> vector<8x1xf32>
    %79 = vector.broadcast %78 : vector<8x1xf32> to vector<8x8xf32>
    %80 = arith.mulf %75, %79 : vector<8x8xf32>
    %81 = arith.truncf %80 : vector<8x8xf32> to vector<8x8xbf16>
    %82 = vector.extract_strided_slice %43 {offsets = [0, 8], sizes = [8, 8], strides = [1, 1]} : vector<8x64xbf16> to vector<8x8xbf16>
    %cst_42 = arith.constant dense<0.000000e+00> : vector<8x8xf32>
    %83 = tpu.matmul %81, %82, %cst_42 {dimension_numbers = #tpu.dot_dimension_numbers<[1], [0], [0], [1], [0, 0, 1, 1], [], []>} : vector<8x8xbf16>, vector<8x8xbf16>, vector<8x8xf32> -> vector<8x8xf32>
    %84 = vector.extract_strided_slice %41 {offsets = [0, 16], sizes = [8, 8], strides = [1, 1]} : vector<8x64xbf16> to vector<8x8xbf16>
    %85 = vector.extract_strided_slice %42 {offsets = [0, 16], sizes = [8, 8], strides = [1, 1]} : vector<8x64xbf16> to vector<8x8xbf16>
    %cst_43 = arith.constant dense<0.000000e+00> : vector<8x8xf32>
    %86 = tpu.matmul %84, %85, %cst_43 {dimension_numbers = #tpu.dot_dimension_numbers<[1], [1], [0], [0], [0, 0, 1, 0], [], []>} : vector<8x8xbf16>, vector<8x8xbf16>, vector<8x8xf32> -> vector<8x8xf32>
    %cst_44 = arith.constant 0.353553385 : f32
    %87 = vector.broadcast %cst_44 : f32 to vector<8x8xf32>
    %88 = arith.mulf %86, %87 : vector<8x8xf32>
    %89 = vector.broadcast %19 : vector<1x8xf32> to vector<8x8xf32>
    %90 = arith.addf %88, %89 : vector<8x8xf32>
    %cst_45 = arith.constant dense<0xFF800000> : vector<8xf32>
    %91 = vector.multi_reduction <maximumf>, %90, %cst_45 [1] : vector<8x8xf32> to vector<8xf32>
    %92 = vector.shape_cast %91 : vector<8xf32> to vector<8x1xf32>
    %93 = vector.broadcast %92 : vector<8x1xf32> to vector<8x8xf32>
    %94 = arith.subf %90, %93 : vector<8x8xf32>
    %95 = math.exp %94 : vector<8x8xf32>
    %cst_46 = arith.constant dense<0.000000e+00> : vector<8xf32>
    %96 = vector.multi_reduction <add>, %95, %cst_46 [1] : vector<8x8xf32> to vector<8xf32>
    %97 = vector.shape_cast %96 : vector<8xf32> to vector<8x1xf32>
    %98 = tpu.reciprocal %97 {approx = true} : vector<8x1xf32> -> vector<8x1xf32>
    %99 = vector.broadcast %98 : vector<8x1xf32> to vector<8x8xf32>
    %100 = arith.mulf %95, %99 : vector<8x8xf32>
    %101 = arith.truncf %100 : vector<8x8xf32> to vector<8x8xbf16>
    %102 = vector.extract_strided_slice %43 {offsets = [0, 16], sizes = [8, 8], strides = [1, 1]} : vector<8x64xbf16> to vector<8x8xbf16>
    %cst_47 = arith.constant dense<0.000000e+00> : vector<8x8xf32>
    %103 = tpu.matmul %101, %102, %cst_47 {dimension_numbers = #tpu.dot_dimension_numbers<[1], [0], [0], [1], [0, 0, 1, 1], [], []>} : vector<8x8xbf16>, vector<8x8xbf16>, vector<8x8xf32> -> vector<8x8xf32>
    %104 = vector.extract_strided_slice %41 {offsets = [0, 24], sizes = [8, 8], strides = [1, 1]} : vector<8x64xbf16> to vector<8x8xbf16>
    %105 = vector.extract_strided_slice %42 {offsets = [0, 24], sizes = [8, 8], strides = [1, 1]} : vector<8x64xbf16> to vector<8x8xbf16>
    %cst_48 = arith.constant dense<0.000000e+00> : vector<8x8xf32>
    %106 = tpu.matmul %104, %105, %cst_48 {dimension_numbers = #tpu.dot_dimension_numbers<[1], [1], [0], [0], [0, 0, 1, 0], [], []>} : vector<8x8xbf16>, vector<8x8xbf16>, vector<8x8xf32> -> vector<8x8xf32>
    %cst_49 = arith.constant 0.353553385 : f32
    %107 = vector.broadcast %cst_49 : f32 to vector<8x8xf32>
    %108 = arith.mulf %106, %107 : vector<8x8xf32>
    %109 = vector.broadcast %19 : vector<1x8xf32> to vector<8x8xf32>
    %110 = arith.addf %108, %109 : vector<8x8xf32>
    %cst_50 = arith.constant dense<0xFF800000> : vector<8xf32>
    %111 = vector.multi_reduction <maximumf>, %110, %cst_50 [1] : vector<8x8xf32> to vector<8xf32>
    %112 = vector.shape_cast %111 : vector<8xf32> to vector<8x1xf32>
    %113 = vector.broadcast %112 : vector<8x1xf32> to vector<8x8xf32>
    %114 = arith.subf %110, %113 : vector<8x8xf32>
    %115 = math.exp %114 : vector<8x8xf32>
    %cst_51 = arith.constant dense<0.000000e+00> : vector<8xf32>
    %116 = vector.multi_reduction <add>, %115, %cst_51 [1] : vector<8x8xf32> to vector<8xf32>
    %117 = vector.shape_cast %116 : vector<8xf32> to vector<8x1xf32>
    %118 = tpu.reciprocal %117 {approx = true} : vector<8x1xf32> -> vector<8x1xf32>
    %119 = vector.broadcast %118 : vector<8x1xf32> to vector<8x8xf32>
    %120 = arith.mulf %115, %119 : vector<8x8xf32>
    %121 = arith.truncf %120 : vector<8x8xf32> to vector<8x8xbf16>
    %122 = vector.extract_strided_slice %43 {offsets = [0, 24], sizes = [8, 8], strides = [1, 1]} : vector<8x64xbf16> to vector<8x8xbf16>
    %cst_52 = arith.constant dense<0.000000e+00> : vector<8x8xf32>
    %123 = tpu.matmul %121, %122, %cst_52 {dimension_numbers = #tpu.dot_dimension_numbers<[1], [0], [0], [1], [0, 0, 1, 1], [], []>} : vector<8x8xbf16>, vector<8x8xbf16>, vector<8x8xf32> -> vector<8x8xf32>
    %124 = vector.extract_strided_slice %41 {offsets = [0, 32], sizes = [8, 8], strides = [1, 1]} : vector<8x64xbf16> to vector<8x8xbf16>
    %125 = vector.extract_strided_slice %42 {offsets = [0, 32], sizes = [8, 8], strides = [1, 1]} : vector<8x64xbf16> to vector<8x8xbf16>
    %cst_53 = arith.constant dense<0.000000e+00> : vector<8x8xf32>
    %126 = tpu.matmul %124, %125, %cst_53 {dimension_numbers = #tpu.dot_dimension_numbers<[1], [1], [0], [0], [0, 0, 1, 0], [], []>} : vector<8x8xbf16>, vector<8x8xbf16>, vector<8x8xf32> -> vector<8x8xf32>
    %cst_54 = arith.constant 0.353553385 : f32
    %127 = vector.broadcast %cst_54 : f32 to vector<8x8xf32>
    %128 = arith.mulf %126, %127 : vector<8x8xf32>
    %129 = vector.broadcast %19 : vector<1x8xf32> to vector<8x8xf32>
    %130 = arith.addf %128, %129 : vector<8x8xf32>
    %cst_55 = arith.constant dense<0xFF800000> : vector<8xf32>
    %131 = vector.multi_reduction <maximumf>, %130, %cst_55 [1] : vector<8x8xf32> to vector<8xf32>
    %132 = vector.shape_cast %131 : vector<8xf32> to vector<8x1xf32>
    %133 = vector.broadcast %132 : vector<8x1xf32> to vector<8x8xf32>
    %134 = arith.subf %130, %133 : vector<8x8xf32>
    %135 = math.exp %134 : vector<8x8xf32>
    %cst_56 = arith.constant dense<0.000000e+00> : vector<8xf32>
    %136 = vector.multi_reduction <add>, %135, %cst_56 [1] : vector<8x8xf32> to vector<8xf32>
    %137 = vector.shape_cast %136 : vector<8xf32> to vector<8x1xf32>
    %138 = tpu.reciprocal %137 {approx = true} : vector<8x1xf32> -> vector<8x1xf32>
    %139 = vector.broadcast %138 : vector<8x1xf32> to vector<8x8xf32>
    %140 = arith.mulf %135, %139 : vector<8x8xf32>
    %141 = arith.truncf %140 : vector<8x8xf32> to vector<8x8xbf16>
    %142 = vector.extract_strided_slice %43 {offsets = [0, 32], sizes = [8, 8], strides = [1, 1]} : vector<8x64xbf16> to vector<8x8xbf16>
    %cst_57 = arith.constant dense<0.000000e+00> : vector<8x8xf32>
    %143 = tpu.matmul %141, %142, %cst_57 {dimension_numbers = #tpu.dot_dimension_numbers<[1], [0], [0], [1], [0, 0, 1, 1], [], []>} : vector<8x8xbf16>, vector<8x8xbf16>, vector<8x8xf32> -> vector<8x8xf32>
    %144 = vector.extract_strided_slice %41 {offsets = [0, 40], sizes = [8, 8], strides = [1, 1]} : vector<8x64xbf16> to vector<8x8xbf16>
    %145 = vector.extract_strided_slice %42 {offsets = [0, 40], sizes = [8, 8], strides = [1, 1]} : vector<8x64xbf16> to vector<8x8xbf16>
    %cst_58 = arith.constant dense<0.000000e+00> : vector<8x8xf32>
    %146 = tpu.matmul %144, %145, %cst_58 {dimension_numbers = #tpu.dot_dimension_numbers<[1], [1], [0], [0], [0, 0, 1, 0], [], []>} : vector<8x8xbf16>, vector<8x8xbf16>, vector<8x8xf32> -> vector<8x8xf32>
    %cst_59 = arith.constant 0.353553385 : f32
    %147 = vector.broadcast %cst_59 : f32 to vector<8x8xf32>
    %148 = arith.mulf %146, %147 : vector<8x8xf32>
    %149 = vector.broadcast %19 : vector<1x8xf32> to vector<8x8xf32>
    %150 = arith.addf %148, %149 : vector<8x8xf32>
    %cst_60 = arith.constant dense<0xFF800000> : vector<8xf32>
    %151 = vector.multi_reduction <maximumf>, %150, %cst_60 [1] : vector<8x8xf32> to vector<8xf32>
    %152 = vector.shape_cast %151 : vector<8xf32> to vector<8x1xf32>
    %153 = vector.broadcast %152 : vector<8x1xf32> to vector<8x8xf32>
    %154 = arith.subf %150, %153 : vector<8x8xf32>
    %155 = math.exp %154 : vector<8x8xf32>
    %cst_61 = arith.constant dense<0.000000e+00> : vector<8xf32>
    %156 = vector.multi_reduction <add>, %155, %cst_61 [1] : vector<8x8xf32> to vector<8xf32>
    %157 = vector.shape_cast %156 : vector<8xf32> to vector<8x1xf32>
    %158 = tpu.reciprocal %157 {approx = true} : vector<8x1xf32> -> vector<8x1xf32>
    %159 = vector.broadcast %158 : vector<8x1xf32> to vector<8x8xf32>
    %160 = arith.mulf %155, %159 : vector<8x8xf32>
    %161 = arith.truncf %160 : vector<8x8xf32> to vector<8x8xbf16>
    %162 = vector.extract_strided_slice %43 {offsets = [0, 40], sizes = [8, 8], strides = [1, 1]} : vector<8x64xbf16> to vector<8x8xbf16>
    %cst_62 = arith.constant dense<0.000000e+00> : vector<8x8xf32>
    %163 = tpu.matmul %161, %162, %cst_62 {dimension_numbers = #tpu.dot_dimension_numbers<[1], [0], [0], [1], [0, 0, 1, 1], [], []>} : vector<8x8xbf16>, vector<8x8xbf16>, vector<8x8xf32> -> vector<8x8xf32>
    %164 = vector.extract_strided_slice %41 {offsets = [0, 48], sizes = [8, 8], strides = [1, 1]} : vector<8x64xbf16> to vector<8x8xbf16>
    %165 = vector.extract_strided_slice %42 {offsets = [0, 48], sizes = [8, 8], strides = [1, 1]} : vector<8x64xbf16> to vector<8x8xbf16>
    %cst_63 = arith.constant dense<0.000000e+00> : vector<8x8xf32>
    %166 = tpu.matmul %164, %165, %cst_63 {dimension_numbers = #tpu.dot_dimension_numbers<[1], [1], [0], [0], [0, 0, 1, 0], [], []>} : vector<8x8xbf16>, vector<8x8xbf16>, vector<8x8xf32> -> vector<8x8xf32>
    %cst_64 = arith.constant 0.353553385 : f32
    %167 = vector.broadcast %cst_64 : f32 to vector<8x8xf32>
    %168 = arith.mulf %166, %167 : vector<8x8xf32>
    %169 = vector.broadcast %19 : vector<1x8xf32> to vector<8x8xf32>
    %170 = arith.addf %168, %169 : vector<8x8xf32>
    %cst_65 = arith.constant dense<0xFF800000> : vector<8xf32>
    %171 = vector.multi_reduction <maximumf>, %170, %cst_65 [1] : vector<8x8xf32> to vector<8xf32>
    %172 = vector.shape_cast %171 : vector<8xf32> to vector<8x1xf32>
    %173 = vector.broadcast %172 : vector<8x1xf32> to vector<8x8xf32>
    %174 = arith.subf %170, %173 : vector<8x8xf32>
    %175 = math.exp %174 : vector<8x8xf32>
    %cst_66 = arith.constant dense<0.000000e+00> : vector<8xf32>
    %176 = vector.multi_reduction <add>, %175, %cst_66 [1] : vector<8x8xf32> to vector<8xf32>
    %177 = vector.shape_cast %176 : vector<8xf32> to vector<8x1xf32>
    %178 = tpu.reciprocal %177 {approx = true} : vector<8x1xf32> -> vector<8x1xf32>
    %179 = vector.broadcast %178 : vector<8x1xf32> to vector<8x8xf32>
    %180 = arith.mulf %175, %179 : vector<8x8xf32>
    %181 = arith.truncf %180 : vector<8x8xf32> to vector<8x8xbf16>
    %182 = vector.extract_strided_slice %43 {offsets = [0, 48], sizes = [8, 8], strides = [1, 1]} : vector<8x64xbf16> to vector<8x8xbf16>
    %cst_67 = arith.constant dense<0.000000e+00> : vector<8x8xf32>
    %183 = tpu.matmul %181, %182, %cst_67 {dimension_numbers = #tpu.dot_dimension_numbers<[1], [0], [0], [1], [0, 0, 1, 1], [], []>} : vector<8x8xbf16>, vector<8x8xbf16>, vector<8x8xf32> -> vector<8x8xf32>
    %184 = vector.extract_strided_slice %41 {offsets = [0, 56], sizes = [8, 8], strides = [1, 1]} : vector<8x64xbf16> to vector<8x8xbf16>
    %185 = vector.extract_strided_slice %42 {offsets = [0, 56], sizes = [8, 8], strides = [1, 1]} : vector<8x64xbf16> to vector<8x8xbf16>
    %cst_68 = arith.constant dense<0.000000e+00> : vector<8x8xf32>
    %186 = tpu.matmul %184, %185, %cst_68 {dimension_numbers = #tpu.dot_dimension_numbers<[1], [1], [0], [0], [0, 0, 1, 0], [], []>} : vector<8x8xbf16>, vector<8x8xbf16>, vector<8x8xf32> -> vector<8x8xf32>
    %cst_69 = arith.constant 0.353553385 : f32
    %187 = vector.broadcast %cst_69 : f32 to vector<8x8xf32>
    %188 = arith.mulf %186, %187 : vector<8x8xf32>
    %189 = vector.broadcast %19 : vector<1x8xf32> to vector<8x8xf32>
    %190 = arith.addf %188, %189 : vector<8x8xf32>
    %cst_70 = arith.constant dense<0xFF800000> : vector<8xf32>
    %191 = vector.multi_reduction <maximumf>, %190, %cst_70 [1] : vector<8x8xf32> to vector<8xf32>
    %192 = vector.shape_cast %191 : vector<8xf32> to vector<8x1xf32>
    %193 = vector.broadcast %192 : vector<8x1xf32> to vector<8x8xf32>
    %194 = arith.subf %190, %193 : vector<8x8xf32>
    %195 = math.exp %194 : vector<8x8xf32>
    %cst_71 = arith.constant dense<0.000000e+00> : vector<8xf32>
    %196 = vector.multi_reduction <add>, %195, %cst_71 [1] : vector<8x8xf32> to vector<8xf32>
    %197 = vector.shape_cast %196 : vector<8xf32> to vector<8x1xf32>
    %198 = tpu.reciprocal %197 {approx = true} : vector<8x1xf32> -> vector<8x1xf32>
    %199 = vector.broadcast %198 : vector<8x1xf32> to vector<8x8xf32>
    %200 = arith.mulf %195, %199 : vector<8x8xf32>
    %201 = arith.truncf %200 : vector<8x8xf32> to vector<8x8xbf16>
    %202 = vector.extract_strided_slice %43 {offsets = [0, 56], sizes = [8, 8], strides = [1, 1]} : vector<8x64xbf16> to vector<8x8xbf16>
    %cst_72 = arith.constant dense<0.000000e+00> : vector<8x8xf32>
    %203 = tpu.matmul %201, %202, %cst_72 {dimension_numbers = #tpu.dot_dimension_numbers<[1], [0], [0], [1], [0, 0, 1, 1], [], []>} : vector<8x8xbf16>, vector<8x8xbf16>, vector<8x8xf32> -> vector<8x8xf32>
    %204 = tpu.concatenate %63, %83, %103, %123, %143, %163, %183, %203 in 1 : vector<8x8xf32>, vector<8x8xf32>, vector<8x8xf32>, vector<8x8xf32>, vector<8x8xf32>, vector<8x8xf32>, vector<8x8xf32>, vector<8x8xf32> -> vector<8x64xf32>
    %205 = arith.truncf %204 : vector<8x64xf32> to vector<8x64xbf16>
    %c0_73 = arith.constant 0 : index
    %c0_74 = arith.constant 0 : index
    %206 = vector.load %arg9[%c0_73, %c0_74] : memref<64x64xbf16, #tpu.memory_space<vmem>>, vector<64x64xbf16>
    %cst_75 = arith.constant dense<0.000000e+00> : vector<8x64xf32>
    %207 = tpu.matmul %205, %206, %cst_75 {dimension_numbers = #tpu.dot_dimension_numbers<[1], [0], [0], [1], [0, 0, 1, 1], [], []>} : vector<8x64xbf16>, vector<64x64xbf16>, vector<8x64xf32> -> vector<8x64xf32>
    %c0_76 = arith.constant 0 : index
    %c0_77 = arith.constant 0 : index
    %208 = vector.load %arg10[%c0_76, %c0_77] : memref<1x64xf32, #tpu.memory_space<vmem>>, vector<1x64xf32>
    %209 = vector.broadcast %208 : vector<1x64xf32> to vector<8x64xf32>
    %210 = arith.addf %207, %209 : vector<8x64xf32>
    %211 = arith.addf %3, %210 : vector<8x64xf32>
    %cst_78 = arith.constant dense<0.000000e+00> : vector<8xf32>
    %212 = vector.multi_reduction <add>, %211, %cst_78 [1] : vector<8x64xf32> to vector<8xf32>
    %213 = vector.shape_cast %212 : vector<8xf32> to vector<8x1xf32>
    %cst_79 = arith.constant 6.400000e+01 : f32
    %214 = vector.broadcast %cst_79 : f32 to vector<8x1xf32>
    %215 = arith.divf %213, %214 : vector<8x1xf32>
    %216 = vector.broadcast %215 : vector<8x1xf32> to vector<8x64xf32>
    %217 = arith.subf %211, %216 : vector<8x64xf32>
    %218 = arith.mulf %217, %217 : vector<8x64xf32>
    %cst_80 = arith.constant dense<0.000000e+00> : vector<8xf32>
    %219 = vector.multi_reduction <add>, %218, %cst_80 [1] : vector<8x64xf32> to vector<8xf32>
    %220 = vector.shape_cast %219 : vector<8xf32> to vector<8x1xf32>
    %cst_81 = arith.constant 6.400000e+01 : f32
    %221 = vector.broadcast %cst_81 : f32 to vector<8x1xf32>
    %222 = arith.divf %220, %221 : vector<8x1xf32>
    %223 = vector.broadcast %215 : vector<8x1xf32> to vector<8x64xf32>
    %224 = arith.subf %211, %223 : vector<8x64xf32>
    %cst_82 = arith.constant 9.99999974E-6 : f32
    %225 = vector.broadcast %cst_82 : f32 to vector<8x1xf32>
    %226 = arith.addf %222, %225 : vector<8x1xf32>
    %227 = math.rsqrt %226 : vector<8x1xf32>
    %228 = vector.broadcast %227 : vector<8x1xf32> to vector<8x64xf32>
    %229 = arith.mulf %224, %228 : vector<8x64xf32>
    %c0_83 = arith.constant 0 : index
    %c0_84 = arith.constant 0 : index
    %230 = vector.load %arg11[%c0_83, %c0_84] : memref<1x64xf32, #tpu.memory_space<vmem>>, vector<1x64xf32>
    %231 = vector.broadcast %230 : vector<1x64xf32> to vector<8x64xf32>
    %232 = arith.mulf %229, %231 : vector<8x64xf32>
    %c0_85 = arith.constant 0 : index
    %c0_86 = arith.constant 0 : index
    %233 = vector.load %arg12[%c0_85, %c0_86] : memref<1x64xf32, #tpu.memory_space<vmem>>, vector<1x64xf32>
    %234 = vector.broadcast %233 : vector<1x64xf32> to vector<8x64xf32>
    %235 = arith.addf %232, %234 : vector<8x64xf32>
    %236 = arith.truncf %235 : vector<8x64xf32> to vector<8x64xbf16>
    %c0_87 = arith.constant 0 : index
    %c0_88 = arith.constant 0 : index
    %237 = vector.load %arg13[%c0_87, %c0_88] : memref<64x128xbf16, #tpu.memory_space<vmem>>, vector<64x128xbf16>
    %cst_89 = arith.constant dense<0.000000e+00> : vector<8x128xf32>
    %238 = tpu.matmul %236, %237, %cst_89 {dimension_numbers = #tpu.dot_dimension_numbers<[1], [0], [0], [1], [0, 0, 1, 1], [], []>} : vector<8x64xbf16>, vector<64x128xbf16>, vector<8x128xf32> -> vector<8x128xf32>
    %c0_90 = arith.constant 0 : index
    %c0_91 = arith.constant 0 : index
    %239 = vector.load %arg14[%c0_90, %c0_91] : memref<1x128xf32, #tpu.memory_space<vmem>>, vector<1x128xf32>
    %240 = vector.broadcast %239 : vector<1x128xf32> to vector<8x128xf32>
    %241 = arith.addf %238, %240 : vector<8x128xf32>
    %cst_92 = arith.constant 0.000000e+00 : f32
    %242 = vector.broadcast %cst_92 : f32 to vector<8x128xf32>
    %243 = arith.maximumf %241, %242 : vector<8x128xf32>
    %244 = arith.truncf %243 : vector<8x128xf32> to vector<8x128xbf16>
    %c0_93 = arith.constant 0 : index
    %c0_94 = arith.constant 0 : index
    %245 = vector.load %arg15[%c0_93, %c0_94] : memref<128x64xbf16, #tpu.memory_space<vmem>>, vector<128x64xbf16>
    %cst_95 = arith.constant dense<0.000000e+00> : vector<8x64xf32>
    %246 = tpu.matmul %244, %245, %cst_95 {dimension_numbers = #tpu.dot_dimension_numbers<[1], [0], [0], [1], [0, 0, 1, 1], [], []>} : vector<8x128xbf16>, vector<128x64xbf16>, vector<8x64xf32> -> vector<8x64xf32>
    %c0_96 = arith.constant 0 : index
    %c0_97 = arith.constant 0 : index
    %247 = vector.load %arg16[%c0_96, %c0_97] : memref<1x64xf32, #tpu.memory_space<vmem>>, vector<1x64xf32>
    %248 = vector.broadcast %247 : vector<1x64xf32> to vector<8x64xf32>
    %249 = arith.addf %246, %248 : vector<8x64xf32>
    %250 = arith.addf %235, %249 : vector<8x64xf32>
    %cst_98 = arith.constant dense<0.000000e+00> : vector<8xf32>
    %251 = vector.multi_reduction <add>, %250, %cst_98 [1] : vector<8x64xf32> to vector<8xf32>
    %252 = vector.shape_cast %251 : vector<8xf32> to vector<8x1xf32>
    %cst_99 = arith.constant 6.400000e+01 : f32
    %253 = vector.broadcast %cst_99 : f32 to vector<8x1xf32>
    %254 = arith.divf %252, %253 : vector<8x1xf32>
    %255 = vector.broadcast %254 : vector<8x1xf32> to vector<8x64xf32>
    %256 = arith.subf %250, %255 : vector<8x64xf32>
    %257 = arith.mulf %256, %256 : vector<8x64xf32>
    %cst_100 = arith.constant dense<0.000000e+00> : vector<8xf32>
    %258 = vector.multi_reduction <add>, %257, %cst_100 [1] : vector<8x64xf32> to vector<8xf32>
    %259 = vector.shape_cast %258 : vector<8xf32> to vector<8x1xf32>
    %cst_101 = arith.constant 6.400000e+01 : f32
    %260 = vector.broadcast %cst_101 : f32 to vector<8x1xf32>
    %261 = arith.divf %259, %260 : vector<8x1xf32>
    %262 = vector.broadcast %254 : vector<8x1xf32> to vector<8x64xf32>
    %263 = arith.subf %250, %262 : vector<8x64xf32>
    %cst_102 = arith.constant 9.99999974E-6 : f32
    %264 = vector.broadcast %cst_102 : f32 to vector<8x1xf32>
    %265 = arith.addf %261, %264 : vector<8x1xf32>
    %266 = math.rsqrt %265 : vector<8x1xf32>
    %267 = vector.broadcast %266 : vector<8x1xf32> to vector<8x64xf32>
    %268 = arith.mulf %263, %267 : vector<8x64xf32>
    %c0_103 = arith.constant 0 : index
    %c0_104 = arith.constant 0 : index
    %269 = vector.load %arg17[%c0_103, %c0_104] : memref<1x64xf32, #tpu.memory_space<vmem>>, vector<1x64xf32>
    %270 = vector.broadcast %269 : vector<1x64xf32> to vector<8x64xf32>
    %271 = arith.mulf %268, %270 : vector<8x64xf32>
    %c0_105 = arith.constant 0 : index
    %c0_106 = arith.constant 0 : index
    %272 = vector.load %arg18[%c0_105, %c0_106] : memref<1x64xf32, #tpu.memory_space<vmem>>, vector<1x64xf32>
    %273 = vector.broadcast %272 : vector<1x64xf32> to vector<8x64xf32>
    %274 = arith.addf %271, %273 : vector<8x64xf32>
    %c0_107 = arith.constant 0 : index
    %c0_108 = arith.constant 0 : index
    %275 = vector.load %arg19[%c0_107, %c0_108] : memref<64x192xbf16, #tpu.memory_space<vmem>>, vector<64x192xbf16>
    %c0_109 = arith.constant 0 : index
    %c0_110 = arith.constant 0 : index
    %276 = vector.load %arg20[%c0_109, %c0_110] : memref<1x192xf32, #tpu.memory_space<vmem>>, vector<1x192xf32>
    %277 = arith.truncf %1 : vector<8x64xf32> to vector<8x64xbf16>
    %cst_111 = arith.constant dense<0.000000e+00> : vector<8x192xf32>
    %278 = tpu.matmul %277, %275, %cst_111 {dimension_numbers = #tpu.dot_dimension_numbers<[1], [0], [0], [1], [0, 0, 1, 1], [], []>} : vector<8x64xbf16>, vector<64x192xbf16>, vector<8x192xf32> -> vector<8x192xf32>
    %279 = vector.broadcast %276 : vector<1x192xf32> to vector<8x192xf32>
    %280 = arith.addf %278, %279 : vector<8x192xf32>
    %281 = vector.extract_strided_slice %280 {offsets = [0, 0], sizes = [8, 64], strides = [1, 1]} : vector<8x192xf32> to vector<8x64xf32>
    %282 = vector.extract_strided_slice %280 {offsets = [0, 64], sizes = [8, 64], strides = [1, 1]} : vector<8x192xf32> to vector<8x64xf32>
    %283 = vector.extract_strided_slice %280 {offsets = [0, 128], sizes = [8, 64], strides = [1, 1]} : vector<8x192xf32> to vector<8x64xf32>
    %284 = arith.truncf %281 : vector<8x64xf32> to vector<8x64xbf16>
    %285 = arith.truncf %282 : vector<8x64xf32> to vector<8x64xbf16>
    %286 = arith.truncf %283 : vector<8x64xf32> to vector<8x64xbf16>
    %287 = vector.extract_strided_slice %284 {offsets = [0, 0], sizes = [8, 8], strides = [1, 1]} : vector<8x64xbf16> to vector<8x8xbf16>
    %288 = vector.extract_strided_slice %285 {offsets = [0, 0], sizes = [8, 8], strides = [1, 1]} : vector<8x64xbf16> to vector<8x8xbf16>
    %cst_112 = arith.constant dense<0.000000e+00> : vector<8x8xf32>
    %289 = tpu.matmul %287, %288, %cst_112 {dimension_numbers = #tpu.dot_dimension_numbers<[1], [1], [0], [0], [0, 0, 1, 0], [], []>} : vector<8x8xbf16>, vector<8x8xbf16>, vector<8x8xf32> -> vector<8x8xf32>
    %cst_113 = arith.constant 0.353553385 : f32
    %290 = vector.broadcast %cst_113 : f32 to vector<8x8xf32>
    %291 = arith.mulf %289, %290 : vector<8x8xf32>
    %292 = vector.broadcast %12 : vector<1x8xf32> to vector<8x8xf32>
    %293 = arith.addf %291, %292 : vector<8x8xf32>
    %cst_114 = arith.constant dense<0xFF800000> : vector<8xf32>
    %294 = vector.multi_reduction <maximumf>, %293, %cst_114 [1] : vector<8x8xf32> to vector<8xf32>
    %295 = vector.shape_cast %294 : vector<8xf32> to vector<8x1xf32>
    %296 = vector.broadcast %295 : vector<8x1xf32> to vector<8x8xf32>
    %297 = arith.subf %293, %296 : vector<8x8xf32>
    %298 = math.exp %297 : vector<8x8xf32>
    %cst_115 = arith.constant dense<0.000000e+00> : vector<8xf32>
    %299 = vector.multi_reduction <add>, %298, %cst_115 [1] : vector<8x8xf32> to vector<8xf32>
    %300 = vector.shape_cast %299 : vector<8xf32> to vector<8x1xf32>
    %301 = tpu.reciprocal %300 {approx = true} : vector<8x1xf32> -> vector<8x1xf32>
    %302 = vector.broadcast %301 : vector<8x1xf32> to vector<8x8xf32>
    %303 = arith.mulf %298, %302 : vector<8x8xf32>
    %304 = arith.truncf %303 : vector<8x8xf32> to vector<8x8xbf16>
    %305 = vector.extract_strided_slice %286 {offsets = [0, 0], sizes = [8, 8], strides = [1, 1]} : vector<8x64xbf16> to vector<8x8xbf16>
    %cst_116 = arith.constant dense<0.000000e+00> : vector<8x8xf32>
    %306 = tpu.matmul %304, %305, %cst_116 {dimension_numbers = #tpu.dot_dimension_numbers<[1], [0], [0], [1], [0, 0, 1, 1], [], []>} : vector<8x8xbf16>, vector<8x8xbf16>, vector<8x8xf32> -> vector<8x8xf32>
    %307 = vector.extract_strided_slice %284 {offsets = [0, 8], sizes = [8, 8], strides = [1, 1]} : vector<8x64xbf16> to vector<8x8xbf16>
    %308 = vector.extract_strided_slice %285 {offsets = [0, 8], sizes = [8, 8], strides = [1, 1]} : vector<8x64xbf16> to vector<8x8xbf16>
    %cst_117 = arith.constant dense<0.000000e+00> : vector<8x8xf32>
    %309 = tpu.matmul %307, %308, %cst_117 {dimension_numbers = #tpu.dot_dimension_numbers<[1], [1], [0], [0], [0, 0, 1, 0], [], []>} : vector<8x8xbf16>, vector<8x8xbf16>, vector<8x8xf32> -> vector<8x8xf32>
    %cst_118 = arith.constant 0.353553385 : f32
    %310 = vector.broadcast %cst_118 : f32 to vector<8x8xf32>
    %311 = arith.mulf %309, %310 : vector<8x8xf32>
    %312 = vector.broadcast %12 : vector<1x8xf32> to vector<8x8xf32>
    %313 = arith.addf %311, %312 : vector<8x8xf32>
    %cst_119 = arith.constant dense<0xFF800000> : vector<8xf32>
    %314 = vector.multi_reduction <maximumf>, %313, %cst_119 [1] : vector<8x8xf32> to vector<8xf32>
    %315 = vector.shape_cast %314 : vector<8xf32> to vector<8x1xf32>
    %316 = vector.broadcast %315 : vector<8x1xf32> to vector<8x8xf32>
    %317 = arith.subf %313, %316 : vector<8x8xf32>
    %318 = math.exp %317 : vector<8x8xf32>
    %cst_120 = arith.constant dense<0.000000e+00> : vector<8xf32>
    %319 = vector.multi_reduction <add>, %318, %cst_120 [1] : vector<8x8xf32> to vector<8xf32>
    %320 = vector.shape_cast %319 : vector<8xf32> to vector<8x1xf32>
    %321 = tpu.reciprocal %320 {approx = true} : vector<8x1xf32> -> vector<8x1xf32>
    %322 = vector.broadcast %321 : vector<8x1xf32> to vector<8x8xf32>
    %323 = arith.mulf %318, %322 : vector<8x8xf32>
    %324 = arith.truncf %323 : vector<8x8xf32> to vector<8x8xbf16>
    %325 = vector.extract_strided_slice %286 {offsets = [0, 8], sizes = [8, 8], strides = [1, 1]} : vector<8x64xbf16> to vector<8x8xbf16>
    %cst_121 = arith.constant dense<0.000000e+00> : vector<8x8xf32>
    %326 = tpu.matmul %324, %325, %cst_121 {dimension_numbers = #tpu.dot_dimension_numbers<[1], [0], [0], [1], [0, 0, 1, 1], [], []>} : vector<8x8xbf16>, vector<8x8xbf16>, vector<8x8xf32> -> vector<8x8xf32>
    %327 = vector.extract_strided_slice %284 {offsets = [0, 16], sizes = [8, 8], strides = [1, 1]} : vector<8x64xbf16> to vector<8x8xbf16>
    %328 = vector.extract_strided_slice %285 {offsets = [0, 16], sizes = [8, 8], strides = [1, 1]} : vector<8x64xbf16> to vector<8x8xbf16>
    %cst_122 = arith.constant dense<0.000000e+00> : vector<8x8xf32>
    %329 = tpu.matmul %327, %328, %cst_122 {dimension_numbers = #tpu.dot_dimension_numbers<[1], [1], [0], [0], [0, 0, 1, 0], [], []>} : vector<8x8xbf16>, vector<8x8xbf16>, vector<8x8xf32> -> vector<8x8xf32>
    %cst_123 = arith.constant 0.353553385 : f32
    %330 = vector.broadcast %cst_123 : f32 to vector<8x8xf32>
    %331 = arith.mulf %329, %330 : vector<8x8xf32>
    %332 = vector.broadcast %12 : vector<1x8xf32> to vector<8x8xf32>
    %333 = arith.addf %331, %332 : vector<8x8xf32>
    %cst_124 = arith.constant dense<0xFF800000> : vector<8xf32>
    %334 = vector.multi_reduction <maximumf>, %333, %cst_124 [1] : vector<8x8xf32> to vector<8xf32>
    %335 = vector.shape_cast %334 : vector<8xf32> to vector<8x1xf32>
    %336 = vector.broadcast %335 : vector<8x1xf32> to vector<8x8xf32>
    %337 = arith.subf %333, %336 : vector<8x8xf32>
    %338 = math.exp %337 : vector<8x8xf32>
    %cst_125 = arith.constant dense<0.000000e+00> : vector<8xf32>
    %339 = vector.multi_reduction <add>, %338, %cst_125 [1] : vector<8x8xf32> to vector<8xf32>
    %340 = vector.shape_cast %339 : vector<8xf32> to vector<8x1xf32>
    %341 = tpu.reciprocal %340 {approx = true} : vector<8x1xf32> -> vector<8x1xf32>
    %342 = vector.broadcast %341 : vector<8x1xf32> to vector<8x8xf32>
    %343 = arith.mulf %338, %342 : vector<8x8xf32>
    %344 = arith.truncf %343 : vector<8x8xf32> to vector<8x8xbf16>
    %345 = vector.extract_strided_slice %286 {offsets = [0, 16], sizes = [8, 8], strides = [1, 1]} : vector<8x64xbf16> to vector<8x8xbf16>
    %cst_126 = arith.constant dense<0.000000e+00> : vector<8x8xf32>
    %346 = tpu.matmul %344, %345, %cst_126 {dimension_numbers = #tpu.dot_dimension_numbers<[1], [0], [0], [1], [0, 0, 1, 1], [], []>} : vector<8x8xbf16>, vector<8x8xbf16>, vector<8x8xf32> -> vector<8x8xf32>
    %347 = vector.extract_strided_slice %284 {offsets = [0, 24], sizes = [8, 8], strides = [1, 1]} : vector<8x64xbf16> to vector<8x8xbf16>
    %348 = vector.extract_strided_slice %285 {offsets = [0, 24], sizes = [8, 8], strides = [1, 1]} : vector<8x64xbf16> to vector<8x8xbf16>
    %cst_127 = arith.constant dense<0.000000e+00> : vector<8x8xf32>
    %349 = tpu.matmul %347, %348, %cst_127 {dimension_numbers = #tpu.dot_dimension_numbers<[1], [1], [0], [0], [0, 0, 1, 0], [], []>} : vector<8x8xbf16>, vector<8x8xbf16>, vector<8x8xf32> -> vector<8x8xf32>
    %cst_128 = arith.constant 0.353553385 : f32
    %350 = vector.broadcast %cst_128 : f32 to vector<8x8xf32>
    %351 = arith.mulf %349, %350 : vector<8x8xf32>
    %352 = vector.broadcast %12 : vector<1x8xf32> to vector<8x8xf32>
    %353 = arith.addf %351, %352 : vector<8x8xf32>
    %cst_129 = arith.constant dense<0xFF800000> : vector<8xf32>
    %354 = vector.multi_reduction <maximumf>, %353, %cst_129 [1] : vector<8x8xf32> to vector<8xf32>
    %355 = vector.shape_cast %354 : vector<8xf32> to vector<8x1xf32>
    %356 = vector.broadcast %355 : vector<8x1xf32> to vector<8x8xf32>
    %357 = arith.subf %353, %356 : vector<8x8xf32>
    %358 = math.exp %357 : vector<8x8xf32>
    %cst_130 = arith.constant dense<0.000000e+00> : vector<8xf32>
    %359 = vector.multi_reduction <add>, %358, %cst_130 [1] : vector<8x8xf32> to vector<8xf32>
    %360 = vector.shape_cast %359 : vector<8xf32> to vector<8x1xf32>
    %361 = tpu.reciprocal %360 {approx = true} : vector<8x1xf32> -> vector<8x1xf32>
    %362 = vector.broadcast %361 : vector<8x1xf32> to vector<8x8xf32>
    %363 = arith.mulf %358, %362 : vector<8x8xf32>
    %364 = arith.truncf %363 : vector<8x8xf32> to vector<8x8xbf16>
    %365 = vector.extract_strided_slice %286 {offsets = [0, 24], sizes = [8, 8], strides = [1, 1]} : vector<8x64xbf16> to vector<8x8xbf16>
    %cst_131 = arith.constant dense<0.000000e+00> : vector<8x8xf32>
    %366 = tpu.matmul %364, %365, %cst_131 {dimension_numbers = #tpu.dot_dimension_numbers<[1], [0], [0], [1], [0, 0, 1, 1], [], []>} : vector<8x8xbf16>, vector<8x8xbf16>, vector<8x8xf32> -> vector<8x8xf32>
    %367 = vector.extract_strided_slice %284 {offsets = [0, 32], sizes = [8, 8], strides = [1, 1]} : vector<8x64xbf16> to vector<8x8xbf16>
    %368 = vector.extract_strided_slice %285 {offsets = [0, 32], sizes = [8, 8], strides = [1, 1]} : vector<8x64xbf16> to vector<8x8xbf16>
    %cst_132 = arith.constant dense<0.000000e+00> : vector<8x8xf32>
    %369 = tpu.matmul %367, %368, %cst_132 {dimension_numbers = #tpu.dot_dimension_numbers<[1], [1], [0], [0], [0, 0, 1, 0], [], []>} : vector<8x8xbf16>, vector<8x8xbf16>, vector<8x8xf32> -> vector<8x8xf32>
    %cst_133 = arith.constant 0.353553385 : f32
    %370 = vector.broadcast %cst_133 : f32 to vector<8x8xf32>
    %371 = arith.mulf %369, %370 : vector<8x8xf32>
    %372 = vector.broadcast %12 : vector<1x8xf32> to vector<8x8xf32>
    %373 = arith.addf %371, %372 : vector<8x8xf32>
    %cst_134 = arith.constant dense<0xFF800000> : vector<8xf32>
    %374 = vector.multi_reduction <maximumf>, %373, %cst_134 [1] : vector<8x8xf32> to vector<8xf32>
    %375 = vector.shape_cast %374 : vector<8xf32> to vector<8x1xf32>
    %376 = vector.broadcast %375 : vector<8x1xf32> to vector<8x8xf32>
    %377 = arith.subf %373, %376 : vector<8x8xf32>
    %378 = math.exp %377 : vector<8x8xf32>
    %cst_135 = arith.constant dense<0.000000e+00> : vector<8xf32>
    %379 = vector.multi_reduction <add>, %378, %cst_135 [1] : vector<8x8xf32> to vector<8xf32>
    %380 = vector.shape_cast %379 : vector<8xf32> to vector<8x1xf32>
    %381 = tpu.reciprocal %380 {approx = true} : vector<8x1xf32> -> vector<8x1xf32>
    %382 = vector.broadcast %381 : vector<8x1xf32> to vector<8x8xf32>
    %383 = arith.mulf %378, %382 : vector<8x8xf32>
    %384 = arith.truncf %383 : vector<8x8xf32> to vector<8x8xbf16>
    %385 = vector.extract_strided_slice %286 {offsets = [0, 32], sizes = [8, 8], strides = [1, 1]} : vector<8x64xbf16> to vector<8x8xbf16>
    %cst_136 = arith.constant dense<0.000000e+00> : vector<8x8xf32>
    %386 = tpu.matmul %384, %385, %cst_136 {dimension_numbers = #tpu.dot_dimension_numbers<[1], [0], [0], [1], [0, 0, 1, 1], [], []>} : vector<8x8xbf16>, vector<8x8xbf16>, vector<8x8xf32> -> vector<8x8xf32>
    %387 = vector.extract_strided_slice %284 {offsets = [0, 40], sizes = [8, 8], strides = [1, 1]} : vector<8x64xbf16> to vector<8x8xbf16>
    %388 = vector.extract_strided_slice %285 {offsets = [0, 40], sizes = [8, 8], strides = [1, 1]} : vector<8x64xbf16> to vector<8x8xbf16>
    %cst_137 = arith.constant dense<0.000000e+00> : vector<8x8xf32>
    %389 = tpu.matmul %387, %388, %cst_137 {dimension_numbers = #tpu.dot_dimension_numbers<[1], [1], [0], [0], [0, 0, 1, 0], [], []>} : vector<8x8xbf16>, vector<8x8xbf16>, vector<8x8xf32> -> vector<8x8xf32>
    %cst_138 = arith.constant 0.353553385 : f32
    %390 = vector.broadcast %cst_138 : f32 to vector<8x8xf32>
    %391 = arith.mulf %389, %390 : vector<8x8xf32>
    %392 = vector.broadcast %12 : vector<1x8xf32> to vector<8x8xf32>
    %393 = arith.addf %391, %392 : vector<8x8xf32>
    %cst_139 = arith.constant dense<0xFF800000> : vector<8xf32>
    %394 = vector.multi_reduction <maximumf>, %393, %cst_139 [1] : vector<8x8xf32> to vector<8xf32>
    %395 = vector.shape_cast %394 : vector<8xf32> to vector<8x1xf32>
    %396 = vector.broadcast %395 : vector<8x1xf32> to vector<8x8xf32>
    %397 = arith.subf %393, %396 : vector<8x8xf32>
    %398 = math.exp %397 : vector<8x8xf32>
    %cst_140 = arith.constant dense<0.000000e+00> : vector<8xf32>
    %399 = vector.multi_reduction <add>, %398, %cst_140 [1] : vector<8x8xf32> to vector<8xf32>
    %400 = vector.shape_cast %399 : vector<8xf32> to vector<8x1xf32>
    %401 = tpu.reciprocal %400 {approx = true} : vector<8x1xf32> -> vector<8x1xf32>
    %402 = vector.broadcast %401 : vector<8x1xf32> to vector<8x8xf32>
    %403 = arith.mulf %398, %402 : vector<8x8xf32>
    %404 = arith.truncf %403 : vector<8x8xf32> to vector<8x8xbf16>
    %405 = vector.extract_strided_slice %286 {offsets = [0, 40], sizes = [8, 8], strides = [1, 1]} : vector<8x64xbf16> to vector<8x8xbf16>
    %cst_141 = arith.constant dense<0.000000e+00> : vector<8x8xf32>
    %406 = tpu.matmul %404, %405, %cst_141 {dimension_numbers = #tpu.dot_dimension_numbers<[1], [0], [0], [1], [0, 0, 1, 1], [], []>} : vector<8x8xbf16>, vector<8x8xbf16>, vector<8x8xf32> -> vector<8x8xf32>
    %407 = vector.extract_strided_slice %284 {offsets = [0, 48], sizes = [8, 8], strides = [1, 1]} : vector<8x64xbf16> to vector<8x8xbf16>
    %408 = vector.extract_strided_slice %285 {offsets = [0, 48], sizes = [8, 8], strides = [1, 1]} : vector<8x64xbf16> to vector<8x8xbf16>
    %cst_142 = arith.constant dense<0.000000e+00> : vector<8x8xf32>
    %409 = tpu.matmul %407, %408, %cst_142 {dimension_numbers = #tpu.dot_dimension_numbers<[1], [1], [0], [0], [0, 0, 1, 0], [], []>} : vector<8x8xbf16>, vector<8x8xbf16>, vector<8x8xf32> -> vector<8x8xf32>
    %cst_143 = arith.constant 0.353553385 : f32
    %410 = vector.broadcast %cst_143 : f32 to vector<8x8xf32>
    %411 = arith.mulf %409, %410 : vector<8x8xf32>
    %412 = vector.broadcast %12 : vector<1x8xf32> to vector<8x8xf32>
    %413 = arith.addf %411, %412 : vector<8x8xf32>
    %cst_144 = arith.constant dense<0xFF800000> : vector<8xf32>
    %414 = vector.multi_reduction <maximumf>, %413, %cst_144 [1] : vector<8x8xf32> to vector<8xf32>
    %415 = vector.shape_cast %414 : vector<8xf32> to vector<8x1xf32>
    %416 = vector.broadcast %415 : vector<8x1xf32> to vector<8x8xf32>
    %417 = arith.subf %413, %416 : vector<8x8xf32>
    %418 = math.exp %417 : vector<8x8xf32>
    %cst_145 = arith.constant dense<0.000000e+00> : vector<8xf32>
    %419 = vector.multi_reduction <add>, %418, %cst_145 [1] : vector<8x8xf32> to vector<8xf32>
    %420 = vector.shape_cast %419 : vector<8xf32> to vector<8x1xf32>
    %421 = tpu.reciprocal %420 {approx = true} : vector<8x1xf32> -> vector<8x1xf32>
    %422 = vector.broadcast %421 : vector<8x1xf32> to vector<8x8xf32>
    %423 = arith.mulf %418, %422 : vector<8x8xf32>
    %424 = arith.truncf %423 : vector<8x8xf32> to vector<8x8xbf16>
    %425 = vector.extract_strided_slice %286 {offsets = [0, 48], sizes = [8, 8], strides = [1, 1]} : vector<8x64xbf16> to vector<8x8xbf16>
    %cst_146 = arith.constant dense<0.000000e+00> : vector<8x8xf32>
    %426 = tpu.matmul %424, %425, %cst_146 {dimension_numbers = #tpu.dot_dimension_numbers<[1], [0], [0], [1], [0, 0, 1, 1], [], []>} : vector<8x8xbf16>, vector<8x8xbf16>, vector<8x8xf32> -> vector<8x8xf32>
    %427 = vector.extract_strided_slice %284 {offsets = [0, 56], sizes = [8, 8], strides = [1, 1]} : vector<8x64xbf16> to vector<8x8xbf16>
    %428 = vector.extract_strided_slice %285 {offsets = [0, 56], sizes = [8, 8], strides = [1, 1]} : vector<8x64xbf16> to vector<8x8xbf16>
    %cst_147 = arith.constant dense<0.000000e+00> : vector<8x8xf32>
    %429 = tpu.matmul %427, %428, %cst_147 {dimension_numbers = #tpu.dot_dimension_numbers<[1], [1], [0], [0], [0, 0, 1, 0], [], []>} : vector<8x8xbf16>, vector<8x8xbf16>, vector<8x8xf32> -> vector<8x8xf32>
    %cst_148 = arith.constant 0.353553385 : f32
    %430 = vector.broadcast %cst_148 : f32 to vector<8x8xf32>
    %431 = arith.mulf %429, %430 : vector<8x8xf32>
    %432 = vector.broadcast %12 : vector<1x8xf32> to vector<8x8xf32>
    %433 = arith.addf %431, %432 : vector<8x8xf32>
    %cst_149 = arith.constant dense<0xFF800000> : vector<8xf32>
    %434 = vector.multi_reduction <maximumf>, %433, %cst_149 [1] : vector<8x8xf32> to vector<8xf32>
    %435 = vector.shape_cast %434 : vector<8xf32> to vector<8x1xf32>
    %436 = vector.broadcast %435 : vector<8x1xf32> to vector<8x8xf32>
    %437 = arith.subf %433, %436 : vector<8x8xf32>
    %438 = math.exp %437 : vector<8x8xf32>
    %cst_150 = arith.constant dense<0.000000e+00> : vector<8xf32>
    %439 = vector.multi_reduction <add>, %438, %cst_150 [1] : vector<8x8xf32> to vector<8xf32>
    %440 = vector.shape_cast %439 : vector<8xf32> to vector<8x1xf32>
    %441 = tpu.reciprocal %440 {approx = true} : vector<8x1xf32> -> vector<8x1xf32>
    %442 = vector.broadcast %441 : vector<8x1xf32> to vector<8x8xf32>
    %443 = arith.mulf %438, %442 : vector<8x8xf32>
    %444 = arith.truncf %443 : vector<8x8xf32> to vector<8x8xbf16>
    %445 = vector.extract_strided_slice %286 {offsets = [0, 56], sizes = [8, 8], strides = [1, 1]} : vector<8x64xbf16> to vector<8x8xbf16>
    %cst_151 = arith.constant dense<0.000000e+00> : vector<8x8xf32>
    %446 = tpu.matmul %444, %445, %cst_151 {dimension_numbers = #tpu.dot_dimension_numbers<[1], [0], [0], [1], [0, 0, 1, 1], [], []>} : vector<8x8xbf16>, vector<8x8xbf16>, vector<8x8xf32> -> vector<8x8xf32>
    %447 = tpu.concatenate %306, %326, %346, %366, %386, %406, %426, %446 in 1 : vector<8x8xf32>, vector<8x8xf32>, vector<8x8xf32>, vector<8x8xf32>, vector<8x8xf32>, vector<8x8xf32>, vector<8x8xf32>, vector<8x8xf32> -> vector<8x64xf32>
    %448 = arith.truncf %447 : vector<8x64xf32> to vector<8x64xbf16>
    %c0_152 = arith.constant 0 : index
    %c0_153 = arith.constant 0 : index
    %449 = vector.load %arg21[%c0_152, %c0_153] : memref<64x64xbf16, #tpu.memory_space<vmem>>, vector<64x64xbf16>
    %cst_154 = arith.constant dense<0.000000e+00> : vector<8x64xf32>
    %450 = tpu.matmul %448, %449, %cst_154 {dimension_numbers = #tpu.dot_dimension_numbers<[1], [0], [0], [1], [0, 0, 1, 1], [], []>} : vector<8x64xbf16>, vector<64x64xbf16>, vector<8x64xf32> -> vector<8x64xf32>
    %c0_155 = arith.constant 0 : index
    %c0_156 = arith.constant 0 : index
    %451 = vector.load %arg22[%c0_155, %c0_156] : memref<1x64xf32, #tpu.memory_space<vmem>>, vector<1x64xf32>
    %452 = vector.broadcast %451 : vector<1x64xf32> to vector<8x64xf32>
    %453 = arith.addf %450, %452 : vector<8x64xf32>
    %454 = arith.addf %1, %453 : vector<8x64xf32>
    %cst_157 = arith.constant dense<0.000000e+00> : vector<8xf32>
    %455 = vector.multi_reduction <add>, %454, %cst_157 [1] : vector<8x64xf32> to vector<8xf32>
    %456 = vector.shape_cast %455 : vector<8xf32> to vector<8x1xf32>
    %cst_158 = arith.constant 6.400000e+01 : f32
    %457 = vector.broadcast %cst_158 : f32 to vector<8x1xf32>
    %458 = arith.divf %456, %457 : vector<8x1xf32>
    %459 = vector.broadcast %458 : vector<8x1xf32> to vector<8x64xf32>
    %460 = arith.subf %454, %459 : vector<8x64xf32>
    %461 = arith.mulf %460, %460 : vector<8x64xf32>
    %cst_159 = arith.constant dense<0.000000e+00> : vector<8xf32>
    %462 = vector.multi_reduction <add>, %461, %cst_159 [1] : vector<8x64xf32> to vector<8xf32>
    %463 = vector.shape_cast %462 : vector<8xf32> to vector<8x1xf32>
    %cst_160 = arith.constant 6.400000e+01 : f32
    %464 = vector.broadcast %cst_160 : f32 to vector<8x1xf32>
    %465 = arith.divf %463, %464 : vector<8x1xf32>
    %466 = vector.broadcast %458 : vector<8x1xf32> to vector<8x64xf32>
    %467 = arith.subf %454, %466 : vector<8x64xf32>
    %cst_161 = arith.constant 9.99999974E-6 : f32
    %468 = vector.broadcast %cst_161 : f32 to vector<8x1xf32>
    %469 = arith.addf %465, %468 : vector<8x1xf32>
    %470 = math.rsqrt %469 : vector<8x1xf32>
    %471 = vector.broadcast %470 : vector<8x1xf32> to vector<8x64xf32>
    %472 = arith.mulf %467, %471 : vector<8x64xf32>
    %c0_162 = arith.constant 0 : index
    %c0_163 = arith.constant 0 : index
    %473 = vector.load %arg23[%c0_162, %c0_163] : memref<1x64xf32, #tpu.memory_space<vmem>>, vector<1x64xf32>
    %474 = vector.broadcast %473 : vector<1x64xf32> to vector<8x64xf32>
    %475 = arith.mulf %472, %474 : vector<8x64xf32>
    %c0_164 = arith.constant 0 : index
    %c0_165 = arith.constant 0 : index
    %476 = vector.load %arg24[%c0_164, %c0_165] : memref<1x64xf32, #tpu.memory_space<vmem>>, vector<1x64xf32>
    %477 = vector.broadcast %476 : vector<1x64xf32> to vector<8x64xf32>
    %478 = arith.addf %475, %477 : vector<8x64xf32>
    %c0_166 = arith.constant 0 : index
    %c0_167 = arith.constant 0 : index
    %479 = vector.load %arg25[%c0_166, %c0_167] : memref<64x192xbf16, #tpu.memory_space<vmem>>, vector<64x192xbf16>
    %c0_168 = arith.constant 0 : index
    %c0_169 = arith.constant 0 : index
    %480 = vector.load %arg26[%c0_168, %c0_169] : memref<1x192xf32, #tpu.memory_space<vmem>>, vector<1x192xf32>
    %481 = arith.truncf %478 : vector<8x64xf32> to vector<8x64xbf16>
    %482 = vector.extract_strided_slice %479 {offsets = [0, 0], sizes = [64, 64], strides = [1, 1]} : vector<64x192xbf16> to vector<64x64xbf16>
    %cst_170 = arith.constant dense<0.000000e+00> : vector<8x64xf32>
    %483 = tpu.matmul %481, %482, %cst_170 {dimension_numbers = #tpu.dot_dimension_numbers<[1], [0], [0], [1], [0, 0, 1, 1], [], []>} : vector<8x64xbf16>, vector<64x64xbf16>, vector<8x64xf32> -> vector<8x64xf32>
    %484 = vector.extract_strided_slice %480 {offsets = [0, 0], sizes = [1, 64], strides = [1, 1]} : vector<1x192xf32> to vector<1x64xf32>
    %485 = vector.broadcast %484 : vector<1x64xf32> to vector<8x64xf32>
    %486 = arith.addf %483, %485 : vector<8x64xf32>
    %487 = arith.truncf %274 : vector<8x64xf32> to vector<8x64xbf16>
    %488 = vector.extract_strided_slice %479 {offsets = [0, 64], sizes = [64, 128], strides = [1, 1]} : vector<64x192xbf16> to vector<64x128xbf16>
    %cst_171 = arith.constant dense<0.000000e+00> : vector<8x128xf32>
    %489 = tpu.matmul %487, %488, %cst_171 {dimension_numbers = #tpu.dot_dimension_numbers<[1], [0], [0], [1], [0, 0, 1, 1], [], []>} : vector<8x64xbf16>, vector<64x128xbf16>, vector<8x128xf32> -> vector<8x128xf32>
    %490 = vector.extract_strided_slice %480 {offsets = [0, 64], sizes = [1, 128], strides = [1, 1]} : vector<1x192xf32> to vector<1x128xf32>
    %491 = vector.broadcast %490 : vector<1x128xf32> to vector<8x128xf32>
    %492 = arith.addf %489, %491 : vector<8x128xf32>
    %493 = vector.extract_strided_slice %492 {offsets = [0, 0], sizes = [8, 64], strides = [1, 1]} : vector<8x128xf32> to vector<8x64xf32>
    %494 = vector.extract_strided_slice %492 {offsets = [0, 64], sizes = [8, 64], strides = [1, 1]} : vector<8x128xf32> to vector<8x64xf32>
    %495 = arith.truncf %486 : vector<8x64xf32> to vector<8x64xbf16>
    %496 = arith.truncf %493 : vector<8x64xf32> to vector<8x64xbf16>
    %497 = arith.truncf %494 : vector<8x64xf32> to vector<8x64xbf16>
    %498 = vector.extract_strided_slice %495 {offsets = [0, 0], sizes = [8, 8], strides = [1, 1]} : vector<8x64xbf16> to vector<8x8xbf16>
    %499 = vector.extract_strided_slice %496 {offsets = [0, 0], sizes = [8, 8], strides = [1, 1]} : vector<8x64xbf16> to vector<8x8xbf16>
    %cst_172 = arith.constant dense<0.000000e+00> : vector<8x8xf32>
    %500 = tpu.matmul %498, %499, %cst_172 {dimension_numbers = #tpu.dot_dimension_numbers<[1], [1], [0], [0], [0, 0, 1, 0], [], []>} : vector<8x8xbf16>, vector<8x8xbf16>, vector<8x8xf32> -> vector<8x8xf32>
    %cst_173 = arith.constant 0.353553385 : f32
    %501 = vector.broadcast %cst_173 : f32 to vector<8x8xf32>
    %502 = arith.mulf %500, %501 : vector<8x8xf32>
    %503 = vector.broadcast %19 : vector<1x8xf32> to vector<8x8xf32>
    %504 = arith.addf %502, %503 : vector<8x8xf32>
    %cst_174 = arith.constant dense<0xFF800000> : vector<8xf32>
    %505 = vector.multi_reduction <maximumf>, %504, %cst_174 [1] : vector<8x8xf32> to vector<8xf32>
    %506 = vector.shape_cast %505 : vector<8xf32> to vector<8x1xf32>
    %507 = vector.broadcast %506 : vector<8x1xf32> to vector<8x8xf32>
    %508 = arith.subf %504, %507 : vector<8x8xf32>
    %509 = math.exp %508 : vector<8x8xf32>
    %cst_175 = arith.constant dense<0.000000e+00> : vector<8xf32>
    %510 = vector.multi_reduction <add>, %509, %cst_175 [1] : vector<8x8xf32> to vector<8xf32>
    %511 = vector.shape_cast %510 : vector<8xf32> to vector<8x1xf32>
    %512 = tpu.reciprocal %511 {approx = true} : vector<8x1xf32> -> vector<8x1xf32>
    %513 = vector.broadcast %512 : vector<8x1xf32> to vector<8x8xf32>
    %514 = arith.mulf %509, %513 : vector<8x8xf32>
    %515 = arith.truncf %514 : vector<8x8xf32> to vector<8x8xbf16>
    %516 = vector.extract_strided_slice %497 {offsets = [0, 0], sizes = [8, 8], strides = [1, 1]} : vector<8x64xbf16> to vector<8x8xbf16>
    %cst_176 = arith.constant dense<0.000000e+00> : vector<8x8xf32>
    %517 = tpu.matmul %515, %516, %cst_176 {dimension_numbers = #tpu.dot_dimension_numbers<[1], [0], [0], [1], [0, 0, 1, 1], [], []>} : vector<8x8xbf16>, vector<8x8xbf16>, vector<8x8xf32> -> vector<8x8xf32>
    %518 = vector.extract_strided_slice %495 {offsets = [0, 8], sizes = [8, 8], strides = [1, 1]} : vector<8x64xbf16> to vector<8x8xbf16>
    %519 = vector.extract_strided_slice %496 {offsets = [0, 8], sizes = [8, 8], strides = [1, 1]} : vector<8x64xbf16> to vector<8x8xbf16>
    %cst_177 = arith.constant dense<0.000000e+00> : vector<8x8xf32>
    %520 = tpu.matmul %518, %519, %cst_177 {dimension_numbers = #tpu.dot_dimension_numbers<[1], [1], [0], [0], [0, 0, 1, 0], [], []>} : vector<8x8xbf16>, vector<8x8xbf16>, vector<8x8xf32> -> vector<8x8xf32>
    %cst_178 = arith.constant 0.353553385 : f32
    %521 = vector.broadcast %cst_178 : f32 to vector<8x8xf32>
    %522 = arith.mulf %520, %521 : vector<8x8xf32>
    %523 = vector.broadcast %19 : vector<1x8xf32> to vector<8x8xf32>
    %524 = arith.addf %522, %523 : vector<8x8xf32>
    %cst_179 = arith.constant dense<0xFF800000> : vector<8xf32>
    %525 = vector.multi_reduction <maximumf>, %524, %cst_179 [1] : vector<8x8xf32> to vector<8xf32>
    %526 = vector.shape_cast %525 : vector<8xf32> to vector<8x1xf32>
    %527 = vector.broadcast %526 : vector<8x1xf32> to vector<8x8xf32>
    %528 = arith.subf %524, %527 : vector<8x8xf32>
    %529 = math.exp %528 : vector<8x8xf32>
    %cst_180 = arith.constant dense<0.000000e+00> : vector<8xf32>
    %530 = vector.multi_reduction <add>, %529, %cst_180 [1] : vector<8x8xf32> to vector<8xf32>
    %531 = vector.shape_cast %530 : vector<8xf32> to vector<8x1xf32>
    %532 = tpu.reciprocal %531 {approx = true} : vector<8x1xf32> -> vector<8x1xf32>
    %533 = vector.broadcast %532 : vector<8x1xf32> to vector<8x8xf32>
    %534 = arith.mulf %529, %533 : vector<8x8xf32>
    %535 = arith.truncf %534 : vector<8x8xf32> to vector<8x8xbf16>
    %536 = vector.extract_strided_slice %497 {offsets = [0, 8], sizes = [8, 8], strides = [1, 1]} : vector<8x64xbf16> to vector<8x8xbf16>
    %cst_181 = arith.constant dense<0.000000e+00> : vector<8x8xf32>
    %537 = tpu.matmul %535, %536, %cst_181 {dimension_numbers = #tpu.dot_dimension_numbers<[1], [0], [0], [1], [0, 0, 1, 1], [], []>} : vector<8x8xbf16>, vector<8x8xbf16>, vector<8x8xf32> -> vector<8x8xf32>
    %538 = vector.extract_strided_slice %495 {offsets = [0, 16], sizes = [8, 8], strides = [1, 1]} : vector<8x64xbf16> to vector<8x8xbf16>
    %539 = vector.extract_strided_slice %496 {offsets = [0, 16], sizes = [8, 8], strides = [1, 1]} : vector<8x64xbf16> to vector<8x8xbf16>
    %cst_182 = arith.constant dense<0.000000e+00> : vector<8x8xf32>
    %540 = tpu.matmul %538, %539, %cst_182 {dimension_numbers = #tpu.dot_dimension_numbers<[1], [1], [0], [0], [0, 0, 1, 0], [], []>} : vector<8x8xbf16>, vector<8x8xbf16>, vector<8x8xf32> -> vector<8x8xf32>
    %cst_183 = arith.constant 0.353553385 : f32
    %541 = vector.broadcast %cst_183 : f32 to vector<8x8xf32>
    %542 = arith.mulf %540, %541 : vector<8x8xf32>
    %543 = vector.broadcast %19 : vector<1x8xf32> to vector<8x8xf32>
    %544 = arith.addf %542, %543 : vector<8x8xf32>
    %cst_184 = arith.constant dense<0xFF800000> : vector<8xf32>
    %545 = vector.multi_reduction <maximumf>, %544, %cst_184 [1] : vector<8x8xf32> to vector<8xf32>
    %546 = vector.shape_cast %545 : vector<8xf32> to vector<8x1xf32>
    %547 = vector.broadcast %546 : vector<8x1xf32> to vector<8x8xf32>
    %548 = arith.subf %544, %547 : vector<8x8xf32>
    %549 = math.exp %548 : vector<8x8xf32>
    %cst_185 = arith.constant dense<0.000000e+00> : vector<8xf32>
    %550 = vector.multi_reduction <add>, %549, %cst_185 [1] : vector<8x8xf32> to vector<8xf32>
    %551 = vector.shape_cast %550 : vector<8xf32> to vector<8x1xf32>
    %552 = tpu.reciprocal %551 {approx = true} : vector<8x1xf32> -> vector<8x1xf32>
    %553 = vector.broadcast %552 : vector<8x1xf32> to vector<8x8xf32>
    %554 = arith.mulf %549, %553 : vector<8x8xf32>
    %555 = arith.truncf %554 : vector<8x8xf32> to vector<8x8xbf16>
    %556 = vector.extract_strided_slice %497 {offsets = [0, 16], sizes = [8, 8], strides = [1, 1]} : vector<8x64xbf16> to vector<8x8xbf16>
    %cst_186 = arith.constant dense<0.000000e+00> : vector<8x8xf32>
    %557 = tpu.matmul %555, %556, %cst_186 {dimension_numbers = #tpu.dot_dimension_numbers<[1], [0], [0], [1], [0, 0, 1, 1], [], []>} : vector<8x8xbf16>, vector<8x8xbf16>, vector<8x8xf32> -> vector<8x8xf32>
    %558 = vector.extract_strided_slice %495 {offsets = [0, 24], sizes = [8, 8], strides = [1, 1]} : vector<8x64xbf16> to vector<8x8xbf16>
    %559 = vector.extract_strided_slice %496 {offsets = [0, 24], sizes = [8, 8], strides = [1, 1]} : vector<8x64xbf16> to vector<8x8xbf16>
    %cst_187 = arith.constant dense<0.000000e+00> : vector<8x8xf32>
    %560 = tpu.matmul %558, %559, %cst_187 {dimension_numbers = #tpu.dot_dimension_numbers<[1], [1], [0], [0], [0, 0, 1, 0], [], []>} : vector<8x8xbf16>, vector<8x8xbf16>, vector<8x8xf32> -> vector<8x8xf32>
    %cst_188 = arith.constant 0.353553385 : f32
    %561 = vector.broadcast %cst_188 : f32 to vector<8x8xf32>
    %562 = arith.mulf %560, %561 : vector<8x8xf32>
    %563 = vector.broadcast %19 : vector<1x8xf32> to vector<8x8xf32>
    %564 = arith.addf %562, %563 : vector<8x8xf32>
    %cst_189 = arith.constant dense<0xFF800000> : vector<8xf32>
    %565 = vector.multi_reduction <maximumf>, %564, %cst_189 [1] : vector<8x8xf32> to vector<8xf32>
    %566 = vector.shape_cast %565 : vector<8xf32> to vector<8x1xf32>
    %567 = vector.broadcast %566 : vector<8x1xf32> to vector<8x8xf32>
    %568 = arith.subf %564, %567 : vector<8x8xf32>
    %569 = math.exp %568 : vector<8x8xf32>
    %cst_190 = arith.constant dense<0.000000e+00> : vector<8xf32>
    %570 = vector.multi_reduction <add>, %569, %cst_190 [1] : vector<8x8xf32> to vector<8xf32>
    %571 = vector.shape_cast %570 : vector<8xf32> to vector<8x1xf32>
    %572 = tpu.reciprocal %571 {approx = true} : vector<8x1xf32> -> vector<8x1xf32>
    %573 = vector.broadcast %572 : vector<8x1xf32> to vector<8x8xf32>
    %574 = arith.mulf %569, %573 : vector<8x8xf32>
    %575 = arith.truncf %574 : vector<8x8xf32> to vector<8x8xbf16>
    %576 = vector.extract_strided_slice %497 {offsets = [0, 24], sizes = [8, 8], strides = [1, 1]} : vector<8x64xbf16> to vector<8x8xbf16>
    %cst_191 = arith.constant dense<0.000000e+00> : vector<8x8xf32>
    %577 = tpu.matmul %575, %576, %cst_191 {dimension_numbers = #tpu.dot_dimension_numbers<[1], [0], [0], [1], [0, 0, 1, 1], [], []>} : vector<8x8xbf16>, vector<8x8xbf16>, vector<8x8xf32> -> vector<8x8xf32>
    %578 = vector.extract_strided_slice %495 {offsets = [0, 32], sizes = [8, 8], strides = [1, 1]} : vector<8x64xbf16> to vector<8x8xbf16>
    %579 = vector.extract_strided_slice %496 {offsets = [0, 32], sizes = [8, 8], strides = [1, 1]} : vector<8x64xbf16> to vector<8x8xbf16>
    %cst_192 = arith.constant dense<0.000000e+00> : vector<8x8xf32>
    %580 = tpu.matmul %578, %579, %cst_192 {dimension_numbers = #tpu.dot_dimension_numbers<[1], [1], [0], [0], [0, 0, 1, 0], [], []>} : vector<8x8xbf16>, vector<8x8xbf16>, vector<8x8xf32> -> vector<8x8xf32>
    %cst_193 = arith.constant 0.353553385 : f32
    %581 = vector.broadcast %cst_193 : f32 to vector<8x8xf32>
    %582 = arith.mulf %580, %581 : vector<8x8xf32>
    %583 = vector.broadcast %19 : vector<1x8xf32> to vector<8x8xf32>
    %584 = arith.addf %582, %583 : vector<8x8xf32>
    %cst_194 = arith.constant dense<0xFF800000> : vector<8xf32>
    %585 = vector.multi_reduction <maximumf>, %584, %cst_194 [1] : vector<8x8xf32> to vector<8xf32>
    %586 = vector.shape_cast %585 : vector<8xf32> to vector<8x1xf32>
    %587 = vector.broadcast %586 : vector<8x1xf32> to vector<8x8xf32>
    %588 = arith.subf %584, %587 : vector<8x8xf32>
    %589 = math.exp %588 : vector<8x8xf32>
    %cst_195 = arith.constant dense<0.000000e+00> : vector<8xf32>
    %590 = vector.multi_reduction <add>, %589, %cst_195 [1] : vector<8x8xf32> to vector<8xf32>
    %591 = vector.shape_cast %590 : vector<8xf32> to vector<8x1xf32>
    %592 = tpu.reciprocal %591 {approx = true} : vector<8x1xf32> -> vector<8x1xf32>
    %593 = vector.broadcast %592 : vector<8x1xf32> to vector<8x8xf32>
    %594 = arith.mulf %589, %593 : vector<8x8xf32>
    %595 = arith.truncf %594 : vector<8x8xf32> to vector<8x8xbf16>
    %596 = vector.extract_strided_slice %497 {offsets = [0, 32], sizes = [8, 8], strides = [1, 1]} : vector<8x64xbf16> to vector<8x8xbf16>
    %cst_196 = arith.constant dense<0.000000e+00> : vector<8x8xf32>
    %597 = tpu.matmul %595, %596, %cst_196 {dimension_numbers = #tpu.dot_dimension_numbers<[1], [0], [0], [1], [0, 0, 1, 1], [], []>} : vector<8x8xbf16>, vector<8x8xbf16>, vector<8x8xf32> -> vector<8x8xf32>
    %598 = vector.extract_strided_slice %495 {offsets = [0, 40], sizes = [8, 8], strides = [1, 1]} : vector<8x64xbf16> to vector<8x8xbf16>
    %599 = vector.extract_strided_slice %496 {offsets = [0, 40], sizes = [8, 8], strides = [1, 1]} : vector<8x64xbf16> to vector<8x8xbf16>
    %cst_197 = arith.constant dense<0.000000e+00> : vector<8x8xf32>
    %600 = tpu.matmul %598, %599, %cst_197 {dimension_numbers = #tpu.dot_dimension_numbers<[1], [1], [0], [0], [0, 0, 1, 0], [], []>} : vector<8x8xbf16>, vector<8x8xbf16>, vector<8x8xf32> -> vector<8x8xf32>
    %cst_198 = arith.constant 0.353553385 : f32
    %601 = vector.broadcast %cst_198 : f32 to vector<8x8xf32>
    %602 = arith.mulf %600, %601 : vector<8x8xf32>
    %603 = vector.broadcast %19 : vector<1x8xf32> to vector<8x8xf32>
    %604 = arith.addf %602, %603 : vector<8x8xf32>
    %cst_199 = arith.constant dense<0xFF800000> : vector<8xf32>
    %605 = vector.multi_reduction <maximumf>, %604, %cst_199 [1] : vector<8x8xf32> to vector<8xf32>
    %606 = vector.shape_cast %605 : vector<8xf32> to vector<8x1xf32>
    %607 = vector.broadcast %606 : vector<8x1xf32> to vector<8x8xf32>
    %608 = arith.subf %604, %607 : vector<8x8xf32>
    %609 = math.exp %608 : vector<8x8xf32>
    %cst_200 = arith.constant dense<0.000000e+00> : vector<8xf32>
    %610 = vector.multi_reduction <add>, %609, %cst_200 [1] : vector<8x8xf32> to vector<8xf32>
    %611 = vector.shape_cast %610 : vector<8xf32> to vector<8x1xf32>
    %612 = tpu.reciprocal %611 {approx = true} : vector<8x1xf32> -> vector<8x1xf32>
    %613 = vector.broadcast %612 : vector<8x1xf32> to vector<8x8xf32>
    %614 = arith.mulf %609, %613 : vector<8x8xf32>
    %615 = arith.truncf %614 : vector<8x8xf32> to vector<8x8xbf16>
    %616 = vector.extract_strided_slice %497 {offsets = [0, 40], sizes = [8, 8], strides = [1, 1]} : vector<8x64xbf16> to vector<8x8xbf16>
    %cst_201 = arith.constant dense<0.000000e+00> : vector<8x8xf32>
    %617 = tpu.matmul %615, %616, %cst_201 {dimension_numbers = #tpu.dot_dimension_numbers<[1], [0], [0], [1], [0, 0, 1, 1], [], []>} : vector<8x8xbf16>, vector<8x8xbf16>, vector<8x8xf32> -> vector<8x8xf32>
    %618 = vector.extract_strided_slice %495 {offsets = [0, 48], sizes = [8, 8], strides = [1, 1]} : vector<8x64xbf16> to vector<8x8xbf16>
    %619 = vector.extract_strided_slice %496 {offsets = [0, 48], sizes = [8, 8], strides = [1, 1]} : vector<8x64xbf16> to vector<8x8xbf16>
    %cst_202 = arith.constant dense<0.000000e+00> : vector<8x8xf32>
    %620 = tpu.matmul %618, %619, %cst_202 {dimension_numbers = #tpu.dot_dimension_numbers<[1], [1], [0], [0], [0, 0, 1, 0], [], []>} : vector<8x8xbf16>, vector<8x8xbf16>, vector<8x8xf32> -> vector<8x8xf32>
    %cst_203 = arith.constant 0.353553385 : f32
    %621 = vector.broadcast %cst_203 : f32 to vector<8x8xf32>
    %622 = arith.mulf %620, %621 : vector<8x8xf32>
    %623 = vector.broadcast %19 : vector<1x8xf32> to vector<8x8xf32>
    %624 = arith.addf %622, %623 : vector<8x8xf32>
    %cst_204 = arith.constant dense<0xFF800000> : vector<8xf32>
    %625 = vector.multi_reduction <maximumf>, %624, %cst_204 [1] : vector<8x8xf32> to vector<8xf32>
    %626 = vector.shape_cast %625 : vector<8xf32> to vector<8x1xf32>
    %627 = vector.broadcast %626 : vector<8x1xf32> to vector<8x8xf32>
    %628 = arith.subf %624, %627 : vector<8x8xf32>
    %629 = math.exp %628 : vector<8x8xf32>
    %cst_205 = arith.constant dense<0.000000e+00> : vector<8xf32>
    %630 = vector.multi_reduction <add>, %629, %cst_205 [1] : vector<8x8xf32> to vector<8xf32>
    %631 = vector.shape_cast %630 : vector<8xf32> to vector<8x1xf32>
    %632 = tpu.reciprocal %631 {approx = true} : vector<8x1xf32> -> vector<8x1xf32>
    %633 = vector.broadcast %632 : vector<8x1xf32> to vector<8x8xf32>
    %634 = arith.mulf %629, %633 : vector<8x8xf32>
    %635 = arith.truncf %634 : vector<8x8xf32> to vector<8x8xbf16>
    %636 = vector.extract_strided_slice %497 {offsets = [0, 48], sizes = [8, 8], strides = [1, 1]} : vector<8x64xbf16> to vector<8x8xbf16>
    %cst_206 = arith.constant dense<0.000000e+00> : vector<8x8xf32>
    %637 = tpu.matmul %635, %636, %cst_206 {dimension_numbers = #tpu.dot_dimension_numbers<[1], [0], [0], [1], [0, 0, 1, 1], [], []>} : vector<8x8xbf16>, vector<8x8xbf16>, vector<8x8xf32> -> vector<8x8xf32>
    %638 = vector.extract_strided_slice %495 {offsets = [0, 56], sizes = [8, 8], strides = [1, 1]} : vector<8x64xbf16> to vector<8x8xbf16>
    %639 = vector.extract_strided_slice %496 {offsets = [0, 56], sizes = [8, 8], strides = [1, 1]} : vector<8x64xbf16> to vector<8x8xbf16>
    %cst_207 = arith.constant dense<0.000000e+00> : vector<8x8xf32>
    %640 = tpu.matmul %638, %639, %cst_207 {dimension_numbers = #tpu.dot_dimension_numbers<[1], [1], [0], [0], [0, 0, 1, 0], [], []>} : vector<8x8xbf16>, vector<8x8xbf16>, vector<8x8xf32> -> vector<8x8xf32>
    %cst_208 = arith.constant 0.353553385 : f32
    %641 = vector.broadcast %cst_208 : f32 to vector<8x8xf32>
    %642 = arith.mulf %640, %641 : vector<8x8xf32>
    %643 = vector.broadcast %19 : vector<1x8xf32> to vector<8x8xf32>
    %644 = arith.addf %642, %643 : vector<8x8xf32>
    %cst_209 = arith.constant dense<0xFF800000> : vector<8xf32>
    %645 = vector.multi_reduction <maximumf>, %644, %cst_209 [1] : vector<8x8xf32> to vector<8xf32>
    %646 = vector.shape_cast %645 : vector<8xf32> to vector<8x1xf32>
    %647 = vector.broadcast %646 : vector<8x1xf32> to vector<8x8xf32>
    %648 = arith.subf %644, %647 : vector<8x8xf32>
    %649 = math.exp %648 : vector<8x8xf32>
    %cst_210 = arith.constant dense<0.000000e+00> : vector<8xf32>
    %650 = vector.multi_reduction <add>, %649, %cst_210 [1] : vector<8x8xf32> to vector<8xf32>
    %651 = vector.shape_cast %650 : vector<8xf32> to vector<8x1xf32>
    %652 = tpu.reciprocal %651 {approx = true} : vector<8x1xf32> -> vector<8x1xf32>
    %653 = vector.broadcast %652 : vector<8x1xf32> to vector<8x8xf32>
    %654 = arith.mulf %649, %653 : vector<8x8xf32>
    %655 = arith.truncf %654 : vector<8x8xf32> to vector<8x8xbf16>
    %656 = vector.extract_strided_slice %497 {offsets = [0, 56], sizes = [8, 8], strides = [1, 1]} : vector<8x64xbf16> to vector<8x8xbf16>
    %cst_211 = arith.constant dense<0.000000e+00> : vector<8x8xf32>
    %657 = tpu.matmul %655, %656, %cst_211 {dimension_numbers = #tpu.dot_dimension_numbers<[1], [0], [0], [1], [0, 0, 1, 1], [], []>} : vector<8x8xbf16>, vector<8x8xbf16>, vector<8x8xf32> -> vector<8x8xf32>
    %658 = tpu.concatenate %517, %537, %557, %577, %597, %617, %637, %657 in 1 : vector<8x8xf32>, vector<8x8xf32>, vector<8x8xf32>, vector<8x8xf32>, vector<8x8xf32>, vector<8x8xf32>, vector<8x8xf32>, vector<8x8xf32> -> vector<8x64xf32>
    %659 = arith.truncf %658 : vector<8x64xf32> to vector<8x64xbf16>
    %c0_212 = arith.constant 0 : index
    %c0_213 = arith.constant 0 : index
    %660 = vector.load %arg27[%c0_212, %c0_213] : memref<64x64xbf16, #tpu.memory_space<vmem>>, vector<64x64xbf16>
    %cst_214 = arith.constant dense<0.000000e+00> : vector<8x64xf32>
    %661 = tpu.matmul %659, %660, %cst_214 {dimension_numbers = #tpu.dot_dimension_numbers<[1], [0], [0], [1], [0, 0, 1, 1], [], []>} : vector<8x64xbf16>, vector<64x64xbf16>, vector<8x64xf32> -> vector<8x64xf32>
    %c0_215 = arith.constant 0 : index
    %c0_216 = arith.constant 0 : index
    %662 = vector.load %arg28[%c0_215, %c0_216] : memref<1x64xf32, #tpu.memory_space<vmem>>, vector<1x64xf32>
    %663 = vector.broadcast %662 : vector<1x64xf32> to vector<8x64xf32>
    %664 = arith.addf %661, %663 : vector<8x64xf32>
    %665 = arith.addf %478, %664 : vector<8x64xf32>
    %cst_217 = arith.constant dense<0.000000e+00> : vector<8xf32>
    %666 = vector.multi_reduction <add>, %665, %cst_217 [1] : vector<8x64xf32> to vector<8xf32>
    %667 = vector.shape_cast %666 : vector<8xf32> to vector<8x1xf32>
    %cst_218 = arith.constant 6.400000e+01 : f32
    %668 = vector.broadcast %cst_218 : f32 to vector<8x1xf32>
    %669 = arith.divf %667, %668 : vector<8x1xf32>
    %670 = vector.broadcast %669 : vector<8x1xf32> to vector<8x64xf32>
    %671 = arith.subf %665, %670 : vector<8x64xf32>
    %672 = arith.mulf %671, %671 : vector<8x64xf32>
    %cst_219 = arith.constant dense<0.000000e+00> : vector<8xf32>
    %673 = vector.multi_reduction <add>, %672, %cst_219 [1] : vector<8x64xf32> to vector<8xf32>
    %674 = vector.shape_cast %673 : vector<8xf32> to vector<8x1xf32>
    %cst_220 = arith.constant 6.400000e+01 : f32
    %675 = vector.broadcast %cst_220 : f32 to vector<8x1xf32>
    %676 = arith.divf %674, %675 : vector<8x1xf32>
    %677 = vector.broadcast %669 : vector<8x1xf32> to vector<8x64xf32>
    %678 = arith.subf %665, %677 : vector<8x64xf32>
    %cst_221 = arith.constant 9.99999974E-6 : f32
    %679 = vector.broadcast %cst_221 : f32 to vector<8x1xf32>
    %680 = arith.addf %676, %679 : vector<8x1xf32>
    %681 = math.rsqrt %680 : vector<8x1xf32>
    %682 = vector.broadcast %681 : vector<8x1xf32> to vector<8x64xf32>
    %683 = arith.mulf %678, %682 : vector<8x64xf32>
    %c0_222 = arith.constant 0 : index
    %c0_223 = arith.constant 0 : index
    %684 = vector.load %arg29[%c0_222, %c0_223] : memref<1x64xf32, #tpu.memory_space<vmem>>, vector<1x64xf32>
    %685 = vector.broadcast %684 : vector<1x64xf32> to vector<8x64xf32>
    %686 = arith.mulf %683, %685 : vector<8x64xf32>
    %c0_224 = arith.constant 0 : index
    %c0_225 = arith.constant 0 : index
    %687 = vector.load %arg30[%c0_224, %c0_225] : memref<1x64xf32, #tpu.memory_space<vmem>>, vector<1x64xf32>
    %688 = vector.broadcast %687 : vector<1x64xf32> to vector<8x64xf32>
    %689 = arith.addf %686, %688 : vector<8x64xf32>
    %690 = arith.truncf %689 : vector<8x64xf32> to vector<8x64xbf16>
    %c0_226 = arith.constant 0 : index
    %c0_227 = arith.constant 0 : index
    %691 = vector.load %arg31[%c0_226, %c0_227] : memref<64x128xbf16, #tpu.memory_space<vmem>>, vector<64x128xbf16>
    %cst_228 = arith.constant dense<0.000000e+00> : vector<8x128xf32>
    %692 = tpu.matmul %690, %691, %cst_228 {dimension_numbers = #tpu.dot_dimension_numbers<[1], [0], [0], [1], [0, 0, 1, 1], [], []>} : vector<8x64xbf16>, vector<64x128xbf16>, vector<8x128xf32> -> vector<8x128xf32>
    %c0_229 = arith.constant 0 : index
    %c0_230 = arith.constant 0 : index
    %693 = vector.load %arg32[%c0_229, %c0_230] : memref<1x128xf32, #tpu.memory_space<vmem>>, vector<1x128xf32>
    %694 = vector.broadcast %693 : vector<1x128xf32> to vector<8x128xf32>
    %695 = arith.addf %692, %694 : vector<8x128xf32>
    %cst_231 = arith.constant 0.000000e+00 : f32
    %696 = vector.broadcast %cst_231 : f32 to vector<8x128xf32>
    %697 = arith.maximumf %695, %696 : vector<8x128xf32>
    %698 = arith.truncf %697 : vector<8x128xf32> to vector<8x128xbf16>
    %c0_232 = arith.constant 0 : index
    %c0_233 = arith.constant 0 : index
    %699 = vector.load %arg33[%c0_232, %c0_233] : memref<128x64xbf16, #tpu.memory_space<vmem>>, vector<128x64xbf16>
    %cst_234 = arith.constant dense<0.000000e+00> : vector<8x64xf32>
    %700 = tpu.matmul %698, %699, %cst_234 {dimension_numbers = #tpu.dot_dimension_numbers<[1], [0], [0], [1], [0, 0, 1, 1], [], []>} : vector<8x128xbf16>, vector<128x64xbf16>, vector<8x64xf32> -> vector<8x64xf32>
    %c0_235 = arith.constant 0 : index
    %c0_236 = arith.constant 0 : index
    %701 = vector.load %arg34[%c0_235, %c0_236] : memref<1x64xf32, #tpu.memory_space<vmem>>, vector<1x64xf32>
    %702 = vector.broadcast %701 : vector<1x64xf32> to vector<8x64xf32>
    %703 = arith.addf %700, %702 : vector<8x64xf32>
    %704 = arith.addf %689, %703 : vector<8x64xf32>
    %cst_237 = arith.constant dense<0.000000e+00> : vector<8xf32>
    %705 = vector.multi_reduction <add>, %704, %cst_237 [1] : vector<8x64xf32> to vector<8xf32>
    %706 = vector.shape_cast %705 : vector<8xf32> to vector<8x1xf32>
    %cst_238 = arith.constant 6.400000e+01 : f32
    %707 = vector.broadcast %cst_238 : f32 to vector<8x1xf32>
    %708 = arith.divf %706, %707 : vector<8x1xf32>
    %709 = vector.broadcast %708 : vector<8x1xf32> to vector<8x64xf32>
    %710 = arith.subf %704, %709 : vector<8x64xf32>
    %711 = arith.mulf %710, %710 : vector<8x64xf32>
    %cst_239 = arith.constant dense<0.000000e+00> : vector<8xf32>
    %712 = vector.multi_reduction <add>, %711, %cst_239 [1] : vector<8x64xf32> to vector<8xf32>
    %713 = vector.shape_cast %712 : vector<8xf32> to vector<8x1xf32>
    %cst_240 = arith.constant 6.400000e+01 : f32
    %714 = vector.broadcast %cst_240 : f32 to vector<8x1xf32>
    %715 = arith.divf %713, %714 : vector<8x1xf32>
    %716 = vector.broadcast %708 : vector<8x1xf32> to vector<8x64xf32>
    %717 = arith.subf %704, %716 : vector<8x64xf32>
    %cst_241 = arith.constant 9.99999974E-6 : f32
    %718 = vector.broadcast %cst_241 : f32 to vector<8x1xf32>
    %719 = arith.addf %715, %718 : vector<8x1xf32>
    %720 = math.rsqrt %719 : vector<8x1xf32>
    %721 = vector.broadcast %720 : vector<8x1xf32> to vector<8x64xf32>
    %722 = arith.mulf %717, %721 : vector<8x64xf32>
    %c0_242 = arith.constant 0 : index
    %c0_243 = arith.constant 0 : index
    %723 = vector.load %arg35[%c0_242, %c0_243] : memref<1x64xf32, #tpu.memory_space<vmem>>, vector<1x64xf32>
    %724 = vector.broadcast %723 : vector<1x64xf32> to vector<8x64xf32>
    %725 = arith.mulf %722, %724 : vector<8x64xf32>
    %c0_244 = arith.constant 0 : index
    %c0_245 = arith.constant 0 : index
    %726 = vector.load %arg36[%c0_244, %c0_245] : memref<1x64xf32, #tpu.memory_space<vmem>>, vector<1x64xf32>
    %727 = vector.broadcast %726 : vector<1x64xf32> to vector<8x64xf32>
    %728 = arith.addf %725, %727 : vector<8x64xf32>
    %729 = arith.truncf %728 : vector<8x64xf32> to vector<8x64xbf16>
    %730 = arith.truncf %274 : vector<8x64xf32> to vector<8x64xbf16>
    %cst_246 = arith.constant dense<0.000000e+00> : vector<8x8xf32>
    %731 = tpu.matmul %729, %730, %cst_246 {dimension_numbers = #tpu.dot_dimension_numbers<[1], [1], [0], [0], [0, 0, 1, 0], [], []>} : vector<8x64xbf16>, vector<8x64xbf16>, vector<8x8xf32> -> vector<8x8xf32>
    %cst_247 = arith.constant 1.250000e-01 : f32
    %732 = vector.broadcast %cst_247 : f32 to vector<8x8xf32>
    %733 = arith.mulf %731, %732 : vector<8x8xf32>
    %734 = vector.broadcast %19 : vector<1x8xf32> to vector<8x8xf32>
    %735 = arith.addf %733, %734 : vector<8x8xf32>
    %cst_248 = arith.constant dense<0xFF800000> : vector<8xf32>
    %736 = vector.multi_reduction <maximumf>, %735, %cst_248 [1] : vector<8x8xf32> to vector<8xf32>
    %737 = vector.shape_cast %736 : vector<8xf32> to vector<8x1xf32>
    %738 = vector.broadcast %737 : vector<8x1xf32> to vector<8x8xf32>
    %739 = arith.subf %735, %738 : vector<8x8xf32>
    %740 = math.exp %739 : vector<8x8xf32>
    %cst_249 = arith.constant dense<0.000000e+00> : vector<8xf32>
    %741 = vector.multi_reduction <add>, %740, %cst_249 [1] : vector<8x8xf32> to vector<8xf32>
    %742 = vector.shape_cast %741 : vector<8xf32> to vector<8x1xf32>
    %743 = vector.broadcast %742 : vector<8x1xf32> to vector<8x8xf32>
    %744 = arith.divf %740, %743 : vector<8x8xf32>
    %745 = arith.truncf %744 : vector<8x8xf32> to vector<8x8xbf16>
    %746 = arith.truncf %274 : vector<8x64xf32> to vector<8x64xbf16>
    %cst_250 = arith.constant dense<0.000000e+00> : vector<8x64xf32>
    %747 = tpu.matmul %745, %746, %cst_250 {dimension_numbers = #tpu.dot_dimension_numbers<[1], [0], [0], [1], [0, 0, 1, 1], [], []>} : vector<8x8xbf16>, vector<8x64xbf16>, vector<8x64xf32> -> vector<8x64xf32>
    %748 = arith.truncf %747 : vector<8x64xf32> to vector<8x64xbf16>
    %c0_251 = arith.constant 0 : index
    %c0_252 = arith.constant 0 : index
    %749 = vector.load %arg37[%c0_251, %c0_252] : memref<64x128xbf16, #tpu.memory_space<vmem>>, vector<64x128xbf16>
    %cst_253 = arith.constant dense<0.000000e+00> : vector<8x128xf32>
    %750 = tpu.matmul %748, %749, %cst_253 {dimension_numbers = #tpu.dot_dimension_numbers<[1], [0], [0], [1], [0, 0, 1, 1], [], []>} : vector<8x64xbf16>, vector<64x128xbf16>, vector<8x128xf32> -> vector<8x128xf32>
    %c0_254 = arith.constant 0 : index
    %c0_255 = arith.constant 0 : index
    %751 = vector.load %arg38[%c0_254, %c0_255] : memref<1x128xf32, #tpu.memory_space<vmem>>, vector<1x128xf32>
    %752 = vector.broadcast %751 : vector<1x128xf32> to vector<8x128xf32>
    %753 = arith.addf %750, %752 : vector<8x128xf32>
    %cst_256 = arith.constant 0.000000e+00 : f32
    %754 = vector.broadcast %cst_256 : f32 to vector<8x128xf32>
    %755 = arith.maximumf %753, %754 : vector<8x128xf32>
    %756 = arith.truncf %755 : vector<8x128xf32> to vector<8x128xbf16>
    %c0_257 = arith.constant 0 : index
    %c0_258 = arith.constant 0 : index
    %757 = vector.load %arg39[%c0_257, %c0_258] : memref<128x1xbf16, #tpu.memory_space<vmem>>, vector<128x1xbf16>
    %cst_259 = arith.constant dense<0.000000e+00> : vector<8x1xf32>
    %758 = tpu.matmul %756, %757, %cst_259 {dimension_numbers = #tpu.dot_dimension_numbers<[1], [0], [0], [1], [0, 0, 1, 1], [], []>} : vector<8x128xbf16>, vector<128x1xbf16>, vector<8x1xf32> -> vector<8x1xf32>
    %c0_260 = arith.constant 0 : index
    %c0_261 = arith.constant 0 : index
    %759 = vector.load %arg40[%c0_260, %c0_261] : memref<1x1xf32, #tpu.memory_space<vmem>>, vector<1x1xf32>
    %760 = vector.broadcast %759 : vector<1x1xf32> to vector<8x1xf32>
    %761 = arith.addf %758, %760 : vector<8x1xf32>
    %762 = arith.addf %761, %24 : vector<8x1xf32>
    %cst_262 = arith.constant dense<0xFF800000> : vector<1xf32>
    %763 = vector.multi_reduction <maximumf>, %762, %cst_262 [0] : vector<8x1xf32> to vector<1xf32>
    %764 = vector.shape_cast %763 : vector<1xf32> to vector<1x1xf32>
    %765 = vector.broadcast %764 : vector<1x1xf32> to vector<8x1xf32>
    %766 = arith.subf %762, %765 : vector<8x1xf32>
    %767 = math.exp %766 : vector<8x1xf32>
    %cst_263 = arith.constant dense<0.000000e+00> : vector<1xf32>
    %768 = vector.multi_reduction <add>, %767, %cst_263 [0] : vector<8x1xf32> to vector<1xf32>
    %769 = vector.shape_cast %768 : vector<1xf32> to vector<1x1xf32>
    %770 = vector.broadcast %769 : vector<1x1xf32> to vector<8x1xf32>
    %771 = arith.divf %767, %770 : vector<8x1xf32>
    %772 = vector.broadcast %771 : vector<8x1xf32> to vector<8x64xf32>
    %773 = arith.mulf %772, %747 : vector<8x64xf32>
    %cst_264 = arith.constant dense<0.000000e+00> : vector<64xf32>
    %774 = vector.multi_reduction <add>, %773, %cst_264 [0] : vector<8x64xf32> to vector<64xf32>
    %775 = vector.shape_cast %774 : vector<64xf32> to vector<1x64xf32>
    %776 = arith.truncf %775 : vector<1x64xf32> to vector<1x64xbf16>
    %c0_265 = arith.constant 0 : index
    %c0_266 = arith.constant 0 : index
    %777 = vector.load %arg41[%c0_265, %c0_266] : memref<64x64xbf16, #tpu.memory_space<vmem>>, vector<64x64xbf16>
    %cst_267 = arith.constant dense<0.000000e+00> : vector<1x64xf32>
    %778 = tpu.matmul %776, %777, %cst_267 {dimension_numbers = #tpu.dot_dimension_numbers<[1], [0], [0], [1], [0, 0, 1, 1], [], []>} : vector<1x64xbf16>, vector<64x64xbf16>, vector<1x64xf32> -> vector<1x64xf32>
    %c0_268 = arith.constant 0 : index
    %c0_269 = arith.constant 0 : index
    %779 = vector.load %arg42[%c0_268, %c0_269] : memref<1x64xf32, #tpu.memory_space<vmem>>, vector<1x64xf32>
    %780 = arith.addf %778, %779 : vector<1x64xf32>
    %781 = arith.truncf %274 : vector<8x64xf32> to vector<8x64xbf16>
    %782 = arith.truncf %728 : vector<8x64xf32> to vector<8x64xbf16>
    %cst_270 = arith.constant dense<0.000000e+00> : vector<8x8xf32>
    %783 = tpu.matmul %781, %782, %cst_270 {dimension_numbers = #tpu.dot_dimension_numbers<[1], [1], [0], [0], [0, 0, 1, 0], [], []>} : vector<8x64xbf16>, vector<8x64xbf16>, vector<8x8xf32> -> vector<8x8xf32>
    %cst_271 = arith.constant 1.250000e-01 : f32
    %784 = vector.broadcast %cst_271 : f32 to vector<8x8xf32>
    %785 = arith.mulf %783, %784 : vector<8x8xf32>
    %786 = vector.broadcast %12 : vector<1x8xf32> to vector<8x8xf32>
    %787 = arith.addf %785, %786 : vector<8x8xf32>
    %cst_272 = arith.constant dense<0xFF800000> : vector<8xf32>
    %788 = vector.multi_reduction <maximumf>, %787, %cst_272 [1] : vector<8x8xf32> to vector<8xf32>
    %789 = vector.shape_cast %788 : vector<8xf32> to vector<8x1xf32>
    %790 = vector.broadcast %789 : vector<8x1xf32> to vector<8x8xf32>
    %791 = arith.subf %787, %790 : vector<8x8xf32>
    %792 = math.exp %791 : vector<8x8xf32>
    %cst_273 = arith.constant dense<0.000000e+00> : vector<8xf32>
    %793 = vector.multi_reduction <add>, %792, %cst_273 [1] : vector<8x8xf32> to vector<8xf32>
    %794 = vector.shape_cast %793 : vector<8xf32> to vector<8x1xf32>
    %795 = vector.broadcast %794 : vector<8x1xf32> to vector<8x8xf32>
    %796 = arith.divf %792, %795 : vector<8x8xf32>
    %797 = arith.truncf %796 : vector<8x8xf32> to vector<8x8xbf16>
    %798 = arith.truncf %728 : vector<8x64xf32> to vector<8x64xbf16>
    %cst_274 = arith.constant dense<0.000000e+00> : vector<8x64xf32>
    %799 = tpu.matmul %797, %798, %cst_274 {dimension_numbers = #tpu.dot_dimension_numbers<[1], [0], [0], [1], [0, 0, 1, 1], [], []>} : vector<8x8xbf16>, vector<8x64xbf16>, vector<8x64xf32> -> vector<8x64xf32>
    %800 = arith.truncf %799 : vector<8x64xf32> to vector<8x64xbf16>
    %c0_275 = arith.constant 0 : index
    %c0_276 = arith.constant 0 : index
    %801 = vector.load %arg43[%c0_275, %c0_276] : memref<64x128xbf16, #tpu.memory_space<vmem>>, vector<64x128xbf16>
    %cst_277 = arith.constant dense<0.000000e+00> : vector<8x128xf32>
    %802 = tpu.matmul %800, %801, %cst_277 {dimension_numbers = #tpu.dot_dimension_numbers<[1], [0], [0], [1], [0, 0, 1, 1], [], []>} : vector<8x64xbf16>, vector<64x128xbf16>, vector<8x128xf32> -> vector<8x128xf32>
    %c0_278 = arith.constant 0 : index
    %c0_279 = arith.constant 0 : index
    %803 = vector.load %arg44[%c0_278, %c0_279] : memref<1x128xf32, #tpu.memory_space<vmem>>, vector<1x128xf32>
    %804 = vector.broadcast %803 : vector<1x128xf32> to vector<8x128xf32>
    %805 = arith.addf %802, %804 : vector<8x128xf32>
    %cst_280 = arith.constant 0.000000e+00 : f32
    %806 = vector.broadcast %cst_280 : f32 to vector<8x128xf32>
    %807 = arith.maximumf %805, %806 : vector<8x128xf32>
    %808 = arith.truncf %807 : vector<8x128xf32> to vector<8x128xbf16>
    %c0_281 = arith.constant 0 : index
    %c0_282 = arith.constant 0 : index
    %809 = vector.load %arg45[%c0_281, %c0_282] : memref<128x1xbf16, #tpu.memory_space<vmem>>, vector<128x1xbf16>
    %cst_283 = arith.constant dense<0.000000e+00> : vector<8x1xf32>
    %810 = tpu.matmul %808, %809, %cst_283 {dimension_numbers = #tpu.dot_dimension_numbers<[1], [0], [0], [1], [0, 0, 1, 1], [], []>} : vector<8x128xbf16>, vector<128x1xbf16>, vector<8x1xf32> -> vector<8x1xf32>
    %c0_284 = arith.constant 0 : index
    %c0_285 = arith.constant 0 : index
    %811 = vector.load %arg46[%c0_284, %c0_285] : memref<1x1xf32, #tpu.memory_space<vmem>>, vector<1x1xf32>
    %812 = vector.broadcast %811 : vector<1x1xf32> to vector<8x1xf32>
    %813 = arith.addf %810, %812 : vector<8x1xf32>
    %814 = arith.addf %813, %31 : vector<8x1xf32>
    %cst_286 = arith.constant dense<0xFF800000> : vector<1xf32>
    %815 = vector.multi_reduction <maximumf>, %814, %cst_286 [0] : vector<8x1xf32> to vector<1xf32>
    %816 = vector.shape_cast %815 : vector<1xf32> to vector<1x1xf32>
    %817 = vector.broadcast %816 : vector<1x1xf32> to vector<8x1xf32>
    %818 = arith.subf %814, %817 : vector<8x1xf32>
    %819 = math.exp %818 : vector<8x1xf32>
    %cst_287 = arith.constant dense<0.000000e+00> : vector<1xf32>
    %820 = vector.multi_reduction <add>, %819, %cst_287 [0] : vector<8x1xf32> to vector<1xf32>
    %821 = vector.shape_cast %820 : vector<1xf32> to vector<1x1xf32>
    %822 = vector.broadcast %821 : vector<1x1xf32> to vector<8x1xf32>
    %823 = arith.divf %819, %822 : vector<8x1xf32>
    %824 = vector.broadcast %823 : vector<8x1xf32> to vector<8x64xf32>
    %825 = arith.mulf %824, %799 : vector<8x64xf32>
    %cst_288 = arith.constant dense<0.000000e+00> : vector<64xf32>
    %826 = vector.multi_reduction <add>, %825, %cst_288 [0] : vector<8x64xf32> to vector<64xf32>
    %827 = vector.shape_cast %826 : vector<64xf32> to vector<1x64xf32>
    %828 = arith.truncf %827 : vector<1x64xf32> to vector<1x64xbf16>
    %c0_289 = arith.constant 0 : index
    %c0_290 = arith.constant 0 : index
    %829 = vector.load %arg47[%c0_289, %c0_290] : memref<64x64xbf16, #tpu.memory_space<vmem>>, vector<64x64xbf16>
    %cst_291 = arith.constant dense<0.000000e+00> : vector<1x64xf32>
    %830 = tpu.matmul %828, %829, %cst_291 {dimension_numbers = #tpu.dot_dimension_numbers<[1], [0], [0], [1], [0, 0, 1, 1], [], []>} : vector<1x64xbf16>, vector<64x64xbf16>, vector<1x64xf32> -> vector<1x64xf32>
    %c0_292 = arith.constant 0 : index
    %c0_293 = arith.constant 0 : index
    %831 = vector.load %arg48[%c0_292, %c0_293] : memref<1x64xf32, #tpu.memory_space<vmem>>, vector<1x64xf32>
    %832 = arith.addf %830, %831 : vector<1x64xf32>
    %833 = arith.truncf %832 : vector<1x64xf32> to vector<1x64xbf16>
    %c0_294 = arith.constant 0 : index
    %c0_295 = arith.constant 0 : index
    %834 = vector.load %arg49[%c0_294, %c0_295] : memref<64x64xbf16, #tpu.memory_space<vmem>>, vector<64x64xbf16>
    %cst_296 = arith.constant dense<0.000000e+00> : vector<1x64xf32>
    %835 = tpu.matmul %833, %834, %cst_296 {dimension_numbers = #tpu.dot_dimension_numbers<[1], [0], [0], [1], [0, 0, 1, 1], [], []>} : vector<1x64xbf16>, vector<64x64xbf16>, vector<1x64xf32> -> vector<1x64xf32>
    %836 = arith.truncf %780 : vector<1x64xf32> to vector<1x64xbf16>
    %c0_297 = arith.constant 0 : index
    %c0_298 = arith.constant 0 : index
    %837 = vector.load %arg50[%c0_297, %c0_298] : memref<64x64xbf16, #tpu.memory_space<vmem>>, vector<64x64xbf16>
    %cst_299 = arith.constant dense<0.000000e+00> : vector<1x64xf32>
    %838 = tpu.matmul %836, %837, %cst_299 {dimension_numbers = #tpu.dot_dimension_numbers<[1], [0], [0], [1], [0, 0, 1, 1], [], []>} : vector<1x64xbf16>, vector<64x64xbf16>, vector<1x64xf32> -> vector<1x64xf32>
    %839 = arith.addf %835, %838 : vector<1x64xf32>
    %c0_300 = arith.constant 0 : index
    %c0_301 = arith.constant 0 : index
    %840 = vector.load %arg51[%c0_300, %c0_301] : memref<1x64xf32, #tpu.memory_space<vmem>>, vector<1x64xf32>
    %841 = arith.addf %839, %840 : vector<1x64xf32>
    %842 = arith.truncf %274 : vector<8x64xf32> to vector<8x64xbf16>
    %c0_302 = arith.constant 0 : index
    %c0_303 = arith.constant 0 : index
    %843 = vector.load %arg52[%c0_302, %c0_303] : memref<64x128xbf16, #tpu.memory_space<vmem>>, vector<64x128xbf16>
    %cst_304 = arith.constant dense<0.000000e+00> : vector<8x128xf32>
    %844 = tpu.matmul %842, %843, %cst_304 {dimension_numbers = #tpu.dot_dimension_numbers<[1], [0], [0], [1], [0, 0, 1, 1], [], []>} : vector<8x64xbf16>, vector<64x128xbf16>, vector<8x128xf32> -> vector<8x128xf32>
    %c0_305 = arith.constant 0 : index
    %c0_306 = arith.constant 0 : index
    %845 = vector.load %arg53[%c0_305, %c0_306] : memref<1x128xf32, #tpu.memory_space<vmem>>, vector<1x128xf32>
    %846 = vector.broadcast %845 : vector<1x128xf32> to vector<8x128xf32>
    %847 = arith.addf %844, %846 : vector<8x128xf32>
    %cst_307 = arith.constant 0.000000e+00 : f32
    %848 = vector.broadcast %cst_307 : f32 to vector<8x128xf32>
    %849 = arith.maximumf %847, %848 : vector<8x128xf32>
    %850 = arith.truncf %849 : vector<8x128xf32> to vector<8x128xbf16>
    %c0_308 = arith.constant 0 : index
    %c0_309 = arith.constant 0 : index
    %851 = vector.load %arg54[%c0_308, %c0_309] : memref<128x1xbf16, #tpu.memory_space<vmem>>, vector<128x1xbf16>
    %cst_310 = arith.constant dense<0.000000e+00> : vector<8x1xf32>
    %852 = tpu.matmul %850, %851, %cst_310 {dimension_numbers = #tpu.dot_dimension_numbers<[1], [0], [0], [1], [0, 0, 1, 1], [], []>} : vector<8x128xbf16>, vector<128x1xbf16>, vector<8x1xf32> -> vector<8x1xf32>
    %c0_311 = arith.constant 0 : index
    %c0_312 = arith.constant 0 : index
    %853 = vector.load %arg55[%c0_311, %c0_312] : memref<1x1xf32, #tpu.memory_space<vmem>>, vector<1x1xf32>
    %854 = vector.broadcast %853 : vector<1x1xf32> to vector<8x1xf32>
    %855 = arith.addf %852, %854 : vector<8x1xf32>
    %856 = arith.addf %855, %31 : vector<8x1xf32>
    %cst_313 = arith.constant dense<0xFF800000> : vector<1xf32>
    %857 = vector.multi_reduction <maximumf>, %856, %cst_313 [0] : vector<8x1xf32> to vector<1xf32>
    %858 = vector.shape_cast %857 : vector<1xf32> to vector<1x1xf32>
    %859 = vector.broadcast %858 : vector<1x1xf32> to vector<8x1xf32>
    %860 = arith.subf %856, %859 : vector<8x1xf32>
    %861 = math.exp %860 : vector<8x1xf32>
    %cst_314 = arith.constant dense<0.000000e+00> : vector<1xf32>
    %862 = vector.multi_reduction <add>, %861, %cst_314 [0] : vector<8x1xf32> to vector<1xf32>
    %863 = vector.shape_cast %862 : vector<1xf32> to vector<1x1xf32>
    %864 = vector.broadcast %863 : vector<1x1xf32> to vector<8x1xf32>
    %865 = arith.divf %861, %864 : vector<8x1xf32>
    %866 = vector.broadcast %865 : vector<8x1xf32> to vector<8x64xf32>
    %867 = arith.mulf %866, %274 : vector<8x64xf32>
    %cst_315 = arith.constant dense<0.000000e+00> : vector<64xf32>
    %868 = vector.multi_reduction <add>, %867, %cst_315 [0] : vector<8x64xf32> to vector<64xf32>
    %869 = vector.shape_cast %868 : vector<64xf32> to vector<1x64xf32>
    %870 = arith.truncf %869 : vector<1x64xf32> to vector<1x64xbf16>
    %c0_316 = arith.constant 0 : index
    %c0_317 = arith.constant 0 : index
    %871 = vector.load %arg56[%c0_316, %c0_317] : memref<64x128xbf16, #tpu.memory_space<vmem>>, vector<64x128xbf16>
    %cst_318 = arith.constant dense<0.000000e+00> : vector<1x128xf32>
    %872 = tpu.matmul %870, %871, %cst_318 {dimension_numbers = #tpu.dot_dimension_numbers<[1], [0], [0], [1], [0, 0, 1, 1], [], []>} : vector<1x64xbf16>, vector<64x128xbf16>, vector<1x128xf32> -> vector<1x128xf32>
    %c0_319 = arith.constant 0 : index
    %c0_320 = arith.constant 0 : index
    %873 = vector.load %arg57[%c0_319, %c0_320] : memref<1x128xf32, #tpu.memory_space<vmem>>, vector<1x128xf32>
    %874 = arith.addf %872, %873 : vector<1x128xf32>
    %875 = arith.truncf %874 : vector<1x128xf32> to vector<1x128xbf16>
    %c0_321 = arith.constant 0 : index
    %c0_322 = arith.constant 0 : index
    %876 = vector.load %arg58[%c0_321, %c0_322] : memref<128x64xbf16, #tpu.memory_space<vmem>>, vector<128x64xbf16>
    %cst_323 = arith.constant dense<0.000000e+00> : vector<1x64xf32>
    %877 = tpu.matmul %875, %876, %cst_323 {dimension_numbers = #tpu.dot_dimension_numbers<[1], [0], [0], [1], [0, 0, 1, 1], [], []>} : vector<1x128xbf16>, vector<128x64xbf16>, vector<1x64xf32> -> vector<1x64xf32>
    %c0_324 = arith.constant 0 : index
    %c0_325 = arith.constant 0 : index
    %878 = vector.load %arg59[%c0_324, %c0_325] : memref<1x64xf32, #tpu.memory_space<vmem>>, vector<1x64xf32>
    %879 = arith.addf %877, %878 : vector<1x64xf32>
    %880 = arith.addf %841, %879 : vector<1x64xf32>
    %881 = arith.truncf %1 : vector<8x64xf32> to vector<8x64xbf16>
    %c0_326 = arith.constant 0 : index
    %c0_327 = arith.constant 0 : index
    %882 = vector.load %arg60[%c0_326, %c0_327] : memref<64x128xbf16, #tpu.memory_space<vmem>>, vector<64x128xbf16>
    %cst_328 = arith.constant dense<0.000000e+00> : vector<8x128xf32>
    %883 = tpu.matmul %881, %882, %cst_328 {dimension_numbers = #tpu.dot_dimension_numbers<[1], [0], [0], [1], [0, 0, 1, 1], [], []>} : vector<8x64xbf16>, vector<64x128xbf16>, vector<8x128xf32> -> vector<8x128xf32>
    %c0_329 = arith.constant 0 : index
    %c0_330 = arith.constant 0 : index
    %884 = vector.load %arg61[%c0_329, %c0_330] : memref<1x128xf32, #tpu.memory_space<vmem>>, vector<1x128xf32>
    %885 = vector.broadcast %884 : vector<1x128xf32> to vector<8x128xf32>
    %886 = arith.addf %883, %885 : vector<8x128xf32>
    %cst_331 = arith.constant 0.000000e+00 : f32
    %887 = vector.broadcast %cst_331 : f32 to vector<8x128xf32>
    %888 = arith.maximumf %886, %887 : vector<8x128xf32>
    %889 = arith.truncf %888 : vector<8x128xf32> to vector<8x128xbf16>
    %c0_332 = arith.constant 0 : index
    %c0_333 = arith.constant 0 : index
    %890 = vector.load %arg62[%c0_332, %c0_333] : memref<128x64xbf16, #tpu.memory_space<vmem>>, vector<128x64xbf16>
    %cst_334 = arith.constant dense<0.000000e+00> : vector<8x64xf32>
    %891 = tpu.matmul %889, %890, %cst_334 {dimension_numbers = #tpu.dot_dimension_numbers<[1], [0], [0], [1], [0, 0, 1, 1], [], []>} : vector<8x128xbf16>, vector<128x64xbf16>, vector<8x64xf32> -> vector<8x64xf32>
    %c0_335 = arith.constant 0 : index
    %c0_336 = arith.constant 0 : index
    %892 = vector.load %arg63[%c0_335, %c0_336] : memref<1x64xf32, #tpu.memory_space<vmem>>, vector<1x64xf32>
    %893 = vector.broadcast %892 : vector<1x64xf32> to vector<8x64xf32>
    %894 = arith.addf %891, %893 : vector<8x64xf32>
    %895 = arith.truncf %880 : vector<1x64xf32> to vector<1x64xbf16>
    %c0_337 = arith.constant 0 : index
    %c0_338 = arith.constant 0 : index
    %896 = vector.load %arg64[%c0_337, %c0_338] : memref<64x128xbf16, #tpu.memory_space<vmem>>, vector<64x128xbf16>
    %cst_339 = arith.constant dense<0.000000e+00> : vector<1x128xf32>
    %897 = tpu.matmul %895, %896, %cst_339 {dimension_numbers = #tpu.dot_dimension_numbers<[1], [0], [0], [1], [0, 0, 1, 1], [], []>} : vector<1x64xbf16>, vector<64x128xbf16>, vector<1x128xf32> -> vector<1x128xf32>
    %c0_340 = arith.constant 0 : index
    %c0_341 = arith.constant 0 : index
    %898 = vector.load %arg65[%c0_340, %c0_341] : memref<1x128xf32, #tpu.memory_space<vmem>>, vector<1x128xf32>
    %899 = arith.addf %897, %898 : vector<1x128xf32>
    %cst_342 = arith.constant 0.000000e+00 : f32
    %900 = vector.broadcast %cst_342 : f32 to vector<1x128xf32>
    %901 = arith.maximumf %899, %900 : vector<1x128xf32>
    %902 = arith.truncf %901 : vector<1x128xf32> to vector<1x128xbf16>
    %c0_343 = arith.constant 0 : index
    %c0_344 = arith.constant 0 : index
    %903 = vector.load %arg66[%c0_343, %c0_344] : memref<128x64xbf16, #tpu.memory_space<vmem>>, vector<128x64xbf16>
    %cst_345 = arith.constant dense<0.000000e+00> : vector<1x64xf32>
    %904 = tpu.matmul %902, %903, %cst_345 {dimension_numbers = #tpu.dot_dimension_numbers<[1], [0], [0], [1], [0, 0, 1, 1], [], []>} : vector<1x128xbf16>, vector<128x64xbf16>, vector<1x64xf32> -> vector<1x64xf32>
    %c0_346 = arith.constant 0 : index
    %c0_347 = arith.constant 0 : index
    %905 = vector.load %arg67[%c0_346, %c0_347] : memref<1x64xf32, #tpu.memory_space<vmem>>, vector<1x64xf32>
    %906 = arith.addf %904, %905 : vector<1x64xf32>
    %907 = vector.broadcast %906 : vector<1x64xf32> to vector<8x64xf32>
    %908 = arith.mulf %894, %907 : vector<8x64xf32>
    %909 = arith.truncf %908 : vector<8x64xf32> to vector<8x64xbf16>
    %c0_348 = arith.constant 0 : index
    %c0_349 = arith.constant 0 : index
    %910 = vector.load %arg68[%c0_348, %c0_349] : memref<64x128xbf16, #tpu.memory_space<vmem>>, vector<64x128xbf16>
    %cst_350 = arith.constant dense<0.000000e+00> : vector<8x128xf32>
    %911 = tpu.matmul %909, %910, %cst_350 {dimension_numbers = #tpu.dot_dimension_numbers<[1], [0], [0], [1], [0, 0, 1, 1], [], []>} : vector<8x64xbf16>, vector<64x128xbf16>, vector<8x128xf32> -> vector<8x128xf32>
    %c0_351 = arith.constant 0 : index
    %c0_352 = arith.constant 0 : index
    %912 = vector.load %arg69[%c0_351, %c0_352] : memref<1x128xf32, #tpu.memory_space<vmem>>, vector<1x128xf32>
    %913 = vector.broadcast %912 : vector<1x128xf32> to vector<8x128xf32>
    %914 = arith.addf %911, %913 : vector<8x128xf32>
    %cst_353 = arith.constant 0.000000e+00 : f32
    %915 = vector.broadcast %cst_353 : f32 to vector<8x128xf32>
    %916 = arith.maximumf %914, %915 : vector<8x128xf32>
    %917 = arith.truncf %916 : vector<8x128xf32> to vector<8x128xbf16>
    %c0_354 = arith.constant 0 : index
    %c0_355 = arith.constant 0 : index
    %918 = vector.load %arg70[%c0_354, %c0_355] : memref<128x1xbf16, #tpu.memory_space<vmem>>, vector<128x1xbf16>
    %cst_356 = arith.constant dense<0.000000e+00> : vector<8x1xf32>
    %919 = tpu.matmul %917, %918, %cst_356 {dimension_numbers = #tpu.dot_dimension_numbers<[1], [0], [0], [1], [0, 0, 1, 1], [], []>} : vector<8x128xbf16>, vector<128x1xbf16>, vector<8x1xf32> -> vector<8x1xf32>
    %c0_357 = arith.constant 0 : index
    %c0_358 = arith.constant 0 : index
    %920 = vector.load %arg71[%c0_357, %c0_358] : memref<1x1xf32, #tpu.memory_space<vmem>>, vector<1x1xf32>
    %921 = vector.broadcast %920 : vector<1x1xf32> to vector<8x1xf32>
    %922 = arith.addf %919, %921 : vector<8x1xf32>
    %923 = arith.addf %922, %24 : vector<8x1xf32>
    %cst_359 = arith.constant dense<0xFF800000> : vector<1xf32>
    %924 = vector.multi_reduction <maximumf>, %923, %cst_359 [0] : vector<8x1xf32> to vector<1xf32>
    %925 = vector.shape_cast %924 : vector<1xf32> to vector<1x1xf32>
    %926 = vector.broadcast %925 : vector<1x1xf32> to vector<8x1xf32>
    %927 = arith.subf %923, %926 : vector<8x1xf32>
    %928 = math.exp %927 : vector<8x1xf32>
    %cst_360 = arith.constant dense<0.000000e+00> : vector<1xf32>
    %929 = vector.multi_reduction <add>, %928, %cst_360 [0] : vector<8x1xf32> to vector<1xf32>
    %930 = vector.shape_cast %929 : vector<1xf32> to vector<1x1xf32>
    %931 = vector.broadcast %930 : vector<1x1xf32> to vector<8x1xf32>
    %932 = arith.divf %928, %931 : vector<8x1xf32>
    %cst_361 = arith.constant dense<0.000000e+00> : vector<1xf32>
    %933 = vector.multi_reduction <add>, %5, %cst_361 [0] : vector<8x1xf32> to vector<1xf32>
    %934 = vector.shape_cast %933 : vector<1xf32> to vector<1x1xf32>
    %cst_362 = arith.constant 8.000000e+00 : f32
    %935 = vector.broadcast %cst_362 : f32 to vector<1x1xf32>
    %936 = arith.subf %935, %934 : vector<1x1xf32>
    %cst_363 = arith.constant 1.000000e+00 : f32
    %937 = vector.broadcast %cst_363 : f32 to vector<1x1xf32>
    %938 = arith.maximumf %936, %937 : vector<1x1xf32>
    %cst_364 = arith.constant 1.000000e+00 : f32
    %939 = vector.broadcast %cst_364 : f32 to vector<1x1xf32>
    %940 = arith.divf %939, %938 : vector<1x1xf32>
    %cst_365 = arith.constant 0.000000e+00 : f32
    %941 = vector.broadcast %cst_365 : f32 to vector<1x1xf32>
    %942 = arith.subf %941, %940 : vector<1x1xf32>
    %943 = math.log %940 : vector<1x1xf32>
    %944 = arith.mulf %942, %943 : vector<1x1xf32>
    %cst_366 = arith.constant 8.000000e+00 : f32
    %945 = vector.broadcast %cst_366 : f32 to vector<1x1xf32>
    %946 = arith.mulf %945, %944 : vector<1x1xf32>
    %cst_367 = arith.constant 9.99999971E-10 : f32
    %947 = vector.broadcast %cst_367 : f32 to vector<8x1xf32>
    %948 = arith.maximumf %771, %947 : vector<8x1xf32>
    %cst_368 = arith.constant 0.000000e+00 : f32
    %949 = vector.broadcast %cst_368 : f32 to vector<8x1xf32>
    %950 = arith.subf %949, %948 : vector<8x1xf32>
    %951 = math.log %948 : vector<8x1xf32>
    %952 = arith.mulf %950, %951 : vector<8x1xf32>
    %cst_369 = arith.constant dense<0.000000e+00> : vector<1xf32>
    %953 = vector.multi_reduction <add>, %952, %cst_369 [0] : vector<8x1xf32> to vector<1xf32>
    %954 = vector.shape_cast %953 : vector<1xf32> to vector<1x1xf32>
    %955 = arith.cmpf ogt, %954, %946 : vector<1x1xf32>
    %cst_370 = arith.constant 1.000000e+00 : f32
    %cst_371 = arith.constant 0.000000e+00 : f32
    %956 = vector.broadcast %cst_370 : f32 to vector<1x1xf32>
    %957 = vector.broadcast %cst_371 : f32 to vector<1x1xf32>
    %958 = arith.select %955, %956, %957 : vector<1x1xi1>, vector<1x1xf32>
    %959 = arith.subf %771, %932 : vector<8x1xf32>
    %960 = arith.mulf %959, %959 : vector<8x1xf32>
    %cst_372 = arith.constant dense<0.000000e+00> : vector<1xf32>
    %961 = vector.multi_reduction <add>, %960, %cst_372 [0] : vector<8x1xf32> to vector<1xf32>
    %962 = vector.shape_cast %961 : vector<1xf32> to vector<1x1xf32>
    %963 = arith.mulf %962, %958 : vector<1x1xf32>
    %964 = arith.truncf %841 : vector<1x64xf32> to vector<1x64xbf16>
    %c0_373 = arith.constant 0 : index
    %c0_374 = arith.constant 0 : index
    %965 = vector.load %arg72[%c0_373, %c0_374] : memref<64x128xbf16, #tpu.memory_space<vmem>>, vector<64x128xbf16>
    %cst_375 = arith.constant dense<0.000000e+00> : vector<1x128xf32>
    %966 = tpu.matmul %964, %965, %cst_375 {dimension_numbers = #tpu.dot_dimension_numbers<[1], [0], [0], [1], [0, 0, 1, 1], [], []>} : vector<1x64xbf16>, vector<64x128xbf16>, vector<1x128xf32> -> vector<1x128xf32>
    %c0_376 = arith.constant 0 : index
    %c0_377 = arith.constant 0 : index
    %967 = vector.load %arg73[%c0_376, %c0_377] : memref<1x128xf32, #tpu.memory_space<vmem>>, vector<1x128xf32>
    %968 = arith.addf %966, %967 : vector<1x128xf32>
    %cst_378 = arith.constant dense<0.000000e+00> : vector<1xf32>
    %969 = vector.multi_reduction <add>, %968, %cst_378 [1] : vector<1x128xf32> to vector<1xf32>
    %970 = vector.shape_cast %969 : vector<1xf32> to vector<1x1xf32>
    %cst_379 = arith.constant 1.280000e+02 : f32
    %971 = vector.broadcast %cst_379 : f32 to vector<1x1xf32>
    %972 = arith.divf %970, %971 : vector<1x1xf32>
    %973 = vector.broadcast %972 : vector<1x1xf32> to vector<1x128xf32>
    %974 = arith.subf %968, %973 : vector<1x128xf32>
    %975 = arith.mulf %974, %974 : vector<1x128xf32>
    %cst_380 = arith.constant dense<0.000000e+00> : vector<1xf32>
    %976 = vector.multi_reduction <add>, %975, %cst_380 [1] : vector<1x128xf32> to vector<1xf32>
    %977 = vector.shape_cast %976 : vector<1xf32> to vector<1x1xf32>
    %cst_381 = arith.constant 1.280000e+02 : f32
    %978 = vector.broadcast %cst_381 : f32 to vector<1x1xf32>
    %979 = arith.divf %977, %978 : vector<1x1xf32>
    %980 = vector.broadcast %972 : vector<1x1xf32> to vector<1x128xf32>
    %981 = arith.subf %968, %980 : vector<1x128xf32>
    %cst_382 = arith.constant 9.99999974E-6 : f32
    %982 = vector.broadcast %cst_382 : f32 to vector<1x1xf32>
    %983 = arith.addf %979, %982 : vector<1x1xf32>
    %984 = math.rsqrt %983 : vector<1x1xf32>
    %985 = vector.broadcast %984 : vector<1x1xf32> to vector<1x128xf32>
    %986 = arith.mulf %981, %985 : vector<1x128xf32>
    %c0_383 = arith.constant 0 : index
    %c0_384 = arith.constant 0 : index
    %987 = vector.load %arg74[%c0_383, %c0_384] : memref<1x128xf32, #tpu.memory_space<vmem>>, vector<1x128xf32>
    %988 = arith.mulf %986, %987 : vector<1x128xf32>
    %c0_385 = arith.constant 0 : index
    %c0_386 = arith.constant 0 : index
    %989 = vector.load %arg75[%c0_385, %c0_386] : memref<1x128xf32, #tpu.memory_space<vmem>>, vector<1x128xf32>
    %990 = arith.addf %988, %989 : vector<1x128xf32>
    %991 = arith.truncf %990 : vector<1x128xf32> to vector<1x128xbf16>
    %c0_387 = arith.constant 0 : index
    %c0_388 = arith.constant 0 : index
    %992 = vector.load %arg76[%c0_387, %c0_388] : memref<128x64xbf16, #tpu.memory_space<vmem>>, vector<128x64xbf16>
    %cst_389 = arith.constant dense<0.000000e+00> : vector<1x64xf32>
    %993 = tpu.matmul %991, %992, %cst_389 {dimension_numbers = #tpu.dot_dimension_numbers<[1], [0], [0], [1], [0, 0, 1, 1], [], []>} : vector<1x128xbf16>, vector<128x64xbf16>, vector<1x64xf32> -> vector<1x64xf32>
    %c0_390 = arith.constant 0 : index
    %c0_391 = arith.constant 0 : index
    %994 = vector.load %arg77[%c0_390, %c0_391] : memref<1x64xf32, #tpu.memory_space<vmem>>, vector<1x64xf32>
    %995 = arith.addf %993, %994 : vector<1x64xf32>
    %cst_392 = arith.constant 0.000000e+00 : f32
    %996 = vector.broadcast %cst_392 : f32 to vector<1x63xf32>
    %997 = tpu.concatenate %995, %963, %996 in 1 : vector<1x64xf32>, vector<1x1xf32>, vector<1x63xf32> -> vector<1x128xf32>
    %c0_393 = arith.constant 0 : index
    %c0_394 = arith.constant 0 : index
    %c0_395 = arith.constant 0 : index
    %998 = vector.load %arg78[%c0_393, %c0_394, %c0_395] : memref<1x1x128xf32, #tpu.memory_space<vmem>>, vector<1x1x128xf32>
    %999 = vector.shape_cast %998 : vector<1x1x128xf32> to vector<1x128xf32>
    %1000 = vector.shape_cast %997 : vector<1x128xf32> to vector<1x1x128xf32>
    tpu.vector_store %arg78[%c0_393, %c0_394, %c0_395], %1000 {strides = array<i32>} : memref<1x1x128xf32, #tpu.memory_space<vmem>>, vector<1x1x128xf32>,
    return
  }
  func.func @transform_0(%arg0: i32) -> (i32, i32, i32) {
    %c0_i32 = arith.constant 0 : i32
    %c0_i32_0 = arith.constant 0 : i32
    %c0_i32_1 = arith.constant 0 : i32
    return %arg0, %c0_i32, %c0_i32_0 : i32, i32, i32
  }
  func.func @transform_1(%arg0: i32) -> (i32, i32, i32) {
    %c0_i32 = arith.constant 0 : i32
    %c0_i32_0 = arith.constant 0 : i32
    %c0_i32_1 = arith.constant 0 : i32
    return %arg0, %c0_i32, %c0_i32_0 : i32, i32, i32
  }
  func.func @transform_2(%arg0: i32) -> (i32, i32, i32) {
    %c0_i32 = arith.constant 0 : i32
    %c0_i32_0 = arith.constant 0 : i32
    %c0_i32_1 = arith.constant 0 : i32
    return %arg0, %c0_i32, %c0_i32_0 : i32, i32, i32
  }
  func.func @transform_3(%arg0: i32) -> (i32, i32, i32) {
    %c0_i32 = arith.constant 0 : i32
    %c0_i32_0 = arith.constant 0 : i32
    %c0_i32_1 = arith.constant 0 : i32
    return %arg0, %c0_i32, %c0_i32_0 : i32, i32, i32
  }
  func.func @transform_4(%arg0: i32) -> (i32, i32, i32) {
    %c0_i32 = arith.constant 0 : i32
    %c0_i32_0 = arith.constant 0 : i32
    %c0_i32_1 = arith.constant 0 : i32
    return %arg0, %c0_i32, %c0_i32_0 : i32, i32, i32
  }
  func.func @transform_5(%arg0: i32) -> (i32, i32, i32) {
    %c0_i32 = arith.constant 0 : i32
    %c0_i32_0 = arith.constant 0 : i32
    %c0_i32_1 = arith.constant 0 : i32
    return %arg0, %c0_i32, %c0_i32_0 : i32, i32, i32
  }
  func.func @transform_6(%arg0: i32) -> (i32, i32) {
    %c0_i32 = arith.constant 0 : i32
    %c0_i32_0 = arith.constant 0 : i32
    %c0_i32_1 = arith.constant 0 : i32
    return %c0_i32, %c0_i32_0 : i32, i32
  }
  func.func @transform_7(%arg0: i32) -> (i32, i32) {
    %c0_i32 = arith.constant 0 : i32
    %c0_i32_0 = arith.constant 0 : i32
    %c0_i32_1 = arith.constant 0 : i32
    return %c0_i32, %c0_i32_0 : i32, i32
  }
  func.func @transform_8(%arg0: i32) -> (i32, i32) {
    %c0_i32 = arith.constant 0 : i32
    %c0_i32_0 = arith.constant 0 : i32
    %c0_i32_1 = arith.constant 0 : i32
    return %c0_i32, %c0_i32_0 : i32, i32
  }
  func.func @transform_9(%arg0: i32) -> (i32, i32) {
    %c0_i32 = arith.constant 0 : i32
    %c0_i32_0 = arith.constant 0 : i32
    %c0_i32_1 = arith.constant 0 : i32
    return %c0_i32, %c0_i32_0 : i32, i32
  }
  func.func @transform_10(%arg0: i32) -> (i32, i32) {
    %c0_i32 = arith.constant 0 : i32
    %c0_i32_0 = arith.constant 0 : i32
    %c0_i32_1 = arith.constant 0 : i32
    return %c0_i32, %c0_i32_0 : i32, i32
  }
  func.func @transform_11(%arg0: i32) -> (i32, i32) {
    %c0_i32 = arith.constant 0 : i32
    %c0_i32_0 = arith.constant 0 : i32
    %c0_i32_1 = arith.constant 0 : i32
    return %c0_i32, %c0_i32_0 : i32, i32
  }
  func.func @transform_12(%arg0: i32) -> (i32, i32) {
    %c0_i32 = arith.constant 0 : i32
    %c0_i32_0 = arith.constant 0 : i32
    %c0_i32_1 = arith.constant 0 : i32
    return %c0_i32, %c0_i32_0 : i32, i32
  }
  func.func @transform_13(%arg0: i32) -> (i32, i32) {
    %c0_i32 = arith.constant 0 : i32
    %c0_i32_0 = arith.constant 0 : i32
    %c0_i32_1 = arith.constant 0 : i32
    return %c0_i32, %c0_i32_0 : i32, i32
  }
  func.func @transform_14(%arg0: i32) -> (i32, i32) {
    %c0_i32 = arith.constant 0 : i32
    %c0_i32_0 = arith.constant 0 : i32
    %c0_i32_1 = arith.constant 0 : i32
    return %c0_i32, %c0_i32_0 : i32, i32
  }
  func.func @transform_15(%arg0: i32) -> (i32, i32) {
    %c0_i32 = arith.constant 0 : i32
    %c0_i32_0 = arith.constant 0 : i32
    %c0_i32_1 = arith.constant 0 : i32
    return %c0_i32, %c0_i32_0 : i32, i32
  }
  func.func @transform_16(%arg0: i32) -> (i32, i32) {
    %c0_i32 = arith.constant 0 : i32
    %c0_i32_0 = arith.constant 0 : i32
    %c0_i32_1 = arith.constant 0 : i32
    return %c0_i32, %c0_i32_0 : i32, i32
  }
  func.func @transform_17(%arg0: i32) -> (i32, i32) {
    %c0_i32 = arith.constant 0 : i32
    %c0_i32_0 = arith.constant 0 : i32
    %c0_i32_1 = arith.constant 0 : i32
    return %c0_i32, %c0_i32_0 : i32, i32
  }
  func.func @transform_18(%arg0: i32) -> (i32, i32) {
    %c0_i32 = arith.constant 0 : i32
    %c0_i32_0 = arith.constant 0 : i32
    %c0_i32_1 = arith.constant 0 : i32
    return %c0_i32, %c0_i32_0 : i32, i32
  }
  func.func @transform_19(%arg0: i32) -> (i32, i32) {
    %c0_i32 = arith.constant 0 : i32
    %c0_i32_0 = arith.constant 0 : i32
    %c0_i32_1 = arith.constant 0 : i32
    return %c0_i32, %c0_i32_0 : i32, i32
  }
  func.func @transform_20(%arg0: i32) -> (i32, i32) {
    %c0_i32 = arith.constant 0 : i32
    %c0_i32_0 = arith.constant 0 : i32
    %c0_i32_1 = arith.constant 0 : i32
    return %c0_i32, %c0_i32_0 : i32, i32
  }
  func.func @transform_21(%arg0: i32) -> (i32, i32) {
    %c0_i32 = arith.constant 0 : i32
    %c0_i32_0 = arith.constant 0 : i32
    %c0_i32_1 = arith.constant 0 : i32
    return %c0_i32, %c0_i32_0 : i32, i32
  }
  func.func @transform_22(%arg0: i32) -> (i32, i32) {
    %c0_i32 = arith.constant 0 : i32
    %c0_i32_0 = arith.constant 0 : i32
    %c0_i32_1 = arith.constant 0 : i32
    return %c0_i32, %c0_i32_0 : i32, i32
  }
  func.func @transform_23(%arg0: i32) -> (i32, i32) {
    %c0_i32 = arith.constant 0 : i32
    %c0_i32_0 = arith.constant 0 : i32
    %c0_i32_1 = arith.constant 0 : i32
    return %c0_i32, %c0_i32_0 : i32, i32
  }
  func.func @transform_24(%arg0: i32) -> (i32, i32) {
    %c0_i32 = arith.constant 0 : i32
    %c0_i32_0 = arith.constant 0 : i32
    %c0_i32_1 = arith.constant 0 : i32
    return %c0_i32, %c0_i32_0 : i32, i32
  }
  func.func @transform_25(%arg0: i32) -> (i32, i32) {
    %c0_i32 = arith.constant 0 : i32
    %c0_i32_0 = arith.constant 0 : i32
    %c0_i32_1 = arith.constant 0 : i32
    return %c0_i32, %c0_i32_0 : i32, i32
  }
  func.func @transform_26(%arg0: i32) -> (i32, i32) {
    %c0_i32 = arith.constant 0 : i32
    %c0_i32_0 = arith.constant 0 : i32
    %c0_i32_1 = arith.constant 0 : i32
    return %c0_i32, %c0_i32_0 : i32, i32
  }
  func.func @transform_27(%arg0: i32) -> (i32, i32) {
    %c0_i32 = arith.constant 0 : i32
    %c0_i32_0 = arith.constant 0 : i32
    %c0_i32_1 = arith.constant 0 : i32
    return %c0_i32, %c0_i32_0 : i32, i32
  }
  func.func @transform_28(%arg0: i32) -> (i32, i32) {
    %c0_i32 = arith.constant 0 : i32
    %c0_i32_0 = arith.constant 0 : i32
    %c0_i32_1 = arith.constant 0 : i32
    return %c0_i32, %c0_i32_0 : i32, i32
  }
  func.func @transform_29(%arg0: i32) -> (i32, i32) {
    %c0_i32 = arith.constant 0 : i32
    %c0_i32_0 = arith.constant 0 : i32
    %c0_i32_1 = arith.constant 0 : i32
    return %c0_i32, %c0_i32_0 : i32, i32
  }
  func.func @transform_30(%arg0: i32) -> (i32, i32) {
    %c0_i32 = arith.constant 0 : i32
    %c0_i32_0 = arith.constant 0 : i32
    %c0_i32_1 = arith.constant 0 : i32
    return %c0_i32, %c0_i32_0 : i32, i32
  }
  func.func @transform_31(%arg0: i32) -> (i32, i32) {
    %c0_i32 = arith.constant 0 : i32
    %c0_i32_0 = arith.constant 0 : i32
    %c0_i32_1 = arith.constant 0 : i32
    return %c0_i32, %c0_i32_0 : i32, i32
  }
  func.func @transform_32(%arg0: i32) -> (i32, i32) {
    %c0_i32 = arith.constant 0 : i32
    %c0_i32_0 = arith.constant 0 : i32
    %c0_i32_1 = arith.constant 0 : i32
    return %c0_i32, %c0_i32_0 : i32, i32
  }
  func.func @transform_33(%arg0: i32) -> (i32, i32) {
    %c0_i32 = arith.constant 0 : i32
    %c0_i32_0 = arith.constant 0 : i32
    %c0_i32_1 = arith.constant 0 : i32
    return %c0_i32, %c0_i32_0 : i32, i32
  }
  func.func @transform_34(%arg0: i32) -> (i32, i32) {
    %c0_i32 = arith.constant 0 : i32
    %c0_i32_0 = arith.constant 0 : i32
    %c0_i32_1 = arith.constant 0 : i32
    return %c0_i32, %c0_i32_0 : i32, i32
  }
  func.func @transform_35(%arg0: i32) -> (i32, i32) {
    %c0_i32 = arith.constant 0 : i32
    %c0_i32_0 = arith.constant 0 : i32
    %c0_i32_1 = arith.constant 0 : i32
    return %c0_i32, %c0_i32_0 : i32, i32
  }
  func.func @transform_36(%arg0: i32) -> (i32, i32) {
    %c0_i32 = arith.constant 0 : i32
    %c0_i32_0 = arith.constant 0 : i32
    %c0_i32_1 = arith.constant 0 : i32
    return %c0_i32, %c0_i32_0 : i32, i32
  }
  func.func @transform_37(%arg0: i32) -> (i32, i32) {
    %c0_i32 = arith.constant 0 : i32
    %c0_i32_0 = arith.constant 0 : i32
    %c0_i32_1 = arith.constant 0 : i32
    return %c0_i32, %c0_i32_0 : i32, i32
  }
  func.func @transform_38(%arg0: i32) -> (i32, i32) {
    %c0_i32 = arith.constant 0 : i32
    %c0_i32_0 = arith.constant 0 : i32
    %c0_i32_1 = arith.constant 0 : i32
    return %c0_i32, %c0_i32_0 : i32, i32
  }
  func.func @transform_39(%arg0: i32) -> (i32, i32) {
    %c0_i32 = arith.constant 0 : i32
    %c0_i32_0 = arith.constant 0 : i32
    %c0_i32_1 = arith.constant 0 : i32
    return %c0_i32, %c0_i32_0 : i32, i32
  }
  func.func @transform_40(%arg0: i32) -> (i32, i32) {
    %c0_i32 = arith.constant 0 : i32
    %c0_i32_0 = arith.constant 0 : i32
    %c0_i32_1 = arith.constant 0 : i32
    return %c0_i32, %c0_i32_0 : i32, i32
  }
  func.func @transform_41(%arg0: i32) -> (i32, i32) {
    %c0_i32 = arith.constant 0 : i32
    %c0_i32_0 = arith.constant 0 : i32
    %c0_i32_1 = arith.constant 0 : i32
    return %c0_i32, %c0_i32_0 : i32, i32
  }
  func.func @transform_42(%arg0: i32) -> (i32, i32) {
    %c0_i32 = arith.constant 0 : i32
    %c0_i32_0 = arith.constant 0 : i32
    %c0_i32_1 = arith.constant 0 : i32
    return %c0_i32, %c0_i32_0 : i32, i32
  }
  func.func @transform_43(%arg0: i32) -> (i32, i32) {
    %c0_i32 = arith.constant 0 : i32
    %c0_i32_0 = arith.constant 0 : i32
    %c0_i32_1 = arith.constant 0 : i32
    return %c0_i32, %c0_i32_0 : i32, i32
  }
  func.func @transform_44(%arg0: i32) -> (i32, i32) {
    %c0_i32 = arith.constant 0 : i32
    %c0_i32_0 = arith.constant 0 : i32
    %c0_i32_1 = arith.constant 0 : i32
    return %c0_i32, %c0_i32_0 : i32, i32
  }
  func.func @transform_45(%arg0: i32) -> (i32, i32) {
    %c0_i32 = arith.constant 0 : i32
    %c0_i32_0 = arith.constant 0 : i32
    %c0_i32_1 = arith.constant 0 : i32
    return %c0_i32, %c0_i32_0 : i32, i32
  }
  func.func @transform_46(%arg0: i32) -> (i32, i32) {
    %c0_i32 = arith.constant 0 : i32
    %c0_i32_0 = arith.constant 0 : i32
    %c0_i32_1 = arith.constant 0 : i32
    return %c0_i32, %c0_i32_0 : i32, i32
  }
  func.func @transform_47(%arg0: i32) -> (i32, i32) {
    %c0_i32 = arith.constant 0 : i32
    %c0_i32_0 = arith.constant 0 : i32
    %c0_i32_1 = arith.constant 0 : i32
    return %c0_i32, %c0_i32_0 : i32, i32
  }
  func.func @transform_48(%arg0: i32) -> (i32, i32) {
    %c0_i32 = arith.constant 0 : i32
    %c0_i32_0 = arith.constant 0 : i32
    %c0_i32_1 = arith.constant 0 : i32
    return %c0_i32, %c0_i32_0 : i32, i32
  }
  func.func @transform_49(%arg0: i32) -> (i32, i32) {
    %c0_i32 = arith.constant 0 : i32
    %c0_i32_0 = arith.constant 0 : i32
    %c0_i32_1 = arith.constant 0 : i32
    return %c0_i32, %c0_i32_0 : i32, i32
  }
  func.func @transform_50(%arg0: i32) -> (i32, i32) {
    %c0_i32 = arith.constant 0 : i32
    %c0_i32_0 = arith.constant 0 : i32
    %c0_i32_1 = arith.constant 0 : i32
    return %c0_i32, %c0_i32_0 : i32, i32
  }
  func.func @transform_51(%arg0: i32) -> (i32, i32) {
    %c0_i32 = arith.constant 0 : i32
    %c0_i32_0 = arith.constant 0 : i32
    %c0_i32_1 = arith.constant 0 : i32
    return %c0_i32, %c0_i32_0 : i32, i32
  }
  func.func @transform_52(%arg0: i32) -> (i32, i32) {
    %c0_i32 = arith.constant 0 : i32
    %c0_i32_0 = arith.constant 0 : i32
    %c0_i32_1 = arith.constant 0 : i32
    return %c0_i32, %c0_i32_0 : i32, i32
  }
  func.func @transform_53(%arg0: i32) -> (i32, i32) {
    %c0_i32 = arith.constant 0 : i32
    %c0_i32_0 = arith.constant 0 : i32
    %c0_i32_1 = arith.constant 0 : i32
    return %c0_i32, %c0_i32_0 : i32, i32
  }
  func.func @transform_54(%arg0: i32) -> (i32, i32) {
    %c0_i32 = arith.constant 0 : i32
    %c0_i32_0 = arith.constant 0 : i32
    %c0_i32_1 = arith.constant 0 : i32
    return %c0_i32, %c0_i32_0 : i32, i32
  }
  func.func @transform_55(%arg0: i32) -> (i32, i32) {
    %c0_i32 = arith.constant 0 : i32
    %c0_i32_0 = arith.constant 0 : i32
    %c0_i32_1 = arith.constant 0 : i32
    return %c0_i32, %c0_i32_0 : i32, i32
  }
  func.func @transform_56(%arg0: i32) -> (i32, i32) {
    %c0_i32 = arith.constant 0 : i32
    %c0_i32_0 = arith.constant 0 : i32
    %c0_i32_1 = arith.constant 0 : i32
    return %c0_i32, %c0_i32_0 : i32, i32
  }
  func.func @transform_57(%arg0: i32) -> (i32, i32) {
    %c0_i32 = arith.constant 0 : i32
    %c0_i32_0 = arith.constant 0 : i32
    %c0_i32_1 = arith.constant 0 : i32
    return %c0_i32, %c0_i32_0 : i32, i32
  }
  func.func @transform_58(%arg0: i32) -> (i32, i32) {
    %c0_i32 = arith.constant 0 : i32
    %c0_i32_0 = arith.constant 0 : i32
    %c0_i32_1 = arith.constant 0 : i32
    return %c0_i32, %c0_i32_0 : i32, i32
  }
  func.func @transform_59(%arg0: i32) -> (i32, i32) {
    %c0_i32 = arith.constant 0 : i32
    %c0_i32_0 = arith.constant 0 : i32
    %c0_i32_1 = arith.constant 0 : i32
    return %c0_i32, %c0_i32_0 : i32, i32
  }
  func.func @transform_60(%arg0: i32) -> (i32, i32) {
    %c0_i32 = arith.constant 0 : i32
    %c0_i32_0 = arith.constant 0 : i32
    %c0_i32_1 = arith.constant 0 : i32
    return %c0_i32, %c0_i32_0 : i32, i32
  }
  func.func @transform_61(%arg0: i32) -> (i32, i32) {
    %c0_i32 = arith.constant 0 : i32
    %c0_i32_0 = arith.constant 0 : i32
    %c0_i32_1 = arith.constant 0 : i32
    return %c0_i32, %c0_i32_0 : i32, i32
  }
  func.func @transform_62(%arg0: i32) -> (i32, i32) {
    %c0_i32 = arith.constant 0 : i32
    %c0_i32_0 = arith.constant 0 : i32
    %c0_i32_1 = arith.constant 0 : i32
    return %c0_i32, %c0_i32_0 : i32, i32
  }
  func.func @transform_63(%arg0: i32) -> (i32, i32) {
    %c0_i32 = arith.constant 0 : i32
    %c0_i32_0 = arith.constant 0 : i32
    %c0_i32_1 = arith.constant 0 : i32
    return %c0_i32, %c0_i32_0 : i32, i32
  }
  func.func @transform_64(%arg0: i32) -> (i32, i32) {
    %c0_i32 = arith.constant 0 : i32
    %c0_i32_0 = arith.constant 0 : i32
    %c0_i32_1 = arith.constant 0 : i32
    return %c0_i32, %c0_i32_0 : i32, i32
  }
  func.func @transform_65(%arg0: i32) -> (i32, i32) {
    %c0_i32 = arith.constant 0 : i32
    %c0_i32_0 = arith.constant 0 : i32
    %c0_i32_1 = arith.constant 0 : i32
    return %c0_i32, %c0_i32_0 : i32, i32
  }
  func.func @transform_66(%arg0: i32) -> (i32, i32) {
    %c0_i32 = arith.constant 0 : i32
    %c0_i32_0 = arith.constant 0 : i32
    %c0_i32_1 = arith.constant 0 : i32
    return %c0_i32, %c0_i32_0 : i32, i32
  }
  func.func @transform_67(%arg0: i32) -> (i32, i32) {
    %c0_i32 = arith.constant 0 : i32
    %c0_i32_0 = arith.constant 0 : i32
    %c0_i32_1 = arith.constant 0 : i32
    return %c0_i32, %c0_i32_0 : i32, i32
  }
  func.func @transform_68(%arg0: i32) -> (i32, i32) {
    %c0_i32 = arith.constant 0 : i32
    %c0_i32_0 = arith.constant 0 : i32
    %c0_i32_1 = arith.constant 0 : i32
    return %c0_i32, %c0_i32_0 : i32, i32
  }
  func.func @transform_69(%arg0: i32) -> (i32, i32) {
    %c0_i32 = arith.constant 0 : i32
    %c0_i32_0 = arith.constant 0 : i32
    %c0_i32_1 = arith.constant 0 : i32
    return %c0_i32, %c0_i32_0 : i32, i32
  }
  func.func @transform_70(%arg0: i32) -> (i32, i32) {
    %c0_i32 = arith.constant 0 : i32
    %c0_i32_0 = arith.constant 0 : i32
    %c0_i32_1 = arith.constant 0 : i32
    return %c0_i32, %c0_i32_0 : i32, i32
  }
  func.func @transform_71(%arg0: i32) -> (i32, i32) {
    %c0_i32 = arith.constant 0 : i32
    %c0_i32_0 = arith.constant 0 : i32
    %c0_i32_1 = arith.constant 0 : i32
    return %c0_i32, %c0_i32_0 : i32, i32
  }
  func.func @transform_72(%arg0: i32) -> (i32, i32) {
    %c0_i32 = arith.constant 0 : i32
    %c0_i32_0 = arith.constant 0 : i32
    %c0_i32_1 = arith.constant 0 : i32
    return %c0_i32, %c0_i32_0 : i32, i32
  }
  func.func @transform_73(%arg0: i32) -> (i32, i32) {
    %c0_i32 = arith.constant 0 : i32
    %c0_i32_0 = arith.constant 0 : i32
    %c0_i32_1 = arith.constant 0 : i32
    return %c0_i32, %c0_i32_0 : i32, i32
  }
  func.func @transform_74(%arg0: i32) -> (i32, i32) {
    %c0_i32 = arith.constant 0 : i32
    %c0_i32_0 = arith.constant 0 : i32
    %c0_i32_1 = arith.constant 0 : i32
    return %c0_i32, %c0_i32_0 : i32, i32
  }
  func.func @transform_75(%arg0: i32) -> (i32, i32) {
    %c0_i32 = arith.constant 0 : i32
    %c0_i32_0 = arith.constant 0 : i32
    %c0_i32_1 = arith.constant 0 : i32
    return %c0_i32, %c0_i32_0 : i32, i32
  }
  func.func @transform_76(%arg0: i32) -> (i32, i32) {
    %c0_i32 = arith.constant 0 : i32
    %c0_i32_0 = arith.constant 0 : i32
    %c0_i32_1 = arith.constant 0 : i32
    return %c0_i32, %c0_i32_0 : i32, i32
  }
  func.func @transform_77(%arg0: i32) -> (i32, i32, i32) {
    %c0_i32 = arith.constant 0 : i32
    %c0_i32_0 = arith.constant 0 : i32
    %c0_i32_1 = arith.constant 0 : i32
    return %arg0, %c0_i32, %c0_i32_0 : i32, i32, i32
  }
}

</mosaic_0001>

<llo_original>
// kernel: transformer_forward.1
$region0: #{transformer_forward.1}
  #allocation0 [shape = 'u32[]', space=smem, size = 0x4, offset = 0x4, fixed_abs, tag = 'smem constant byte address 0x4 - core index']
  #allocation1 [shape = 'u32[72,128]{1,0:T(1,128)}', space=vmem, size = 0x9000, scoped, tag = 'internal scratch']
  #allocation2 [shape = 'f32[1,1]{1,0:T(1,128)S(1)}', space=vmem, size = 0x200, scoped, tag = 'scoped memory for transformer_forward.1']
  #allocation3 [shape = 'f32[1,1]{1,0:T(1,128)S(1)}', space=vmem, size = 0x200, scoped, tag = 'scoped memory for transformer_forward.1']
  #allocation4 [shape = 'f32[1,1]{1,0:T(1,128)S(1)}', space=vmem, size = 0x200, scoped, tag = 'scoped memory for transformer_forward.1']
  #allocation5 [shape = 'f32[1,1]{1,0:T(1,128)S(1)}', space=vmem, size = 0x200, scoped, tag = 'scoped memory for transformer_forward.1']
  %s0 = inlined_call_operand.smem [shape: u32[78], index: -1, kind: input, shape index: {}]
  %s1 = sld [smem:[%s0]]
  %s2 = scalar_lea.smem %s0, 1
  %s3 = sld [smem:[%s2]]
  %s4 = scalar_lea.smem %s0, 2
  %s5 = sld [smem:[%s4]]
  %s6 = scalar_lea.smem %s0, 3
  %s7 = sld [smem:[%s6]]
  %s8 = scalar_lea.smem %s0, 4
  %s9 = sld [smem:[%s8]]
  %s10 = scalar_lea.smem %s0, 5
  %s11 = sld [smem:[%s10]]
  %s12 = scalar_lea.smem %s0, 6
  %s13 = sld [smem:[%s12]]
  %s14 = scalar_lea.smem %s0, 7
  %s15 = sld [smem:[%s14]]
  %s16 = scalar_lea.smem %s0, 8
  %s17 = sld [smem:[%s16]]
  %s18 = scalar_lea.smem %s0, 9
  %s19 = sld [smem:[%s18]]
  %s20 = scalar_lea.smem %s0, 10
  %s21 = sld [smem:[%s20]]
  %s22 = scalar_lea.smem %s0, 11
  %s23 = sld [smem:[%s22]]
  %s24 = scalar_lea.smem %s0, 12
  %s25 = sld [smem:[%s24]]
  %s26 = scalar_lea.smem %s0, 13
  %s27 = sld [smem:[%s26]]
  %s28 = scalar_lea.smem %s0, 14
  %s29 = sld [smem:[%s28]]
  %s30 = scalar_lea.smem %s0, 15
  %s31 = sld [smem:[%s30]]
  %s32 = scalar_lea.smem %s0, 16
  %s33 = sld [smem:[%s32]]
  %s34 = scalar_lea.smem %s0, 17
  %s35 = sld [smem:[%s34]]
  %s36 = scalar_lea.smem %s0, 18
  %s37 = sld [smem:[%s36]]
  %s38 = scalar_lea.smem %s0, 19
  %s39 = sld [smem:[%s38]]
  %s40 = scalar_lea.smem %s0, 20
  %s41 = sld [smem:[%s40]]
  %s42 = scalar_lea.smem %s0, 21
  %s43 = sld [smem:[%s42]]
  %s44 = scalar_lea.smem %s0, 22
  %s45 = sld [smem:[%s44]]
  %s46 = scalar_lea.smem %s0, 23
  %s47 = sld [smem:[%s46]]
  %s48 = scalar_lea.smem %s0, 24
  %s49 = sld [smem:[%s48]]
  %s50 = scalar_lea.smem %s0, 25
  %s51 = sld [smem:[%s50]]
  %s52 = scalar_lea.smem %s0, 26
  %s53 = sld [smem:[%s52]]
  %s54 = scalar_lea.smem %s0, 27
  %s55 = sld [smem:[%s54]]
  %s56 = scalar_lea.smem %s0, 28
  %s57 = sld [smem:[%s56]]
  %s58 = scalar_lea.smem %s0, 29
  %s59 = sld [smem:[%s58]]
  %s60 = scalar_lea.smem %s0, 30
  %s61 = sld [smem:[%s60]]
  %s62 = scalar_lea.smem %s0, 31
  %s63 = sld [smem:[%s62]]
  %s64 = scalar_lea.smem %s0, 32
  %s65 = sld [smem:[%s64]]
  %s66 = scalar_lea.smem %s0, 33
  %s67 = sld [smem:[%s66]]
  %s68 = scalar_lea.smem %s0, 34
  %s69 = sld [smem:[%s68]]
  %s70 = scalar_lea.smem %s0, 35
  %s71 = sld [smem:[%s70]]
  %s72 = scalar_lea.smem %s0, 36
  %s73 = sld [smem:[%s72]]
  %s74 = scalar_lea.smem %s0, 37
  %s75 = sld [smem:[%s74]]
  %s76 = scalar_lea.smem %s0, 38
  %s77 = sld [smem:[%s76]]
  %s78 = scalar_lea.smem %s0, 39
  %s79 = sld [smem:[%s78]]
  %s80 = scalar_lea.smem %s0, 40
  %s81 = sld [smem:[%s80]]
  %s82 = scalar_lea.smem %s0, 41
  %s83 = sld [smem:[%s82]]
  %s84 = scalar_lea.smem %s0, 42
  %s85 = sld [smem:[%s84]]
  %s86 = scalar_lea.smem %s0, 43
  %s87 = sld [smem:[%s86]]
  %s88 = scalar_lea.smem %s0, 44
  %s89 = sld [smem:[%s88]]
  %s90 = scalar_lea.smem %s0, 45
  %s91 = sld [smem:[%s90]]
  %s92 = scalar_lea.smem %s0, 46
  %s93 = sld [smem:[%s92]]
  %s94 = scalar_lea.smem %s0, 47
  %s95 = sld [smem:[%s94]]
  %s96 = scalar_lea.smem %s0, 48
  %s97 = sld [smem:[%s96]]
  %s98 = scalar_lea.smem %s0, 49
  %s99 = sld [smem:[%s98]]
  %s100 = scalar_lea.smem %s0, 50
  %s101 = sld [smem:[%s100]]
  %s102 = scalar_lea.smem %s0, 51
  %s103 = sld [smem:[%s102]]
  %s104 = scalar_lea.smem %s0, 52
  %s105 = sld [smem:[%s104]]
  %s106 = scalar_lea.smem %s0, 53
  %s107 = sld [smem:[%s106]]
  %s108 = scalar_lea.smem %s0, 54
  %s109 = sld [smem:[%s108]]
  %s110 = scalar_lea.smem %s0, 55
  %s111 = sld [smem:[%s110]]
  %s112 = scalar_lea.smem %s0, 56
  %s113 = sld [smem:[%s112]]
  %s114 = scalar_lea.smem %s0, 57
  %s115 = sld [smem:[%s114]]
  %s116 = scalar_lea.smem %s0, 58
  %s117 = sld [smem:[%s116]]
  %s118 = scalar_lea.smem %s0, 59
  %s119 = sld [smem:[%s118]]
  %s120 = scalar_lea.smem %s0, 60
  %s121 = sld [smem:[%s120]]
  %s122 = scalar_lea.smem %s0, 61
  %s123 = sld [smem:[%s122]]
  %s124 = scalar_lea.smem %s0, 62
  %s125 = sld [smem:[%s124]]
  %s126 = scalar_lea.smem %s0, 63
  %s127 = sld [smem:[%s126]]
  %s128 = scalar_lea.smem %s0, 64
  %s129 = sld [smem:[%s128]]
  %s130 = scalar_lea.smem %s0, 65
  %s131 = sld [smem:[%s130]]
  %s132 = scalar_lea.smem %s0, 66
  %s133 = sld [smem:[%s132]]
  %s134 = scalar_lea.smem %s0, 67
  %s135 = sld [smem:[%s134]]
  %s136 = scalar_lea.smem %s0, 68
  %s137 = sld [smem:[%s136]]
  %s138 = scalar_lea.smem %s0, 69
  %s139 = sld [smem:[%s138]]
  %s140 = scalar_lea.smem %s0, 70
  %s141 = sld [smem:[%s140]]
  %s142 = scalar_lea.smem %s0, 71
  %s143 = sld [smem:[%s142]]
  %s144 = scalar_lea.smem %s0, 72
  %s145 = sld [smem:[%s144]]
  %s146 = scalar_lea.smem %s0, 73
  %s147 = sld [smem:[%s146]]
  %s148 = scalar_lea.smem %s0, 74
  %s149 = sld [smem:[%s148]]
  %s150 = scalar_lea.smem %s0, 75
  %s151 = sld [smem:[%s150]]
  %s152 = scalar_lea.smem %s0, 76
  %s153 = sld [smem:[%s152]]
  %s154 = scalar_lea.smem %s0, 77
  %s155 = sld [smem:[%s154]]
  %s156 = sld [smem:[#allocation0]]
  $region465: #{transformer_forward.1} parent=0
    _
  %s158 = ssub.s32 1, %s156
  %s159 = scalar_select 0, %s158, %s156
  %v160 = vstv %s79
  %161 = vst [vmem:[#allocation2] sm:$0x1] %v160
  %v162 = vstv %s91
  %163 = vst [vmem:[#allocation3] sm:$0x1] %v162
  %v164 = vstv %s109
  %165 = vst [vmem:[#allocation4] sm:$0x1] %v164
  %v166 = vstv %s141
  %167 = vst [vmem:[#allocation5] sm:$0x1] %v166
  $region1: #{transformer_forward.1} parent=0
    #allocation6 [shape = 'u8[8192]{0}', space=vmem, size = 0x2000, scoped, tag = 'input window, operand 1']
    #allocation7 [shape = 's32[2]{0}', space=sflag, size = 0x8, scoped, tag = 'scoped memory for transformer_forward.1']
    #allocation8 [shape = 'u8[512]{0}', space=vmem, size = 0x400, scoped, tag = 'input window, operand 10, single buffered']
    #allocation9 [shape = 's32[1]{0}', space=sflag, size = 0x4, scoped, tag = 'scoped memory for transformer_forward.1']
    #allocation10 [shape = 'u8[512]{0}', space=vmem, size = 0x400, scoped, tag = 'input window, operand 11, single buffered']
    #allocation11 [shape = 'u8[512]{0}', space=vmem, size = 0x400, scoped, tag = 'input window, operand 13, single buffered']
    #allocation12 [shape = 's32[1]{0}', space=sflag, size = 0x4, scoped, tag = 'scoped memory for transformer_forward.1']
    #allocation13 [shape = 'u8[512]{0}', space=vmem, size = 0x400, scoped, tag = 'input window, operand 15, single buffered']
    #allocation14 [shape = 'u8[512]{0}', space=vmem, size = 0x400, scoped, tag = 'input window, operand 16, single buffered']
    #allocation15 [shape = 's32[1]{0}', space=sflag, size = 0x4, scoped, tag = 'scoped memory for transformer_forward.1']
    #allocation16 [shape = 'u8[512]{0}', space=vmem, size = 0x400, scoped, tag = 'input window, operand 17, single buffered']
    #allocation17 [shape = 'u8[512]{0}', space=vmem, size = 0x400, scoped, tag = 'input window, operand 22, single buffered']
    #allocation18 [shape = 's32[1]{0}', space=sflag, size = 0x4, scoped, tag = 'scoped memory for transformer_forward.1']
    #allocation19 [shape = 'u8[512]{0}', space=vmem, size = 0x400, scoped, tag = 'input window, operand 28, single buffered']
    #allocation20 [shape = 'u8[512]{0}', space=vmem, size = 0x400, scoped, tag = 'input window, operand 29, single buffered']
    #allocation21 [shape = 's32[1]{0}', space=sflag, size = 0x4, scoped, tag = 'scoped memory for transformer_forward.1']
    #allocation22 [shape = 'u8[512]{0}', space=vmem, size = 0x400, scoped, tag = 'input window, operand 31, single buffered']
    #allocation23 [shape = 'u8[512]{0}', space=vmem, size = 0x400, scoped, tag = 'input window, operand 33, single buffered']
    #allocation24 [shape = 's32[1]{0}', space=sflag, size = 0x4, scoped, tag = 'scoped memory for transformer_forward.1']
    #allocation25 [shape = 'u8[512]{0}', space=vmem, size = 0x400, scoped, tag = 'input window, operand 34, single buffered']
    #allocation26 [shape = 'u8[512]{0}', space=vmem, size = 0x400, scoped, tag = 'input window, operand 35, single buffered']
    #allocation27 [shape = 's32[1]{0}', space=sflag, size = 0x4, scoped, tag = 'scoped memory for transformer_forward.1']
    #allocation28 [shape = 'u8[512]{0}', space=vmem, size = 0x400, scoped, tag = 'input window, operand 37, single buffered']
    #allocation29 [shape = 'u8[512]{0}', space=vmem, size = 0x400, scoped, tag = 'input window, operand 41, single buffered']
    #allocation30 [shape = 's32[1]{0}', space=sflag, size = 0x4, scoped, tag = 'scoped memory for transformer_forward.1']
    #allocation31 [shape = 'u8[512]{0}', space=vmem, size = 0x400, scoped, tag = 'input window, operand 43, single buffered']
    #allocation32 [shape = 'u8[512]{0}', space=vmem, size = 0x400, scoped, tag = 'input window, operand 47, single buffered']
    #allocation33 [shape = 's32[1]{0}', space=sflag, size = 0x4, scoped, tag = 'scoped memory for transformer_forward.1']
    #allocation34 [shape = 'u8[512]{0}', space=vmem, size = 0x400, scoped, tag = 'input window, operand 52, single buffered']
    #allocation35 [shape = 'u8[512]{0}', space=vmem, size = 0x400, scoped, tag = 'input window, operand 56, single buffered']
    #allocation36 [shape = 's32[1]{0}', space=sflag, size = 0x4, scoped, tag = 'scoped memory for transformer_forward.1']
    #allocation37 [shape = 'u8[512]{0}', space=vmem, size = 0x400, scoped, tag = 'input window, operand 58, single buffered']
    #allocation38 [shape = 'u8[512]{0}', space=vmem, size = 0x400, scoped, tag = 'input window, operand 60, single buffered']
    #allocation39 [shape = 's32[1]{0}', space=sflag, size = 0x4, scoped, tag = 'scoped memory for transformer_forward.1']
    #allocation40 [shape = 'u8[512]{0}', space=vmem, size = 0x400, scoped, tag = 'input window, operand 62, single buffered']
    #allocation41 [shape = 'u8[512]{0}', space=vmem, size = 0x400, scoped, tag = 'input window, operand 64, single buffered']
    #allocation42 [shape = 's32[1]{0}', space=sflag, size = 0x4, scoped, tag = 'scoped memory for transformer_forward.1']
    #allocation43 [shape = 'u8[512]{0}', space=vmem, size = 0x400, scoped, tag = 'input window, operand 66, single buffered']
    #allocation44 [shape = 'u8[512]{0}', space=vmem, size = 0x400, scoped, tag = 'input window, operand 68, single buffered']
    #allocation45 [shape = 's32[1]{0}', space=sflag, size = 0x4, scoped, tag = 'scoped memory for transformer_forward.1']
    #allocation46 [shape = 'u8[16384]{0}', space=vmem, size = 0x4000, scoped, tag = 'input window, operand 71, single buffered']
    #allocation47 [shape = 'u8[512]{0}', space=vmem, size = 0x400, scoped, tag = 'input window, operand 72, single buffered']
    #allocation48 [shape = 's32[1]{0}', space=sflag, size = 0x4, scoped, tag = 'scoped memory for transformer_forward.1']
    #allocation49 [shape = 'u8[512]{0}', space=vmem, size = 0x400, scoped, tag = 'input window, operand 73, single buffered']
    #allocation50 [shape = 'u8[512]{0}', space=vmem, size = 0x400, scoped, tag = 'input window, operand 74, single buffered']
    #allocation51 [shape = 's32[1]{0}', space=sflag, size = 0x4, scoped, tag = 'scoped memory for transformer_forward.1']
    #allocation52 [shape = 'u8[512]{0}', space=vmem, size = 0x400, scoped, tag = 'input window, operand 76, single buffered']
    %168 = vsyncpa [#allocation7], 0
    %s169 = scalar_lea.sflag [#allocation7], 1
    %170 = vsyncpa %s169, 0
    %171 = vsyncpa [#allocation9], 0
    %172 = vsyncpa [#allocation12], 0
    %173 = vsyncpa [#allocation15], 0
    %174 = vsyncpa [#allocation18], 0
    %175 = vsyncpa [#allocation21], 0
    %176 = vsyncpa [#allocation24], 0
    %177 = vsyncpa [#allocation27], 0
    %178 = vsyncpa [#allocation30], 0
    %179 = vsyncpa [#allocation33], 0
    %180 = vsyncpa [#allocation36], 0
    %181 = vsyncpa [#allocation39], 0
    %182 = vsyncpa [#allocation42], 0
    %183 = vsyncpa [#allocation45], 0
    %184 = vsyncpa [#allocation48], 0
    %185 = vsyncpa [#allocation51], 0
    loop: start=0, step=1, limit=4
    $region2: #{transformer_forward.1} parent=1 // loop_pre_header
      _
    $region3: #{transformer_forward.1} parent=1 // loop_header
      %s187 = sphi 0, %s191
      %p188 = scmp.ge.s32.totalorder %s187, 4
      %s197 = sphi 0, %s199
      %s200 = sphi 0, %s197
      %s201 = sphi 0, %s200
      %s217 = sphi 0, %s201
      %s223 = sphi 0, %s225
      %s226 = sphi 0, %s223
      %s227 = sphi 0, %s226
      %s243 = sphi 0, %s227
      %s249 = sphi 0, %s251
      %s252 = sphi 0, %s249
      %s253 = sphi 0, %s252
      %s269 = sphi 0, %s253
      %s275 = sphi 0, %s277
      %s278 = sphi 0, %s275
      %s279 = sphi 0, %s278
      %s295 = sphi 0, %s279
      %s301 = sphi 0, %s303
      %s304 = sphi 0, %s301
      %s305 = sphi 0, %s304
      %s321 = sphi 0, %s305
      %s327 = sphi 0, %s329
      %s330 = sphi 0, %s327
      %s331 = sphi 0, %s330
      %s347 = sphi 0, %s331
      %s351 = sphi 0, %s351
      %s353 = sphi 0, %s351
      %s354 = sphi 0, %s353
      %s368 = sphi 0, %s354
      %s372 = sphi 0, %s372
      %s374 = sphi 0, %s372
      %s375 = sphi 0, %s374
      %s389 = sphi 0, %s375
      %s393 = sphi 0, %s393
      %s395 = sphi 0, %s393
      %s396 = sphi 0, %s395
      %s410 = sphi 0, %s396
      %s414 = sphi 0, %s414
      %s416 = sphi 0, %s414
      %s417 = sphi 0, %s416
      %s431 = sphi 0, %s417
      %s435 = sphi 0, %s435
      %s437 = sphi 0, %s435
      %s438 = sphi 0, %s437
      %s452 = sphi 0, %s438
      %s456 = sphi 0, %s456
      %s458 = sphi 0, %s456
      %s459 = sphi 0, %s458
      %s473 = sphi 0, %s459
      %s477 = sphi 0, %s477
      %s479 = sphi 0, %s477
      %s480 = sphi 0, %s479
      %s494 = sphi 0, %s480
      %s498 = sphi 0, %s498
      %s500 = sphi 0, %s498
      %s501 = sphi 0, %s500
      %s515 = sphi 0, %s501
      %s519 = sphi 0, %s519
      %s521 = sphi 0, %s519
      %s522 = sphi 0, %s521
      %s536 = sphi 0, %s522
      %s540 = sphi 0, %s540
      %s542 = sphi 0, %s540
      %s543 = sphi 0, %s542
      %s557 = sphi 0, %s543
      %s561 = sphi 0, %s561
      %s563 = sphi 0, %s561
      %s564 = sphi 0, %s563
      %s578 = sphi 0, %s564
      %s582 = sphi 0, %s582
      %s584 = sphi 0, %s582
      %s585 = sphi 0, %s584
      %s599 = sphi 0, %s585
      %s603 = sphi 0, %s603
      %s605 = sphi 0, %s603
      %s606 = sphi 0, %s605
      %s620 = sphi 0, %s606
      %s624 = sphi 0, %s624
      %s626 = sphi 0, %s624
      %s627 = sphi 0, %s626
      %s641 = sphi 0, %s627
      %s645 = sphi 0, %s645
      %s647 = sphi 0, %s645
      %s648 = sphi 0, %s647
      %s662 = sphi 0, %s648
      %s666 = sphi 0, %s666
      %s668 = sphi 0, %s666
      %s669 = sphi 0, %s668
      %s683 = sphi 0, %s669
      %s687 = sphi 0, %s687
      %s689 = sphi 0, %s687
      %s690 = sphi 0, %s689
      %s704 = sphi 0, %s690
      %s708 = sphi 0, %s708
      %s710 = sphi 0, %s708
      %s711 = sphi 0, %s710
      %s725 = sphi 0, %s711
      %s729 = sphi 0, %s729
      %s731 = sphi 0, %s729
      %s732 = sphi 0, %s731
      %s746 = sphi 0, %s732
      %s750 = sphi 0, %s750
      %s752 = sphi 0, %s750
      %s753 = sphi 0, %s752
      %s767 = sphi 0, %s753
      %s771 = sphi 0, %s771
      %s773 = sphi 0, %s771
      %s774 = sphi 0, %s773
      %s788 = sphi 0, %s774
      %s792 = sphi 0, %s792
      %s794 = sphi 0, %s792
      %s795 = sphi 0, %s794
      %s809 = sphi 0, %s795
      %s813 = sphi 0, %s813
      %s815 = sphi 0, %s813
      %s816 = sphi 0, %s815
      %s830 = sphi 0, %s816
      %s834 = sphi 0, %s834
      %s836 = sphi 0, %s834
      %s837 = sphi 0, %s836
      %s851 = sphi 0, %s837
      %s855 = sphi 0, %s855
      %s857 = sphi 0, %s855
      %s858 = sphi 0, %s857
      %s872 = sphi 0, %s858
      %s876 = sphi 0, %s876
      %s878 = sphi 0, %s876
      %s879 = sphi 0, %s878
      %s893 = sphi 0, %s879
      %s897 = sphi 0, %s897
      %s899 = sphi 0, %s897
      %s900 = sphi 0, %s899
      %s914 = sphi 0, %s900
      %s918 = sphi 0, %s918
      %s920 = sphi 0, %s918
      %s921 = sphi 0, %s920
      %s935 = sphi 0, %s921
      %s939 = sphi 0, %s939
      %s941 = sphi 0, %s939
      %s942 = sphi 0, %s941
      %s956 = sphi 0, %s942
      %s960 = sphi 0, %s960
      %s962 = sphi 0, %s960
      %s963 = sphi 0, %s962
      %s977 = sphi 0, %s963
      %s981 = sphi 0, %s981
      %s983 = sphi 0, %s981
      %s984 = sphi 0, %s983
      %s998 = sphi 0, %s984
      %s1002 = sphi 0, %s1002
      %s1004 = sphi 0, %s1002
      %s1005 = sphi 0, %s1004
      %s1019 = sphi 0, %s1005
      %s1023 = sphi 0, %s1023
      %s1025 = sphi 0, %s1023
      %s1026 = sphi 0, %s1025
      %s1040 = sphi 0, %s1026
      %s1044 = sphi 0, %s1044
      %s1046 = sphi 0, %s1044
      %s1047 = sphi 0, %s1046
      %s1061 = sphi 0, %s1047
      %s1065 = sphi 0, %s1065
      %s1067 = sphi 0, %s1065
      %s1068 = sphi 0, %s1067
      %s1082 = sphi 0, %s1068
      %s1086 = sphi 0, %s1086
      %s1088 = sphi 0, %s1086
      %s1089 = sphi 0, %s1088
      %s1103 = sphi 0, %s1089
      %s1107 = sphi 0, %s1107
      %s1109 = sphi 0, %s1107
      %s1110 = sphi 0, %s1109
      %s1124 = sphi 0, %s1110
      %s1128 = sphi 0, %s1128
      %s1130 = sphi 0, %s1128
      %s1131 = sphi 0, %s1130
      %s1145 = sphi 0, %s1131
      %s1149 = sphi 0, %s1149
      %s1151 = sphi 0, %s1149
      %s1152 = sphi 0, %s1151
      %s1166 = sphi 0, %s1152
      %s1170 = sphi 0, %s1170
      %s1172 = sphi 0, %s1170
      %s1173 = sphi 0, %s1172
      %s1187 = sphi 0, %s1173
      %s1191 = sphi 0, %s1191
      %s1193 = sphi 0, %s1191
      %s1194 = sphi 0, %s1193
      %s1208 = sphi 0, %s1194
      %s1212 = sphi 0, %s1212
      %s1214 = sphi 0, %s1212
      %s1215 = sphi 0, %s1214
      %s1229 = sphi 0, %s1215
      %s1233 = sphi 0, %s1233
      %s1235 = sphi 0, %s1233
      %s1236 = sphi 0, %s1235
      %s1250 = sphi 0, %s1236
      %s1254 = sphi 0, %s1254
      %s1256 = sphi 0, %s1254
      %s1257 = sphi 0, %s1256
      %s1271 = sphi 0, %s1257
      %s1275 = sphi 0, %s1275
      %s1277 = sphi 0, %s1275
      %s1278 = sphi 0, %s1277
      %s1292 = sphi 0, %s1278
      %s1296 = sphi 0, %s1296
      %s1298 = sphi 0, %s1296
      %s1299 = sphi 0, %s1298
      %s1313 = sphi 0, %s1299
      %s1317 = sphi 0, %s1317
      %s1319 = sphi 0, %s1317
      %s1320 = sphi 0, %s1319
      %s1334 = sphi 0, %s1320
      %s1338 = sphi 0, %s1338
      %s1340 = sphi 0, %s1338
      %s1341 = sphi 0, %s1340
      %s1355 = sphi 0, %s1341
      %s1359 = sphi 0, %s1359
      %s1361 = sphi 0, %s1359
      %s1362 = sphi 0, %s1361
      %s1376 = sphi 0, %s1362
      %s1380 = sphi 0, %s1380
      %s1382 = sphi 0, %s1380
      %s1383 = sphi 0, %s1382
      %s1397 = sphi 0, %s1383
      %s1401 = sphi 0, %s1401
      %s1403 = sphi 0, %s1401
      %s1404 = sphi 0, %s1403
      %s1418 = sphi 0, %s1404
      %s1422 = sphi 0, %s1422
      %s1424 = sphi 0, %s1422
      %s1425 = sphi 0, %s1424
      %s1439 = sphi 0, %s1425
      %s1443 = sphi 0, %s1443
      %s1445 = sphi 0, %s1443
      %s1446 = sphi 0, %s1445
      %s1460 = sphi 0, %s1446
      %s1464 = sphi 0, %s1464
      %s1466 = sphi 0, %s1464
      %s1467 = sphi 0, %s1466
      %s1481 = sphi 0, %s1467
      %s1485 = sphi 0, %s1485
      %s1487 = sphi 0, %s1485
      %s1488 = sphi 0, %s1487
      %s1502 = sphi 0, %s1488
      %s1506 = sphi 0, %s1506
      %s1508 = sphi 0, %s1506
      %s1509 = sphi 0, %s1508
      %s1523 = sphi 0, %s1509
      %s1527 = sphi 0, %s1527
      %s1529 = sphi 0, %s1527
      %s1530 = sphi 0, %s1529
      %s1544 = sphi 0, %s1530
      %s1548 = sphi 0, %s1548
      %s1550 = sphi 0, %s1548
      %s1551 = sphi 0, %s1550
      %s1565 = sphi 0, %s1551
      %s1569 = sphi 0, %s1569
      %s1571 = sphi 0, %s1569
      %s1572 = sphi 0, %s1571
      %s1586 = sphi 0, %s1572
      %s1590 = sphi 0, %s1590
      %s1592 = sphi 0, %s1590
      %s1593 = sphi 0, %s1592
      %s1607 = sphi 0, %s1593
      %s1611 = sphi 0, %s1611
      %s1613 = sphi 0, %s1611
      %s1614 = sphi 0, %s1613
      %s1628 = sphi 0, %s1614
      %s1632 = sphi 0, %s1632
      %s1634 = sphi 0, %s1632
      %s1635 = sphi 0, %s1634
      %s1649 = sphi 0, %s1635
      %s1653 = sphi 0, %s1653
      %s1655 = sphi 0, %s1653
      %s1656 = sphi 0, %s1655
      %s1670 = sphi 0, %s1656
      %s1674 = sphi 0, %s1674
      %s1676 = sphi 0, %s1674
      %s1677 = sphi 0, %s1676
      %s1691 = sphi 0, %s1677
      %s1695 = sphi 0, %s1695
      %s1697 = sphi 0, %s1695
      %s1698 = sphi 0, %s1697
      %s1712 = sphi 0, %s1698
      %s1716 = sphi 0, %s1716
      %s1718 = sphi 0, %s1716
      %s1719 = sphi 0, %s1718
      %s1733 = sphi 0, %s1719
      %s1737 = sphi 0, %s1737
      %s1739 = sphi 0, %s1737
      %s1740 = sphi 0, %s1739
      %s1754 = sphi 0, %s1740
      %s1758 = sphi 0, %s1758
      %s1760 = sphi 0, %s1758
      %s1761 = sphi 0, %s1760
      %s1775 = sphi 0, %s1761
      %s1779 = sphi 0, %s1779
      %s1781 = sphi 0, %s1779
      %s1782 = sphi 0, %s1781
      %s1796 = sphi 0, %s1782
      %s1800 = sphi 0, %s1800
      %s1802 = sphi 0, %s1800
      %s1803 = sphi 0, %s1802
      %s1817 = sphi 0, %s1803
      %s1821 = sphi 0, %s1821
      %s1823 = sphi 0, %s1821
      %s1824 = sphi 0, %s1823
      %s1838 = sphi 0, %s1824
      %s1844 = sphi 0, %s1846
      %s1847 = sphi 0, %s1844
      %s1848 = sphi 0, %s1847
      %s1864 = sphi 0, %s1848
    $region4: #{transformer_forward.1} parent=1 // loop_header_branch
      %190 = sbr.rel (%p188) target = $region8
    $region5: #{transformer_forward.1} parent=1 // loop_body
      %s192 = ssub.s32 %s187, 1
      %s193 = ssub.s32 %s187, 2
      %s194 = sadd.s32 %s187, 1
      %s195 = ssub.s32 %s187, %s194
      %p196 = scmp.eq.s32.totalorder %s195, 0
      %s198 = sadd.s32 %s197, 1
      %s199 = scalar_select %p196, %s197, %s198
      %p202 = pneg %p196
      %p203 = scmp.eq.s32.totalorder %s187, 1
      %p204 = por %p202, %p203
      %p205 = scmp.ne.s32.totalorder %s197, %s200
      %p206 = scmp.eq.s32.totalorder %s187, 0
      %p207 = por %p205, %p206
      %p208 = scmp.ne.s32.totalorder %s197, %s200
      %p209 = scmp.eq.s32.totalorder %s192, 1
      %p210 = por %p208, %p209
      %p211 = scmp.ne.s32.totalorder %s200, %s201
      %p212 = scmp.eq.s32.totalorder %s192, 0
      %p213 = por %p211, %p212
      %p214 = scmp.ne.s32.totalorder %s200, %s201
      %p215 = scmp.eq.s32.totalorder %s193, 1
      %p216 = por %p214, %p215
      %p218 = scmp.ne.s32.totalorder %s201, %s217
      %p219 = scmp.eq.s32.totalorder %s193, 0
      %p220 = por %p218, %p219
      %s221 = ssub.s32 %s187, %s194
      %p222 = scmp.eq.s32.totalorder %s221, 0
      %s224 = sadd.s32 %s223, 1
      %s225 = scalar_select %p222, %s223, %s224
      %p228 = pneg %p222
      %p229 = scmp.eq.s32.totalorder %s187, 1
      %p230 = por %p228, %p229
      %p231 = scmp.ne.s32.totalorder %s223, %s226
      %p232 = scmp.eq.s32.totalorder %s187, 0
      %p233 = por %p231, %p232
      %p234 = scmp.ne.s32.totalorder %s223, %s226
      %p235 = scmp.eq.s32.totalorder %s192, 1
      %p236 = por %p234, %p235
      %p237 = scmp.ne.s32.totalorder %s226, %s227
      %p238 = scmp.eq.s32.totalorder %s192, 0
      %p239 = por %p237, %p238
      %p240 = scmp.ne.s32.totalorder %s226, %s227
      %p241 = scmp.eq.s32.totalorder %s193, 1
      %p242 = por %p240, %p241
      %p244 = scmp.ne.s32.totalorder %s227, %s243
      %p245 = scmp.eq.s32.totalorder %s193, 0
      %p246 = por %p244, %p245
      %s247 = ssub.s32 %s187, %s194
      %p248 = scmp.eq.s32.totalorder %s247, 0
      %s250 = sadd.s32 %s249, 1
      %s251 = scalar_select %p248, %s249, %s250
      %p254 = pneg %p248
      %p255 = scmp.eq.s32.totalorder %s187, 1
      %p256 = por %p254, %p255
      %p257 = scmp.ne.s32.totalorder %s249, %s252
      %p258 = scmp.eq.s32.totalorder %s187, 0
      %p259 = por %p257, %p258
      %p260 = scmp.ne.s32.totalorder %s249, %s252
      %p261 = scmp.eq.s32.totalorder %s192, 1
      %p262 = por %p260, %p261
      %p263 = scmp.ne.s32.totalorder %s252, %s253
      %p264 = scmp.eq.s32.totalorder %s192, 0
      %p265 = por %p263, %p264
      %p266 = scmp.ne.s32.totalorder %s252, %s253
      %p267 = scmp.eq.s32.totalorder %s193, 1
      %p268 = por %p266, %p267
      %p270 = scmp.ne.s32.totalorder %s253, %s269
      %p271 = scmp.eq.s32.totalorder %s193, 0
      %p272 = por %p270, %p271
      %s273 = ssub.s32 %s187, %s194
      %p274 = scmp.eq.s32.totalorder %s273, 0
      %s276 = sadd.s32 %s275, 1
      %s277 = scalar_select %p274, %s275, %s276
      %p280 = pneg %p274
      %p281 = scmp.eq.s32.totalorder %s187, 1
      %p282 = por %p280, %p281
      %p283 = scmp.ne.s32.totalorder %s275, %s278
      %p284 = scmp.eq.s32.totalorder %s187, 0
      %p285 = por %p283, %p284
      %p286 = scmp.ne.s32.totalorder %s275, %s278
      %p287 = scmp.eq.s32.totalorder %s192, 1
      %p288 = por %p286, %p287
      %p289 = scmp.ne.s32.totalorder %s278, %s279
      %p290 = scmp.eq.s32.totalorder %s192, 0
      %p291 = por %p289, %p290
      %p292 = scmp.ne.s32.totalorder %s278, %s279
      %p293 = scmp.eq.s32.totalorder %s193, 1
      %p294 = por %p292, %p293
      %p296 = scmp.ne.s32.totalorder %s279, %s295
      %p297 = scmp.eq.s32.totalorder %s193, 0
      %p298 = por %p296, %p297
      %s299 = ssub.s32 %s187, %s194
      %p300 = scmp.eq.s32.totalorder %s299, 0
      %s302 = sadd.s32 %s301, 1
      %s303 = scalar_select %p300, %s301, %s302
      %p306 = pneg %p300
      %p307 = scmp.eq.s32.totalorder %s187, 1
      %p308 = por %p306, %p307
      %p309 = scmp.ne.s32.totalorder %s301, %s304
      %p310 = scmp.eq.s32.totalorder %s187, 0
      %p311 = por %p309, %p310
      %p312 = scmp.ne.s32.totalorder %s301, %s304
      %p313 = scmp.eq.s32.totalorder %s192, 1
      %p314 = por %p312, %p313
      %p315 = scmp.ne.s32.totalorder %s304, %s305
      %p316 = scmp.eq.s32.totalorder %s192, 0
      %p317 = por %p315, %p316
      %p318 = scmp.ne.s32.totalorder %s304, %s305
      %p319 = scmp.eq.s32.totalorder %s193, 1
      %p320 = por %p318, %p319
      %p322 = scmp.ne.s32.totalorder %s305, %s321
      %p323 = scmp.eq.s32.totalorder %s193, 0
      %p324 = por %p322, %p323
      %s325 = ssub.s32 %s187, %s194
      %p326 = scmp.eq.s32.totalorder %s325, 0
      %s328 = sadd.s32 %s327, 1
      %s329 = scalar_select %p326, %s327, %s328
      %p332 = pneg %p326
      %p333 = scmp.eq.s32.totalorder %s187, 1
      %p334 = por %p332, %p333
      %p335 = scmp.ne.s32.totalorder %s327, %s330
      %p336 = scmp.eq.s32.totalorder %s187, 0
      %p337 = por %p335, %p336
      %p338 = scmp.ne.s32.totalorder %s327, %s330
      %p339 = scmp.eq.s32.totalorder %s192, 1
      %p340 = por %p338, %p339
      %p341 = scmp.ne.s32.totalorder %s330, %s331
      %p342 = scmp.eq.s32.totalorder %s192, 0
      %p343 = por %p341, %p342
      %p344 = scmp.ne.s32.totalorder %s330, %s331
      %p345 = scmp.eq.s32.totalorder %s193, 1
      %p346 = por %p344, %p345
      %p348 = scmp.ne.s32.totalorder %s331, %s347
      %p349 = scmp.eq.s32.totalorder %s193, 0
      %p350 = por %p348, %p349
      %s352 = sadd.s32 %s351, 1
      %p355 = scmp.eq.s32.totalorder %s187, 1
      %p356 = scmp.ne.s32.totalorder %s351, %s353
      %p357 = scmp.eq.s32.totalorder %s187, 0
      %p358 = por %p356, %p357
      %p359 = scmp.ne.s32.totalorder %s351, %s353
      %p360 = scmp.eq.s32.totalorder %s192, 1
      %p361 = por %p359, %p360
      %p362 = scmp.ne.s32.totalorder %s353, %s354
      %p363 = scmp.eq.s32.totalorder %s192, 0
      %p364 = por %p362, %p363
      %p365 = scmp.ne.s32.totalorder %s353, %s354
      %p366 = scmp.eq.s32.totalorder %s193, 1
      %p367 = por %p365, %p366
      %p369 = scmp.ne.s32.totalorder %s354, %s368
      %p370 = scmp.eq.s32.totalorder %s193, 0
      %p371 = por %p369, %p370
      %s373 = sadd.s32 %s372, 1
      %p376 = scmp.eq.s32.totalorder %s187, 1
      %p377 = scmp.ne.s32.totalorder %s372, %s374
      %p378 = scmp.eq.s32.totalorder %s187, 0
      %p379 = por %p377, %p378
      %p380 = scmp.ne.s32.totalorder %s372, %s374
      %p381 = scmp.eq.s32.totalorder %s192, 1
      %p382 = por %p380, %p381
      %p383 = scmp.ne.s32.totalorder %s374, %s375
      %p384 = scmp.eq.s32.totalorder %s192, 0
      %p385 = por %p383, %p384
      %p386 = scmp.ne.s32.totalorder %s374, %s375
      %p387 = scmp.eq.s32.totalorder %s193, 1
      %p388 = por %p386, %p387
      %p390 = scmp.ne.s32.totalorder %s375, %s389
      %p391 = scmp.eq.s32.totalorder %s193, 0
      %p392 = por %p390, %p391
      %s394 = sadd.s32 %s393, 1
      %p397 = scmp.eq.s32.totalorder %s187, 1
      %p398 = scmp.ne.s32.totalorder %s393, %s395
      %p399 = scmp.eq.s32.totalorder %s187, 0
      %p400 = por %p398, %p399
      %p401 = scmp.ne.s32.totalorder %s393, %s395
      %p402 = scmp.eq.s32.totalorder %s192, 1
      %p403 = por %p401, %p402
      %p404 = scmp.ne.s32.totalorder %s395, %s396
      %p405 = scmp.eq.s32.totalorder %s192, 0
      %p406 = por %p404, %p405
      %p407 = scmp.ne.s32.totalorder %s395, %s396
      %p408 = scmp.eq.s32.totalorder %s193, 1
      %p409 = por %p407, %p408
      %p411 = scmp.ne.s32.totalorder %s396, %s410
      %p412 = scmp.eq.s32.totalorder %s193, 0
      %p413 = por %p411, %p412
      %s415 = sadd.s32 %s414, 1
      %p418 = scmp.eq.s32.totalorder %s187, 1
      %p419 = scmp.ne.s32.totalorder %s414, %s416
      %p420 = scmp.eq.s32.totalorder %s187, 0
      %p421 = por %p419, %p420
      %p422 = scmp.ne.s32.totalorder %s414, %s416
      %p423 = scmp.eq.s32.totalorder %s192, 1
      %p424 = por %p422, %p423
      %p425 = scmp.ne.s32.totalorder %s416, %s417
      %p426 = scmp.eq.s32.totalorder %s192, 0
      %p427 = por %p425, %p426
      %p428 = scmp.ne.s32.totalorder %s416, %s417
      %p429 = scmp.eq.s32.totalorder %s193, 1
      %p430 = por %p428, %p429
      %p432 = scmp.ne.s32.totalorder %s417, %s431
      %p433 = scmp.eq.s32.totalorder %s193, 0
      %p434 = por %p432, %p433
      %s436 = sadd.s32 %s435, 1
      %p439 = scmp.eq.s32.totalorder %s187, 1
      %p440 = scmp.ne.s32.totalorder %s435, %s437
      %p441 = scmp.eq.s32.totalorder %s187, 0
      %p442 = por %p440, %p441
      %p443 = scmp.ne.s32.totalorder %s435, %s437
      %p444 = scmp.eq.s32.totalorder %s192, 1
      %p445 = por %p443, %p444
      %p446 = scmp.ne.s32.totalorder %s437, %s438
      %p447 = scmp.eq.s32.totalorder %s192, 0
      %p448 = por %p446, %p447
      %p449 = scmp.ne.s32.totalorder %s437, %s438
      %p450 = scmp.eq.s32.totalorder %s193, 1
      %p451 = por %p449, %p450
      %p453 = scmp.ne.s32.totalorder %s438, %s452
      %p454 = scmp.eq.s32.totalorder %s193, 0
      %p455 = por %p453, %p454
      %s457 = sadd.s32 %s456, 1
      %p460 = scmp.eq.s32.totalorder %s187, 1
      %p461 = scmp.ne.s32.totalorder %s456, %s458
      %p462 = scmp.eq.s32.totalorder %s187, 0
      %p463 = por %p461, %p462
      %p464 = scmp.ne.s32.totalorder %s456, %s458
      %p465 = scmp.eq.s32.totalorder %s192, 1
      %p466 = por %p464, %p465
      %p467 = scmp.ne.s32.totalorder %s458, %s459
      %p468 = scmp.eq.s32.totalorder %s192, 0
      %p469 = por %p467, %p468
      %p470 = scmp.ne.s32.totalorder %s458, %s459
      %p471 = scmp.eq.s32.totalorder %s193, 1
      %p472 = por %p470, %p471
      %p474 = scmp.ne.s32.totalorder %s459, %s473
      %p475 = scmp.eq.s32.totalorder %s193, 0
      %p476 = por %p474, %p475
      %s478 = sadd.s32 %s477, 1
      %p481 = scmp.eq.s32.totalorder %s187, 1
      %p482 = scmp.ne.s32.totalorder %s477, %s479
      %p483 = scmp.eq.s32.totalorder %s187, 0
      %p484 = por %p482, %p483
      %p485 = scmp.ne.s32.totalorder %s477, %s479
      %p486 = scmp.eq.s32.totalorder %s192, 1
      %p487 = por %p485, %p486
      %p488 = scmp.ne.s32.totalorder %s479, %s480
      %p489 = scmp.eq.s32.totalorder %s192, 0
      %p490 = por %p488, %p489
      %p491 = scmp.ne.s32.totalorder %s479, %s480
      %p492 = scmp.eq.s32.totalorder %s193, 1
      %p493 = por %p491, %p492
      %p495 = scmp.ne.s32.totalorder %s480, %s494
      %p496 = scmp.eq.s32.totalorder %s193, 0
      %p497 = por %p495, %p496
      %s499 = sadd.s32 %s498, 1
      %p502 = scmp.eq.s32.totalorder %s187, 1
      %p503 = scmp.ne.s32.totalorder %s498, %s500
      %p504 = scmp.eq.s32.totalorder %s187, 0
      %p505 = por %p503, %p504
      %p506 = scmp.ne.s32.totalorder %s498, %s500
      %p507 = scmp.eq.s32.totalorder %s192, 1
      %p508 = por %p506, %p507
      %p509 = scmp.ne.s32.totalorder %s500, %s501
      %p510 = scmp.eq.s32.totalorder %s192, 0
      %p511 = por %p509, %p510
      %p512 = scmp.ne.s32.totalorder %s500, %s501
      %p513 = scmp.eq.s32.totalorder %s193, 1
      %p514 = por %p512, %p513
      %p516 = scmp.ne.s32.totalorder %s501, %s515
      %p517 = scmp.eq.s32.totalorder %s193, 0
      %p518 = por %p516, %p517
      %s520 = sadd.s32 %s519, 1
      %p523 = scmp.eq.s32.totalorder %s187, 1
      %p524 = scmp.ne.s32.totalorder %s519, %s521
      %p525 = scmp.eq.s32.totalorder %s187, 0
      %p526 = por %p524, %p525
      %p527 = scmp.ne.s32.totalorder %s519, %s521
      %p528 = scmp.eq.s32.totalorder %s192, 1
      %p529 = por %p527, %p528
      %p530 = scmp.ne.s32.totalorder %s521, %s522
      %p531 = scmp.eq.s32.totalorder %s192, 0
      %p532 = por %p530, %p531
      %p533 = scmp.ne.s32.totalorder %s521, %s522
      %p534 = scmp.eq.s32.totalorder %s193, 1
      %p535 = por %p533, %p534
      %p537 = scmp.ne.s32.totalorder %s522, %s536
      %p538 = scmp.eq.s32.totalorder %s193, 0
      %p539 = por %p537, %p538
      %s541 = sadd.s32 %s540, 1
      %p544 = scmp.eq.s32.totalorder %s187, 1
      %p545 = scmp.ne.s32.totalorder %s540, %s542
      %p546 = scmp.eq.s32.totalorder %s187, 0
      %p547 = por %p545, %p546
      %p548 = scmp.ne.s32.totalorder %s540, %s542
      %p549 = scmp.eq.s32.totalorder %s192, 1
      %p550 = por %p548, %p549
      %p551 = scmp.ne.s32.totalorder %s542, %s543
      %p552 = scmp.eq.s32.totalorder %s192, 0
      %p553 = por %p551, %p552
      %p554 = scmp.ne.s32.totalorder %s542, %s543
      %p555 = scmp.eq.s32.totalorder %s193, 1
      %p556 = por %p554, %p555
      %p558 = scmp.ne.s32.totalorder %s543, %s557
      %p559 = scmp.eq.s32.totalorder %s193, 0
      %p560 = por %p558, %p559
      %s562 = sadd.s32 %s561, 1
      %p565 = scmp.eq.s32.totalorder %s187, 1
      %p566 = scmp.ne.s32.totalorder %s561, %s563
      %p567 = scmp.eq.s32.totalorder %s187, 0
      %p568 = por %p566, %p567
      %p569 = scmp.ne.s32.totalorder %s561, %s563
      %p570 = scmp.eq.s32.totalorder %s192, 1
      %p571 = por %p569, %p570
      %p572 = scmp.ne.s32.totalorder %s563, %s564
      %p573 = scmp.eq.s32.totalorder %s192, 0
      %p574 = por %p572, %p573
      %p575 = scmp.ne.s32.totalorder %s563, %s564
      %p576 = scmp.eq.s32.totalorder %s193, 1
      %p577 = por %p575, %p576
      %p579 = scmp.ne.s32.totalorder %s564, %s578
      %p580 = scmp.eq.s32.totalorder %s193, 0
      %p581 = por %p579, %p580
      %s583 = sadd.s32 %s582, 1
      %p586 = scmp.eq.s32.totalorder %s187, 1
      %p587 = scmp.ne.s32.totalorder %s582, %s584
      %p588 = scmp.eq.s32.totalorder %s187, 0
      %p589 = por %p587, %p588
      %p590 = scmp.ne.s32.totalorder %s582, %s584
      %p591 = scmp.eq.s32.totalorder %s192, 1
      %p592 = por %p590, %p591
      %p593 = scmp.ne.s32.totalorder %s584, %s585
      %p594 = scmp.eq.s32.totalorder %s192, 0
      %p595 = por %p593, %p594
      %p596 = scmp.ne.s32.totalorder %s584, %s585
      %p597 = scmp.eq.s32.totalorder %s193, 1
      %p598 = por %p596, %p597
      %p600 = scmp.ne.s32.totalorder %s585, %s599
      %p601 = scmp.eq.s32.totalorder %s193, 0
      %p602 = por %p600, %p601
      %s604 = sadd.s32 %s603, 1
      %p607 = scmp.eq.s32.totalorder %s187, 1
      %p608 = scmp.ne.s32.totalorder %s603, %s605
      %p609 = scmp.eq.s32.totalorder %s187, 0
      %p610 = por %p608, %p609
      %p611 = scmp.ne.s32.totalorder %s603, %s605
      %p612 = scmp.eq.s32.totalorder %s192, 1
      %p613 = por %p611, %p612
      %p614 = scmp.ne.s32.totalorder %s605, %s606
      %p615 = scmp.eq.s32.totalorder %s192, 0
      %p616 = por %p614, %p615
      %p617 = scmp.ne.s32.totalorder %s605, %s606
      %p618 = scmp.eq.s32.totalorder %s193, 1
      %p619 = por %p617, %p618
      %p621 = scmp.ne.s32.totalorder %s606, %s620
      %p622 = scmp.eq.s32.totalorder %s193, 0
      %p623 = por %p621, %p622
      %s625 = sadd.s32 %s624, 1
      %p628 = scmp.eq.s32.totalorder %s187, 1
      %p629 = scmp.ne.s32.totalorder %s624, %s626
      %p630 = scmp.eq.s32.totalorder %s187, 0
      %p631 = por %p629, %p630
      %p632 = scmp.ne.s32.totalorder %s624, %s626
      %p633 = scmp.eq.s32.totalorder %s192, 1
      %p634 = por %p632, %p633
      %p635 = scmp.ne.s32.totalorder %s626, %s627
      %p636 = scmp.eq.s32.totalorder %s192, 0
      %p637 = por %p635, %p636
      %p638 = scmp.ne.s32.totalorder %s626, %s627
      %p639 = scmp.eq.s32.totalorder %s193, 1
      %p640 = por %p638, %p639
      %p642 = scmp.ne.s32.totalorder %s627, %s641
      %p643 = scmp.eq.s32.totalorder %s193, 0
      %p644 = por %p642, %p643
      %s646 = sadd.s32 %s645, 1
      %p649 = scmp.eq.s32.totalorder %s187, 1
      %p650 = scmp.ne.s32.totalorder %s645, %s647
      %p651 = scmp.eq.s32.totalorder %s187, 0
      %p652 = por %p650, %p651
      %p653 = scmp.ne.s32.totalorder %s645, %s647
      %p654 = scmp.eq.s32.totalorder %s192, 1
      %p655 = por %p653, %p654
      %p656 = scmp.ne.s32.totalorder %s647, %s648
      %p657 = scmp.eq.s32.totalorder %s192, 0
      %p658 = por %p656, %p657
      %p659 = scmp.ne.s32.totalorder %s647, %s648
      %p660 = scmp.eq.s32.totalorder %s193, 1
      %p661 = por %p659, %p660
      %p663 = scmp.ne.s32.totalorder %s648, %s662
      %p664 = scmp.eq.s32.totalorder %s193, 0
      %p665 = por %p663, %p664
      %s667 = sadd.s32 %s666, 1
      %p670 = scmp.eq.s32.totalorder %s187, 1
      %p671 = scmp.ne.s32.totalorder %s666, %s668
      %p672 = scmp.eq.s32.totalorder %s187, 0
      %p673 = por %p671, %p672
      %p674 = scmp.ne.s32.totalorder %s666, %s668
      %p675 = scmp.eq.s32.totalorder %s192, 1
      %p676 = por %p674, %p675
      %p677 = scmp.ne.s32.totalorder %s668, %s669
      %p678 = scmp.eq.s32.totalorder %s192, 0
      %p679 = por %p677, %p678
      %p680 = scmp.ne.s32.totalorder %s668, %s669
      %p681 = scmp.eq.s32.totalorder %s193, 1
      %p682 = por %p680, %p681
      %p684 = scmp.ne.s32.totalorder %s669, %s683
      %p685 = scmp.eq.s32.totalorder %s193, 0
      %p686 = por %p684, %p685
      %s688 = sadd.s32 %s687, 1
      %p691 = scmp.eq.s32.totalorder %s187, 1
      %p692 = scmp.ne.s32.totalorder %s687, %s689
      %p693 = scmp.eq.s32.totalorder %s187, 0
      %p694 = por %p692, %p693
      %p695 = scmp.ne.s32.totalorder %s687, %s689
      %p696 = scmp.eq.s32.totalorder %s192, 1
      %p697 = por %p695, %p696
      %p698 = scmp.ne.s32.totalorder %s689, %s690
      %p699 = scmp.eq.s32.totalorder %s192, 0
      %p700 = por %p698, %p699
      %p701 = scmp.ne.s32.totalorder %s689, %s690
      %p702 = scmp.eq.s32.totalorder %s193, 1
      %p703 = por %p701, %p702
      %p705 = scmp.ne.s32.totalorder %s690, %s704
      %p706 = scmp.eq.s32.totalorder %s193, 0
      %p707 = por %p705, %p706
      %s709 = sadd.s32 %s708, 1
      %p712 = scmp.eq.s32.totalorder %s187, 1
      %p713 = scmp.ne.s32.totalorder %s708, %s710
      %p714 = scmp.eq.s32.totalorder %s187, 0
      %p715 = por %p713, %p714
      %p716 = scmp.ne.s32.totalorder %s708, %s710
      %p717 = scmp.eq.s32.totalorder %s192, 1
      %p718 = por %p716, %p717
      %p719 = scmp.ne.s32.totalorder %s710, %s711
      %p720 = scmp.eq.s32.totalorder %s192, 0
      %p721 = por %p719, %p720
      %p722 = scmp.ne.s32.totalorder %s710, %s711
      %p723 = scmp.eq.s32.totalorder %s193, 1
      %p724 = por %p722, %p723
      %p726 = scmp.ne.s32.totalorder %s711, %s725
      %p727 = scmp.eq.s32.totalorder %s193, 0
      %p728 = por %p726, %p727
      %s730 = sadd.s32 %s729, 1
      %p733 = scmp.eq.s32.totalorder %s187, 1
      %p734 = scmp.ne.s32.totalorder %s729, %s731
      %p735 = scmp.eq.s32.totalorder %s187, 0
      %p736 = por %p734, %p735
      %p737 = scmp.ne.s32.totalorder %s729, %s731
      %p738 = scmp.eq.s32.totalorder %s192, 1
      %p739 = por %p737, %p738
      %p740 = scmp.ne.s32.totalorder %s731, %s732
      %p741 = scmp.eq.s32.totalorder %s192, 0
      %p742 = por %p740, %p741
      %p743 = scmp.ne.s32.totalorder %s731, %s732
      %p744 = scmp.eq.s32.totalorder %s193, 1
      %p745 = por %p743, %p744
      %p747 = scmp.ne.s32.totalorder %s732, %s746
      %p748 = scmp.eq.s32.totalorder %s193, 0
      %p749 = por %p747, %p748
      %s751 = sadd.s32 %s750, 1
      %p754 = scmp.eq.s32.totalorder %s187, 1
      %p755 = scmp.ne.s32.totalorder %s750, %s752
      %p756 = scmp.eq.s32.totalorder %s187, 0
      %p757 = por %p755, %p756
      %p758 = scmp.ne.s32.totalorder %s750, %s752
      %p759 = scmp.eq.s32.totalorder %s192, 1
      %p760 = por %p758, %p759
      %p761 = scmp.ne.s32.totalorder %s752, %s753
      %p762 = scmp.eq.s32.totalorder %s192, 0
      %p763 = por %p761, %p762
      %p764 = scmp.ne.s32.totalorder %s752, %s753
      %p765 = scmp.eq.s32.totalorder %s193, 1
      %p766 = por %p764, %p765
      %p768 = scmp.ne.s32.totalorder %s753, %s767
      %p769 = scmp.eq.s32.totalorder %s193, 0
      %p770 = por %p768, %p769
      %s772 = sadd.s32 %s771, 1
      %p775 = scmp.eq.s32.totalorder %s187, 1
      %p776 = scmp.ne.s32.totalorder %s771, %s773
      %p777 = scmp.eq.s32.totalorder %s187, 0
      %p778 = por %p776, %p777
      %p779 = scmp.ne.s32.totalorder %s771, %s773
      %p780 = scmp.eq.s32.totalorder %s192, 1
      %p781 = por %p779, %p780
      %p782 = scmp.ne.s32.totalorder %s773, %s774
      %p783 = scmp.eq.s32.totalorder %s192, 0
      %p784 = por %p782, %p783
      %p785 = scmp.ne.s32.totalorder %s773, %s774
      %p786 = scmp.eq.s32.totalorder %s193, 1
      %p787 = por %p785, %p786
      %p789 = scmp.ne.s32.totalorder %s774, %s788
      %p790 = scmp.eq.s32.totalorder %s193, 0
      %p791 = por %p789, %p790
      %s793 = sadd.s32 %s792, 1
      %p796 = scmp.eq.s32.totalorder %s187, 1
      %p797 = scmp.ne.s32.totalorder %s792, %s794
      %p798 = scmp.eq.s32.totalorder %s187, 0
      %p799 = por %p797, %p798
      %p800 = scmp.ne.s32.totalorder %s792, %s794
      %p801 = scmp.eq.s32.totalorder %s192, 1
      %p802 = por %p800, %p801
      %p803 = scmp.ne.s32.totalorder %s794, %s795
      %p804 = scmp.eq.s32.totalorder %s192, 0
      %p805 = por %p803, %p804
      %p806 = scmp.ne.s32.totalorder %s794, %s795
      %p807 = scmp.eq.s32.totalorder %s193, 1
      %p808 = por %p806, %p807
      %p810 = scmp.ne.s32.totalorder %s795, %s809
      %p811 = scmp.eq.s32.totalorder %s193, 0
      %p812 = por %p810, %p811
      %s814 = sadd.s32 %s813, 1
      %p817 = scmp.eq.s32.totalorder %s187, 1
      %p818 = scmp.ne.s32.totalorder %s813, %s815
      %p819 = scmp.eq.s32.totalorder %s187, 0
      %p820 = por %p818, %p819
      %p821 = scmp.ne.s32.totalorder %s813, %s815
      %p822 = scmp.eq.s32.totalorder %s192, 1
      %p823 = por %p821, %p822
      %p824 = scmp.ne.s32.totalorder %s815, %s816
      %p825 = scmp.eq.s32.totalorder %s192, 0
      %p826 = por %p824, %p825
      %p827 = scmp.ne.s32.totalorder %s815, %s816
      %p828 = scmp.eq.s32.totalorder %s193, 1
      %p829 = por %p827, %p828
      %p831 = scmp.ne.s32.totalorder %s816, %s830
      %p832 = scmp.eq.s32.totalorder %s193, 0
      %p833 = por %p831, %p832
      %s835 = sadd.s32 %s834, 1
      %p838 = scmp.eq.s32.totalorder %s187, 1
      %p839 = scmp.ne.s32.totalorder %s834, %s836
      %p840 = scmp.eq.s32.totalorder %s187, 0
      %p841 = por %p839, %p840
      %p842 = scmp.ne.s32.totalorder %s834, %s836
      %p843 = scmp.eq.s32.totalorder %s192, 1
      %p844 = por %p842, %p843
      %p845 = scmp.ne.s32.totalorder %s836, %s837
      %p846 = scmp.eq.s32.totalorder %s192, 0
      %p847 = por %p845, %p846
      %p848 = scmp.ne.s32.totalorder %s836, %s837
      %p849 = scmp.eq.s32.totalorder %s193, 1
      %p850 = por %p848, %p849
      %p852 = scmp.ne.s32.totalorder %s837, %s851
      %p853 = scmp.eq.s32.totalorder %s193, 0
      %p854 = por %p852, %p853
      %s856 = sadd.s32 %s855, 1
      %p859 = scmp.eq.s32.totalorder %s187, 1
      %p860 = scmp.ne.s32.totalorder %s855, %s857
      %p861 = scmp.eq.s32.totalorder %s187, 0
      %p862 = por %p860, %p861
      %p863 = scmp.ne.s32.totalorder %s855, %s857
      %p864 = scmp.eq.s32.totalorder %s192, 1
      %p865 = por %p863, %p864
      %p866 = scmp.ne.s32.totalorder %s857, %s858
      %p867 = scmp.eq.s32.totalorder %s192, 0
      %p868 = por %p866, %p867
      %p869 = scmp.ne.s32.totalorder %s857, %s858
      %p870 = scmp.eq.s32.totalorder %s193, 1
      %p871 = por %p869, %p870
      %p873 = scmp.ne.s32.totalorder %s858, %s872
      %p874 = scmp.eq.s32.totalorder %s193, 0
      %p875 = por %p873, %p874
      %s877 = sadd.s32 %s876, 1
      %p880 = scmp.eq.s32.totalorder %s187, 1
      %p881 = scmp.ne.s32.totalorder %s876, %s878
      %p882 = scmp.eq.s32.totalorder %s187, 0
      %p883 = por %p881, %p882
      %p884 = scmp.ne.s32.totalorder %s876, %s878
      %p885 = scmp.eq.s32.totalorder %s192, 1
      %p886 = por %p884, %p885
      %p887 = scmp.ne.s32.totalorder %s878, %s879
      %p888 = scmp.eq.s32.totalorder %s192, 0
      %p889 = por %p887, %p888
      %p890 = scmp.ne.s32.totalorder %s878, %s879
      %p891 = scmp.eq.s32.totalorder %s193, 1
      %p892 = por %p890, %p891
      %p894 = scmp.ne.s32.totalorder %s879, %s893
      %p895 = scmp.eq.s32.totalorder %s193, 0
      %p896 = por %p894, %p895
      %s898 = sadd.s32 %s897, 1
      %p901 = scmp.eq.s32.totalorder %s187, 1
      %p902 = scmp.ne.s32.totalorder %s897, %s899
      %p903 = scmp.eq.s32.totalorder %s187, 0
      %p904 = por %p902, %p903
      %p905 = scmp.ne.s32.totalorder %s897, %s899
      %p906 = scmp.eq.s32.totalorder %s192, 1
      %p907 = por %p905, %p906
      %p908 = scmp.ne.s32.totalorder %s899, %s900
      %p909 = scmp.eq.s32.totalorder %s192, 0
      %p910 = por %p908, %p909
      %p911 = scmp.ne.s32.totalorder %s899, %s900
      %p912 = scmp.eq.s32.totalorder %s193, 1
      %p913 = por %p911, %p912
      %p915 = scmp.ne.s32.totalorder %s900, %s914
      %p916 = scmp.eq.s32.totalorder %s193, 0
      %p917 = por %p915, %p916
      %s919 = sadd.s32 %s918, 1
      %p922 = scmp.eq.s32.totalorder %s187, 1
      %p923 = scmp.ne.s32.totalorder %s918, %s920
      %p924 = scmp.eq.s32.totalorder %s187, 0
      %p925 = por %p923, %p924
      %p926 = scmp.ne.s32.totalorder %s918, %s920
      %p927 = scmp.eq.s32.totalorder %s192, 1
      %p928 = por %p926, %p927
      %p929 = scmp.ne.s32.totalorder %s920, %s921
      %p930 = scmp.eq.s32.totalorder %s192, 0
      %p931 = por %p929, %p930
      %p932 = scmp.ne.s32.totalorder %s920, %s921
      %p933 = scmp.eq.s32.totalorder %s193, 1
      %p934 = por %p932, %p933
      %p936 = scmp.ne.s32.totalorder %s921, %s935
      %p937 = scmp.eq.s32.totalorder %s193, 0
      %p938 = por %p936, %p937
      %s940 = sadd.s32 %s939, 1
      %p943 = scmp.eq.s32.totalorder %s187, 1
      %p944 = scmp.ne.s32.totalorder %s939, %s941
      %p945 = scmp.eq.s32.totalorder %s187, 0
      %p946 = por %p944, %p945
      %p947 = scmp.ne.s32.totalorder %s939, %s941
      %p948 = scmp.eq.s32.totalorder %s192, 1
      %p949 = por %p947, %p948
      %p950 = scmp.ne.s32.totalorder %s941, %s942
      %p951 = scmp.eq.s32.totalorder %s192, 0
      %p952 = por %p950, %p951
      %p953 = scmp.ne.s32.totalorder %s941, %s942
      %p954 = scmp.eq.s32.totalorder %s193, 1
      %p955 = por %p953, %p954
      %p957 = scmp.ne.s32.totalorder %s942, %s956
      %p958 = scmp.eq.s32.totalorder %s193, 0
      %p959 = por %p957, %p958
      %s961 = sadd.s32 %s960, 1
      %p964 = scmp.eq.s32.totalorder %s187, 1
      %p965 = scmp.ne.s32.totalorder %s960, %s962
      %p966 = scmp.eq.s32.totalorder %s187, 0
      %p967 = por %p965, %p966
      %p968 = scmp.ne.s32.totalorder %s960, %s962
      %p969 = scmp.eq.s32.totalorder %s192, 1
      %p970 = por %p968, %p969
      %p971 = scmp.ne.s32.totalorder %s962, %s963
      %p972 = scmp.eq.s32.totalorder %s192, 0
      %p973 = por %p971, %p972
      %p974 = scmp.ne.s32.totalorder %s962, %s963
      %p975 = scmp.eq.s32.totalorder %s193, 1
      %p976 = por %p974, %p975
      %p978 = scmp.ne.s32.totalorder %s963, %s977
      %p979 = scmp.eq.s32.totalorder %s193, 0
      %p980 = por %p978, %p979
      %s982 = sadd.s32 %s981, 1
      %p985 = scmp.eq.s32.totalorder %s187, 1
      %p986 = scmp.ne.s32.totalorder %s981, %s983
      %p987 = scmp.eq.s32.totalorder %s187, 0
      %p988 = por %p986, %p987
      %p989 = scmp.ne.s32.totalorder %s981, %s983
      %p990 = scmp.eq.s32.totalorder %s192, 1
      %p991 = por %p989, %p990
      %p992 = scmp.ne.s32.totalorder %s983, %s984
      %p993 = scmp.eq.s32.totalorder %s192, 0
      %p994 = por %p992, %p993
      %p995 = scmp.ne.s32.totalorder %s983, %s984
      %p996 = scmp.eq.s32.totalorder %s193, 1
      %p997 = por %p995, %p996
      %p999 = scmp.ne.s32.totalorder %s984, %s998
      %p1000 = scmp.eq.s32.totalorder %s193, 0
      %p1001 = por %p999, %p1000
      %s1003 = sadd.s32 %s1002, 1
      %p1006 = scmp.eq.s32.totalorder %s187, 1
      %p1007 = scmp.ne.s32.totalorder %s1002, %s1004
      %p1008 = scmp.eq.s32.totalorder %s187, 0
      %p1009 = por %p1007, %p1008
      %p1010 = scmp.ne.s32.totalorder %s1002, %s1004
      %p1011 = scmp.eq.s32.totalorder %s192, 1
      %p1012 = por %p1010, %p1011
      %p1013 = scmp.ne.s32.totalorder %s1004, %s1005
      %p1014 = scmp.eq.s32.totalorder %s192, 0
      %p1015 = por %p1013, %p1014
      %p1016 = scmp.ne.s32.totalorder %s1004, %s1005
      %p1017 = scmp.eq.s32.totalorder %s193, 1
      %p1018 = por %p1016, %p1017
      %p1020 = scmp.ne.s32.totalorder %s1005, %s1019
      %p1021 = scmp.eq.s32.totalorder %s193, 0
      %p1022 = por %p1020, %p1021
      %s1024 = sadd.s32 %s1023, 1
      %p1027 = scmp.eq.s32.totalorder %s187, 1
      %p1028 = scmp.ne.s32.totalorder %s1023, %s1025
      %p1029 = scmp.eq.s32.totalorder %s187, 0
      %p1030 = por %p1028, %p1029
      %p1031 = scmp.ne.s32.totalorder %s1023, %s1025
      %p1032 = scmp.eq.s32.totalorder %s192, 1
      %p1033 = por %p1031, %p1032
      %p1034 = scmp.ne.s32.totalorder %s1025, %s1026
      %p1035 = scmp.eq.s32.totalorder %s192, 0
      %p1036 = por %p1034, %p1035
      %p1037 = scmp.ne.s32.totalorder %s1025, %s1026
      %p1038 = scmp.eq.s32.totalorder %s193, 1
      %p1039 = por %p1037, %p1038
      %p1041 = scmp.ne.s32.totalorder %s1026, %s1040
      %p1042 = scmp.eq.s32.totalorder %s193, 0
      %p1043 = por %p1041, %p1042
      %s1045 = sadd.s32 %s1044, 1
      %p1048 = scmp.eq.s32.totalorder %s187, 1
      %p1049 = scmp.ne.s32.totalorder %s1044, %s1046
      %p1050 = scmp.eq.s32.totalorder %s187, 0
      %p1051 = por %p1049, %p1050
      %p1052 = scmp.ne.s32.totalorder %s1044, %s1046
      %p1053 = scmp.eq.s32.totalorder %s192, 1
      %p1054 = por %p1052, %p1053
      %p1055 = scmp.ne.s32.totalorder %s1046, %s1047
      %p1056 = scmp.eq.s32.totalorder %s192, 0
      %p1057 = por %p1055, %p1056
      %p1058 = scmp.ne.s32.totalorder %s1046, %s1047
      %p1059 = scmp.eq.s32.totalorder %s193, 1
      %p1060 = por %p1058, %p1059
      %p1062 = scmp.ne.s32.totalorder %s1047, %s1061
      %p1063 = scmp.eq.s32.totalorder %s193, 0
      %p1064 = por %p1062, %p1063
      %s1066 = sadd.s32 %s1065, 1
      %p1069 = scmp.eq.s32.totalorder %s187, 1
      %p1070 = scmp.ne.s32.totalorder %s1065, %s1067
      %p1071 = scmp.eq.s32.totalorder %s187, 0
      %p1072 = por %p1070, %p1071
      %p1073 = scmp.ne.s32.totalorder %s1065, %s1067
      %p1074 = scmp.eq.s32.totalorder %s192, 1
      %p1075 = por %p1073, %p1074
      %p1076 = scmp.ne.s32.totalorder %s1067, %s1068
      %p1077 = scmp.eq.s32.totalorder %s192, 0
      %p1078 = por %p1076, %p1077
      %p1079 = scmp.ne.s32.totalorder %s1067, %s1068
      %p1080 = scmp.eq.s32.totalorder %s193, 1
      %p1081 = por %p1079, %p1080
      %p1083 = scmp.ne.s32.totalorder %s1068, %s1082
      %p1084 = scmp.eq.s32.totalorder %s193, 0
      %p1085 = por %p1083, %p1084
      %s1087 = sadd.s32 %s1086, 1
      %p1090 = scmp.eq.s32.totalorder %s187, 1
      %p1091 = scmp.ne.s32.totalorder %s1086, %s1088
      %p1092 = scmp.eq.s32.totalorder %s187, 0
      %p1093 = por %p1091, %p1092
      %p1094 = scmp.ne.s32.totalorder %s1086, %s1088
      %p1095 = scmp.eq.s32.totalorder %s192, 1
      %p1096 = por %p1094, %p1095
      %p1097 = scmp.ne.s32.totalorder %s1088, %s1089
      %p1098 = scmp.eq.s32.totalorder %s192, 0
      %p1099 = por %p1097, %p1098
      %p1100 = scmp.ne.s32.totalorder %s1088, %s1089
      %p1101 = scmp.eq.s32.totalorder %s193, 1
      %p1102 = por %p1100, %p1101
      %p1104 = scmp.ne.s32.totalorder %s1089, %s1103
      %p1105 = scmp.eq.s32.totalorder %s193, 0
      %p1106 = por %p1104, %p1105
      %s1108 = sadd.s32 %s1107, 1
      %p1111 = scmp.eq.s32.totalorder %s187, 1
      %p1112 = scmp.ne.s32.totalorder %s1107, %s1109
      %p1113 = scmp.eq.s32.totalorder %s187, 0
      %p1114 = por %p1112, %p1113
      %p1115 = scmp.ne.s32.totalorder %s1107, %s1109
      %p1116 = scmp.eq.s32.totalorder %s192, 1
      %p1117 = por %p1115, %p1116
      %p1118 = scmp.ne.s32.totalorder %s1109, %s1110
      %p1119 = scmp.eq.s32.totalorder %s192, 0
      %p1120 = por %p1118, %p1119
      %p1121 = scmp.ne.s32.totalorder %s1109, %s1110
      %p1122 = scmp.eq.s32.totalorder %s193, 1
      %p1123 = por %p1121, %p1122
      %p1125 = scmp.ne.s32.totalorder %s1110, %s1124
      %p1126 = scmp.eq.s32.totalorder %s193, 0
      %p1127 = por %p1125, %p1126
      %s1129 = sadd.s32 %s1128, 1
      %p1132 = scmp.eq.s32.totalorder %s187, 1
      %p1133 = scmp.ne.s32.totalorder %s1128, %s1130
      %p1134 = scmp.eq.s32.totalorder %s187, 0
      %p1135 = por %p1133, %p1134
      %p1136 = scmp.ne.s32.totalorder %s1128, %s1130
      %p1137 = scmp.eq.s32.totalorder %s192, 1
      %p1138 = por %p1136, %p1137
      %p1139 = scmp.ne.s32.totalorder %s1130, %s1131
      %p1140 = scmp.eq.s32.totalorder %s192, 0
      %p1141 = por %p1139, %p1140
      %p1142 = scmp.ne.s32.totalorder %s1130, %s1131
      %p1143 = scmp.eq.s32.totalorder %s193, 1
      %p1144 = por %p1142, %p1143
      %p1146 = scmp.ne.s32.totalorder %s1131, %s1145
      %p1147 = scmp.eq.s32.totalorder %s193, 0
      %p1148 = por %p1146, %p1147
      %s1150 = sadd.s32 %s1149, 1
      %p1153 = scmp.eq.s32.totalorder %s187, 1
      %p1154 = scmp.ne.s32.totalorder %s1149, %s1151
      %p1155 = scmp.eq.s32.totalorder %s187, 0
      %p1156 = por %p1154, %p1155
      %p1157 = scmp.ne.s32.totalorder %s1149, %s1151
      %p1158 = scmp.eq.s32.totalorder %s192, 1
      %p1159 = por %p1157, %p1158
      %p1160 = scmp.ne.s32.totalorder %s1151, %s1152
      %p1161 = scmp.eq.s32.totalorder %s192, 0
      %p1162 = por %p1160, %p1161
      %p1163 = scmp.ne.s32.totalorder %s1151, %s1152
      %p1164 = scmp.eq.s32.totalorder %s193, 1
      %p1165 = por %p1163, %p1164
      %p1167 = scmp.ne.s32.totalorder %s1152, %s1166
      %p1168 = scmp.eq.s32.totalorder %s193, 0
      %p1169 = por %p1167, %p1168
      %s1171 = sadd.s32 %s1170, 1
      %p1174 = scmp.eq.s32.totalorder %s187, 1
      %p1175 = scmp.ne.s32.totalorder %s1170, %s1172
      %p1176 = scmp.eq.s32.totalorder %s187, 0
      %p1177 = por %p1175, %p1176
      %p1178 = scmp.ne.s32.totalorder %s1170, %s1172
      %p1179 = scmp.eq.s32.totalorder %s192, 1
      %p1180 = por %p1178, %p1179
      %p1181 = scmp.ne.s32.totalorder %s1172, %s1173
      %p1182 = scmp.eq.s32.totalorder %s192, 0
      %p1183 = por %p1181, %p1182
      %p1184 = scmp.ne.s32.totalorder %s1172, %s1173
      %p1185 = scmp.eq.s32.totalorder %s193, 1
      %p1186 = por %p1184, %p1185
      %p1188 = scmp.ne.s32.totalorder %s1173, %s1187
      %p1189 = scmp.eq.s32.totalorder %s193, 0
      %p1190 = por %p1188, %p1189
      %s1192 = sadd.s32 %s1191, 1
      %p1195 = scmp.eq.s32.totalorder %s187, 1
      %p1196 = scmp.ne.s32.totalorder %s1191, %s1193
      %p1197 = scmp.eq.s32.totalorder %s187, 0
      %p1198 = por %p1196, %p1197
      %p1199 = scmp.ne.s32.totalorder %s1191, %s1193
      %p1200 = scmp.eq.s32.totalorder %s192, 1
      %p1201 = por %p1199, %p1200
      %p1202 = scmp.ne.s32.totalorder %s1193, %s1194
      %p1203 = scmp.eq.s32.totalorder %s192, 0
      %p1204 = por %p1202, %p1203
      %p1205 = scmp.ne.s32.totalorder %s1193, %s1194
      %p1206 = scmp.eq.s32.totalorder %s193, 1
      %p1207 = por %p1205, %p1206
      %p1209 = scmp.ne.s32.totalorder %s1194, %s1208
      %p1210 = scmp.eq.s32.totalorder %s193, 0
      %p1211 = por %p1209, %p1210
      %s1213 = sadd.s32 %s1212, 1
      %p1216 = scmp.eq.s32.totalorder %s187, 1
      %p1217 = scmp.ne.s32.totalorder %s1212, %s1214
      %p1218 = scmp.eq.s32.totalorder %s187, 0
      %p1219 = por %p1217, %p1218
      %p1220 = scmp.ne.s32.totalorder %s1212, %s1214
      %p1221 = scmp.eq.s32.totalorder %s192, 1
      %p1222 = por %p1220, %p1221
      %p1223 = scmp.ne.s32.totalorder %s1214, %s1215
      %p1224 = scmp.eq.s32.totalorder %s192, 0
      %p1225 = por %p1223, %p1224
      %p1226 = scmp.ne.s32.totalorder %s1214, %s1215
      %p1227 = scmp.eq.s32.totalorder %s193, 1
      %p1228 = por %p1226, %p1227
      %p1230 = scmp.ne.s32.totalorder %s1215, %s1229
      %p1231 = scmp.eq.s32.totalorder %s193, 0
      %p1232 = por %p1230, %p1231
      %s1234 = sadd.s32 %s1233, 1
      %p1237 = scmp.eq.s32.totalorder %s187, 1
      %p1238 = scmp.ne.s32.totalorder %s1233, %s1235
      %p1239 = scmp.eq.s32.totalorder %s187, 0
      %p1240 = por %p1238, %p1239
      %p1241 = scmp.ne.s32.totalorder %s1233, %s1235
      %p1242 = scmp.eq.s32.totalorder %s192, 1
      %p1243 = por %p1241, %p1242
      %p1244 = scmp.ne.s32.totalorder %s1235, %s1236
      %p1245 = scmp.eq.s32.totalorder %s192, 0
      %p1246 = por %p1244, %p1245
      %p1247 = scmp.ne.s32.totalorder %s1235, %s1236
      %p1248 = scmp.eq.s32.totalorder %s193, 1
      %p1249 = por %p1247, %p1248
      %p1251 = scmp.ne.s32.totalorder %s1236, %s1250
      %p1252 = scmp.eq.s32.totalorder %s193, 0
      %p1253 = por %p1251, %p1252
      %s1255 = sadd.s32 %s1254, 1
      %p1258 = scmp.eq.s32.totalorder %s187, 1
      %p1259 = scmp.ne.s32.totalorder %s1254, %s1256
      %p1260 = scmp.eq.s32.totalorder %s187, 0
      %p1261 = por %p1259, %p1260
      %p1262 = scmp.ne.s32.totalorder %s1254, %s1256
      %p1263 = scmp.eq.s32.totalorder %s192, 1
      %p1264 = por %p1262, %p1263
      %p1265 = scmp.ne.s32.totalorder %s1256, %s1257
      %p1266 = scmp.eq.s32.totalorder %s192, 0
      %p1267 = por %p1265, %p1266
      %p1268 = scmp.ne.s32.totalorder %s1256, %s1257
      %p1269 = scmp.eq.s32.totalorder %s193, 1
      %p1270 = por %p1268, %p1269
      %p1272 = scmp.ne.s32.totalorder %s1257, %s1271
      %p1273 = scmp.eq.s32.totalorder %s193, 0
      %p1274 = por %p1272, %p1273
      %s1276 = sadd.s32 %s1275, 1
      %p1279 = scmp.eq.s32.totalorder %s187, 1
      %p1280 = scmp.ne.s32.totalorder %s1275, %s1277
      %p1281 = scmp.eq.s32.totalorder %s187, 0
      %p1282 = por %p1280, %p1281
      %p1283 = scmp.ne.s32.totalorder %s1275, %s1277
      %p1284 = scmp.eq.s32.totalorder %s192, 1
      %p1285 = por %p1283, %p1284
      %p1286 = scmp.ne.s32.totalorder %s1277, %s1278
      %p1287 = scmp.eq.s32.totalorder %s192, 0
      %p1288 = por %p1286, %p1287
      %p1289 = scmp.ne.s32.totalorder %s1277, %s1278
      %p1290 = scmp.eq.s32.totalorder %s193, 1
      %p1291 = por %p1289, %p1290
      %p1293 = scmp.ne.s32.totalorder %s1278, %s1292
      %p1294 = scmp.eq.s32.totalorder %s193, 0
      %p1295 = por %p1293, %p1294
      %s1297 = sadd.s32 %s1296, 1
      %p1300 = scmp.eq.s32.totalorder %s187, 1
      %p1301 = scmp.ne.s32.totalorder %s1296, %s1298
      %p1302 = scmp.eq.s32.totalorder %s187, 0
      %p1303 = por %p1301, %p1302
      %p1304 = scmp.ne.s32.totalorder %s1296, %s1298
      %p1305 = scmp.eq.s32.totalorder %s192, 1
      %p1306 = por %p1304, %p1305
      %p1307 = scmp.ne.s32.totalorder %s1298, %s1299
      %p1308 = scmp.eq.s32.totalorder %s192, 0
      %p1309 = por %p1307, %p1308
      %p1310 = scmp.ne.s32.totalorder %s1298, %s1299
      %p1311 = scmp.eq.s32.totalorder %s193, 1
      %p1312 = por %p1310, %p1311
      %p1314 = scmp.ne.s32.totalorder %s1299, %s1313
      %p1315 = scmp.eq.s32.totalorder %s193, 0
      %p1316 = por %p1314, %p1315
      %s1318 = sadd.s32 %s1317, 1
      %p1321 = scmp.eq.s32.totalorder %s187, 1
      %p1322 = scmp.ne.s32.totalorder %s1317, %s1319
      %p1323 = scmp.eq.s32.totalorder %s187, 0
      %p1324 = por %p1322, %p1323
      %p1325 = scmp.ne.s32.totalorder %s1317, %s1319
      %p1326 = scmp.eq.s32.totalorder %s192, 1
      %p1327 = por %p1325, %p1326
      %p1328 = scmp.ne.s32.totalorder %s1319, %s1320
      %p1329 = scmp.eq.s32.totalorder %s192, 0
      %p1330 = por %p1328, %p1329
      %p1331 = scmp.ne.s32.totalorder %s1319, %s1320
      %p1332 = scmp.eq.s32.totalorder %s193, 1
      %p1333 = por %p1331, %p1332
      %p1335 = scmp.ne.s32.totalorder %s1320, %s1334
      %p1336 = scmp.eq.s32.totalorder %s193, 0
      %p1337 = por %p1335, %p1336
      %s1339 = sadd.s32 %s1338, 1
      %p1342 = scmp.eq.s32.totalorder %s187, 1
      %p1343 = scmp.ne.s32.totalorder %s1338, %s1340
      %p1344 = scmp.eq.s32.totalorder %s187, 0
      %p1345 = por %p1343, %p1344
      %p1346 = scmp.ne.s32.totalorder %s1338, %s1340
      %p1347 = scmp.eq.s32.totalorder %s192, 1
      %p1348 = por %p1346, %p1347
      %p1349 = scmp.ne.s32.totalorder %s1340, %s1341
      %p1350 = scmp.eq.s32.totalorder %s192, 0
      %p1351 = por %p1349, %p1350
      %p1352 = scmp.ne.s32.totalorder %s1340, %s1341
      %p1353 = scmp.eq.s32.totalorder %s193, 1
      %p1354 = por %p1352, %p1353
      %p1356 = scmp.ne.s32.totalorder %s1341, %s1355
      %p1357 = scmp.eq.s32.totalorder %s193, 0
      %p1358 = por %p1356, %p1357
      %s1360 = sadd.s32 %s1359, 1
      %p1363 = scmp.eq.s32.totalorder %s187, 1
      %p1364 = scmp.ne.s32.totalorder %s1359, %s1361
      %p1365 = scmp.eq.s32.totalorder %s187, 0
      %p1366 = por %p1364, %p1365
      %p1367 = scmp.ne.s32.totalorder %s1359, %s1361
      %p1368 = scmp.eq.s32.totalorder %s192, 1
      %p1369 = por %p1367, %p1368
      %p1370 = scmp.ne.s32.totalorder %s1361, %s1362
      %p1371 = scmp.eq.s32.totalorder %s192, 0
      %p1372 = por %p1370, %p1371
      %p1373 = scmp.ne.s32.totalorder %s1361, %s1362
      %p1374 = scmp.eq.s32.totalorder %s193, 1
      %p1375 = por %p1373, %p1374
      %p1377 = scmp.ne.s32.totalorder %s1362, %s1376
      %p1378 = scmp.eq.s32.totalorder %s193, 0
      %p1379 = por %p1377, %p1378
      %s1381 = sadd.s32 %s1380, 1
      %p1384 = scmp.eq.s32.totalorder %s187, 1
      %p1385 = scmp.ne.s32.totalorder %s1380, %s1382
      %p1386 = scmp.eq.s32.totalorder %s187, 0
      %p1387 = por %p1385, %p1386
      %p1388 = scmp.ne.s32.totalorder %s1380, %s1382
      %p1389 = scmp.eq.s32.totalorder %s192, 1
      %p1390 = por %p1388, %p1389
      %p1391 = scmp.ne.s32.totalorder %s1382, %s1383
      %p1392 = scmp.eq.s32.totalorder %s192, 0
      %p1393 = por %p1391, %p1392
      %p1394 = scmp.ne.s32.totalorder %s1382, %s1383
      %p1395 = scmp.eq.s32.totalorder %s193, 1
      %p1396 = por %p1394, %p1395
      %p1398 = scmp.ne.s32.totalorder %s1383, %s1397
      %p1399 = scmp.eq.s32.totalorder %s193, 0
      %p1400 = por %p1398, %p1399
      %s1402 = sadd.s32 %s1401, 1
      %p1405 = scmp.eq.s32.totalorder %s187, 1
      %p1406 = scmp.ne.s32.totalorder %s1401, %s1403
      %p1407 = scmp.eq.s32.totalorder %s187, 0
      %p1408 = por %p1406, %p1407
      %p1409 = scmp.ne.s32.totalorder %s1401, %s1403
      %p1410 = scmp.eq.s32.totalorder %s192, 1
      %p1411 = por %p1409, %p1410
      %p1412 = scmp.ne.s32.totalorder %s1403, %s1404
      %p1413 = scmp.eq.s32.totalorder %s192, 0
      %p1414 = por %p1412, %p1413
      %p1415 = scmp.ne.s32.totalorder %s1403, %s1404
      %p1416 = scmp.eq.s32.totalorder %s193, 1
      %p1417 = por %p1415, %p1416
      %p1419 = scmp.ne.s32.totalorder %s1404, %s1418
      %p1420 = scmp.eq.s32.totalorder %s193, 0
      %p1421 = por %p1419, %p1420
      %s1423 = sadd.s32 %s1422, 1
      %p1426 = scmp.eq.s32.totalorder %s187, 1
      %p1427 = scmp.ne.s32.totalorder %s1422, %s1424
      %p1428 = scmp.eq.s32.totalorder %s187, 0
      %p1429 = por %p1427, %p1428
      %p1430 = scmp.ne.s32.totalorder %s1422, %s1424
      %p1431 = scmp.eq.s32.totalorder %s192, 1
      %p1432 = por %p1430, %p1431
      %p1433 = scmp.ne.s32.totalorder %s1424, %s1425
      %p1434 = scmp.eq.s32.totalorder %s192, 0
      %p1435 = por %p1433, %p1434
      %p1436 = scmp.ne.s32.totalorder %s1424, %s1425
      %p1437 = scmp.eq.s32.totalorder %s193, 1
      %p1438 = por %p1436, %p1437
      %p1440 = scmp.ne.s32.totalorder %s1425, %s1439
      %p1441 = scmp.eq.s32.totalorder %s193, 0
      %p1442 = por %p1440, %p1441
      %s1444 = sadd.s32 %s1443, 1
      %p1447 = scmp.eq.s32.totalorder %s187, 1
      %p1448 = scmp.ne.s32.totalorder %s1443, %s1445
      %p1449 = scmp.eq.s32.totalorder %s187, 0
      %p1450 = por %p1448, %p1449
      %p1451 = scmp.ne.s32.totalorder %s1443, %s1445
      %p1452 = scmp.eq.s32.totalorder %s192, 1
      %p1453 = por %p1451, %p1452
      %p1454 = scmp.ne.s32.totalorder %s1445, %s1446
      %p1455 = scmp.eq.s32.totalorder %s192, 0
      %p1456 = por %p1454, %p1455
      %p1457 = scmp.ne.s32.totalorder %s1445, %s1446
      %p1458 = scmp.eq.s32.totalorder %s193, 1
      %p1459 = por %p1457, %p1458
      %p1461 = scmp.ne.s32.totalorder %s1446, %s1460
      %p1462 = scmp.eq.s32.totalorder %s193, 0
      %p1463 = por %p1461, %p1462
      %s1465 = sadd.s32 %s1464, 1
      %p1468 = scmp.eq.s32.totalorder %s187, 1
      %p1469 = scmp.ne.s32.totalorder %s1464, %s1466
      %p1470 = scmp.eq.s32.totalorder %s187, 0
      %p1471 = por %p1469, %p1470
      %p1472 = scmp.ne.s32.totalorder %s1464, %s1466
      %p1473 = scmp.eq.s32.totalorder %s192, 1
      %p1474 = por %p1472, %p1473
      %p1475 = scmp.ne.s32.totalorder %s1466, %s1467
      %p1476 = scmp.eq.s32.totalorder %s192, 0
      %p1477 = por %p1475, %p1476
      %p1478 = scmp.ne.s32.totalorder %s1466, %s1467
      %p1479 = scmp.eq.s32.totalorder %s193, 1
      %p1480 = por %p1478, %p1479
      %p1482 = scmp.ne.s32.totalorder %s1467, %s1481
      %p1483 = scmp.eq.s32.totalorder %s193, 0
      %p1484 = por %p1482, %p1483
      %s1486 = sadd.s32 %s1485, 1
      %p1489 = scmp.eq.s32.totalorder %s187, 1
      %p1490 = scmp.ne.s32.totalorder %s1485, %s1487
      %p1491 = scmp.eq.s32.totalorder %s187, 0
      %p1492 = por %p1490, %p1491
      %p1493 = scmp.ne.s32.totalorder %s1485, %s1487
      %p1494 = scmp.eq.s32.totalorder %s192, 1
      %p1495 = por %p1493, %p1494
      %p1496 = scmp.ne.s32.totalorder %s1487, %s1488
      %p1497 = scmp.eq.s32.totalorder %s192, 0
      %p1498 = por %p1496, %p1497
      %p1499 = scmp.ne.s32.totalorder %s1487, %s1488
      %p1500 = scmp.eq.s32.totalorder %s193, 1
      %p1501 = por %p1499, %p1500
      %p1503 = scmp.ne.s32.totalorder %s1488, %s1502
      %p1504 = scmp.eq.s32.totalorder %s193, 0
      %p1505 = por %p1503, %p1504
      %s1507 = sadd.s32 %s1506, 1
      %p1510 = scmp.eq.s32.totalorder %s187, 1
      %p1511 = scmp.ne.s32.totalorder %s1506, %s1508
      %p1512 = scmp.eq.s32.totalorder %s187, 0
      %p1513 = por %p1511, %p1512
      %p1514 = scmp.ne.s32.totalorder %s1506, %s1508
      %p1515 = scmp.eq.s32.totalorder %s192, 1
      %p1516 = por %p1514, %p1515
      %p1517 = scmp.ne.s32.totalorder %s1508, %s1509
      %p1518 = scmp.eq.s32.totalorder %s192, 0
      %p1519 = por %p1517, %p1518
      %p1520 = scmp.ne.s32.totalorder %s1508, %s1509
      %p1521 = scmp.eq.s32.totalorder %s193, 1
      %p1522 = por %p1520, %p1521
      %p1524 = scmp.ne.s32.totalorder %s1509, %s1523
      %p1525 = scmp.eq.s32.totalorder %s193, 0
      %p1526 = por %p1524, %p1525
      %s1528 = sadd.s32 %s1527, 1
      %p1531 = scmp.eq.s32.totalorder %s187, 1
      %p1532 = scmp.ne.s32.totalorder %s1527, %s1529
      %p1533 = scmp.eq.s32.totalorder %s187, 0
      %p1534 = por %p1532, %p1533
      %p1535 = scmp.ne.s32.totalorder %s1527, %s1529
      %p1536 = scmp.eq.s32.totalorder %s192, 1
      %p1537 = por %p1535, %p1536
      %p1538 = scmp.ne.s32.totalorder %s1529, %s1530
      %p1539 = scmp.eq.s32.totalorder %s192, 0
      %p1540 = por %p1538, %p1539
      %p1541 = scmp.ne.s32.totalorder %s1529, %s1530
      %p1542 = scmp.eq.s32.totalorder %s193, 1
      %p1543 = por %p1541, %p1542
      %p1545 = scmp.ne.s32.totalorder %s1530, %s1544
      %p1546 = scmp.eq.s32.totalorder %s193, 0
      %p1547 = por %p1545, %p1546
      %s1549 = sadd.s32 %s1548, 1
      %p1552 = scmp.eq.s32.totalorder %s187, 1
      %p1553 = scmp.ne.s32.totalorder %s1548, %s1550
      %p1554 = scmp.eq.s32.totalorder %s187, 0
      %p1555 = por %p1553, %p1554
      %p1556 = scmp.ne.s32.totalorder %s1548, %s1550
      %p1557 = scmp.eq.s32.totalorder %s192, 1
      %p1558 = por %p1556, %p1557
      %p1559 = scmp.ne.s32.totalorder %s1550, %s1551
      %p1560 = scmp.eq.s32.totalorder %s192, 0
      %p1561 = por %p1559, %p1560
      %p1562 = scmp.ne.s32.totalorder %s1550, %s1551
      %p1563 = scmp.eq.s32.totalorder %s193, 1
      %p1564 = por %p1562, %p1563
      %p1566 = scmp.ne.s32.totalorder %s1551, %s1565
      %p1567 = scmp.eq.s32.totalorder %s193, 0
      %p1568 = por %p1566, %p1567
      %s1570 = sadd.s32 %s1569, 1
      %p1573 = scmp.eq.s32.totalorder %s187, 1
      %p1574 = scmp.ne.s32.totalorder %s1569, %s1571
      %p1575 = scmp.eq.s32.totalorder %s187, 0
      %p1576 = por %p1574, %p1575
      %p1577 = scmp.ne.s32.totalorder %s1569, %s1571
      %p1578 = scmp.eq.s32.totalorder %s192, 1
      %p1579 = por %p1577, %p1578
      %p1580 = scmp.ne.s32.totalorder %s1571, %s1572
      %p1581 = scmp.eq.s32.totalorder %s192, 0
      %p1582 = por %p1580, %p1581
      %p1583 = scmp.ne.s32.totalorder %s1571, %s1572
      %p1584 = scmp.eq.s32.totalorder %s193, 1
      %p1585 = por %p1583, %p1584
      %p1587 = scmp.ne.s32.totalorder %s1572, %s1586
      %p1588 = scmp.eq.s32.totalorder %s193, 0
      %p1589 = por %p1587, %p1588
      %s1591 = sadd.s32 %s1590, 1
      %p1594 = scmp.eq.s32.totalorder %s187, 1
      %p1595 = scmp.ne.s32.totalorder %s1590, %s1592
      %p1596 = scmp.eq.s32.totalorder %s187, 0
      %p1597 = por %p1595, %p1596
      %p1598 = scmp.ne.s32.totalorder %s1590, %s1592
      %p1599 = scmp.eq.s32.totalorder %s192, 1
      %p1600 = por %p1598, %p1599
      %p1601 = scmp.ne.s32.totalorder %s1592, %s1593
      %p1602 = scmp.eq.s32.totalorder %s192, 0
      %p1603 = por %p1601, %p1602
      %p1604 = scmp.ne.s32.totalorder %s1592, %s1593
      %p1605 = scmp.eq.s32.totalorder %s193, 1
      %p1606 = por %p1604, %p1605
      %p1608 = scmp.ne.s32.totalorder %s1593, %s1607
      %p1609 = scmp.eq.s32.totalorder %s193, 0
      %p1610 = por %p1608, %p1609
      %s1612 = sadd.s32 %s1611, 1
      %p1615 = scmp.eq.s32.totalorder %s187, 1
      %p1616 = scmp.ne.s32.totalorder %s1611, %s1613
      %p1617 = scmp.eq.s32.totalorder %s187, 0
      %p1618 = por %p1616, %p1617
      %p1619 = scmp.ne.s32.totalorder %s1611, %s1613
      %p1620 = scmp.eq.s32.totalorder %s192, 1
      %p1621 = por %p1619, %p1620
      %p1622 = scmp.ne.s32.totalorder %s1613, %s1614
      %p1623 = scmp.eq.s32.totalorder %s192, 0
      %p1624 = por %p1622, %p1623
      %p1625 = scmp.ne.s32.totalorder %s1613, %s1614
      %p1626 = scmp.eq.s32.totalorder %s193, 1
      %p1627 = por %p1625, %p1626
      %p1629 = scmp.ne.s32.totalorder %s1614, %s1628
      %p1630 = scmp.eq.s32.totalorder %s193, 0
      %p1631 = por %p1629, %p1630
      %s1633 = sadd.s32 %s1632, 1
      %p1636 = scmp.eq.s32.totalorder %s187, 1
      %p1637 = scmp.ne.s32.totalorder %s1632, %s1634
      %p1638 = scmp.eq.s32.totalorder %s187, 0
      %p1639 = por %p1637, %p1638
      %p1640 = scmp.ne.s32.totalorder %s1632, %s1634
      %p1641 = scmp.eq.s32.totalorder %s192, 1
      %p1642 = por %p1640, %p1641
      %p1643 = scmp.ne.s32.totalorder %s1634, %s1635
      %p1644 = scmp.eq.s32.totalorder %s192, 0
      %p1645 = por %p1643, %p1644
      %p1646 = scmp.ne.s32.totalorder %s1634, %s1635
      %p1647 = scmp.eq.s32.totalorder %s193, 1
      %p1648 = por %p1646, %p1647
      %p1650 = scmp.ne.s32.totalorder %s1635, %s1649
      %p1651 = scmp.eq.s32.totalorder %s193, 0
      %p1652 = por %p1650, %p1651
      %s1654 = sadd.s32 %s1653, 1
      %p1657 = scmp.eq.s32.totalorder %s187, 1
      %p1658 = scmp.ne.s32.totalorder %s1653, %s1655
      %p1659 = scmp.eq.s32.totalorder %s187, 0
      %p1660 = por %p1658, %p1659
      %p1661 = scmp.ne.s32.totalorder %s1653, %s1655
      %p1662 = scmp.eq.s32.totalorder %s192, 1
      %p1663 = por %p1661, %p1662
      %p1664 = scmp.ne.s32.totalorder %s1655, %s1656
      %p1665 = scmp.eq.s32.totalorder %s192, 0
      %p1666 = por %p1664, %p1665
      %p1667 = scmp.ne.s32.totalorder %s1655, %s1656
      %p1668 = scmp.eq.s32.totalorder %s193, 1
      %p1669 = por %p1667, %p1668
      %p1671 = scmp.ne.s32.totalorder %s1656, %s1670
      %p1672 = scmp.eq.s32.totalorder %s193, 0
      %p1673 = por %p1671, %p1672
      %s1675 = sadd.s32 %s1674, 1
      %p1678 = scmp.eq.s32.totalorder %s187, 1
      %p1679 = scmp.ne.s32.totalorder %s1674, %s1676
      %p1680 = scmp.eq.s32.totalorder %s187, 0
      %p1681 = por %p1679, %p1680
      %p1682 = scmp.ne.s32.totalorder %s1674, %s1676
      %p1683 = scmp.eq.s32.totalorder %s192, 1
      %p1684 = por %p1682, %p1683
      %p1685 = scmp.ne.s32.totalorder %s1676, %s1677
      %p1686 = scmp.eq.s32.totalorder %s192, 0
      %p1687 = por %p1685, %p1686
      %p1688 = scmp.ne.s32.totalorder %s1676, %s1677
      %p1689 = scmp.eq.s32.totalorder %s193, 1
      %p1690 = por %p1688, %p1689
      %p1692 = scmp.ne.s32.totalorder %s1677, %s1691
      %p1693 = scmp.eq.s32.totalorder %s193, 0
      %p1694 = por %p1692, %p1693
      %s1696 = sadd.s32 %s1695, 1
      %p1699 = scmp.eq.s32.totalorder %s187, 1
      %p1700 = scmp.ne.s32.totalorder %s1695, %s1697
      %p1701 = scmp.eq.s32.totalorder %s187, 0
      %p1702 = por %p1700, %p1701
      %p1703 = scmp.ne.s32.totalorder %s1695, %s1697
      %p1704 = scmp.eq.s32.totalorder %s192, 1
      %p1705 = por %p1703, %p1704
      %p1706 = scmp.ne.s32.totalorder %s1697, %s1698
      %p1707 = scmp.eq.s32.totalorder %s192, 0
      %p1708 = por %p1706, %p1707
      %p1709 = scmp.ne.s32.totalorder %s1697, %s1698
      %p1710 = scmp.eq.s32.totalorder %s193, 1
      %p1711 = por %p1709, %p1710
      %p1713 = scmp.ne.s32.totalorder %s1698, %s1712
      %p1714 = scmp.eq.s32.totalorder %s193, 0
      %p1715 = por %p1713, %p1714
      %s1717 = sadd.s32 %s1716, 1
      %p1720 = scmp.eq.s32.totalorder %s187, 1
      %p1721 = scmp.ne.s32.totalorder %s1716, %s1718
      %p1722 = scmp.eq.s32.totalorder %s187, 0
      %p1723 = por %p1721, %p1722
      %p1724 = scmp.ne.s32.totalorder %s1716, %s1718
      %p1725 = scmp.eq.s32.totalorder %s192, 1
      %p1726 = por %p1724, %p1725
      %p1727 = scmp.ne.s32.totalorder %s1718, %s1719
      %p1728 = scmp.eq.s32.totalorder %s192, 0
      %p1729 = por %p1727, %p1728
      %p1730 = scmp.ne.s32.totalorder %s1718, %s1719
      %p1731 = scmp.eq.s32.totalorder %s193, 1
      %p1732 = por %p1730, %p1731
      %p1734 = scmp.ne.s32.totalorder %s1719, %s1733
      %p1735 = scmp.eq.s32.totalorder %s193, 0
      %p1736 = por %p1734, %p1735
      %s1738 = sadd.s32 %s1737, 1
      %p1741 = scmp.eq.s32.totalorder %s187, 1
      %p1742 = scmp.ne.s32.totalorder %s1737, %s1739
      %p1743 = scmp.eq.s32.totalorder %s187, 0
      %p1744 = por %p1742, %p1743
      %p1745 = scmp.ne.s32.totalorder %s1737, %s1739
      %p1746 = scmp.eq.s32.totalorder %s192, 1
      %p1747 = por %p1745, %p1746
      %p1748 = scmp.ne.s32.totalorder %s1739, %s1740
      %p1749 = scmp.eq.s32.totalorder %s192, 0
      %p1750 = por %p1748, %p1749
      %p1751 = scmp.ne.s32.totalorder %s1739, %s1740
      %p1752 = scmp.eq.s32.totalorder %s193, 1
      %p1753 = por %p1751, %p1752
      %p1755 = scmp.ne.s32.totalorder %s1740, %s1754
      %p1756 = scmp.eq.s32.totalorder %s193, 0
      %p1757 = por %p1755, %p1756
      %s1759 = sadd.s32 %s1758, 1
      %p1762 = scmp.eq.s32.totalorder %s187, 1
      %p1763 = scmp.ne.s32.totalorder %s1758, %s1760
      %p1764 = scmp.eq.s32.totalorder %s187, 0
      %p1765 = por %p1763, %p1764
      %p1766 = scmp.ne.s32.totalorder %s1758, %s1760
      %p1767 = scmp.eq.s32.totalorder %s192, 1
      %p1768 = por %p1766, %p1767
      %p1769 = scmp.ne.s32.totalorder %s1760, %s1761
      %p1770 = scmp.eq.s32.totalorder %s192, 0
      %p1771 = por %p1769, %p1770
      %p1772 = scmp.ne.s32.totalorder %s1760, %s1761
      %p1773 = scmp.eq.s32.totalorder %s193, 1
      %p1774 = por %p1772, %p1773
      %p1776 = scmp.ne.s32.totalorder %s1761, %s1775
      %p1777 = scmp.eq.s32.totalorder %s193, 0
      %p1778 = por %p1776, %p1777
      %s1780 = sadd.s32 %s1779, 1
      %p1783 = scmp.eq.s32.totalorder %s187, 1
      %p1784 = scmp.ne.s32.totalorder %s1779, %s1781
      %p1785 = scmp.eq.s32.totalorder %s187, 0
      %p1786 = por %p1784, %p1785
      %p1787 = scmp.ne.s32.totalorder %s1779, %s1781
      %p1788 = scmp.eq.s32.totalorder %s192, 1
      %p1789 = por %p1787, %p1788
      %p1790 = scmp.ne.s32.totalorder %s1781, %s1782
      %p1791 = scmp.eq.s32.totalorder %s192, 0
      %p1792 = por %p1790, %p1791
      %p1793 = scmp.ne.s32.totalorder %s1781, %s1782
      %p1794 = scmp.eq.s32.totalorder %s193, 1
      %p1795 = por %p1793, %p1794
      %p1797 = scmp.ne.s32.totalorder %s1782, %s1796
      %p1798 = scmp.eq.s32.totalorder %s193, 0
      %p1799 = por %p1797, %p1798
      %s1801 = sadd.s32 %s1800, 1
      %p1804 = scmp.eq.s32.totalorder %s187, 1
      %p1805 = scmp.ne.s32.totalorder %s1800, %s1802
      %p1806 = scmp.eq.s32.totalorder %s187, 0
      %p1807 = por %p1805, %p1806
      %p1808 = scmp.ne.s32.totalorder %s1800, %s1802
      %p1809 = scmp.eq.s32.totalorder %s192, 1
      %p1810 = por %p1808, %p1809
      %p1811 = scmp.ne.s32.totalorder %s1802, %s1803
      %p1812 = scmp.eq.s32.totalorder %s192, 0
      %p1813 = por %p1811, %p1812
      %p1814 = scmp.ne.s32.totalorder %s1802, %s1803
      %p1815 = scmp.eq.s32.totalorder %s193, 1
      %p1816 = por %p1814, %p1815
      %p1818 = scmp.ne.s32.totalorder %s1803, %s1817
      %p1819 = scmp.eq.s32.totalorder %s193, 0
      %p1820 = por %p1818, %p1819
      %s1822 = sadd.s32 %s1821, 1
      %p1825 = scmp.eq.s32.totalorder %s187, 1
      %p1826 = scmp.ne.s32.totalorder %s1821, %s1823
      %p1827 = scmp.eq.s32.totalorder %s187, 0
      %p1828 = por %p1826, %p1827
      %p1829 = scmp.ne.s32.totalorder %s1821, %s1823
      %p1830 = scmp.eq.s32.totalorder %s192, 1
      %p1831 = por %p1829, %p1830
      %p1832 = scmp.ne.s32.totalorder %s1823, %s1824
      %p1833 = scmp.eq.s32.totalorder %s192, 0
      %p1834 = por %p1832, %p1833
      %p1835 = scmp.ne.s32.totalorder %s1823, %s1824
      %p1836 = scmp.eq.s32.totalorder %s193, 1
      %p1837 = por %p1835, %p1836
      %p1839 = scmp.ne.s32.totalorder %s1824, %s1838
      %p1840 = scmp.eq.s32.totalorder %s193, 0
      %p1841 = por %p1839, %p1840
      %s1842 = ssub.s32 %s187, %s194
      %p1843 = scmp.eq.s32.totalorder %s1842, 0
      %s1845 = sadd.s32 %s1844, 1
      %s1846 = scalar_select %p1843, %s1844, %s1845
      %p1849 = pneg %p1843
      %p1850 = scmp.eq.s32.totalorder %s187, 1
      %p1851 = por %p1849, %p1850
      %p1852 = scmp.ne.s32.totalorder %s1844, %s1847
      %p1853 = scmp.eq.s32.totalorder %s187, 0
      %p1854 = por %p1852, %p1853
      %p1855 = scmp.ne.s32.totalorder %s1844, %s1847
      %p1856 = scmp.eq.s32.totalorder %s192, 1
      %p1857 = por %p1855, %p1856
      %p1858 = scmp.ne.s32.totalorder %s1847, %s1848
      %p1859 = scmp.eq.s32.totalorder %s192, 0
      %p1860 = por %p1858, %p1859
      %p1861 = scmp.ne.s32.totalorder %s1847, %s1848
      %p1862 = scmp.eq.s32.totalorder %s193, 1
      %p1863 = por %p1861, %p1862
      %p1865 = scmp.ne.s32.totalorder %s1848, %s1864
      %p1866 = scmp.eq.s32.totalorder %s193, 0
      %p1867 = por %p1865, %p1866
      %p1868 = scmp.le.s32.totalorder 1, %s187
      %p1869 = scmp.lt.s32.totalorder %s187, 3
      %p1870 = pnand %p1868, %p1869
      %p1871 = pneg %p1870
      // Predicated region
      $region9: #{transformer_forward.1} parent=5 // pred_check
        _
      $region10: #{transformer_forward.1} parent=5 // pred_check_branch
        %1873 = sbr.rel (%p1870) target = $region12
      $region11: #{transformer_forward.1} parent=5 // pred_region
        %s1874 = ssub.s32 %s187, 1
        // Predicated region
        $region13: #{transformer_forward.1} parent=11 // pred_check
          %p1875 = pneg %p364
        $region14: #{transformer_forward.1} parent=11 // pred_check_branch
          %1877 = sbr.rel (%p1875) target = $region16
        $region15: #{transformer_forward.1} parent=11 // pred_region
          _
        $region16: #{transformer_forward.1} parent=11 // pred_fallthru
          _
        // Predicated region
        $region17: #{transformer_forward.1} parent=11 // pred_check
          %p1878 = pneg %p385
        $region18: #{transformer_forward.1} parent=11 // pred_check_branch
          %1880 = sbr.rel (%p1878) target = $region20
        $region19: #{transformer_forward.1} parent=11 // pred_region
          _
        $region20: #{transformer_forward.1} parent=11 // pred_fallthru
          _
        // Predicated region
        $region21: #{transformer_forward.1} parent=11 // pred_check
          %p1881 = pneg %p406
        $region22: #{transformer_forward.1} parent=11 // pred_check_branch
          %1883 = sbr.rel (%p1881) target = $region24
        $region23: #{transformer_forward.1} parent=11 // pred_region
          _
        $region24: #{transformer_forward.1} parent=11 // pred_fallthru
          _
        // Predicated region
        $region25: #{transformer_forward.1} parent=11 // pred_check
          %p1884 = pneg %p427
        $region26: #{transformer_forward.1} parent=11 // pred_check_branch
          %1886 = sbr.rel (%p1884) target = $region28
        $region27: #{transformer_forward.1} parent=11 // pred_region
          _
        $region28: #{transformer_forward.1} parent=11 // pred_fallthru
          _
        // Predicated region
        $region29: #{transformer_forward.1} parent=11 // pred_check
          %p1887 = pneg %p448
        $region30: #{transformer_forward.1} parent=11 // pred_check_branch
          %1889 = sbr.rel (%p1887) target = $region32
        $region31: #{transformer_forward.1} parent=11 // pred_region
          %1891 = vsyncadd [#allocation9], 0
          %s1893 = sshll.u32 %s21, 4
          %s1894 = int_to_ptr.hbm [resolvable:$true] %s1893
          %s1895 = sshll.u32 [#allocation8], 4
          %s1896 = int_to_ptr.vmem [resolvable:$true] %s1895
          %1898 = dma.hbm_to_vmem [thread:$0]  %s1894, 16, %s1896, [#allocation9]
        $region32: #{transformer_forward.1} parent=11 // pred_fallthru
          _
        // Predicated region
        $region33: #{transformer_forward.1} parent=11 // pred_check
          %p1899 = pneg %p469
        $region34: #{transformer_forward.1} parent=11 // pred_check_branch
          %1901 = sbr.rel (%p1899) target = $region36
        $region35: #{transformer_forward.1} parent=11 // pred_region
          %1903 = vsyncadd [#allocation9], 0
          %s1905 = sshll.u32 %s23, 4
          %s1906 = int_to_ptr.hbm [resolvable:$true] %s1905
          %s1907 = sshll.u32 [#allocation10], 4
          %s1908 = int_to_ptr.vmem [resolvable:$true] %s1907
          %1910 = dma.hbm_to_vmem [thread:$0]  %s1906, 16, %s1908, [#allocation9]
        $region36: #{transformer_forward.1} parent=11 // pred_fallthru
          _
        // Predicated region
        $region37: #{transformer_forward.1} parent=11 // pred_check
          %p1911 = pneg %p490
        $region38: #{transformer_forward.1} parent=11 // pred_check_branch
          %1913 = sbr.rel (%p1911) target = $region40
        $region39: #{transformer_forward.1} parent=11 // pred_region
          _
        $region40: #{transformer_forward.1} parent=11 // pred_fallthru
          _
        // Predicated region
        $region41: #{transformer_forward.1} parent=11 // pred_check
          %p1914 = pneg %p511
        $region42: #{transformer_forward.1} parent=11 // pred_check_branch
          %1916 = sbr.rel (%p1914) target = $region44
        $region43: #{transformer_forward.1} parent=11 // pred_region
          %1918 = vsyncadd [#allocation12], 0
          %s1920 = sshll.u32 %s27, 4
          %s1921 = int_to_ptr.hbm [resolvable:$true] %s1920
          %s1922 = sshll.u32 [#allocation11], 4
          %s1923 = int_to_ptr.vmem [resolvable:$true] %s1922
          %1925 = dma.hbm_to_vmem [thread:$0]  %s1921, 16, %s1923, [#allocation12]
        $region44: #{transformer_forward.1} parent=11 // pred_fallthru
          _
        // Predicated region
        $region45: #{transformer_forward.1} parent=11 // pred_check
          %p1926 = pneg %p532
        $region46: #{transformer_forward.1} parent=11 // pred_check_branch
          %1928 = sbr.rel (%p1926) target = $region48
        $region47: #{transformer_forward.1} parent=11 // pred_region
          _
        $region48: #{transformer_forward.1} parent=11 // pred_fallthru
          _
        // Predicated region
        $region49: #{transformer_forward.1} parent=11 // pred_check
          %p1929 = pneg %p553
        $region50: #{transformer_forward.1} parent=11 // pred_check_branch
          %1931 = sbr.rel (%p1929) target = $region52
        $region51: #{transformer_forward.1} parent=11 // pred_region
          %1933 = vsyncadd [#allocation12], 0
          %s1935 = sshll.u32 %s31, 4
          %s1936 = int_to_ptr.hbm [resolvable:$true] %s1935
          %s1937 = sshll.u32 [#allocation13], 4
          %s1938 = int_to_ptr.vmem [resolvable:$true] %s1937
          %1940 = dma.hbm_to_vmem [thread:$0]  %s1936, 16, %s1938, [#allocation12]
        $region52: #{transformer_forward.1} parent=11 // pred_fallthru
          _
        // Predicated region
        $region53: #{transformer_forward.1} parent=11 // pred_check
          %p1941 = pneg %p574
        $region54: #{transformer_forward.1} parent=11 // pred_check_branch
          %1943 = sbr.rel (%p1941) target = $region56
        $region55: #{transformer_forward.1} parent=11 // pred_region
          %1945 = vsyncadd [#allocation15], 0
          %s1947 = sshll.u32 %s33, 4
          %s1948 = int_to_ptr.hbm [resolvable:$true] %s1947
          %s1949 = sshll.u32 [#allocation14], 4
          %s1950 = int_to_ptr.vmem [resolvable:$true] %s1949
          %1952 = dma.hbm_to_vmem [thread:$0]  %s1948, 16, %s1950, [#allocation15]
        $region56: #{transformer_forward.1} parent=11 // pred_fallthru
          _
        // Predicated region
        $region57: #{transformer_forward.1} parent=11 // pred_check
          %p1953 = pneg %p595
        $region58: #{transformer_forward.1} parent=11 // pred_check_branch
          %1955 = sbr.rel (%p1953) target = $region60
        $region59: #{transformer_forward.1} parent=11 // pred_region
          %1957 = vsyncadd [#allocation15], 0
          %s1959 = sshll.u32 %s35, 4
          %s1960 = int_to_ptr.hbm [resolvable:$true] %s1959
          %s1961 = sshll.u32 [#allocation16], 4
          %s1962 = int_to_ptr.vmem [resolvable:$true] %s1961
          %1964 = dma.hbm_to_vmem [thread:$0]  %s1960, 16, %s1962, [#allocation15]
        $region60: #{transformer_forward.1} parent=11 // pred_fallthru
          _
        // Predicated region
        $region61: #{transformer_forward.1} parent=11 // pred_check
          %p1965 = pneg %p616
        $region62: #{transformer_forward.1} parent=11 // pred_check_branch
          %1967 = sbr.rel (%p1965) target = $region64
        $region63: #{transformer_forward.1} parent=11 // pred_region
          _
        $region64: #{transformer_forward.1} parent=11 // pred_fallthru
          _
        // Predicated region
        $region65: #{transformer_forward.1} parent=11 // pred_check
          %p1968 = pneg %p637
        $region66: #{transformer_forward.1} parent=11 // pred_check_branch
          %1970 = sbr.rel (%p1968) target = $region68
        $region67: #{transformer_forward.1} parent=11 // pred_region
          _
        $region68: #{transformer_forward.1} parent=11 // pred_fallthru
          _
        // Predicated region
        $region69: #{transformer_forward.1} parent=11 // pred_check
          %p1971 = pneg %p658
        $region70: #{transformer_forward.1} parent=11 // pred_check_branch
          %1973 = sbr.rel (%p1971) target = $region72
        $region71: #{transformer_forward.1} parent=11 // pred_region
          _
        $region72: #{transformer_forward.1} parent=11 // pred_fallthru
          _
        // Predicated region
        $region73: #{transformer_forward.1} parent=11 // pred_check
          %p1974 = pneg %p679
        $region74: #{transformer_forward.1} parent=11 // pred_check_branch
          %1976 = sbr.rel (%p1974) target = $region76
        $region75: #{transformer_forward.1} parent=11 // pred_region
          _
        $region76: #{transformer_forward.1} parent=11 // pred_fallthru
          _
        // Predicated region
        $region77: #{transformer_forward.1} parent=11 // pred_check
          %p1977 = pneg %p700
        $region78: #{transformer_forward.1} parent=11 // pred_check_branch
          %1979 = sbr.rel (%p1977) target = $region80
        $region79: #{transformer_forward.1} parent=11 // pred_region
          %1981 = vsyncadd [#allocation18], 0
          %s1983 = sshll.u32 %s45, 4
          %s1984 = int_to_ptr.hbm [resolvable:$true] %s1983
          %s1985 = sshll.u32 [#allocation17], 4
          %s1986 = int_to_ptr.vmem [resolvable:$true] %s1985
          %1988 = dma.hbm_to_vmem [thread:$0]  %s1984, 16, %s1986, [#allocation18]
        $region80: #{transformer_forward.1} parent=11 // pred_fallthru
          _
        // Predicated region
        $region81: #{transformer_forward.1} parent=11 // pred_check
          %p1989 = pneg %p721
        $region82: #{transformer_forward.1} parent=11 // pred_check_branch
          %1991 = sbr.rel (%p1989) target = $region84
        $region83: #{transformer_forward.1} parent=11 // pred_region
          _
        $region84: #{transformer_forward.1} parent=11 // pred_fallthru
          _
        // Predicated region
        $region85: #{transformer_forward.1} parent=11 // pred_check
          %p1992 = pneg %p742
        $region86: #{transformer_forward.1} parent=11 // pred_check_branch
          %1994 = sbr.rel (%p1992) target = $region88
        $region87: #{transformer_forward.1} parent=11 // pred_region
          _
        $region88: #{transformer_forward.1} parent=11 // pred_fallthru
          _
        // Predicated region
        $region89: #{transformer_forward.1} parent=11 // pred_check
          %p1995 = pneg %p763
        $region90: #{transformer_forward.1} parent=11 // pred_check_branch
          %1997 = sbr.rel (%p1995) target = $region92
        $region91: #{transformer_forward.1} parent=11 // pred_region
          _
        $region92: #{transformer_forward.1} parent=11 // pred_fallthru
          _
        // Predicated region
        $region93: #{transformer_forward.1} parent=11 // pred_check
          %p1998 = pneg %p784
        $region94: #{transformer_forward.1} parent=11 // pred_check_branch
          %2000 = sbr.rel (%p1998) target = $region96
        $region95: #{transformer_forward.1} parent=11 // pred_region
          _
        $region96: #{transformer_forward.1} parent=11 // pred_fallthru
          _
        // Predicated region
        $region97: #{transformer_forward.1} parent=11 // pred_check
          %p2001 = pneg %p805
        $region98: #{transformer_forward.1} parent=11 // pred_check_branch
          %2003 = sbr.rel (%p2001) target = $region100
        $region99: #{transformer_forward.1} parent=11 // pred_region
          _
        $region100: #{transformer_forward.1} parent=11 // pred_fallthru
          _
        // Predicated region
        $region101: #{transformer_forward.1} parent=11 // pred_check
          %p2004 = pneg %p826
        $region102: #{transformer_forward.1} parent=11 // pred_check_branch
          %2006 = sbr.rel (%p2004) target = $region104
        $region103: #{transformer_forward.1} parent=11 // pred_region
          %2008 = vsyncadd [#allocation18], 0
          %s2010 = sshll.u32 %s57, 4
          %s2011 = int_to_ptr.hbm [resolvable:$true] %s2010
          %s2012 = sshll.u32 [#allocation19], 4
          %s2013 = int_to_ptr.vmem [resolvable:$true] %s2012
          %2015 = dma.hbm_to_vmem [thread:$0]  %s2011, 16, %s2013, [#allocation18]
        $region104: #{transformer_forward.1} parent=11 // pred_fallthru
          _
        // Predicated region
        $region105: #{transformer_forward.1} parent=11 // pred_check
          %p2016 = pneg %p847
        $region106: #{transformer_forward.1} parent=11 // pred_check_branch
          %2018 = sbr.rel (%p2016) target = $region108
        $region107: #{transformer_forward.1} parent=11 // pred_region
          %2020 = vsyncadd [#allocation21], 0
          %s2022 = sshll.u32 %s59, 4
          %s2023 = int_to_ptr.hbm [resolvable:$true] %s2022
          %s2024 = sshll.u32 [#allocation20], 4
          %s2025 = int_to_ptr.vmem [resolvable:$true] %s2024
          %2027 = dma.hbm_to_vmem [thread:$0]  %s2023, 16, %s2025, [#allocation21]
        $region108: #{transformer_forward.1} parent=11 // pred_fallthru
          _
        // Predicated region
        $region109: #{transformer_forward.1} parent=11 // pred_check
          %p2028 = pneg %p868
        $region110: #{transformer_forward.1} parent=11 // pred_check_branch
          %2030 = sbr.rel (%p2028) target = $region112
        $region111: #{transformer_forward.1} parent=11 // pred_region
          _
        $region112: #{transformer_forward.1} parent=11 // pred_fallthru
          _
        // Predicated region
        $region113: #{transformer_forward.1} parent=11 // pred_check
          %p2031 = pneg %p889
        $region114: #{transformer_forward.1} parent=11 // pred_check_branch
          %2033 = sbr.rel (%p2031) target = $region116
        $region115: #{transformer_forward.1} parent=11 // pred_region
          %2035 = vsyncadd [#allocation21], 0
          %s2037 = sshll.u32 %s63, 4
          %s2038 = int_to_ptr.hbm [resolvable:$true] %s2037
          %s2039 = sshll.u32 [#allocation22], 4
          %s2040 = int_to_ptr.vmem [resolvable:$true] %s2039
          %2042 = dma.hbm_to_vmem [thread:$0]  %s2038, 16, %s2040, [#allocation21]
        $region116: #{transformer_forward.1} parent=11 // pred_fallthru
          _
        // Predicated region
        $region117: #{transformer_forward.1} parent=11 // pred_check
          %p2043 = pneg %p910
        $region118: #{transformer_forward.1} parent=11 // pred_check_branch
          %2045 = sbr.rel (%p2043) target = $region120
        $region119: #{transformer_forward.1} parent=11 // pred_region
          _
        $region120: #{transformer_forward.1} parent=11 // pred_fallthru
          _
        // Predicated region
        $region121: #{transformer_forward.1} parent=11 // pred_check
          %p2046 = pneg %p931
        $region122: #{transformer_forward.1} parent=11 // pred_check_branch
          %2048 = sbr.rel (%p2046) target = $region124
        $region123: #{transformer_forward.1} parent=11 // pred_region
          %2050 = vsyncadd [#allocation24], 0
          %s2052 = sshll.u32 %s67, 4
          %s2053 = int_to_ptr.hbm [resolvable:$true] %s2052
          %s2054 = sshll.u32 [#allocation23], 4
          %s2055 = int_to_ptr.vmem [resolvable:$true] %s2054
          %2057 = dma.hbm_to_vmem [thread:$0]  %s2053, 16, %s2055, [#allocation24]
        $region124: #{transformer_forward.1} parent=11 // pred_fallthru
          _
        // Predicated region
        $region125: #{transformer_forward.1} parent=11 // pred_check
          %p2058 = pneg %p952
        $region126: #{transformer_forward.1} parent=11 // pred_check_branch
          %2060 = sbr.rel (%p2058) target = $region128
        $region127: #{transformer_forward.1} parent=11 // pred_region
          %2062 = vsyncadd [#allocation24], 0
          %s2064 = sshll.u32 %s69, 4
          %s2065 = int_to_ptr.hbm [resolvable:$true] %s2064
          %s2066 = sshll.u32 [#allocation25], 4
          %s2067 = int_to_ptr.vmem [resolvable:$true] %s2066
          %2069 = dma.hbm_to_vmem [thread:$0]  %s2065, 16, %s2067, [#allocation24]
        $region128: #{transformer_forward.1} parent=11 // pred_fallthru
          _
        // Predicated region
        $region129: #{transformer_forward.1} parent=11 // pred_check
          %p2070 = pneg %p973
        $region130: #{transformer_forward.1} parent=11 // pred_check_branch
          %2072 = sbr.rel (%p2070) target = $region132
        $region131: #{transformer_forward.1} parent=11 // pred_region
          %2074 = vsyncadd [#allocation27], 0
          %s2076 = sshll.u32 %s71, 4
          %s2077 = int_to_ptr.hbm [resolvable:$true] %s2076
          %s2078 = sshll.u32 [#allocation26], 4
          %s2079 = int_to_ptr.vmem [resolvable:$true] %s2078
          %2081 = dma.hbm_to_vmem [thread:$0]  %s2077, 16, %s2079, [#allocation27]
        $region132: #{transformer_forward.1} parent=11 // pred_fallthru
          _
        // Predicated region
        $region133: #{transformer_forward.1} parent=11 // pred_check
          %p2082 = pneg %p994
        $region134: #{transformer_forward.1} parent=11 // pred_check_branch
          %2084 = sbr.rel (%p2082) target = $region136
        $region135: #{transformer_forward.1} parent=11 // pred_region
          _
        $region136: #{transformer_forward.1} parent=11 // pred_fallthru
          _
        // Predicated region
        $region137: #{transformer_forward.1} parent=11 // pred_check
          %p2085 = pneg %p1015
        $region138: #{transformer_forward.1} parent=11 // pred_check_branch
          %2087 = sbr.rel (%p2085) target = $region140
        $region139: #{transformer_forward.1} parent=11 // pred_region
          %2089 = vsyncadd [#allocation27], 0
          %s2091 = sshll.u32 %s75, 4
          %s2092 = int_to_ptr.hbm [resolvable:$true] %s2091
          %s2093 = sshll.u32 [#allocation28], 4
          %s2094 = int_to_ptr.vmem [resolvable:$true] %s2093
          %2096 = dma.hbm_to_vmem [thread:$0]  %s2092, 16, %s2094, [#allocation27]
        $region140: #{transformer_forward.1} parent=11 // pred_fallthru
          _
        // Predicated region
        $region141: #{transformer_forward.1} parent=11 // pred_check
          %p2097 = pneg %p1036
        $region142: #{transformer_forward.1} parent=11 // pred_check_branch
          %2099 = sbr.rel (%p2097) target = $region144
        $region143: #{transformer_forward.1} parent=11 // pred_region
          _
        $region144: #{transformer_forward.1} parent=11 // pred_fallthru
          _
        // Predicated region
        $region145: #{transformer_forward.1} parent=11 // pred_check
          %p2100 = pneg %p1057
        $region146: #{transformer_forward.1} parent=11 // pred_check_branch
          %2102 = sbr.rel (%p2100) target = $region148
        $region147: #{transformer_forward.1} parent=11 // pred_region
          _
        $region148: #{transformer_forward.1} parent=11 // pred_fallthru
          _
        // Predicated region
        $region149: #{transformer_forward.1} parent=11 // pred_check
          %p2103 = pneg %p1078
        $region150: #{transformer_forward.1} parent=11 // pred_check_branch
          %2105 = sbr.rel (%p2103) target = $region152
        $region151: #{transformer_forward.1} parent=11 // pred_region
          _
        $region152: #{transformer_forward.1} parent=11 // pred_fallthru
          _
        // Predicated region
        $region153: #{transformer_forward.1} parent=11 // pred_check
          %p2106 = pneg %p1099
        $region154: #{transformer_forward.1} parent=11 // pred_check_branch
          %2108 = sbr.rel (%p2106) target = $region156
        $region155: #{transformer_forward.1} parent=11 // pred_region
          %2110 = vsyncadd [#allocation30], 0
          %s2112 = sshll.u32 %s83, 4
          %s2113 = int_to_ptr.hbm [resolvable:$true] %s2112
          %s2114 = sshll.u32 [#allocation29], 4
          %s2115 = int_to_ptr.vmem [resolvable:$true] %s2114
          %2117 = dma.hbm_to_vmem [thread:$0]  %s2113, 16, %s2115, [#allocation30]
        $region156: #{transformer_forward.1} parent=11 // pred_fallthru
          _
        // Predicated region
        $region157: #{transformer_forward.1} parent=11 // pred_check
          %p2118 = pneg %p1120
        $region158: #{transformer_forward.1} parent=11 // pred_check_branch
          %2120 = sbr.rel (%p2118) target = $region160
        $region159: #{transformer_forward.1} parent=11 // pred_region
          _
        $region160: #{transformer_forward.1} parent=11 // pred_fallthru
          _
        // Predicated region
        $region161: #{transformer_forward.1} parent=11 // pred_check
          %p2121 = pneg %p1141
        $region162: #{transformer_forward.1} parent=11 // pred_check_branch
          %2123 = sbr.rel (%p2121) target = $region164
        $region163: #{transformer_forward.1} parent=11 // pred_region
          %2125 = vsyncadd [#allocation30], 0
          %s2127 = sshll.u32 %s87, 4
          %s2128 = int_to_ptr.hbm [resolvable:$true] %s2127
          %s2129 = sshll.u32 [#allocation31], 4
          %s2130 = int_to_ptr.vmem [resolvable:$true] %s2129
          %2132 = dma.hbm_to_vmem [thread:$0]  %s2128, 16, %s2130, [#allocation30]
        $region164: #{transformer_forward.1} parent=11 // pred_fallthru
          _
        // Predicated region
        $region165: #{transformer_forward.1} parent=11 // pred_check
          %p2133 = pneg %p1162
        $region166: #{transformer_forward.1} parent=11 // pred_check_branch
          %2135 = sbr.rel (%p2133) target = $region168
        $region167: #{transformer_forward.1} parent=11 // pred_region
          _
        $region168: #{transformer_forward.1} parent=11 // pred_fallthru
          _
        // Predicated region
        $region169: #{transformer_forward.1} parent=11 // pred_check
          %p2136 = pneg %p1183
        $region170: #{transformer_forward.1} parent=11 // pred_check_branch
          %2138 = sbr.rel (%p2136) target = $region172
        $region171: #{transformer_forward.1} parent=11 // pred_region
          _
        $region172: #{transformer_forward.1} parent=11 // pred_fallthru
          _
        // Predicated region
        $region173: #{transformer_forward.1} parent=11 // pred_check
          %p2139 = pneg %p1204
        $region174: #{transformer_forward.1} parent=11 // pred_check_branch
          %2141 = sbr.rel (%p2139) target = $region176
        $region175: #{transformer_forward.1} parent=11 // pred_region
          _
        $region176: #{transformer_forward.1} parent=11 // pred_fallthru
          _
        // Predicated region
        $region177: #{transformer_forward.1} parent=11 // pred_check
          %p2142 = pneg %p1225
        $region178: #{transformer_forward.1} parent=11 // pred_check_branch
          %2144 = sbr.rel (%p2142) target = $region180
        $region179: #{transformer_forward.1} parent=11 // pred_region
          %2146 = vsyncadd [#allocation33], 0
          %s2148 = sshll.u32 %s95, 4
          %s2149 = int_to_ptr.hbm [resolvable:$true] %s2148
          %s2150 = sshll.u32 [#allocation32], 4
          %s2151 = int_to_ptr.vmem [resolvable:$true] %s2150
          %2153 = dma.hbm_to_vmem [thread:$0]  %s2149, 16, %s2151, [#allocation33]
        $region180: #{transformer_forward.1} parent=11 // pred_fallthru
          _
        // Predicated region
        $region181: #{transformer_forward.1} parent=11 // pred_check
          %p2154 = pneg %p1246
        $region182: #{transformer_forward.1} parent=11 // pred_check_branch
          %2156 = sbr.rel (%p2154) target = $region184
        $region183: #{transformer_forward.1} parent=11 // pred_region
          _
        $region184: #{transformer_forward.1} parent=11 // pred_fallthru
          _
        // Predicated region
        $region185: #{transformer_forward.1} parent=11 // pred_check
          %p2157 = pneg %p1267
        $region186: #{transformer_forward.1} parent=11 // pred_check_branch
          %2159 = sbr.rel (%p2157) target = $region188
        $region187: #{transformer_forward.1} parent=11 // pred_region
          _
        $region188: #{transformer_forward.1} parent=11 // pred_fallthru
          _
        // Predicated region
        $region189: #{transformer_forward.1} parent=11 // pred_check
          %p2160 = pneg %p1288
        $region190: #{transformer_forward.1} parent=11 // pred_check_branch
          %2162 = sbr.rel (%p2160) target = $region192
        $region191: #{transformer_forward.1} parent=11 // pred_region
          _
        $region192: #{transformer_forward.1} parent=11 // pred_fallthru
          _
        // Predicated region
        $region193: #{transformer_forward.1} parent=11 // pred_check
          %p2163 = pneg %p1309
        $region194: #{transformer_forward.1} parent=11 // pred_check_branch
          %2165 = sbr.rel (%p2163) target = $region196
        $region195: #{transformer_forward.1} parent=11 // pred_region
          _
        $region196: #{transformer_forward.1} parent=11 // pred_fallthru
          _
        // Predicated region
        $region197: #{transformer_forward.1} parent=11 // pred_check
          %p2166 = pneg %p1330
        $region198: #{transformer_forward.1} parent=11 // pred_check_branch
          %2168 = sbr.rel (%p2166) target = $region200
        $region199: #{transformer_forward.1} parent=11 // pred_region
          %2170 = vsyncadd [#allocation33], 0
          %s2172 = sshll.u32 %s105, 4
          %s2173 = int_to_ptr.hbm [resolvable:$true] %s2172
          %s2174 = sshll.u32 [#allocation34], 4
          %s2175 = int_to_ptr.vmem [resolvable:$true] %s2174
          %2177 = dma.hbm_to_vmem [thread:$0]  %s2173, 16, %s2175, [#allocation33]
        $region200: #{transformer_forward.1} parent=11 // pred_fallthru
          _
        // Predicated region
        $region201: #{transformer_forward.1} parent=11 // pred_check
          %p2178 = pneg %p1351
        $region202: #{transformer_forward.1} parent=11 // pred_check_branch
          %2180 = sbr.rel (%p2178) target = $region204
        $region203: #{transformer_forward.1} parent=11 // pred_region
          _
        $region204: #{transformer_forward.1} parent=11 // pred_fallthru
          _
        // Predicated region
        $region205: #{transformer_forward.1} parent=11 // pred_check
          %p2181 = pneg %p1372
        $region206: #{transformer_forward.1} parent=11 // pred_check_branch
          %2183 = sbr.rel (%p2181) target = $region208
        $region207: #{transformer_forward.1} parent=11 // pred_region
          _
        $region208: #{transformer_forward.1} parent=11 // pred_fallthru
          _
        // Predicated region
        $region209: #{transformer_forward.1} parent=11 // pred_check
          %p2184 = pneg %p1393
        $region210: #{transformer_forward.1} parent=11 // pred_check_branch
          %2186 = sbr.rel (%p2184) target = $region212
        $region211: #{transformer_forward.1} parent=11 // pred_region
          _
        $region212: #{transformer_forward.1} parent=11 // pred_fallthru
          _
        // Predicated region
        $region213: #{transformer_forward.1} parent=11 // pred_check
          %p2187 = pneg %p1414
        $region214: #{transformer_forward.1} parent=11 // pred_check_branch
          %2189 = sbr.rel (%p2187) target = $region216
        $region215: #{transformer_forward.1} parent=11 // pred_region
          %2191 = vsyncadd [#allocation36], 0
          %s2193 = sshll.u32 %s113, 4
          %s2194 = int_to_ptr.hbm [resolvable:$true] %s2193
          %s2195 = sshll.u32 [#allocation35], 4
          %s2196 = int_to_ptr.vmem [resolvable:$true] %s2195
          %2198 = dma.hbm_to_vmem [thread:$0]  %s2194, 16, %s2196, [#allocation36]
        $region216: #{transformer_forward.1} parent=11 // pred_fallthru
          _
        // Predicated region
        $region217: #{transformer_forward.1} parent=11 // pred_check
          %p2199 = pneg %p1435
        $region218: #{transformer_forward.1} parent=11 // pred_check_branch
          %2201 = sbr.rel (%p2199) target = $region220
        $region219: #{transformer_forward.1} parent=11 // pred_region
          _
        $region220: #{transformer_forward.1} parent=11 // pred_fallthru
          _
        // Predicated region
        $region221: #{transformer_forward.1} parent=11 // pred_check
          %p2202 = pneg %p1456
        $region222: #{transformer_forward.1} parent=11 // pred_check_branch
          %2204 = sbr.rel (%p2202) target = $region224
        $region223: #{transformer_forward.1} parent=11 // pred_region
          %2206 = vsyncadd [#allocation36], 0
          %s2208 = sshll.u32 %s117, 4
          %s2209 = int_to_ptr.hbm [resolvable:$true] %s2208
          %s2210 = sshll.u32 [#allocation37], 4
          %s2211 = int_to_ptr.vmem [resolvable:$true] %s2210
          %2213 = dma.hbm_to_vmem [thread:$0]  %s2209, 16, %s2211, [#allocation36]
        $region224: #{transformer_forward.1} parent=11 // pred_fallthru
          _
        // Predicated region
        $region225: #{transformer_forward.1} parent=11 // pred_check
          %p2214 = pneg %p1477
        $region226: #{transformer_forward.1} parent=11 // pred_check_branch
          %2216 = sbr.rel (%p2214) target = $region228
        $region227: #{transformer_forward.1} parent=11 // pred_region
          _
        $region228: #{transformer_forward.1} parent=11 // pred_fallthru
          _
        // Predicated region
        $region229: #{transformer_forward.1} parent=11 // pred_check
          %p2217 = pneg %p1498
        $region230: #{transformer_forward.1} parent=11 // pred_check_branch
          %2219 = sbr.rel (%p2217) target = $region232
        $region231: #{transformer_forward.1} parent=11 // pred_region
          %2221 = vsyncadd [#allocation39], 0
          %s2223 = sshll.u32 %s121, 4
          %s2224 = int_to_ptr.hbm [resolvable:$true] %s2223
          %s2225 = sshll.u32 [#allocation38], 4
          %s2226 = int_to_ptr.vmem [resolvable:$true] %s2225
          %2228 = dma.hbm_to_vmem [thread:$0]  %s2224, 16, %s2226, [#allocation39]
        $region232: #{transformer_forward.1} parent=11 // pred_fallthru
          _
        // Predicated region
        $region233: #{transformer_forward.1} parent=11 // pred_check
          %p2229 = pneg %p1519
        $region234: #{transformer_forward.1} parent=11 // pred_check_branch
          %2231 = sbr.rel (%p2229) target = $region236
        $region235: #{transformer_forward.1} parent=11 // pred_region
          _
        $region236: #{transformer_forward.1} parent=11 // pred_fallthru
          _
        // Predicated region
        $region237: #{transformer_forward.1} parent=11 // pred_check
          %p2232 = pneg %p1540
        $region238: #{transformer_forward.1} parent=11 // pred_check_branch
          %2234 = sbr.rel (%p2232) target = $region240
        $region239: #{transformer_forward.1} parent=11 // pred_region
          %2236 = vsyncadd [#allocation39], 0
          %s2238 = sshll.u32 %s125, 4
          %s2239 = int_to_ptr.hbm [resolvable:$true] %s2238
          %s2240 = sshll.u32 [#allocation40], 4
          %s2241 = int_to_ptr.vmem [resolvable:$true] %s2240
          %2243 = dma.hbm_to_vmem [thread:$0]  %s2239, 16, %s2241, [#allocation39]
        $region240: #{transformer_forward.1} parent=11 // pred_fallthru
          _
        // Predicated region
        $region241: #{transformer_forward.1} parent=11 // pred_check
          %p2244 = pneg %p1561
        $region242: #{transformer_forward.1} parent=11 // pred_check_branch
          %2246 = sbr.rel (%p2244) target = $region244
        $region243: #{transformer_forward.1} parent=11 // pred_region
          _
        $region244: #{transformer_forward.1} parent=11 // pred_fallthru
          _
        // Predicated region
        $region245: #{transformer_forward.1} parent=11 // pred_check
          %p2247 = pneg %p1582
        $region246: #{transformer_forward.1} parent=11 // pred_check_branch
          %2249 = sbr.rel (%p2247) target = $region248
        $region247: #{transformer_forward.1} parent=11 // pred_region
          %2251 = vsyncadd [#allocation42], 0
          %s2253 = sshll.u32 %s129, 4
          %s2254 = int_to_ptr.hbm [resolvable:$true] %s2253
          %s2255 = sshll.u32 [#allocation41], 4
          %s2256 = int_to_ptr.vmem [resolvable:$true] %s2255
          %2258 = dma.hbm_to_vmem [thread:$0]  %s2254, 16, %s2256, [#allocation42]
        $region248: #{transformer_forward.1} parent=11 // pred_fallthru
          _
        // Predicated region
        $region249: #{transformer_forward.1} parent=11 // pred_check
          %p2259 = pneg %p1603
        $region250: #{transformer_forward.1} parent=11 // pred_check_branch
          %2261 = sbr.rel (%p2259) target = $region252
        $region251: #{transformer_forward.1} parent=11 // pred_region
          _
        $region252: #{transformer_forward.1} parent=11 // pred_fallthru
          _
        // Predicated region
        $region253: #{transformer_forward.1} parent=11 // pred_check
          %p2262 = pneg %p1624
        $region254: #{transformer_forward.1} parent=11 // pred_check_branch
          %2264 = sbr.rel (%p2262) target = $region256
        $region255: #{transformer_forward.1} parent=11 // pred_region
          %2266 = vsyncadd [#allocation42], 0
          %s2268 = sshll.u32 %s133, 4
          %s2269 = int_to_ptr.hbm [resolvable:$true] %s2268
          %s2270 = sshll.u32 [#allocation43], 4
          %s2271 = int_to_ptr.vmem [resolvable:$true] %s2270
          %2273 = dma.hbm_to_vmem [thread:$0]  %s2269, 16, %s2271, [#allocation42]
        $region256: #{transformer_forward.1} parent=11 // pred_fallthru
          _
        // Predicated region
        $region257: #{transformer_forward.1} parent=11 // pred_check
          %p2274 = pneg %p1645
        $region258: #{transformer_forward.1} parent=11 // pred_check_branch
          %2276 = sbr.rel (%p2274) target = $region260
        $region259: #{transformer_forward.1} parent=11 // pred_region
          _
        $region260: #{transformer_forward.1} parent=11 // pred_fallthru
          _
        // Predicated region
        $region261: #{transformer_forward.1} parent=11 // pred_check
          %p2277 = pneg %p1666
        $region262: #{transformer_forward.1} parent=11 // pred_check_branch
          %2279 = sbr.rel (%p2277) target = $region264
        $region263: #{transformer_forward.1} parent=11 // pred_region
          %2281 = vsyncadd [#allocation45], 0
          %s2283 = sshll.u32 %s137, 4
          %s2284 = int_to_ptr.hbm [resolvable:$true] %s2283
          %s2285 = sshll.u32 [#allocation44], 4
          %s2286 = int_to_ptr.vmem [resolvable:$true] %s2285
          %2288 = dma.hbm_to_vmem [thread:$0]  %s2284, 16, %s2286, [#allocation45]
        $region264: #{transformer_forward.1} parent=11 // pred_fallthru
          _
        // Predicated region
        $region265: #{transformer_forward.1} parent=11 // pred_check
          %p2289 = pneg %p1687
        $region266: #{transformer_forward.1} parent=11 // pred_check_branch
          %2291 = sbr.rel (%p2289) target = $region268
        $region267: #{transformer_forward.1} parent=11 // pred_region
          _
        $region268: #{transformer_forward.1} parent=11 // pred_fallthru
          _
        // Predicated region
        $region269: #{transformer_forward.1} parent=11 // pred_check
          %p2292 = pneg %p1708
        $region270: #{transformer_forward.1} parent=11 // pred_check_branch
          %2294 = sbr.rel (%p2292) target = $region272
        $region271: #{transformer_forward.1} parent=11 // pred_region
          _
        $region272: #{transformer_forward.1} parent=11 // pred_fallthru
          _
        // Predicated region
        $region273: #{transformer_forward.1} parent=11 // pred_check
          %p2295 = pneg %p1729
        $region274: #{transformer_forward.1} parent=11 // pred_check_branch
          %2297 = sbr.rel (%p2295) target = $region276
        $region275: #{transformer_forward.1} parent=11 // pred_region
          %2299 = vsyncadd [#allocation45], 0
          %s2300 = sshll.u32 %s143, 4
          %s2301 = int_to_ptr.hbm [resolvable:$true] %s2300
          %s2302 = sshll.u32 [#allocation46], 4
          %s2303 = int_to_ptr.vmem [resolvable:$true] %s2302
          %2308 = dma.hbm_to_vmem [thread:$0]  %s2301, 512, %s2303, [#allocation45], 64, 64, 4
        $region276: #{transformer_forward.1} parent=11 // pred_fallthru
          _
        // Predicated region
        $region277: #{transformer_forward.1} parent=11 // pred_check
          %p2309 = pneg %p1750
        $region278: #{transformer_forward.1} parent=11 // pred_check_branch
          %2311 = sbr.rel (%p2309) target = $region280
        $region279: #{transformer_forward.1} parent=11 // pred_region
          %2313 = vsyncadd [#allocation48], 0
          %s2315 = sshll.u32 %s145, 4
          %s2316 = int_to_ptr.hbm [resolvable:$true] %s2315
          %s2317 = sshll.u32 [#allocation47], 4
          %s2318 = int_to_ptr.vmem [resolvable:$true] %s2317
          %2320 = dma.hbm_to_vmem [thread:$0]  %s2316, 16, %s2318, [#allocation48]
        $region280: #{transformer_forward.1} parent=11 // pred_fallthru
          _
        // Predicated region
        $region281: #{transformer_forward.1} parent=11 // pred_check
          %p2321 = pneg %p1771
        $region282: #{transformer_forward.1} parent=11 // pred_check_branch
          %2323 = sbr.rel (%p2321) target = $region284
        $region283: #{transformer_forward.1} parent=11 // pred_region
          %2325 = vsyncadd [#allocation48], 0
          %s2327 = sshll.u32 %s147, 4
          %s2328 = int_to_ptr.hbm [resolvable:$true] %s2327
          %s2329 = sshll.u32 [#allocation49], 4
          %s2330 = int_to_ptr.vmem [resolvable:$true] %s2329
          %2332 = dma.hbm_to_vmem [thread:$0]  %s2328, 16, %s2330, [#allocation48]
        $region284: #{transformer_forward.1} parent=11 // pred_fallthru
          _
        // Predicated region
        $region285: #{transformer_forward.1} parent=11 // pred_check
          %p2333 = pneg %p1792
        $region286: #{transformer_forward.1} parent=11 // pred_check_branch
          %2335 = sbr.rel (%p2333) target = $region288
        $region287: #{transformer_forward.1} parent=11 // pred_region
          %2337 = vsyncadd [#allocation51], 0
          %s2339 = sshll.u32 %s149, 4
          %s2340 = int_to_ptr.hbm [resolvable:$true] %s2339
          %s2341 = sshll.u32 [#allocation50], 4
          %s2342 = int_to_ptr.vmem [resolvable:$true] %s2341
          %2344 = dma.hbm_to_vmem [thread:$0]  %s2340, 16, %s2342, [#allocation51]
        $region288: #{transformer_forward.1} parent=11 // pred_fallthru
          _
        // Predicated region
        $region289: #{transformer_forward.1} parent=11 // pred_check
          %p2345 = pneg %p1813
        $region290: #{transformer_forward.1} parent=11 // pred_check_branch
          %2347 = sbr.rel (%p2345) target = $region292
        $region291: #{transformer_forward.1} parent=11 // pred_region
          _
        $region292: #{transformer_forward.1} parent=11 // pred_fallthru
          _
        // Predicated region
        $region293: #{transformer_forward.1} parent=11 // pred_check
          %p2348 = pneg %p1834
        $region294: #{transformer_forward.1} parent=11 // pred_check_branch
          %2350 = sbr.rel (%p2348) target = $region296
        $region295: #{transformer_forward.1} parent=11 // pred_region
          %2352 = vsyncadd [#allocation51], 0
          %s2354 = sshll.u32 %s153, 4
          %s2355 = int_to_ptr.hbm [resolvable:$true] %s2354
          %s2356 = sshll.u32 [#allocation52], 4
          %s2357 = int_to_ptr.vmem [resolvable:$true] %s2356
          %2359 = dma.hbm_to_vmem [thread:$0]  %s2355, 16, %s2357, [#allocation51]
        $region296: #{transformer_forward.1} parent=11 // pred_fallthru
          _
      $region12: #{transformer_forward.1} parent=5 // pred_fallthru
        _
      %p2360 = scmp.lt.s32.totalorder %s187, 2
      // Predicated region
      $region297: #{transformer_forward.1} parent=5 // pred_check
        %p2361 = pneg %p2360
      $region298: #{transformer_forward.1} parent=5 // pred_check_branch
        %2363 = sbr.rel (%p2361) target = $region300
      $region299: #{transformer_forward.1} parent=5 // pred_region
        // Predicated region
        $region301: #{transformer_forward.1} parent=299 // pred_check
          %p2364 = pneg %p207
        $region302: #{transformer_forward.1} parent=299 // pred_check_branch
          %2366 = sbr.rel (%p2364) target = $region304
        $region303: #{transformer_forward.1} parent=299 // pred_region
          %p2367 = scmp.lt.s32.totalorder %s187, 1
          %s2368 = scalar_select %p2367, %s187, 1
          %s2369 = smul.addr %s2368, 8
          %s2370 = scalar_lea.vmem %s1, %s2369
        $region304: #{transformer_forward.1} parent=299 // pred_fallthru
          _
        // Predicated region
        $region305: #{transformer_forward.1} parent=299 // pred_check
          %p2371 = pneg %p233
        $region306: #{transformer_forward.1} parent=299 // pred_check_branch
          %2373 = sbr.rel (%p2371) target = $region308
        $region307: #{transformer_forward.1} parent=299 // pred_region
          %s2374 = sand.u32 %s223, 1
          %s2375 = scalar_lea.sflag [#allocation7], %s2374
          %s2376 = sand.u32 %s223, 1
          %s2377 = smul.addr %s2376, 8
          %s2378 = scalar_lea.vmem [#allocation6], %s2377
          %2380 = vsyncadd %s2375, 0
          %s2381 = smul.addr %s187, 8
          %s2382 = scalar_lea.hbm %s3, %s2381
          %s2384 = sshll.u32 %s2382, 4
          %s2385 = int_to_ptr.hbm [resolvable:$true] %s2384
          %s2386 = sshll.u32 %s2378, 4
          %s2387 = int_to_ptr.vmem [resolvable:$true] %s2386
          %2389 = dma.hbm_to_vmem [thread:$0]  %s2385, 128, %s2387, %s2375
        $region308: #{transformer_forward.1} parent=299 // pred_fallthru
          _
        // Predicated region
        $region309: #{transformer_forward.1} parent=299 // pred_check
          %p2390 = pneg %p259
        $region310: #{transformer_forward.1} parent=299 // pred_check_branch
          %2392 = sbr.rel (%p2390) target = $region312
        $region311: #{transformer_forward.1} parent=299 // pred_region
          %p2393 = scmp.lt.s32.totalorder %s187, 1
          %s2394 = scalar_select %p2393, %s187, 1
          %s2395 = scalar_lea.vmem %s5, %s2394
        $region312: #{transformer_forward.1} parent=299 // pred_fallthru
          _
        // Predicated region
        $region313: #{transformer_forward.1} parent=299 // pred_check
          %p2396 = pneg %p285
        $region314: #{transformer_forward.1} parent=299 // pred_check_branch
          %2398 = sbr.rel (%p2396) target = $region316
        $region315: #{transformer_forward.1} parent=299 // pred_region
          %p2399 = scmp.lt.s32.totalorder %s187, 1
          %s2400 = scalar_select %p2399, %s187, 1
          %s2401 = smul.addr %s2400, 8
          %s2402 = scalar_lea.vmem %s7, %s2401
        $region316: #{transformer_forward.1} parent=299 // pred_fallthru
          _
        // Predicated region
        $region317: #{transformer_forward.1} parent=299 // pred_check
          %p2403 = pneg %p311
        $region318: #{transformer_forward.1} parent=299 // pred_check_branch
          %2405 = sbr.rel (%p2403) target = $region320
        $region319: #{transformer_forward.1} parent=299 // pred_region
          %p2406 = scmp.lt.s32.totalorder %s187, 1
          %s2407 = scalar_select %p2406, %s187, 1
          %s2408 = scalar_lea.vmem %s9, %s2407
        $region320: #{transformer_forward.1} parent=299 // pred_fallthru
          _
        // Predicated region
        $region321: #{transformer_forward.1} parent=299 // pred_check
          %p2409 = pneg %p337
        $region322: #{transformer_forward.1} parent=299 // pred_check_branch
          %2411 = sbr.rel (%p2409) target = $region324
        $region323: #{transformer_forward.1} parent=299 // pred_region
          %p2412 = scmp.lt.s32.totalorder %s187, 1
          %s2413 = scalar_select %p2412, %s187, 1
          %s2414 = smul.addr %s2413, 8
          %s2415 = scalar_lea.vmem %s11, %s2414
        $region324: #{transformer_forward.1} parent=299 // pred_fallthru
          _
      $region300: #{transformer_forward.1} parent=5 // pred_fallthru
        _
      %p2416 = scmp.le.s32.totalorder 1, %s187
      %p2417 = scmp.lt.s32.totalorder %s187, 3
      %p2418 = pnand %p2416, %p2417
      %p2419 = pneg %p2418
      // Predicated region
      $region325: #{transformer_forward.1} parent=5 // pred_check
        _
      $region326: #{transformer_forward.1} parent=5 // pred_check_branch
        %2421 = sbr.rel (%p2418) target = $region328
      $region327: #{transformer_forward.1} parent=5 // pred_region
        %s2422 = ssub.s32 %s187, 1
        %s2423 = sand.u32 %s226, 1
        %s2424 = scalar_lea.sflag [#allocation7], %s2423
        %s2425 = sand.u32 %s226, 1
        %s2426 = smul.addr %s2425, 8
        %s2427 = scalar_lea.vmem [#allocation6], %s2426
        // Predicated region
        $region329: #{transformer_forward.1} parent=327 // pred_check
          %p2428 = pneg %p239
        $region330: #{transformer_forward.1} parent=327 // pred_check_branch
          %2430 = sbr.rel (%p2428) target = $region332
        $region331: #{transformer_forward.1} parent=327 // pred_region
          %2432 = dma.done %s2424, 128
        $region332: #{transformer_forward.1} parent=327 // pred_fallthru
          _
        // Predicated region
        $region333: #{transformer_forward.1} parent=327 // pred_check
          %p2433 = pneg %p448
        $region334: #{transformer_forward.1} parent=327 // pred_check_branch
          %2435 = sbr.rel (%p2433) target = $region336
        $region335: #{transformer_forward.1} parent=327 // pred_region
          %2437 = dma.done [#allocation9], 16
        $region336: #{transformer_forward.1} parent=327 // pred_fallthru
          _
        // Predicated region
        $region337: #{transformer_forward.1} parent=327 // pred_check
          %p2438 = pneg %p469
        $region338: #{transformer_forward.1} parent=327 // pred_check_branch
          %2440 = sbr.rel (%p2438) target = $region340
        $region339: #{transformer_forward.1} parent=327 // pred_region
          %2442 = dma.done [#allocation9], 16
        $region340: #{transformer_forward.1} parent=327 // pred_fallthru
          _
        // Predicated region
        $region341: #{transformer_forward.1} parent=327 // pred_check
          %p2443 = pneg %p511
        $region342: #{transformer_forward.1} parent=327 // pred_check_branch
          %2445 = sbr.rel (%p2443) target = $region344
        $region343: #{transformer_forward.1} parent=327 // pred_region
          %2447 = dma.done [#allocation12], 16
        $region344: #{transformer_forward.1} parent=327 // pred_fallthru
          _
        // Predicated region
        $region345: #{transformer_forward.1} parent=327 // pred_check
          %p2448 = pneg %p553
        $region346: #{transformer_forward.1} parent=327 // pred_check_branch
          %2450 = sbr.rel (%p2448) target = $region348
        $region347: #{transformer_forward.1} parent=327 // pred_region
          %2452 = dma.done [#allocation12], 16
        $region348: #{transformer_forward.1} parent=327 // pred_fallthru
          _
        // Predicated region
        $region349: #{transformer_forward.1} parent=327 // pred_check
          %p2453 = pneg %p574
        $region350: #{transformer_forward.1} parent=327 // pred_check_branch
          %2455 = sbr.rel (%p2453) target = $region352
        $region351: #{transformer_forward.1} parent=327 // pred_region
          %2457 = dma.done [#allocation15], 16
        $region352: #{transformer_forward.1} parent=327 // pred_fallthru
          _
        // Predicated region
        $region353: #{transformer_forward.1} parent=327 // pred_check
          %p2458 = pneg %p595
        $region354: #{transformer_forward.1} parent=327 // pred_check_branch
          %2460 = sbr.rel (%p2458) target = $region356
        $region355: #{transformer_forward.1} parent=327 // pred_region
          %2462 = dma.done [#allocation15], 16
        $region356: #{transformer_forward.1} parent=327 // pred_fallthru
          _
        // Predicated region
        $region357: #{transformer_forward.1} parent=327 // pred_check
          %p2463 = pneg %p700
        $region358: #{transformer_forward.1} parent=327 // pred_check_branch
          %2465 = sbr.rel (%p2463) target = $region360
        $region359: #{transformer_forward.1} parent=327 // pred_region
          %2467 = dma.done [#allocation18], 16
        $region360: #{transformer_forward.1} parent=327 // pred_fallthru
          _
        // Predicated region
        $region361: #{transformer_forward.1} parent=327 // pred_check
          %p2468 = pneg %p826
        $region362: #{transformer_forward.1} parent=327 // pred_check_branch
          %2470 = sbr.rel (%p2468) target = $region364
        $region363: #{transformer_forward.1} parent=327 // pred_region
          %2472 = dma.done [#allocation18], 16
        $region364: #{transformer_forward.1} parent=327 // pred_fallthru
          _
        // Predicated region
        $region365: #{transformer_forward.1} parent=327 // pred_check
          %p2473 = pneg %p847
        $region366: #{transformer_forward.1} parent=327 // pred_check_branch
          %2475 = sbr.rel (%p2473) target = $region368
        $region367: #{transformer_forward.1} parent=327 // pred_region
          %2477 = dma.done [#allocation21], 16
        $region368: #{transformer_forward.1} parent=327 // pred_fallthru
          _
        // Predicated region
        $region369: #{transformer_forward.1} parent=327 // pred_check
          %p2478 = pneg %p889
        $region370: #{transformer_forward.1} parent=327 // pred_check_branch
          %2480 = sbr.rel (%p2478) target = $region372
        $region371: #{transformer_forward.1} parent=327 // pred_region
          %2482 = dma.done [#allocation21], 16
        $region372: #{transformer_forward.1} parent=327 // pred_fallthru
          _
        // Predicated region
        $region373: #{transformer_forward.1} parent=327 // pred_check
          %p2483 = pneg %p931
        $region374: #{transformer_forward.1} parent=327 // pred_check_branch
          %2485 = sbr.rel (%p2483) target = $region376
        $region375: #{transformer_forward.1} parent=327 // pred_region
          %2487 = dma.done [#allocation24], 16
        $region376: #{transformer_forward.1} parent=327 // pred_fallthru
          _
        // Predicated region
        $region377: #{transformer_forward.1} parent=327 // pred_check
          %p2488 = pneg %p952
        $region378: #{transformer_forward.1} parent=327 // pred_check_branch
          %2490 = sbr.rel (%p2488) target = $region380
        $region379: #{transformer_forward.1} parent=327 // pred_region
          %2492 = dma.done [#allocation24], 16
        $region380: #{transformer_forward.1} parent=327 // pred_fallthru
          _
        // Predicated region
        $region381: #{transformer_forward.1} parent=327 // pred_check
          %p2493 = pneg %p973
        $region382: #{transformer_forward.1} parent=327 // pred_check_branch
          %2495 = sbr.rel (%p2493) target = $region384
        $region383: #{transformer_forward.1} parent=327 // pred_region
          %2497 = dma.done [#allocation27], 16
        $region384: #{transformer_forward.1} parent=327 // pred_fallthru
          _
        // Predicated region
        $region385: #{transformer_forward.1} parent=327 // pred_check
          %p2498 = pneg %p1015
        $region386: #{transformer_forward.1} parent=327 // pred_check_branch
          %2500 = sbr.rel (%p2498) target = $region388
        $region387: #{transformer_forward.1} parent=327 // pred_region
          %2502 = dma.done [#allocation27], 16
        $region388: #{transformer_forward.1} parent=327 // pred_fallthru
          _
        // Predicated region
        $region389: #{transformer_forward.1} parent=327 // pred_check
          %p2503 = pneg %p1099
        $region390: #{transformer_forward.1} parent=327 // pred_check_branch
          %2505 = sbr.rel (%p2503) target = $region392
        $region391: #{transformer_forward.1} parent=327 // pred_region
          %2507 = dma.done [#allocation30], 16
        $region392: #{transformer_forward.1} parent=327 // pred_fallthru
          _
        // Predicated region
        $region393: #{transformer_forward.1} parent=327 // pred_check
          %p2508 = pneg %p1141
        $region394: #{transformer_forward.1} parent=327 // pred_check_branch
          %2510 = sbr.rel (%p2508) target = $region396
        $region395: #{transformer_forward.1} parent=327 // pred_region
          %2512 = dma.done [#allocation30], 16
        $region396: #{transformer_forward.1} parent=327 // pred_fallthru
          _
        // Predicated region
        $region397: #{transformer_forward.1} parent=327 // pred_check
          %p2513 = pneg %p1225
        $region398: #{transformer_forward.1} parent=327 // pred_check_branch
          %2515 = sbr.rel (%p2513) target = $region400
        $region399: #{transformer_forward.1} parent=327 // pred_region
          %2517 = dma.done [#allocation33], 16
        $region400: #{transformer_forward.1} parent=327 // pred_fallthru
          _
        // Predicated region
        $region401: #{transformer_forward.1} parent=327 // pred_check
          %p2518 = pneg %p1330
        $region402: #{transformer_forward.1} parent=327 // pred_check_branch
          %2520 = sbr.rel (%p2518) target = $region404
        $region403: #{transformer_forward.1} parent=327 // pred_region
          %2522 = dma.done [#allocation33], 16
        $region404: #{transformer_forward.1} parent=327 // pred_fallthru
          _
        // Predicated region
        $region405: #{transformer_forward.1} parent=327 // pred_check
          %p2523 = pneg %p1414
        $region406: #{transformer_forward.1} parent=327 // pred_check_branch
          %2525 = sbr.rel (%p2523) target = $region408
        $region407: #{transformer_forward.1} parent=327 // pred_region
          %2527 = dma.done [#allocation36], 16
        $region408: #{transformer_forward.1} parent=327 // pred_fallthru
          _
        // Predicated region
        $region409: #{transformer_forward.1} parent=327 // pred_check
          %p2528 = pneg %p1456
        $region410: #{transformer_forward.1} parent=327 // pred_check_branch
          %2530 = sbr.rel (%p2528) target = $region412
        $region411: #{transformer_forward.1} parent=327 // pred_region
          %2532 = dma.done [#allocation36], 16
        $region412: #{transformer_forward.1} parent=327 // pred_fallthru
          _
        // Predicated region
        $region413: #{transformer_forward.1} parent=327 // pred_check
          %p2533 = pneg %p1498
        $region414: #{transformer_forward.1} parent=327 // pred_check_branch
          %2535 = sbr.rel (%p2533) target = $region416
        $region415: #{transformer_forward.1} parent=327 // pred_region
          %2537 = dma.done [#allocation39], 16
        $region416: #{transformer_forward.1} parent=327 // pred_fallthru
          _
        // Predicated region
        $region417: #{transformer_forward.1} parent=327 // pred_check
          %p2538 = pneg %p1540
        $region418: #{transformer_forward.1} parent=327 // pred_check_branch
          %2540 = sbr.rel (%p2538) target = $region420
        $region419: #{transformer_forward.1} parent=327 // pred_region
          %2542 = dma.done [#allocation39], 16
        $region420: #{transformer_forward.1} parent=327 // pred_fallthru
          _
        // Predicated region
        $region421: #{transformer_forward.1} parent=327 // pred_check
          %p2543 = pneg %p1582
        $region422: #{transformer_forward.1} parent=327 // pred_check_branch
          %2545 = sbr.rel (%p2543) target = $region424
        $region423: #{transformer_forward.1} parent=327 // pred_region
          %2547 = dma.done [#allocation42], 16
        $region424: #{transformer_forward.1} parent=327 // pred_fallthru
          _
        // Predicated region
        $region425: #{transformer_forward.1} parent=327 // pred_check
          %p2548 = pneg %p1624
        $region426: #{transformer_forward.1} parent=327 // pred_check_branch
          %2550 = sbr.rel (%p2548) target = $region428
        $region427: #{transformer_forward.1} parent=327 // pred_region
          %2552 = dma.done [#allocation42], 16
        $region428: #{transformer_forward.1} parent=327 // pred_fallthru
          _
        // Predicated region
        $region429: #{transformer_forward.1} parent=327 // pred_check
          %p2553 = pneg %p1666
        $region430: #{transformer_forward.1} parent=327 // pred_check_branch
          %2555 = sbr.rel (%p2553) target = $region432
        $region431: #{transformer_forward.1} parent=327 // pred_region
          %2557 = dma.done [#allocation45], 16
        $region432: #{transformer_forward.1} parent=327 // pred_fallthru
          _
        // Predicated region
        $region433: #{transformer_forward.1} parent=327 // pred_check
          %p2558 = pneg %p1729
        $region434: #{transformer_forward.1} parent=327 // pred_check_branch
          %2560 = sbr.rel (%p2558) target = $region436
        $region435: #{transformer_forward.1} parent=327 // pred_region
          %2562 = dma.done [#allocation45], 512
        $region436: #{transformer_forward.1} parent=327 // pred_fallthru
          _
        // Predicated region
        $region437: #{transformer_forward.1} parent=327 // pred_check
          %p2563 = pneg %p1750
        $region438: #{transformer_forward.1} parent=327 // pred_check_branch
          %2565 = sbr.rel (%p2563) target = $region440
        $region439: #{transformer_forward.1} parent=327 // pred_region
          %2567 = dma.done [#allocation48], 16
        $region440: #{transformer_forward.1} parent=327 // pred_fallthru
          _
        // Predicated region
        $region441: #{transformer_forward.1} parent=327 // pred_check
          %p2568 = pneg %p1771
        $region442: #{transformer_forward.1} parent=327 // pred_check_branch
          %2570 = sbr.rel (%p2568) target = $region444
        $region443: #{transformer_forward.1} parent=327 // pred_region
          %2572 = dma.done [#allocation48], 16
        $region444: #{transformer_forward.1} parent=327 // pred_fallthru
          _
        // Predicated region
        $region445: #{transformer_forward.1} parent=327 // pred_check
          %p2573 = pneg %p1792
        $region446: #{transformer_forward.1} parent=327 // pred_check_branch
          %2575 = sbr.rel (%p2573) target = $region448
        $region447: #{transformer_forward.1} parent=327 // pred_region
          %2577 = dma.done [#allocation51], 16
        $region448: #{transformer_forward.1} parent=327 // pred_fallthru
          _
        // Predicated region
        $region449: #{transformer_forward.1} parent=327 // pred_check
          %p2578 = pneg %p1834
        $region450: #{transformer_forward.1} parent=327 // pred_check_branch
          %2580 = sbr.rel (%p2578) target = $region452
        $region451: #{transformer_forward.1} parent=327 // pred_region
          %2582 = dma.done [#allocation51], 16
        $region452: #{transformer_forward.1} parent=327 // pred_fallthru
          _
        %p2583 = scmp.lt.s32.totalorder %s192, 1
        %s2584 = scalar_select %p2583, %s192, 1
        %s2585 = smul.addr %s2584, 8
        %s2586 = scalar_lea.vmem %s1, %s2585
        %p2587 = pneg %p213
        %p2588 = pneg %p210
        %s2589 = sand.u32 %s226, 1
        %s2590 = scalar_lea.sflag [#allocation7], %s2589
        %s2591 = sand.u32 %s226, 1
        %s2592 = smul.addr %s2591, 8
        %s2593 = scalar_lea.vmem [#allocation6], %s2592
        %p2594 = pneg %p239
        %p2595 = pneg %p236
        %p2596 = scmp.lt.s32.totalorder %s192, 1
        %s2597 = scalar_select %p2596, %s192, 1
        %s2598 = scalar_lea.vmem %s5, %s2597
        %p2599 = pneg %p265
        %p2600 = pneg %p262
        %p2601 = scmp.lt.s32.totalorder %s192, 1
        %s2602 = scalar_select %p2601, %s192, 1
        %s2603 = smul.addr %s2602, 8
        %s2604 = scalar_lea.vmem %s7, %s2603
        %p2605 = pneg %p291
        %p2606 = pneg %p288
        %p2607 = scmp.lt.s32.totalorder %s192, 1
        %s2608 = scalar_select %p2607, %s192, 1
        %s2609 = scalar_lea.vmem %s9, %s2608
        %p2610 = pneg %p317
        %p2611 = pneg %p314
        %p2612 = scmp.lt.s32.totalorder %s192, 1
        %s2613 = scalar_select %p2612, %s192, 1
        %s2614 = smul.addr %s2613, 8
        %s2615 = scalar_lea.vmem %s11, %s2614
        %p2616 = pneg %p343
        %p2617 = pneg %p340
        %p2618 = pneg %p364
        %p2619 = pneg %p361
        %p2620 = pneg %p385
        %p2621 = pneg %p382
        %p2622 = pneg %p406
        %p2623 = pneg %p403
        %p2624 = pneg %p427
        %p2625 = pneg %p424
        %p2626 = pneg %p448
        %p2627 = pneg %p445
        %p2628 = pneg %p469
        %p2629 = pneg %p466
        %p2630 = pneg %p490
        %p2631 = pneg %p487
        %p2632 = pneg %p511
        %p2633 = pneg %p508
        %p2634 = pneg %p532
        %p2635 = pneg %p529
        %p2636 = pneg %p553
        %p2637 = pneg %p550
        %p2638 = pneg %p574
        %p2639 = pneg %p571
        %p2640 = pneg %p595
        %p2641 = pneg %p592
        %p2642 = pneg %p616
        %p2643 = pneg %p613
        %p2644 = pneg %p637
        %p2645 = pneg %p634
        %p2646 = pneg %p658
        %p2647 = pneg %p655
        %p2648 = pneg %p679
        %p2649 = pneg %p676
        %p2650 = pneg %p700
        %p2651 = pneg %p697
        %p2652 = pneg %p721
        %p2653 = pneg %p718
        %p2654 = pneg %p742
        %p2655 = pneg %p739
        %p2656 = pneg %p763
        %p2657 = pneg %p760
        %p2658 = pneg %p784
        %p2659 = pneg %p781
        %p2660 = pneg %p805
        %p2661 = pneg %p802
        %p2662 = pneg %p826
        %p2663 = pneg %p823
        %p2664 = pneg %p847
        %p2665 = pneg %p844
        %p2666 = pneg %p868
        %p2667 = pneg %p865
        %p2668 = pneg %p889
        %p2669 = pneg %p886
        %p2670 = pneg %p910
        %p2671 = pneg %p907
        %p2672 = pneg %p931
        %p2673 = pneg %p928
        %p2674 = pneg %p952
        %p2675 = pneg %p949
        %p2676 = pneg %p973
        %p2677 = pneg %p970
        %p2678 = pneg %p994
        %p2679 = pneg %p991
        %p2680 = pneg %p1015
        %p2681 = pneg %p1012
        %p2682 = pneg %p1036
        %p2683 = pneg %p1033
        %p2684 = pneg %p1057
        %p2685 = pneg %p1054
        %p2686 = pneg %p1078
        %p2687 = pneg %p1075
        %p2688 = pneg %p1099
        %p2689 = pneg %p1096
        %p2690 = pneg %p1120
        %p2691 = pneg %p1117
        %p2692 = pneg %p1141
        %p2693 = pneg %p1138
        %p2694 = pneg %p1162
        %p2695 = pneg %p1159
        %p2696 = pneg %p1183
        %p2697 = pneg %p1180
        %p2698 = pneg %p1204
        %p2699 = pneg %p1201
        %p2700 = pneg %p1225
        %p2701 = pneg %p1222
        %p2702 = pneg %p1246
        %p2703 = pneg %p1243
        %p2704 = pneg %p1267
        %p2705 = pneg %p1264
        %p2706 = pneg %p1288
        %p2707 = pneg %p1285
        %p2708 = pneg %p1309
        %p2709 = pneg %p1306
        %p2710 = pneg %p1330
        %p2711 = pneg %p1327
        %p2712 = pneg %p1351
        %p2713 = pneg %p1348
        %p2714 = pneg %p1372
        %p2715 = pneg %p1369
        %p2716 = pneg %p1393
        %p2717 = pneg %p1390
        %p2718 = pneg %p1414
        %p2719 = pneg %p1411
        %p2720 = pneg %p1435
        %p2721 = pneg %p1432
        %p2722 = pneg %p1456
        %p2723 = pneg %p1453
        %p2724 = pneg %p1477
        %p2725 = pneg %p1474
        %p2726 = pneg %p1498
        %p2727 = pneg %p1495
        %p2728 = pneg %p1519
        %p2729 = pneg %p1516
        %p2730 = pneg %p1540
        %p2731 = pneg %p1537
        %p2732 = pneg %p1561
        %p2733 = pneg %p1558
        %p2734 = pneg %p1582
        %p2735 = pneg %p1579
        %p2736 = pneg %p1603
        %p2737 = pneg %p1600
        %p2738 = pneg %p1624
        %p2739 = pneg %p1621
        %p2740 = pneg %p1645
        %p2741 = pneg %p1642
        %p2742 = pneg %p1666
        %p2743 = pneg %p1663
        %p2744 = pneg %p1687
        %p2745 = pneg %p1684
        %p2746 = pneg %p1708
        %p2747 = pneg %p1705
        %p2748 = pneg %p1729
        %p2749 = pneg %p1726
        %p2750 = pneg %p1750
        %p2751 = pneg %p1747
        %p2752 = pneg %p1771
        %p2753 = pneg %p1768
        %p2754 = pneg %p1792
        %p2755 = pneg %p1789
        %p2756 = pneg %p1813
        %p2757 = pneg %p1810
        %p2758 = pneg %p1834
        %p2759 = pneg %p1831
        %p2760 = pneg %p1860
        %p2761 = pneg %p1857
        %p2762 = scmp.lt.s32.totalorder %s192, 1
        %s2763 = scalar_select %p2762, %s192, 1
        %s2764 = scalar_lea.vmem %s155, %s2763
        %p2765 = scmp.lt.s32.totalorder %s192, 1
        %s2766 = scalar_select %p2765, %s192, 1
        %s2767 = smul.addr %s2766, 8
        %s2768 = scalar_lea.vmem %s1, %s2767
        %p2769 = scmp.lt.s32.totalorder %s192, 1
        %s2770 = scalar_select %p2769, %s192, 1
        %s2771 = scalar_lea.vmem %s5, %s2770
        %p2772 = scmp.lt.s32.totalorder %s192, 1
        %s2773 = scalar_select %p2772, %s192, 1
        %s2774 = smul.addr %s2773, 8
        %s2775 = scalar_lea.vmem %s7, %s2774
        %p2776 = scmp.lt.s32.totalorder %s192, 1
        %s2777 = scalar_select %p2776, %s192, 1
        %s2778 = scalar_lea.vmem %s9, %s2777
        %p2779 = scmp.lt.s32.totalorder %s192, 1
        %s2780 = scalar_select %p2779, %s192, 1
        %s2781 = smul.addr %s2780, 8
        %s2782 = scalar_lea.vmem %s11, %s2781
        %p2783 = scmp.lt.s32.totalorder %s192, 1
        %s2784 = scalar_select %p2783, %s192, 1
        %s2785 = scalar_lea.vmem %s155, %s2784
        %v2787 = vld [vmem:[%s2768] sm:$0xff]
        %v2788 = vld [vmem:[%s2427] sm:$0xff]
        %v2789 = vld [vmem:[%s2775] sm:$0xff]
        %v2790 = vld [vmem:[%s2771] sm:$0x1]
        %vm2791 = vcmp.gt.f32.partialorder %v2790, 0.5
        %v2792 = vsel %vm2791, -65504.0, 0.0
        %v2793 = vld [vmem:[%s2778] sm:$0x1]
        %vm2794 = vcmp.gt.f32.partialorder %v2793, 0.5
        %v2795 = vsel %vm2794, -65504.0, 0.0
        %vm2796 = vcmp.gt.f32.partialorder %v2789, 0.5
        %v2797 = vsel %vm2796, -65504.0, 0.0
        %v2798 = vld [vmem:[%s2782] sm:$0xff]
        %vm2799 = vcmp.gt.f32.partialorder %v2798, 0.5
        %v2800 = vsel %vm2799, -65504.0, 0.0
        %v2801 = vld [vmem:[%s13] sm:$0xff]
        %v2802 = vld [vmem:[%s13 + $0x8] sm:$0xff]
        %v2803 = vld [vmem:[%s13 + $0x10] sm:$0xff]
        %v2804 = vld [vmem:[%s13 + $0x18] sm:$0xff]
        %v2805 = vld [vmem:[%s13 + $0x20] sm:$0xff]
        %v2806 = vld [vmem:[%s13 + $0x28] sm:$0xff]
        %v2807 = vld [vmem:[%s13 + $0x30] sm:$0xff]
        %v2808 = vld [vmem:[%s13 + $0x38] sm:$0xff]
        %v2809 = vld [vmem:[%s15] sm:$0x3]
        %v2810 = vpack.c.bf16 %v2788, %v2788
        %v2812 = vperm.slane %v2809, 0
        %v2813 = vperm.slane %v2809, 1
        %v2824 = vunpack.c.l.b16 %v2801
        %v2825 = vunpack.c.h.b16 %v2801
        %v2826 = vunpack.c.l.b16 %v2802
        %v2827 = vunpack.c.h.b16 %v2802
        %v2828 = vunpack.c.l.b16 %v2803
        %v2829 = vunpack.c.h.b16 %v2803
        %v2830 = vunpack.c.l.b16 %v2804
        %v2831 = vunpack.c.h.b16 %v2804
        %v2832 = vunpack.c.l.b16 %v2805
        %v2833 = vunpack.c.h.b16 %v2805
        %v2834 = vunpack.c.l.b16 %v2806
        %v2835 = vunpack.c.h.b16 %v2806
        %v2836 = vunpack.c.l.b16 %v2807
        %v2837 = vunpack.c.h.b16 %v2807
        %v2838 = vunpack.c.l.b16 %v2808
        %v2839 = vunpack.c.h.b16 %v2808
        %v2840 = vpack.c.b16 %v2826, %v2824
        %v2841 = vpack.c.b16 %v2827, %v2825
        %v2842 = vpack.c.b16 %v2830, %v2828
        %v2843 = vpack.c.b16 %v2831, %v2829
        %v2844 = vpack.c.b16 %v2834, %v2832
        %v2845 = vpack.c.b16 %v2835, %v2833
        %v2846 = vpack.c.b16 %v2838, %v2836
        %v2847 = vpack.c.b16 %v2839, %v2837
        %vm2856 = vcmask 523264
        %v2858 = vsel %vm2856, %v2810, 0
        %2860 = vmatpush.bf16.msra.mxu0 0
        %2861 = vmatpush.bf16.msra.mxu0 0
        %2862 = vmatpush.bf16.msra.mxu0 0
        %2863 = vmatpush.bf16.msra.mxu0 0
        %2864 = vmatpush.bf16.msra.mxu0 %v2846
        %2865 = vmatpush.bf16.msra.mxu0 %v2844
        %2866 = vmatpush.bf16.msra.mxu0 %v2842
        %2867 = vmatpush.bf16.msra.mxu0 %v2840
        %2868 = vmatmul.bf16.gmra.mxu0 %v2858
        %v2869 = vpop.f32.mrf.mxu0
        %v2870 = vadd.f32 %v2812, %v2869
        %v2871 = vpop.f32.mrf.mxu0
        %2872 = vdwg.mxu0
        %2873 = vmatpush.bf16.msra.mxu0 0
        %2874 = vmatpush.bf16.msra.mxu0 0
        %2875 = vmatpush.bf16.msra.mxu0 0
        %2876 = vmatpush.bf16.msra.mxu0 0
        %2877 = vmatpush.bf16.msra.mxu0 %v2847
        %2878 = vmatpush.bf16.msra.mxu0 %v2845
        %2879 = vmatpush.bf16.msra.mxu0 %v2843
        %2880 = vmatpush.bf16.msra.mxu0 %v2841
        %2881 = vmatmul.bf16.gmra.mxu0 %v2858
        %v2882 = vpop.f32.mrf.mxu0
        %v2883 = vadd.f32 %v2813, %v2882
        %v2884 = vpop.f32.mrf.mxu0
        %2885 = vdwg.mxu0
        %v2886 = vpack.c.bf16 %v2870, %v2870
        %v2887 = vpack.c.bf16 %v2883, %v2883
        %v2889 = vunpack.c.l.b16 %v2886
        %v2890 = vpack.c.b16 %v2889, %v2889
        %2891 = vrot.lane.b32.xlu0 %v2890, 64
        %v2892 = vpop.permute.xlu0 %2891
        %vm2893 = vcmask 64512
        %v2895 = vsel %vm2893, %v2886, 0
        %v2898 = vsel %vm2893, %v2892, 0
        %2900 = vmatpush.bf16.xpose.msra.mxu0 0
        %2901 = vmatpush.bf16.xpose.msra.mxu0 0
        %2902 = vmatpush.bf16.xpose.msra.mxu0 0
        %2903 = vmatpush.bf16.xpose.msra.mxu0 0
        %2904 = vmatpush.bf16.xpose.msra.mxu0 0
        %2905 = vmatpush.bf16.xpose.msra.mxu0 0
        %2906 = vmatpush.bf16.xpose.msra.mxu0 0
        %2907 = vmatpush.bf16.xpose.msra.mxu0 %v2898
        %2908 = vmatmul.bf16.gmra.mxu0 %v2895
        %v2909 = vpop.f32.mrf.mxu0
        %v2910 = vadd.f32 0.0, %v2909
        %v2911 = vpop.f32.mrf.mxu0
        %2912 = vdwg.mxu0
        %v2913 = vmul.f32 %v2910, 0.35355338
        %v2915 = vperm.slane %v2795, 0
        %v2917 = vadd.f32 %v2913, %v2915
        %v2918 = vsel %vm2893, %v2917, -inf
        %2919 = vmax.xlane.f32.xlu0 %v2918
        %v2920 = vpop.xlane.xlu0 %2919
        %v2921 = vsub.f32 %v2917, %v2920
        %v2922 = vmul.f32 %v2921, 1.442695
        %v2923 = vpow.pop %v2922
        %v2924 = vsel %vm2893, %v2923, 0.0
        %2925 = vadd.xlane.f32.xlu0 %v2924
        %v2926 = vpop.xlane.xlu0 %2925
        %v2927 = vrcp.pop %v2926
        %v2928 = vmul.f32 %v2923, %v2927
        %v2929 = vpack.c.bf16 %v2928, %v2928
        %v2931 = vsel %vm2893, %v2929, 0
        %vm2933 = vcmask 1043456
        %v2935 = vsel %vm2933, %v2887, 0
        %2937 = vmatpush.bf16.msra.mxu0 0
        %2938 = vmatpush.bf16.msra.mxu0 0
        %2939 = vmatpush.bf16.msra.mxu0 0
        %2940 = vmatpush.bf16.msra.mxu0 0
        %2941 = vmatpush.bf16.msra.mxu0 0
        %2942 = vmatpush.bf16.msra.mxu0 0
        %2943 = vmatpush.bf16.msra.mxu0 0
        %2944 = vmatpush.bf16.msra.mxu0 %v2935
        %2945 = vmatmul.bf16.gmra.mxu0 %v2931
        %v2946 = vpop.f32.mrf.mxu0
        %v2947 = vadd.f32 0.0, %v2946
        %v2948 = vpop.f32.mrf.mxu0
        %2949 = vdwg.mxu0
        %2950 = vrot.lane.b32.xlu0 %v2890, 120
        %v2951 = vpop.permute.xlu0 %2950
        %2952 = vrot.lane.b32.xlu0 %v2890, 56
        %v2953 = vpop.permute.xlu0 %2952
        %v2955 = vsel %vm2893, %v2951, 0
        %v2958 = vsel %vm2893, %v2953, 0
        %2960 = vmatpush.bf16.xpose.msra.mxu0 0
        %2961 = vmatpush.bf16.xpose.msra.mxu0 0
        %2962 = vmatpush.bf16.xpose.msra.mxu0 0
        %2963 = vmatpush.bf16.xpose.msra.mxu0 0
        %2964 = vmatpush.bf16.xpose.msra.mxu0 0
        %2965 = vmatpush.bf16.xpose.msra.mxu0 0
        %2966 = vmatpush.bf16.xpose.msra.mxu0 0
        %2967 = vmatpush.bf16.xpose.msra.mxu0 %v2958
        %2968 = vmatmul.bf16.gmra.mxu0 %v2955
        %v2969 = vpop.f32.mrf.mxu0
        %v2970 = vadd.f32 0.0, %v2969
        %v2971 = vpop.f32.mrf.mxu0
        %2972 = vdwg.mxu0
        %v2973 = vmul.f32 %v2970, 0.35355338
        %v2974 = vadd.f32 %v2973, %v2915
        %v2975 = vsel %vm2893, %v2974, -inf
        %2976 = vmax.xlane.f32.xlu0 %v2975
        %v2977 = vpop.xlane.xlu0 %2976
        %v2978 = vsub.f32 %v2974, %v2977
        %v2979 = vmul.f32 %v2978, 1.442695
        %v2980 = vpow.pop %v2979
        %v2981 = vsel %vm2893, %v2980, 0.0
        %2982 = vadd.xlane.f32.xlu0 %v2981
        %v2983 = vpop.xlane.xlu0 %2982
        %v2984 = vrcp.pop %v2983
        %v2985 = vmul.f32 %v2980, %v2984
        %v2986 = vpack.c.bf16 %v2985, %v2985
        %v2988 = vunpack.c.l.b16 %v2887
        %v2989 = vpack.c.b16 %v2988, %v2988
        %2990 = vrot.lane.b32.xlu0 %v2989, 120
        %v2991 = vpop.permute.xlu0 %2990
        %v2993 = vsel %vm2893, %v2986, 0
        %v2996 = vsel %vm2933, %v2991, 0
        %2998 = vmatpush.bf16.msra.mxu0 0
        %2999 = vmatpush.bf16.msra.mxu0 0
        %3000 = vmatpush.bf16.msra.mxu0 0
        %3001 = vmatpush.bf16.msra.mxu0 0
        %3002 = vmatpush.bf16.msra.mxu0 0
        %3003 = vmatpush.bf16.msra.mxu0 0
        %3004 = vmatpush.bf16.msra.mxu0 0
        %3005 = vmatpush.bf16.msra.mxu0 %v2996
        %3006 = vmatmul.bf16.gmra.mxu0 %v2993
        %v3007 = vpop.f32.mrf.mxu0
        %v3008 = vadd.f32 0.0, %v3007
        %v3009 = vpop.f32.mrf.mxu0
        %3010 = vdwg.mxu0
        %3011 = vrot.lane.b32.xlu0 %v2890, 112
        %v3012 = vpop.permute.xlu0 %3011
        %3013 = vrot.lane.b32.xlu0 %v2890, 48
        %v3014 = vpop.permute.xlu0 %3013
        %v3016 = vsel %vm2893, %v3012, 0
        %v3019 = vsel %vm2893, %v3014, 0
        %3021 = vmatpush.bf16.xpose.msra.mxu0 0
        %3022 = vmatpush.bf16.xpose.msra.mxu0 0
        %3023 = vmatpush.bf16.xpose.msra.mxu0 0
        %3024 = vmatpush.bf16.xpose.msra.mxu0 0
        %3025 = vmatpush.bf16.xpose.msra.mxu0 0
        %3026 = vmatpush.bf16.xpose.msra.mxu0 0
        %3027 = vmatpush.bf16.xpose.msra.mxu0 0
        %3028 = vmatpush.bf16.xpose.msra.mxu0 %v3019
        %3029 = vmatmul.bf16.gmra.mxu0 %v3016
        %v3030 = vpop.f32.mrf.mxu0
        %v3031 = vadd.f32 0.0, %v3030
        %v3032 = vpop.f32.mrf.mxu0
        %3033 = vdwg.mxu0
        %v3034 = vmul.f32 %v3031, 0.35355338
        %v3035 = vadd.f32 %v3034, %v2915
        %v3036 = vsel %vm2893, %v3035, -inf
        %3037 = vmax.xlane.f32.xlu0 %v3036
        %v3038 = vpop.xlane.xlu0 %3037
        %v3039 = vsub.f32 %v3035, %v3038
        %v3040 = vmul.f32 %v3039, 1.442695
        %v3041 = vpow.pop %v3040
        %v3042 = vsel %vm2893, %v3041, 0.0
        %3043 = vadd.xlane.f32.xlu0 %v3042
        %v3044 = vpop.xlane.xlu0 %3043
        %v3045 = vrcp.pop %v3044
        %v3046 = vmul.f32 %v3041, %v3045
        %v3047 = vpack.c.bf16 %v3046, %v3046
        %3048 = vrot.lane.b32.xlu0 %v2989, 112
        %v3049 = vpop.permute.xlu0 %3048
        %v3051 = vsel %vm2893, %v3047, 0
        %v3054 = vsel %vm2933, %v3049, 0
        %3056 = vmatpush.bf16.msra.mxu0 0
        %3057 = vmatpush.bf16.msra.mxu0 0
        %3058 = vmatpush.bf16.msra.mxu0 0
        %3059 = vmatpush.bf16.msra.mxu0 0
        %3060 = vmatpush.bf16.msra.mxu0 0
        %3061 = vmatpush.bf16.msra.mxu0 0
        %3062 = vmatpush.bf16.msra.mxu0 0
        %3063 = vmatpush.bf16.msra.mxu0 %v3054
        %3064 = vmatmul.bf16.gmra.mxu0 %v3051
        %v3065 = vpop.f32.mrf.mxu0
        %v3066 = vadd.f32 0.0, %v3065
        %v3067 = vpop.f32.mrf.mxu0
        %3068 = vdwg.mxu0
        %3069 = vrot.lane.b32.xlu0 %v2890, 104
        %v3070 = vpop.permute.xlu0 %3069
        %3071 = vrot.lane.b32.xlu0 %v2890, 40
        %v3072 = vpop.permute.xlu0 %3071
        %v3074 = vsel %vm2893, %v3070, 0
        %v3077 = vsel %vm2893, %v3072, 0
        %3079 = vmatpush.bf16.xpose.msra.mxu0 0
        %3080 = vmatpush.bf16.xpose.msra.mxu0 0
        %3081 = vmatpush.bf16.xpose.msra.mxu0 0
        %3082 = vmatpush.bf16.xpose.msra.mxu0 0
        %3083 = vmatpush.bf16.xpose.msra.mxu0 0
        %3084 = vmatpush.bf16.xpose.msra.mxu0 0
        %3085 = vmatpush.bf16.xpose.msra.mxu0 0
        %3086 = vmatpush.bf16.xpose.msra.mxu0 %v3077
        %3087 = vmatmul.bf16.gmra.mxu0 %v3074
        %v3088 = vpop.f32.mrf.mxu0
        %v3089 = vadd.f32 0.0, %v3088
        %v3090 = vpop.f32.mrf.mxu0
        %3091 = vdwg.mxu0
        %v3092 = vmul.f32 %v3089, 0.35355338
        %v3093 = vadd.f32 %v3092, %v2915
        %v3094 = vsel %vm2893, %v3093, -inf
        %3095 = vmax.xlane.f32.xlu0 %v3094
        %v3096 = vpop.xlane.xlu0 %3095
        %v3097 = vsub.f32 %v3093, %v3096
        %v3098 = vmul.f32 %v3097, 1.442695
        %v3099 = vpow.pop %v3098
        %v3100 = vsel %vm2893, %v3099, 0.0
        %3101 = vadd.xlane.f32.xlu0 %v3100
        %v3102 = vpop.xlane.xlu0 %3101
        %v3103 = vrcp.pop %v3102
        %v3104 = vmul.f32 %v3099, %v3103
        %v3105 = vpack.c.bf16 %v3104, %v3104
        %3106 = vrot.lane.b32.xlu0 %v2989, 104
        %v3107 = vpop.permute.xlu0 %3106
        %v3109 = vsel %vm2893, %v3105, 0
        %v3112 = vsel %vm2933, %v3107, 0
        %3114 = vmatpush.bf16.msra.mxu0 0
        %3115 = vmatpush.bf16.msra.mxu0 0
        %3116 = vmatpush.bf16.msra.mxu0 0
        %3117 = vmatpush.bf16.msra.mxu0 0
        %3118 = vmatpush.bf16.msra.mxu0 0
        %3119 = vmatpush.bf16.msra.mxu0 0
        %3120 = vmatpush.bf16.msra.mxu0 0
        %3121 = vmatpush.bf16.msra.mxu0 %v3112
        %3122 = vmatmul.bf16.gmra.mxu0 %v3109
        %v3123 = vpop.f32.mrf.mxu0
        %v3124 = vadd.f32 0.0, %v3123
        %v3125 = vpop.f32.mrf.mxu0
        %3126 = vdwg.mxu0
        %3127 = vrot.lane.b32.xlu0 %v2890, 96
        %v3128 = vpop.permute.xlu0 %3127
        %3129 = vrot.lane.b32.xlu0 %v2890, 32
        %v3130 = vpop.permute.xlu0 %3129
        %v3132 = vsel %vm2893, %v3128, 0
        %v3135 = vsel %vm2893, %v3130, 0
        %3137 = vmatpush.bf16.xpose.msra.mxu0 0
        %3138 = vmatpush.bf16.xpose.msra.mxu0 0
        %3139 = vmatpush.bf16.xpose.msra.mxu0 0
        %3140 = vmatpush.bf16.xpose.msra.mxu0 0
        %3141 = vmatpush.bf16.xpose.msra.mxu0 0
        %3142 = vmatpush.bf16.xpose.msra.mxu0 0
        %3143 = vmatpush.bf16.xpose.msra.mxu0 0
        %3144 = vmatpush.bf16.xpose.msra.mxu0 %v3135
        %3145 = vmatmul.bf16.gmra.mxu0 %v3132
        %v3146 = vpop.f32.mrf.mxu0
        %v3147 = vadd.f32 0.0, %v3146
        %v3148 = vpop.f32.mrf.mxu0
        %3149 = vdwg.mxu0
        %v3150 = vmul.f32 %v3147, 0.35355338
        %v3151 = vadd.f32 %v3150, %v2915
        %v3152 = vsel %vm2893, %v3151, -inf
        %3153 = vmax.xlane.f32.xlu0 %v3152
        %v3154 = vpop.xlane.xlu0 %3153
        %v3155 = vsub.f32 %v3151, %v3154
        %v3156 = vmul.f32 %v3155, 1.442695
        %v3157 = vpow.pop %v3156
        %v3158 = vsel %vm2893, %v3157, 0.0
        %3159 = vadd.xlane.f32.xlu0 %v3158
        %v3160 = vpop.xlane.xlu0 %3159
        %v3161 = vrcp.pop %v3160
        %v3162 = vmul.f32 %v3157, %v3161
        %v3163 = vpack.c.bf16 %v3162, %v3162
        %3164 = vrot.lane.b32.xlu0 %v2989, 96
        %v3165 = vpop.permute.xlu0 %3164
        %v3167 = vsel %vm2893, %v3163, 0
        %v3170 = vsel %vm2933, %v3165, 0
        %3172 = vmatpush.bf16.msra.mxu0 0
        %3173 = vmatpush.bf16.msra.mxu0 0
        %3174 = vmatpush.bf16.msra.mxu0 0
        %3175 = vmatpush.bf16.msra.mxu0 0
        %3176 = vmatpush.bf16.msra.mxu0 0
        %3177 = vmatpush.bf16.msra.mxu0 0
        %3178 = vmatpush.bf16.msra.mxu0 0
        %3179 = vmatpush.bf16.msra.mxu0 %v3170
        %3180 = vmatmul.bf16.gmra.mxu0 %v3167
        %v3181 = vpop.f32.mrf.mxu0
        %v3182 = vadd.f32 0.0, %v3181
        %v3183 = vpop.f32.mrf.mxu0
        %3184 = vdwg.mxu0
        %3185 = vrot.lane.b32.xlu0 %v2890, 88
        %v3186 = vpop.permute.xlu0 %3185
        %3187 = vrot.lane.b32.xlu0 %v2890, 24
        %v3188 = vpop.permute.xlu0 %3187
        %v3190 = vsel %vm2893, %v3186, 0
        %v3193 = vsel %vm2893, %v3188, 0
        %3195 = vmatpush.bf16.xpose.msra.mxu0 0
        %3196 = vmatpush.bf16.xpose.msra.mxu0 0
        %3197 = vmatpush.bf16.xpose.msra.mxu0 0
        %3198 = vmatpush.bf16.xpose.msra.mxu0 0
        %3199 = vmatpush.bf16.xpose.msra.mxu0 0
        %3200 = vmatpush.bf16.xpose.msra.mxu0 0
        %3201 = vmatpush.bf16.xpose.msra.mxu0 0
        %3202 = vmatpush.bf16.xpose.msra.mxu0 %v3193
        %3203 = vmatmul.bf16.gmra.mxu0 %v3190
        %v3204 = vpop.f32.mrf.mxu0
        %v3205 = vadd.f32 0.0, %v3204
        %v3206 = vpop.f32.mrf.mxu0
        %3207 = vdwg.mxu0
        %v3208 = vmul.f32 %v3205, 0.35355338
        %v3209 = vadd.f32 %v3208, %v2915
        %v3210 = vsel %vm2893, %v3209, -inf
        %3211 = vmax.xlane.f32.xlu0 %v3210
        %v3212 = vpop.xlane.xlu0 %3211
        %v3213 = vsub.f32 %v3209, %v3212
        %v3214 = vmul.f32 %v3213, 1.442695
        %v3215 = vpow.pop %v3214
        %v3216 = vsel %vm2893, %v3215, 0.0
        %3217 = vadd.xlane.f32.xlu0 %v3216
        %v3218 = vpop.xlane.xlu0 %3217
        %v3219 = vrcp.pop %v3218
        %v3220 = vmul.f32 %v3215, %v3219
        %v3221 = vpack.c.bf16 %v3220, %v3220
        %3222 = vrot.lane.b32.xlu0 %v2989, 88
        %v3223 = vpop.permute.xlu0 %3222
        %v3225 = vsel %vm2893, %v3221, 0
        %v3228 = vsel %vm2933, %v3223, 0
        %3230 = vmatpush.bf16.msra.mxu0 0
        %3231 = vmatpush.bf16.msra.mxu0 0
        %3232 = vmatpush.bf16.msra.mxu0 0
        %3233 = vmatpush.bf16.msra.mxu0 0
        %3234 = vmatpush.bf16.msra.mxu0 0
        %3235 = vmatpush.bf16.msra.mxu0 0
        %3236 = vmatpush.bf16.msra.mxu0 0
        %3237 = vmatpush.bf16.msra.mxu0 %v3228
        %3238 = vmatmul.bf16.gmra.mxu0 %v3225
        %v3239 = vpop.f32.mrf.mxu0
        %v3240 = vadd.f32 0.0, %v3239
        %v3241 = vpop.f32.mrf.mxu0
        %3242 = vdwg.mxu0
        %3243 = vrot.lane.b32.xlu0 %v2890, 80
        %v3244 = vpop.permute.xlu0 %3243
        %3245 = vrot.lane.b32.xlu0 %v2890, 16
        %v3246 = vpop.permute.xlu0 %3245
        %v3248 = vsel %vm2893, %v3244, 0
        %v3251 = vsel %vm2893, %v3246, 0
        %3253 = vmatpush.bf16.xpose.msra.mxu0 0
        %3254 = vmatpush.bf16.xpose.msra.mxu0 0
        %3255 = vmatpush.bf16.xpose.msra.mxu0 0
        %3256 = vmatpush.bf16.xpose.msra.mxu0 0
        %3257 = vmatpush.bf16.xpose.msra.mxu0 0
        %3258 = vmatpush.bf16.xpose.msra.mxu0 0
        %3259 = vmatpush.bf16.xpose.msra.mxu0 0
        %3260 = vmatpush.bf16.xpose.msra.mxu0 %v3251
        %3261 = vmatmul.bf16.gmra.mxu0 %v3248
        %v3262 = vpop.f32.mrf.mxu0
        %v3263 = vadd.f32 0.0, %v3262
        %v3264 = vpop.f32.mrf.mxu0
        %3265 = vdwg.mxu0
        %v3266 = vmul.f32 %v3263, 0.35355338
        %v3267 = vadd.f32 %v3266, %v2915
        %v3268 = vsel %vm2893, %v3267, -inf
        %3269 = vmax.xlane.f32.xlu0 %v3268
        %v3270 = vpop.xlane.xlu0 %3269
        %v3271 = vsub.f32 %v3267, %v3270
        %v3272 = vmul.f32 %v3271, 1.442695
        %v3273 = vpow.pop %v3272
        %v3274 = vsel %vm2893, %v3273, 0.0
        %3275 = vadd.xlane.f32.xlu0 %v3274
        %v3276 = vpop.xlane.xlu0 %3275
        %v3277 = vrcp.pop %v3276
        %v3278 = vmul.f32 %v3273, %v3277
        %v3279 = vpack.c.bf16 %v3278, %v3278
        %3280 = vrot.lane.b32.xlu0 %v2989, 80
        %v3281 = vpop.permute.xlu0 %3280
        %v3283 = vsel %vm2893, %v3279, 0
        %v3286 = vsel %vm2933, %v3281, 0
        %3288 = vmatpush.bf16.msra.mxu0 0
        %3289 = vmatpush.bf16.msra.mxu0 0
        %3290 = vmatpush.bf16.msra.mxu0 0
        %3291 = vmatpush.bf16.msra.mxu0 0
        %3292 = vmatpush.bf16.msra.mxu0 0
        %3293 = vmatpush.bf16.msra.mxu0 0
        %3294 = vmatpush.bf16.msra.mxu0 0
        %3295 = vmatpush.bf16.msra.mxu0 %v3286
        %3296 = vmatmul.bf16.gmra.mxu0 %v3283
        %v3297 = vpop.f32.mrf.mxu0
        %v3298 = vadd.f32 0.0, %v3297
        %v3299 = vpop.f32.mrf.mxu0
        %3300 = vdwg.mxu0
        %3301 = vrot.lane.b32.xlu0 %v2890, 72
        %v3302 = vpop.permute.xlu0 %3301
        %3303 = vrot.lane.b32.xlu0 %v2890, 8
        %v3304 = vpop.permute.xlu0 %3303
        %v3306 = vsel %vm2893, %v3302, 0
        %v3309 = vsel %vm2893, %v3304, 0
        %3311 = vmatpush.bf16.xpose.msra.mxu0 0
        %3312 = vmatpush.bf16.xpose.msra.mxu0 0
        %3313 = vmatpush.bf16.xpose.msra.mxu0 0
        %3314 = vmatpush.bf16.xpose.msra.mxu0 0
        %3315 = vmatpush.bf16.xpose.msra.mxu0 0
        %3316 = vmatpush.bf16.xpose.msra.mxu0 0
        %3317 = vmatpush.bf16.xpose.msra.mxu0 0
        %3318 = vmatpush.bf16.xpose.msra.mxu0 %v3309
        %3319 = vmatmul.bf16.gmra.mxu0 %v3306
        %v3320 = vpop.f32.mrf.mxu0
        %v3321 = vadd.f32 0.0, %v3320
        %v3322 = vpop.f32.mrf.mxu0
        %3323 = vdwg.mxu0
        %v3324 = vmul.f32 %v3321, 0.35355338
        %v3325 = vadd.f32 %v3324, %v2915
        %v3326 = vsel %vm2893, %v3325, -inf
        %3327 = vmax.xlane.f32.xlu0 %v3326
        %v3328 = vpop.xlane.xlu0 %3327
        %v3329 = vsub.f32 %v3325, %v3328
        %v3330 = vmul.f32 %v3329, 1.442695
        %v3331 = vpow.pop %v3330
        %v3332 = vsel %vm2893, %v3331, 0.0
        %3333 = vadd.xlane.f32.xlu0 %v3332
        %v3334 = vpop.xlane.xlu0 %3333
        %v3335 = vrcp.pop %v3334
        %v3336 = vmul.f32 %v3331, %v3335
        %v3337 = vpack.c.bf16 %v3336, %v3336
        %3338 = vrot.lane.b32.xlu0 %v2989, 72
        %v3339 = vpop.permute.xlu0 %3338
        %v3341 = vsel %vm2893, %v3337, 0
        %v3344 = vsel %vm2933, %v3339, 0
        %3346 = vmatpush.bf16.msra.mxu0 0
        %3347 = vmatpush.bf16.msra.mxu0 0
        %3348 = vmatpush.bf16.msra.mxu0 0
        %3349 = vmatpush.bf16.msra.mxu0 0
        %3350 = vmatpush.bf16.msra.mxu0 0
        %3351 = vmatpush.bf16.msra.mxu0 0
        %3352 = vmatpush.bf16.msra.mxu0 0
        %3353 = vmatpush.bf16.msra.mxu0 %v3344
        %3354 = vmatmul.bf16.gmra.mxu0 %v3341
        %v3355 = vpop.f32.mrf.mxu0
        %v3356 = vadd.f32 0.0, %v3355
        %v3357 = vpop.f32.mrf.mxu0
        %3358 = vdwg.mxu0
        %3360 = vrot.lane.b32.xlu0 %v3008, 8
        %v3361 = vpop.permute.xlu0 %3360
        %3364 = vrot.lane.b32.xlu0 %v3066, 16
        %v3365 = vpop.permute.xlu0 %3364
        %3368 = vrot.lane.b32.xlu0 %v3124, 24
        %v3369 = vpop.permute.xlu0 %3368
        %3372 = vrot.lane.b32.xlu0 %v3182, 32
        %v3373 = vpop.permute.xlu0 %3372
        %3376 = vrot.lane.b32.xlu0 %v3240, 40
        %v3377 = vpop.permute.xlu0 %3376
        %3380 = vrot.lane.b32.xlu0 %v3298, 48
        %v3381 = vpop.permute.xlu0 %3380
        %3384 = vrot.lane.b32.xlu0 %v3356, 56
        %v3385 = vpop.permute.xlu0 %3384
        %v3387 = vsel %vm2893, %v2947, %v3361
        %vm3388 = vcmask 130048
        %v3389 = vsel %vm3388, %v3387, %v3365
        %vm3390 = vcmask 195584
        %v3391 = vsel %vm3390, %v3389, %v3369
        %vm3392 = vcmask 261120
        %v3393 = vsel %vm3392, %v3391, %v3373
        %vm3394 = vcmask 326656
        %v3395 = vsel %vm3394, %v3393, %v3377
        %vm3396 = vcmask 392192
        %v3397 = vsel %vm3396, %v3395, %v3381
        %vm3398 = vcmask 457728
        %v3399 = vsel %vm3398, %v3397, %v3385
        %v3400 = vpack.c.bf16 %v3399, %v3399
        %v3401 = vld [vmem:[%s17] sm:$0xf]
        %v3402 = vld [vmem:[%s17 + $0x4] sm:$0xf]
        %v3403 = vld [vmem:[%s17 + $0x8] sm:$0xf]
        %v3404 = vld [vmem:[%s17 + $0xc] sm:$0xf]
        %v3405 = vld [vmem:[%s17 + $0x10] sm:$0xf]
        %v3406 = vld [vmem:[%s17 + $0x14] sm:$0xf]
        %v3407 = vld [vmem:[%s17 + $0x18] sm:$0xf]
        %v3408 = vld [vmem:[%s17 + $0x1c] sm:$0xf]
        %v3409 = vld [vmem:[%s19] sm:$0x1]
        %v3411 = vperm.slane %v3409, 0
        %v3421 = vunpack.c.l.b16 %v3401
        %v3422 = vunpack.c.l.b16 %v3402
        %v3423 = vunpack.c.l.b16 %v3403
        %v3424 = vunpack.c.l.b16 %v3404
        %v3425 = vunpack.c.l.b16 %v3405
        %v3426 = vunpack.c.l.b16 %v3406
        %v3427 = vunpack.c.l.b16 %v3407
        %v3428 = vunpack.c.l.b16 %v3408
        %v3429 = vpack.c.b16 %v3422, %v3421
        %v3430 = vpack.c.b16 %v3424, %v3423
        %v3431 = vpack.c.b16 %v3426, %v3425
        %v3432 = vpack.c.b16 %v3428, %v3427
        %v3438 = vsel %vm2856, %v3400, 0
        %3440 = vmatpush.bf16.msra.mxu0 0
        %3441 = vmatpush.bf16.msra.mxu0 0
        %3442 = vmatpush.bf16.msra.mxu0 0
        %3443 = vmatpush.bf16.msra.mxu0 0
        %3444 = vmatpush.bf16.msra.mxu0 %v3432
        %3445 = vmatpush.bf16.msra.mxu0 %v3431
        %3446 = vmatpush.bf16.msra.mxu0 %v3430
        %3447 = vmatpush.bf16.msra.mxu0 %v3429
        %3448 = vmatmul.bf16.gmra.mxu0 %v3438
        %v3449 = vpop.f32.mrf.mxu0
        %v3450 = vadd.f32 %v3411, %v3449
        %v3451 = vpop.f32.mrf.mxu0
        %3452 = vdwg.mxu0
        %v3453 = vadd.f32 %v2788, %v3450
        %v3454 = vsel %vm2856, %v3453, 0.0
        %3455 = vadd.xlane.f32.xlu0 %v3454
        %v3456 = vpop.xlane.xlu0 %3455
        %v3457 = vrcp.pop 64.0
        %v3458 = vmul.f32 64.0, %v3457
        %v3459 = vsub.f32 1.0, %v3458
        %v3460 = vmul.f32 %v3457, %v3459
        %v3461 = vadd.f32 %v3457, %v3460
        %vm3462 = vweird.f32 %v3457
        %v3463 = vsel %vm3462, %v3457, %v3461
        %v3464 = vmul.f32 %v3456, %v3463
        %v3465 = vsub.f32 %v3453, %v3464
        %v3466 = vmul.f32 %v3465, %v3465
        %v3467 = vsel %vm2856, %v3466, 0.0
        %3468 = vadd.xlane.f32.xlu0 %v3467
        %v3469 = vpop.xlane.xlu0 %3468
        %v3470 = vmul.f32 %v3469, %v3463
        %v3471 = vadd.f32 %v3470, 1e-05
        %v3472 = vrsqrt.pop %v3471
        %v3473 = vmul.f32 %v3472, %v3471
        %v3474 = vmul.f32 %v3473, %v3472
        %v3475 = vmul.f32 0.5, %v3474
        %v3476 = vsub.f32 1.5, %v3475
        %v3477 = vmul.f32 %v3472, %v3476
        %vm3478 = vweird.f32 %v3471
        %vm3479 = vweird.f32 %v3472
        %vm3480 = vmor %vm3478, %vm3479
        %v3481 = vsel %vm3480, %v3472, %v3477
        %v3482 = vmul.f32 %v3465, %v3481
        %v3483 = vld [vmem:[#allocation8] sm:$0x1]
        %v3485 = vperm.slane %v3483, 0
        %v3487 = vmul.f32 %v3482, %v3485
        %v3488 = vld [vmem:[#allocation10] sm:$0x1]
        %v3490 = vperm.slane %v3488, 0
        %v3492 = vadd.f32 %v3487, %v3490
        %v3493 = vpack.c.bf16 %v3492, %v3492
        %v3494 = vld [vmem:[%s25] sm:$0xf]
        %v3495 = vld [vmem:[%s25 + $0x4] sm:$0xf]
        %v3496 = vld [vmem:[%s25 + $0x8] sm:$0xf]
        %v3497 = vld [vmem:[%s25 + $0xc] sm:$0xf]
        %v3498 = vld [vmem:[%s25 + $0x10] sm:$0xf]
        %v3499 = vld [vmem:[%s25 + $0x14] sm:$0xf]
        %v3500 = vld [vmem:[%s25 + $0x18] sm:$0xf]
        %v3501 = vld [vmem:[%s25 + $0x1c] sm:$0xf]
        %v3502 = vld [vmem:[#allocation11] sm:$0x1]
        %v3504 = vperm.slane %v3502, 0
        %v3514 = vunpack.c.l.b16 %v3494
        %v3515 = vunpack.c.l.b16 %v3495
        %v3516 = vunpack.c.l.b16 %v3496
        %v3517 = vunpack.c.l.b16 %v3497
        %v3518 = vunpack.c.l.b16 %v3498
        %v3519 = vunpack.c.l.b16 %v3499
        %v3520 = vunpack.c.l.b16 %v3500
        %v3521 = vunpack.c.l.b16 %v3501
        %v3522 = vpack.c.b16 %v3515, %v3514
        %v3523 = vpack.c.b16 %v3517, %v3516
        %v3524 = vpack.c.b16 %v3519, %v3518
        %v3525 = vpack.c.b16 %v3521, %v3520
        %v3531 = vsel %vm2856, %v3493, 0
        %3533 = vmatpush.bf16.msra.mxu0 0
        %3534 = vmatpush.bf16.msra.mxu0 0
        %3535 = vmatpush.bf16.msra.mxu0 0
        %3536 = vmatpush.bf16.msra.mxu0 0
        %3537 = vmatpush.bf16.msra.mxu0 %v3525
        %3538 = vmatpush.bf16.msra.mxu0 %v3524
        %3539 = vmatpush.bf16.msra.mxu0 %v3523
        %3540 = vmatpush.bf16.msra.mxu0 %v3522
        %3541 = vmatmul.bf16.gmra.mxu0 %v3531
        %v3542 = vpop.f32.mrf.mxu0
        %v3543 = vadd.f32 %v3504, %v3542
        %v3544 = vpop.f32.mrf.mxu0
        %3545 = vdwg.mxu0
        %v3546 = vmax.f32 %v3543, 0.0
        %v3547 = vpack.c.bf16 %v3546, %v3546
        %v3548 = vld [vmem:[%s29] sm:$0xf]
        %v3549 = vld [vmem:[%s29 + $0x4] sm:$0xf]
        %v3550 = vld [vmem:[%s29 + $0x8] sm:$0xf]
        %v3551 = vld [vmem:[%s29 + $0xc] sm:$0xf]
        %v3552 = vld [vmem:[%s29 + $0x10] sm:$0xf]
        %v3553 = vld [vmem:[%s29 + $0x14] sm:$0xf]
        %v3554 = vld [vmem:[%s29 + $0x18] sm:$0xf]
        %v3555 = vld [vmem:[%s29 + $0x1c] sm:$0xf]
        %v3556 = vld [vmem:[%s29 + $0x20] sm:$0xf]
        %v3557 = vld [vmem:[%s29 + $0x24] sm:$0xf]
        %v3558 = vld [vmem:[%s29 + $0x28] sm:$0xf]
        %v3559 = vld [vmem:[%s29 + $0x2c] sm:$0xf]
        %v3560 = vld [vmem:[%s29 + $0x30] sm:$0xf]
        %v3561 = vld [vmem:[%s29 + $0x34] sm:$0xf]
        %v3562 = vld [vmem:[%s29 + $0x38] sm:$0xf]
        %v3563 = vld [vmem:[%s29 + $0x3c] sm:$0xf]
        %v3564 = vld [vmem:[#allocation13] sm:$0x1]
        %v3566 = vperm.slane %v3564, 0
        %v3584 = vunpack.c.l.b16 %v3548
        %v3585 = vunpack.c.l.b16 %v3549
        %v3586 = vunpack.c.l.b16 %v3550
        %v3587 = vunpack.c.l.b16 %v3551
        %v3588 = vunpack.c.l.b16 %v3552
        %v3589 = vunpack.c.l.b16 %v3553
        %v3590 = vunpack.c.l.b16 %v3554
        %v3591 = vunpack.c.l.b16 %v3555
        %v3592 = vunpack.c.l.b16 %v3556
        %v3593 = vunpack.c.l.b16 %v3557
        %v3594 = vunpack.c.l.b16 %v3558
        %v3595 = vunpack.c.l.b16 %v3559
        %v3596 = vunpack.c.l.b16 %v3560
        %v3597 = vunpack.c.l.b16 %v3561
        %v3598 = vunpack.c.l.b16 %v3562
        %v3599 = vunpack.c.l.b16 %v3563
        %v3600 = vpack.c.b16 %v3585, %v3584
        %v3601 = vpack.c.b16 %v3587, %v3586
        %v3602 = vpack.c.b16 %v3589, %v3588
        %v3603 = vpack.c.b16 %v3591, %v3590
        %v3604 = vpack.c.b16 %v3593, %v3592
        %v3605 = vpack.c.b16 %v3595, %v3594
        %v3606 = vpack.c.b16 %v3597, %v3596
        %v3607 = vpack.c.b16 %v3599, %v3598
        %3616 = vmatpush.bf16.msra.mxu0 %v3607
        %3617 = vmatpush.bf16.msra.mxu0 %v3606
        %3618 = vmatpush.bf16.msra.mxu0 %v3605
        %3619 = vmatpush.bf16.msra.mxu0 %v3604
        %3620 = vmatpush.bf16.msra.mxu0 %v3603
        %3621 = vmatpush.bf16.msra.mxu0 %v3602
        %3622 = vmatpush.bf16.msra.mxu0 %v3601
        %3623 = vmatpush.bf16.msra.mxu0 %v3600
        %3624 = vmatmul.bf16.gmra.mxu0 %v3547
        %v3625 = vpop.f32.mrf.mxu0
        %v3626 = vadd.f32 %v3566, %v3625
        %v3627 = vpop.f32.mrf.mxu0
        %3628 = vdwg.mxu0
        %v3629 = vadd.f32 %v3492, %v3626
        %v3630 = vsel %vm2856, %v3629, 0.0
        %3631 = vadd.xlane.f32.xlu0 %v3630
        %v3632 = vpop.xlane.xlu0 %3631
        %v3633 = vmul.f32 %v3632, %v3463
        %v3634 = vsub.f32 %v3629, %v3633
        %v3635 = vmul.f32 %v3634, %v3634
        %v3636 = vsel %vm2856, %v3635, 0.0
        %3637 = vadd.xlane.f32.xlu0 %v3636
        %v3638 = vpop.xlane.xlu0 %3637
        %v3639 = vmul.f32 %v3638, %v3463
        %v3640 = vadd.f32 %v3639, 1e-05
        %v3641 = vrsqrt.pop %v3640
        %v3642 = vmul.f32 %v3641, %v3640
        %v3643 = vmul.f32 %v3642, %v3641
        %v3644 = vmul.f32 0.5, %v3643
        %v3645 = vsub.f32 1.5, %v3644
        %v3646 = vmul.f32 %v3641, %v3645
        %vm3647 = vweird.f32 %v3640
        %vm3648 = vweird.f32 %v3641
        %vm3649 = vmor %vm3647, %vm3648
        %v3650 = vsel %vm3649, %v3641, %v3646
        %v3651 = vmul.f32 %v3634, %v3650
        %v3652 = vld [vmem:[#allocation14] sm:$0x1]
        %v3654 = vperm.slane %v3652, 0
        %v3656 = vmul.f32 %v3651, %v3654
        %v3657 = vld [vmem:[#allocation16] sm:$0x1]
        %v3659 = vperm.slane %v3657, 0
        %v3661 = vadd.f32 %v3656, %v3659
        %v3662 = vld [vmem:[%s37] sm:$0xff]
        %v3663 = vld [vmem:[%s37 + $0x8] sm:$0xff]
        %v3664 = vld [vmem:[%s37 + $0x10] sm:$0xff]
        %v3665 = vld [vmem:[%s37 + $0x18] sm:$0xff]
        %v3666 = vld [vmem:[%s37 + $0x20] sm:$0xff]
        %v3667 = vld [vmem:[%s37 + $0x28] sm:$0xff]
        %v3668 = vld [vmem:[%s37 + $0x30] sm:$0xff]
        %v3669 = vld [vmem:[%s37 + $0x38] sm:$0xff]
        %v3670 = vld [vmem:[%s39] sm:$0x3]
        %v3671 = vpack.c.bf16 %v2787, %v2787
        %v3673 = vperm.slane %v3670, 0
        %v3674 = vperm.slane %v3670, 1
        %v3685 = vunpack.c.l.b16 %v3662
        %v3686 = vunpack.c.h.b16 %v3662
        %v3687 = vunpack.c.l.b16 %v3663
        %v3688 = vunpack.c.h.b16 %v3663
        %v3689 = vunpack.c.l.b16 %v3664
        %v3690 = vunpack.c.h.b16 %v3664
        %v3691 = vunpack.c.l.b16 %v3665
        %v3692 = vunpack.c.h.b16 %v3665
        %v3693 = vunpack.c.l.b16 %v3666
        %v3694 = vunpack.c.h.b16 %v3666
        %v3695 = vunpack.c.l.b16 %v3667
        %v3696 = vunpack.c.h.b16 %v3667
        %v3697 = vunpack.c.l.b16 %v3668
        %v3698 = vunpack.c.h.b16 %v3668
        %v3699 = vunpack.c.l.b16 %v3669
        %v3700 = vunpack.c.h.b16 %v3669
        %v3701 = vpack.c.b16 %v3687, %v3685
        %v3702 = vpack.c.b16 %v3688, %v3686
        %v3703 = vpack.c.b16 %v3691, %v3689
        %v3704 = vpack.c.b16 %v3692, %v3690
        %v3705 = vpack.c.b16 %v3695, %v3693
        %v3706 = vpack.c.b16 %v3696, %v3694
        %v3707 = vpack.c.b16 %v3699, %v3697
        %v3708 = vpack.c.b16 %v3700, %v3698
        %v3718 = vsel %vm2856, %v3671, 0
        %3720 = vmatpush.bf16.msra.mxu0 0
        %3721 = vmatpush.bf16.msra.mxu0 0
        %3722 = vmatpush.bf16.msra.mxu0 0
        %3723 = vmatpush.bf16.msra.mxu0 0
        %3724 = vmatpush.bf16.msra.mxu0 %v3707
        %3725 = vmatpush.bf16.msra.mxu0 %v3705
        %3726 = vmatpush.bf16.msra.mxu0 %v3703
        %3727 = vmatpush.bf16.msra.mxu0 %v3701
        %3728 = vmatmul.bf16.gmra.mxu0 %v3718
        %v3729 = vpop.f32.mrf.mxu0
        %v3730 = vadd.f32 %v3673, %v3729
        %v3731 = vpop.f32.mrf.mxu0
        %3732 = vdwg.mxu0
        %3733 = vmatpush.bf16.msra.mxu0 0
        %3734 = vmatpush.bf16.msra.mxu0 0
        %3735 = vmatpush.bf16.msra.mxu0 0
        %3736 = vmatpush.bf16.msra.mxu0 0
        %3737 = vmatpush.bf16.msra.mxu0 %v3708
        %3738 = vmatpush.bf16.msra.mxu0 %v3706
        %3739 = vmatpush.bf16.msra.mxu0 %v3704
        %3740 = vmatpush.bf16.msra.mxu0 %v3702
        %3741 = vmatmul.bf16.gmra.mxu0 %v3718
        %v3742 = vpop.f32.mrf.mxu0
        %v3743 = vadd.f32 %v3674, %v3742
        %v3744 = vpop.f32.mrf.mxu0
        %3745 = vdwg.mxu0
        %v3746 = vpack.c.bf16 %v3730, %v3730
        %v3747 = vpack.c.bf16 %v3743, %v3743
        %v3749 = vunpack.c.l.b16 %v3746
        %v3750 = vpack.c.b16 %v3749, %v3749
        %3751 = vrot.lane.b32.xlu0 %v3750, 64
        %v3752 = vpop.permute.xlu0 %3751
        %v3754 = vsel %vm2893, %v3746, 0
        %v3757 = vsel %vm2893, %v3752, 0
        %3759 = vmatpush.bf16.xpose.msra.mxu0 0
        %3760 = vmatpush.bf16.xpose.msra.mxu0 0
        %3761 = vmatpush.bf16.xpose.msra.mxu0 0
        %3762 = vmatpush.bf16.xpose.msra.mxu0 0
        %3763 = vmatpush.bf16.xpose.msra.mxu0 0
        %3764 = vmatpush.bf16.xpose.msra.mxu0 0
        %3765 = vmatpush.bf16.xpose.msra.mxu0 0
        %3766 = vmatpush.bf16.xpose.msra.mxu0 %v3757
        %3767 = vmatmul.bf16.gmra.mxu0 %v3754
        %v3768 = vpop.f32.mrf.mxu0
        %v3769 = vadd.f32 0.0, %v3768
        %v3770 = vpop.f32.mrf.mxu0
        %3771 = vdwg.mxu0
        %v3772 = vmul.f32 %v3769, 0.35355338
        %v3774 = vperm.slane %v2792, 0
        %v3776 = vadd.f32 %v3772, %v3774
        %v3777 = vsel %vm2893, %v3776, -inf
        %3778 = vmax.xlane.f32.xlu0 %v3777
        %v3779 = vpop.xlane.xlu0 %3778
        %v3780 = vsub.f32 %v3776, %v3779
        %v3781 = vmul.f32 %v3780, 1.442695
        %v3782 = vpow.pop %v3781
        %v3783 = vsel %vm2893, %v3782, 0.0
        %3784 = vadd.xlane.f32.xlu0 %v3783
        %v3785 = vpop.xlane.xlu0 %3784
        %v3786 = vrcp.pop %v3785
        %v3787 = vmul.f32 %v3782, %v3786
        %v3788 = vpack.c.bf16 %v3787, %v3787
        %v3790 = vsel %vm2893, %v3788, 0
        %v3793 = vsel %vm2933, %v3747, 0
        %3795 = vmatpush.bf16.msra.mxu0 0
        %3796 = vmatpush.bf16.msra.mxu0 0
        %3797 = vmatpush.bf16.msra.mxu0 0
        %3798 = vmatpush.bf16.msra.mxu0 0
        %3799 = vmatpush.bf16.msra.mxu0 0
        %3800 = vmatpush.bf16.msra.mxu0 0
        %3801 = vmatpush.bf16.msra.mxu0 0
        %3802 = vmatpush.bf16.msra.mxu0 %v3793
        %3803 = vmatmul.bf16.gmra.mxu0 %v3790
        %v3804 = vpop.f32.mrf.mxu0
        %v3805 = vadd.f32 0.0, %v3804
        %v3806 = vpop.f32.mrf.mxu0
        %3807 = vdwg.mxu0
        %3808 = vrot.lane.b32.xlu0 %v3750, 120
        %v3809 = vpop.permute.xlu0 %3808
        %3810 = vrot.lane.b32.xlu0 %v3750, 56
        %v3811 = vpop.permute.xlu0 %3810
        %v3813 = vsel %vm2893, %v3809, 0
        %v3816 = vsel %vm2893, %v3811, 0
        %3818 = vmatpush.bf16.xpose.msra.mxu0 0
        %3819 = vmatpush.bf16.xpose.msra.mxu0 0
        %3820 = vmatpush.bf16.xpose.msra.mxu0 0
        %3821 = vmatpush.bf16.xpose.msra.mxu0 0
        %3822 = vmatpush.bf16.xpose.msra.mxu0 0
        %3823 = vmatpush.bf16.xpose.msra.mxu0 0
        %3824 = vmatpush.bf16.xpose.msra.mxu0 0
        %3825 = vmatpush.bf16.xpose.msra.mxu0 %v3816
        %3826 = vmatmul.bf16.gmra.mxu0 %v3813
        %v3827 = vpop.f32.mrf.mxu0
        %v3828 = vadd.f32 0.0, %v3827
        %v3829 = vpop.f32.mrf.mxu0
        %3830 = vdwg.mxu0
        %v3831 = vmul.f32 %v3828, 0.35355338
        %v3832 = vadd.f32 %v3831, %v3774
        %v3833 = vsel %vm2893, %v3832, -inf
        %3834 = vmax.xlane.f32.xlu0 %v3833
        %v3835 = vpop.xlane.xlu0 %3834
        %v3836 = vsub.f32 %v3832, %v3835
        %v3837 = vmul.f32 %v3836, 1.442695
        %v3838 = vpow.pop %v3837
        %v3839 = vsel %vm2893, %v3838, 0.0
        %3840 = vadd.xlane.f32.xlu0 %v3839
        %v3841 = vpop.xlane.xlu0 %3840
        %v3842 = vrcp.pop %v3841
        %v3843 = vmul.f32 %v3838, %v3842
        %v3844 = vpack.c.bf16 %v3843, %v3843
        %v3846 = vunpack.c.l.b16 %v3747
        %v3847 = vpack.c.b16 %v3846, %v3846
        %3848 = vrot.lane.b32.xlu0 %v3847, 120
        %v3849 = vpop.permute.xlu0 %3848
        %v3851 = vsel %vm2893, %v3844, 0
        %v3854 = vsel %vm2933, %v3849, 0
        %3856 = vmatpush.bf16.msra.mxu0 0
        %3857 = vmatpush.bf16.msra.mxu0 0
        %3858 = vmatpush.bf16.msra.mxu0 0
        %3859 = vmatpush.bf16.msra.mxu0 0
        %3860 = vmatpush.bf16.msra.mxu0 0
        %3861 = vmatpush.bf16.msra.mxu0 0
        %3862 = vmatpush.bf16.msra.mxu0 0
        %3863 = vmatpush.bf16.msra.mxu0 %v3854
        %3864 = vmatmul.bf16.gmra.mxu0 %v3851
        %v3865 = vpop.f32.mrf.mxu0
        %v3866 = vadd.f32 0.0, %v3865
        %v3867 = vpop.f32.mrf.mxu0
        %3868 = vdwg.mxu0
        %3869 = vrot.lane.b32.xlu0 %v3750, 112
        %v3870 = vpop.permute.xlu0 %3869
        %3871 = vrot.lane.b32.xlu0 %v3750, 48
        %v3872 = vpop.permute.xlu0 %3871
        %v3874 = vsel %vm2893, %v3870, 0
        %v3877 = vsel %vm2893, %v3872, 0
        %3879 = vmatpush.bf16.xpose.msra.mxu0 0
        %3880 = vmatpush.bf16.xpose.msra.mxu0 0
        %3881 = vmatpush.bf16.xpose.msra.mxu0 0
        %3882 = vmatpush.bf16.xpose.msra.mxu0 0
        %3883 = vmatpush.bf16.xpose.msra.mxu0 0
        %3884 = vmatpush.bf16.xpose.msra.mxu0 0
        %3885 = vmatpush.bf16.xpose.msra.mxu0 0
        %3886 = vmatpush.bf16.xpose.msra.mxu0 %v3877
        %3887 = vmatmul.bf16.gmra.mxu0 %v3874
        %v3888 = vpop.f32.mrf.mxu0
        %v3889 = vadd.f32 0.0, %v3888
        %v3890 = vpop.f32.mrf.mxu0
        %3891 = vdwg.mxu0
        %v3892 = vmul.f32 %v3889, 0.35355338
        %v3893 = vadd.f32 %v3892, %v3774
        %v3894 = vsel %vm2893, %v3893, -inf
        %3895 = vmax.xlane.f32.xlu0 %v3894
        %v3896 = vpop.xlane.xlu0 %3895
        %v3897 = vsub.f32 %v3893, %v3896
        %v3898 = vmul.f32 %v3897, 1.442695
        %v3899 = vpow.pop %v3898
        %v3900 = vsel %vm2893, %v3899, 0.0
        %3901 = vadd.xlane.f32.xlu0 %v3900
        %v3902 = vpop.xlane.xlu0 %3901
        %v3903 = vrcp.pop %v3902
        %v3904 = vmul.f32 %v3899, %v3903
        %v3905 = vpack.c.bf16 %v3904, %v3904
        %3906 = vrot.lane.b32.xlu0 %v3847, 112
        %v3907 = vpop.permute.xlu0 %3906
        %v3909 = vsel %vm2893, %v3905, 0
        %v3912 = vsel %vm2933, %v3907, 0
        %3914 = vmatpush.bf16.msra.mxu0 0
        %3915 = vmatpush.bf16.msra.mxu0 0
        %3916 = vmatpush.bf16.msra.mxu0 0
        %3917 = vmatpush.bf16.msra.mxu0 0
        %3918 = vmatpush.bf16.msra.mxu0 0
        %3919 = vmatpush.bf16.msra.mxu0 0
        %3920 = vmatpush.bf16.msra.mxu0 0
        %3921 = vmatpush.bf16.msra.mxu0 %v3912
        %3922 = vmatmul.bf16.gmra.mxu0 %v3909
        %v3923 = vpop.f32.mrf.mxu0
        %v3924 = vadd.f32 0.0, %v3923
        %v3925 = vpop.f32.mrf.mxu0
        %3926 = vdwg.mxu0
        %3927 = vrot.lane.b32.xlu0 %v3750, 104
        %v3928 = vpop.permute.xlu0 %3927
        %3929 = vrot.lane.b32.xlu0 %v3750, 40
        %v3930 = vpop.permute.xlu0 %3929
        %v3932 = vsel %vm2893, %v3928, 0
        %v3935 = vsel %vm2893, %v3930, 0
        %3937 = vmatpush.bf16.xpose.msra.mxu0 0
        %3938 = vmatpush.bf16.xpose.msra.mxu0 0
        %3939 = vmatpush.bf16.xpose.msra.mxu0 0
        %3940 = vmatpush.bf16.xpose.msra.mxu0 0
        %3941 = vmatpush.bf16.xpose.msra.mxu0 0
        %3942 = vmatpush.bf16.xpose.msra.mxu0 0
        %3943 = vmatpush.bf16.xpose.msra.mxu0 0
        %3944 = vmatpush.bf16.xpose.msra.mxu0 %v3935
        %3945 = vmatmul.bf16.gmra.mxu0 %v3932
        %v3946 = vpop.f32.mrf.mxu0
        %v3947 = vadd.f32 0.0, %v3946
        %v3948 = vpop.f32.mrf.mxu0
        %3949 = vdwg.mxu0
        %v3950 = vmul.f32 %v3947, 0.35355338
        %v3951 = vadd.f32 %v3950, %v3774
        %v3952 = vsel %vm2893, %v3951, -inf
        %3953 = vmax.xlane.f32.xlu0 %v3952
        %v3954 = vpop.xlane.xlu0 %3953
        %v3955 = vsub.f32 %v3951, %v3954
        %v3956 = vmul.f32 %v3955, 1.442695
        %v3957 = vpow.pop %v3956
        %v3958 = vsel %vm2893, %v3957, 0.0
        %3959 = vadd.xlane.f32.xlu0 %v3958
        %v3960 = vpop.xlane.xlu0 %3959
        %v3961 = vrcp.pop %v3960
        %v3962 = vmul.f32 %v3957, %v3961
        %v3963 = vpack.c.bf16 %v3962, %v3962
        %3964 = vrot.lane.b32.xlu0 %v3847, 104
        %v3965 = vpop.permute.xlu0 %3964
        %v3967 = vsel %vm2893, %v3963, 0
        %v3970 = vsel %vm2933, %v3965, 0
        %3972 = vmatpush.bf16.msra.mxu0 0
        %3973 = vmatpush.bf16.msra.mxu0 0
        %3974 = vmatpush.bf16.msra.mxu0 0
        %3975 = vmatpush.bf16.msra.mxu0 0
        %3976 = vmatpush.bf16.msra.mxu0 0
        %3977 = vmatpush.bf16.msra.mxu0 0
        %3978 = vmatpush.bf16.msra.mxu0 0
        %3979 = vmatpush.bf16.msra.mxu0 %v3970
        %3980 = vmatmul.bf16.gmra.mxu0 %v3967
        %v3981 = vpop.f32.mrf.mxu0
        %v3982 = vadd.f32 0.0, %v3981
        %v3983 = vpop.f32.mrf.mxu0
        %3984 = vdwg.mxu0
        %3985 = vrot.lane.b32.xlu0 %v3750, 96
        %v3986 = vpop.permute.xlu0 %3985
        %3987 = vrot.lane.b32.xlu0 %v3750, 32
        %v3988 = vpop.permute.xlu0 %3987
        %v3990 = vsel %vm2893, %v3986, 0
        %v3993 = vsel %vm2893, %v3988, 0
        %3995 = vmatpush.bf16.xpose.msra.mxu0 0
        %3996 = vmatpush.bf16.xpose.msra.mxu0 0
        %3997 = vmatpush.bf16.xpose.msra.mxu0 0
        %3998 = vmatpush.bf16.xpose.msra.mxu0 0
        %3999 = vmatpush.bf16.xpose.msra.mxu0 0
        %4000 = vmatpush.bf16.xpose.msra.mxu0 0
        %4001 = vmatpush.bf16.xpose.msra.mxu0 0
        %4002 = vmatpush.bf16.xpose.msra.mxu0 %v3993
        %4003 = vmatmul.bf16.gmra.mxu0 %v3990
        %v4004 = vpop.f32.mrf.mxu0
        %v4005 = vadd.f32 0.0, %v4004
        %v4006 = vpop.f32.mrf.mxu0
        %4007 = vdwg.mxu0
        %v4008 = vmul.f32 %v4005, 0.35355338
        %v4009 = vadd.f32 %v4008, %v3774
        %v4010 = vsel %vm2893, %v4009, -inf
        %4011 = vmax.xlane.f32.xlu0 %v4010
        %v4012 = vpop.xlane.xlu0 %4011
        %v4013 = vsub.f32 %v4009, %v4012
        %v4014 = vmul.f32 %v4013, 1.442695
        %v4015 = vpow.pop %v4014
        %v4016 = vsel %vm2893, %v4015, 0.0
        %4017 = vadd.xlane.f32.xlu0 %v4016
        %v4018 = vpop.xlane.xlu0 %4017
        %v4019 = vrcp.pop %v4018
        %v4020 = vmul.f32 %v4015, %v4019
        %v4021 = vpack.c.bf16 %v4020, %v4020
        %4022 = vrot.lane.b32.xlu0 %v3847, 96
        %v4023 = vpop.permute.xlu0 %4022
        %v4025 = vsel %vm2893, %v4021, 0
        %v4028 = vsel %vm2933, %v4023, 0
        %4030 = vmatpush.bf16.msra.mxu0 0
        %4031 = vmatpush.bf16.msra.mxu0 0
        %4032 = vmatpush.bf16.msra.mxu0 0
        %4033 = vmatpush.bf16.msra.mxu0 0
        %4034 = vmatpush.bf16.msra.mxu0 0
        %4035 = vmatpush.bf16.msra.mxu0 0
        %4036 = vmatpush.bf16.msra.mxu0 0
        %4037 = vmatpush.bf16.msra.mxu0 %v4028
        %4038 = vmatmul.bf16.gmra.mxu0 %v4025
        %v4039 = vpop.f32.mrf.mxu0
        %v4040 = vadd.f32 0.0, %v4039
        %v4041 = vpop.f32.mrf.mxu0
        %4042 = vdwg.mxu0
        %4043 = vrot.lane.b32.xlu0 %v3750, 88
        %v4044 = vpop.permute.xlu0 %4043
        %4045 = vrot.lane.b32.xlu0 %v3750, 24
        %v4046 = vpop.permute.xlu0 %4045
        %v4048 = vsel %vm2893, %v4044, 0
        %v4051 = vsel %vm2893, %v4046, 0
        %4053 = vmatpush.bf16.xpose.msra.mxu0 0
        %4054 = vmatpush.bf16.xpose.msra.mxu0 0
        %4055 = vmatpush.bf16.xpose.msra.mxu0 0
        %4056 = vmatpush.bf16.xpose.msra.mxu0 0
        %4057 = vmatpush.bf16.xpose.msra.mxu0 0
        %4058 = vmatpush.bf16.xpose.msra.mxu0 0
        %4059 = vmatpush.bf16.xpose.msra.mxu0 0
        %4060 = vmatpush.bf16.xpose.msra.mxu0 %v4051
        %4061 = vmatmul.bf16.gmra.mxu0 %v4048
        %v4062 = vpop.f32.mrf.mxu0
        %v4063 = vadd.f32 0.0, %v4062
        %v4064 = vpop.f32.mrf.mxu0
        %4065 = vdwg.mxu0
        %v4066 = vmul.f32 %v4063, 0.35355338
        %v4067 = vadd.f32 %v4066, %v3774
        %v4068 = vsel %vm2893, %v4067, -inf
        %4069 = vmax.xlane.f32.xlu0 %v4068
        %v4070 = vpop.xlane.xlu0 %4069
        %v4071 = vsub.f32 %v4067, %v4070
        %v4072 = vmul.f32 %v4071, 1.442695
        %v4073 = vpow.pop %v4072
        %v4074 = vsel %vm2893, %v4073, 0.0
        %4075 = vadd.xlane.f32.xlu0 %v4074
        %v4076 = vpop.xlane.xlu0 %4075
        %v4077 = vrcp.pop %v4076
        %v4078 = vmul.f32 %v4073, %v4077
        %v4079 = vpack.c.bf16 %v4078, %v4078
        %4080 = vrot.lane.b32.xlu0 %v3847, 88
        %v4081 = vpop.permute.xlu0 %4080
        %v4083 = vsel %vm2893, %v4079, 0
        %v4086 = vsel %vm2933, %v4081, 0
        %4088 = vmatpush.bf16.msra.mxu0 0
        %4089 = vmatpush.bf16.msra.mxu0 0
        %4090 = vmatpush.bf16.msra.mxu0 0
        %4091 = vmatpush.bf16.msra.mxu0 0
        %4092 = vmatpush.bf16.msra.mxu0 0
        %4093 = vmatpush.bf16.msra.mxu0 0
        %4094 = vmatpush.bf16.msra.mxu0 0
        %4095 = vmatpush.bf16.msra.mxu0 %v4086
        %4096 = vmatmul.bf16.gmra.mxu0 %v4083
        %v4097 = vpop.f32.mrf.mxu0
        %v4098 = vadd.f32 0.0, %v4097
        %v4099 = vpop.f32.mrf.mxu0
        %4100 = vdwg.mxu0
        %4101 = vrot.lane.b32.xlu0 %v3750, 80
        %v4102 = vpop.permute.xlu0 %4101
        %4103 = vrot.lane.b32.xlu0 %v3750, 16
        %v4104 = vpop.permute.xlu0 %4103
        %v4106 = vsel %vm2893, %v4102, 0
        %v4109 = vsel %vm2893, %v4104, 0
        %4111 = vmatpush.bf16.xpose.msra.mxu0 0
        %4112 = vmatpush.bf16.xpose.msra.mxu0 0
        %4113 = vmatpush.bf16.xpose.msra.mxu0 0
        %4114 = vmatpush.bf16.xpose.msra.mxu0 0
        %4115 = vmatpush.bf16.xpose.msra.mxu0 0
        %4116 = vmatpush.bf16.xpose.msra.mxu0 0
        %4117 = vmatpush.bf16.xpose.msra.mxu0 0
        %4118 = vmatpush.bf16.xpose.msra.mxu0 %v4109
        %4119 = vmatmul.bf16.gmra.mxu0 %v4106
        %v4120 = vpop.f32.mrf.mxu0
        %v4121 = vadd.f32 0.0, %v4120
        %v4122 = vpop.f32.mrf.mxu0
        %4123 = vdwg.mxu0
        %v4124 = vmul.f32 %v4121, 0.35355338
        %v4125 = vadd.f32 %v4124, %v3774
        %v4126 = vsel %vm2893, %v4125, -inf
        %4127 = vmax.xlane.f32.xlu0 %v4126
        %v4128 = vpop.xlane.xlu0 %4127
        %v4129 = vsub.f32 %v4125, %v4128
        %v4130 = vmul.f32 %v4129, 1.442695
        %v4131 = vpow.pop %v4130
        %v4132 = vsel %vm2893, %v4131, 0.0
        %4133 = vadd.xlane.f32.xlu0 %v4132
        %v4134 = vpop.xlane.xlu0 %4133
        %v4135 = vrcp.pop %v4134
        %v4136 = vmul.f32 %v4131, %v4135
        %v4137 = vpack.c.bf16 %v4136, %v4136
        %4138 = vrot.lane.b32.xlu0 %v3847, 80
        %v4139 = vpop.permute.xlu0 %4138
        %v4141 = vsel %vm2893, %v4137, 0
        %v4144 = vsel %vm2933, %v4139, 0
        %4146 = vmatpush.bf16.msra.mxu0 0
        %4147 = vmatpush.bf16.msra.mxu0 0
        %4148 = vmatpush.bf16.msra.mxu0 0
        %4149 = vmatpush.bf16.msra.mxu0 0
        %4150 = vmatpush.bf16.msra.mxu0 0
        %4151 = vmatpush.bf16.msra.mxu0 0
        %4152 = vmatpush.bf16.msra.mxu0 0
        %4153 = vmatpush.bf16.msra.mxu0 %v4144
        %4154 = vmatmul.bf16.gmra.mxu0 %v4141
        %v4155 = vpop.f32.mrf.mxu0
        %v4156 = vadd.f32 0.0, %v4155
        %v4157 = vpop.f32.mrf.mxu0
        %4158 = vdwg.mxu0
        %4159 = vrot.lane.b32.xlu0 %v3750, 72
        %v4160 = vpop.permute.xlu0 %4159
        %4161 = vrot.lane.b32.xlu0 %v3750, 8
        %v4162 = vpop.permute.xlu0 %4161
        %v4164 = vsel %vm2893, %v4160, 0
        %v4167 = vsel %vm2893, %v4162, 0
        %4169 = vmatpush.bf16.xpose.msra.mxu0 0
        %4170 = vmatpush.bf16.xpose.msra.mxu0 0
        %4171 = vmatpush.bf16.xpose.msra.mxu0 0
        %4172 = vmatpush.bf16.xpose.msra.mxu0 0
        %4173 = vmatpush.bf16.xpose.msra.mxu0 0
        %4174 = vmatpush.bf16.xpose.msra.mxu0 0
        %4175 = vmatpush.bf16.xpose.msra.mxu0 0
        %4176 = vmatpush.bf16.xpose.msra.mxu0 %v4167
        %4177 = vmatmul.bf16.gmra.mxu0 %v4164
        %v4178 = vpop.f32.mrf.mxu0
        %v4179 = vadd.f32 0.0, %v4178
        %v4180 = vpop.f32.mrf.mxu0
        %4181 = vdwg.mxu0
        %v4182 = vmul.f32 %v4179, 0.35355338
        %v4183 = vadd.f32 %v4182, %v3774
        %v4184 = vsel %vm2893, %v4183, -inf
        %4185 = vmax.xlane.f32.xlu0 %v4184
        %v4186 = vpop.xlane.xlu0 %4185
        %v4187 = vsub.f32 %v4183, %v4186
        %v4188 = vmul.f32 %v4187, 1.442695
        %v4189 = vpow.pop %v4188
        %v4190 = vsel %vm2893, %v4189, 0.0
        %4191 = vadd.xlane.f32.xlu0 %v4190
        %v4192 = vpop.xlane.xlu0 %4191
        %v4193 = vrcp.pop %v4192
        %v4194 = vmul.f32 %v4189, %v4193
        %v4195 = vpack.c.bf16 %v4194, %v4194
        %4196 = vrot.lane.b32.xlu0 %v3847, 72
        %v4197 = vpop.permute.xlu0 %4196
        %v4199 = vsel %vm2893, %v4195, 0
        %v4202 = vsel %vm2933, %v4197, 0
        %4204 = vmatpush.bf16.msra.mxu0 0
        %4205 = vmatpush.bf16.msra.mxu0 0
        %4206 = vmatpush.bf16.msra.mxu0 0
        %4207 = vmatpush.bf16.msra.mxu0 0
        %4208 = vmatpush.bf16.msra.mxu0 0
        %4209 = vmatpush.bf16.msra.mxu0 0
        %4210 = vmatpush.bf16.msra.mxu0 0
        %4211 = vmatpush.bf16.msra.mxu0 %v4202
        %4212 = vmatmul.bf16.gmra.mxu0 %v4199
        %v4213 = vpop.f32.mrf.mxu0
        %v4214 = vadd.f32 0.0, %v4213
        %v4215 = vpop.f32.mrf.mxu0
        %4216 = vdwg.mxu0
        %4218 = vrot.lane.b32.xlu0 %v3866, 8
        %v4219 = vpop.permute.xlu0 %4218
        %4222 = vrot.lane.b32.xlu0 %v3924, 16
        %v4223 = vpop.permute.xlu0 %4222
        %4226 = vrot.lane.b32.xlu0 %v3982, 24
        %v4227 = vpop.permute.xlu0 %4226
        %4230 = vrot.lane.b32.xlu0 %v4040, 32
        %v4231 = vpop.permute.xlu0 %4230
        %4234 = vrot.lane.b32.xlu0 %v4098, 40
        %v4235 = vpop.permute.xlu0 %4234
        %4238 = vrot.lane.b32.xlu0 %v4156, 48
        %v4239 = vpop.permute.xlu0 %4238
        %4242 = vrot.lane.b32.xlu0 %v4214, 56
        %v4243 = vpop.permute.xlu0 %4242
        %v4245 = vsel %vm2893, %v3805, %v4219
        %v4246 = vsel %vm3388, %v4245, %v4223
        %v4247 = vsel %vm3390, %v4246, %v4227
        %v4248 = vsel %vm3392, %v4247, %v4231
        %v4249 = vsel %vm3394, %v4248, %v4235
        %v4250 = vsel %vm3396, %v4249, %v4239
        %v4251 = vsel %vm3398, %v4250, %v4243
        %v4252 = vpack.c.bf16 %v4251, %v4251
        %v4253 = vld [vmem:[%s41] sm:$0xf]
        %v4254 = vld [vmem:[%s41 + $0x4] sm:$0xf]
        %v4255 = vld [vmem:[%s41 + $0x8] sm:$0xf]
        %v4256 = vld [vmem:[%s41 + $0xc] sm:$0xf]
        %v4257 = vld [vmem:[%s41 + $0x10] sm:$0xf]
        %v4258 = vld [vmem:[%s41 + $0x14] sm:$0xf]
        %v4259 = vld [vmem:[%s41 + $0x18] sm:$0xf]
        %v4260 = vld [vmem:[%s41 + $0x1c] sm:$0xf]
        %v4261 = vld [vmem:[%s43] sm:$0x1]
        %v4263 = vperm.slane %v4261, 0
        %v4273 = vunpack.c.l.b16 %v4253
        %v4274 = vunpack.c.l.b16 %v4254
        %v4275 = vunpack.c.l.b16 %v4255
        %v4276 = vunpack.c.l.b16 %v4256
        %v4277 = vunpack.c.l.b16 %v4257
        %v4278 = vunpack.c.l.b16 %v4258
        %v4279 = vunpack.c.l.b16 %v4259
        %v4280 = vunpack.c.l.b16 %v4260
        %v4281 = vpack.c.b16 %v4274, %v4273
        %v4282 = vpack.c.b16 %v4276, %v4275
        %v4283 = vpack.c.b16 %v4278, %v4277
        %v4284 = vpack.c.b16 %v4280, %v4279
        %v4290 = vsel %vm2856, %v4252, 0
        %4292 = vmatpush.bf16.msra.mxu0 0
        %4293 = vmatpush.bf16.msra.mxu0 0
        %4294 = vmatpush.bf16.msra.mxu0 0
        %4295 = vmatpush.bf16.msra.mxu0 0
        %4296 = vmatpush.bf16.msra.mxu0 %v4284
        %4297 = vmatpush.bf16.msra.mxu0 %v4283
        %4298 = vmatpush.bf16.msra.mxu0 %v4282
        %4299 = vmatpush.bf16.msra.mxu0 %v4281
        %4300 = vmatmul.bf16.gmra.mxu0 %v4290
        %v4301 = vpop.f32.mrf.mxu0
        %v4302 = vadd.f32 %v4263, %v4301
        %v4303 = vpop.f32.mrf.mxu0
        %4304 = vdwg.mxu0
        %v4305 = vadd.f32 %v2787, %v4302
        %v4306 = vsel %vm2856, %v4305, 0.0
        %4307 = vadd.xlane.f32.xlu0 %v4306
        %v4308 = vpop.xlane.xlu0 %4307
        %v4309 = vmul.f32 %v4308, %v3463
        %v4310 = vsub.f32 %v4305, %v4309
        %v4311 = vmul.f32 %v4310, %v4310
        %v4312 = vsel %vm2856, %v4311, 0.0
        %4313 = vadd.xlane.f32.xlu0 %v4312
        %v4314 = vpop.xlane.xlu0 %4313
        %v4315 = vmul.f32 %v4314, %v3463
        %v4316 = vadd.f32 %v4315, 1e-05
        %v4317 = vrsqrt.pop %v4316
        %v4318 = vmul.f32 %v4317, %v4316
        %v4319 = vmul.f32 %v4318, %v4317
        %v4320 = vmul.f32 0.5, %v4319
        %v4321 = vsub.f32 1.5, %v4320
        %v4322 = vmul.f32 %v4317, %v4321
        %vm4323 = vweird.f32 %v4316
        %vm4324 = vweird.f32 %v4317
        %vm4325 = vmor %vm4323, %vm4324
        %v4326 = vsel %vm4325, %v4317, %v4322
        %v4327 = vmul.f32 %v4310, %v4326
        %v4328 = vld [vmem:[#allocation17] sm:$0x1]
        %v4330 = vperm.slane %v4328, 0
        %v4332 = vmul.f32 %v4327, %v4330
        %v4333 = vld [vmem:[%s47] sm:$0x1]
        %v4335 = vperm.slane %v4333, 0
        %v4337 = vadd.f32 %v4332, %v4335
        %v4338 = vld [vmem:[%s49] sm:$0xff]
        %v4339 = vld [vmem:[%s49 + $0x8] sm:$0xff]
        %v4340 = vld [vmem:[%s49 + $0x10] sm:$0xff]
        %v4341 = vld [vmem:[%s49 + $0x18] sm:$0xff]
        %v4342 = vld [vmem:[%s49 + $0x20] sm:$0xff]
        %v4343 = vld [vmem:[%s49 + $0x28] sm:$0xff]
        %v4344 = vld [vmem:[%s49 + $0x30] sm:$0xff]
        %v4345 = vld [vmem:[%s49 + $0x38] sm:$0xff]
        %v4346 = vld [vmem:[%s51] sm:$0x3]
        %v4347 = vpack.c.bf16 %v4337, %v4337
        %v4349 = vperm.slane %v4346, 0
        %v4359 = vunpack.c.l.b16 %v4338
        %v4360 = vunpack.c.l.b16 %v4339
        %v4361 = vunpack.c.l.b16 %v4340
        %v4362 = vunpack.c.l.b16 %v4341
        %v4363 = vunpack.c.l.b16 %v4342
        %v4364 = vunpack.c.l.b16 %v4343
        %v4365 = vunpack.c.l.b16 %v4344
        %v4366 = vunpack.c.l.b16 %v4345
        %v4367 = vpack.c.b16 %v4360, %v4359
        %v4368 = vpack.c.b16 %v4362, %v4361
        %v4369 = vpack.c.b16 %v4364, %v4363
        %v4370 = vpack.c.b16 %v4366, %v4365
        %v4376 = vsel %vm2856, %v4347, 0
        %4378 = vmatpush.bf16.msra.mxu0 0
        %4379 = vmatpush.bf16.msra.mxu0 0
        %4380 = vmatpush.bf16.msra.mxu0 0
        %4381 = vmatpush.bf16.msra.mxu0 0
        %4382 = vmatpush.bf16.msra.mxu0 %v4370
        %4383 = vmatpush.bf16.msra.mxu0 %v4369
        %4384 = vmatpush.bf16.msra.mxu0 %v4368
        %4385 = vmatpush.bf16.msra.mxu0 %v4367
        %4386 = vmatmul.bf16.gmra.mxu0 %v4376
        %v4387 = vpop.f32.mrf.mxu0
        %v4388 = vadd.f32 %v4349, %v4387
        %v4389 = vpop.f32.mrf.mxu0
        %4390 = vdwg.mxu0
        %v4391 = vpack.c.bf16 %v3661, %v3661
        %v4392 = vperm.slane %v4346, 1
        %v4393 = vunpack.c.h.b16 %v4338
        %v4394 = vunpack.c.h.b16 %v4339
        %v4395 = vunpack.c.h.b16 %v4340
        %v4396 = vunpack.c.h.b16 %v4341
        %v4397 = vunpack.c.h.b16 %v4342
        %v4398 = vunpack.c.h.b16 %v4343
        %v4399 = vunpack.c.h.b16 %v4344
        %v4400 = vunpack.c.h.b16 %v4345
        %v4401 = vpack.c.b16 %v4394, %v4393
        %v4402 = vpack.c.b16 %v4396, %v4395
        %v4403 = vpack.c.b16 %v4398, %v4397
        %v4404 = vpack.c.b16 %v4400, %v4399
        %4405 = vrot.lane.b32.xlu0 %v4367, 64
        %v4406 = vpop.permute.xlu0 %4405
        %4407 = vrot.lane.b32.xlu0 %v4401, 64
        %v4408 = vpop.permute.xlu0 %4407
        %4409 = vrot.lane.b32.xlu0 %v4368, 64
        %v4410 = vpop.permute.xlu0 %4409
        %4411 = vrot.lane.b32.xlu0 %v4402, 64
        %v4412 = vpop.permute.xlu0 %4411
        %4413 = vrot.lane.b32.xlu0 %v4369, 64
        %v4414 = vpop.permute.xlu0 %4413
        %4415 = vrot.lane.b32.xlu0 %v4403, 64
        %v4416 = vpop.permute.xlu0 %4415
        %4417 = vrot.lane.b32.xlu0 %v4370, 64
        %v4418 = vpop.permute.xlu0 %4417
        %4419 = vrot.lane.b32.xlu0 %v4404, 64
        %v4420 = vpop.permute.xlu0 %4419
        %vm4421 = vcmask 523264
        %v4422 = vsel %vm4421, %v4406, %v4408
        %v4423 = vsel %vm4421, %v4410, %v4412
        %v4424 = vsel %vm4421, %v4414, %v4416
        %v4425 = vsel %vm4421, %v4418, %v4420
        %4430 = vrot.lane.b32.xlu0 %v4349, 64
        %v4431 = vpop.permute.xlu0 %4430
        %4432 = vrot.lane.b32.xlu0 %v4392, 64
        %v4433 = vpop.permute.xlu0 %4432
        %v4434 = vsel %vm2856, %v4431, %v4433
        %v4437 = vsel %vm2856, %v4391, 0
        %4439 = vmatpush.bf16.msra.mxu0 0
        %4440 = vmatpush.bf16.msra.mxu0 0
        %4441 = vmatpush.bf16.msra.mxu0 0
        %4442 = vmatpush.bf16.msra.mxu0 0
        %4443 = vmatpush.bf16.msra.mxu0 %v4425
        %4444 = vmatpush.bf16.msra.mxu0 %v4424
        %4445 = vmatpush.bf16.msra.mxu0 %v4423
        %4446 = vmatpush.bf16.msra.mxu0 %v4422
        %4447 = vmatmul.bf16.gmra.mxu0 %v4437
        %v4448 = vpop.f32.mrf.mxu0
        %v4449 = vadd.f32 %v4434, %v4448
        %v4450 = vpop.f32.mrf.mxu0
        %4451 = vdwg.mxu0
        %v4452 = vpack.c.bf16 %v4388, %v4388
        %v4453 = vpack.c.bf16 %v4449, %v4449
        %v4455 = vsel %vm2893, %v4452, 0
        %v4458 = vsel %vm2893, %v4453, 0
        %4460 = vmatpush.bf16.xpose.msra.mxu0 0
        %4461 = vmatpush.bf16.xpose.msra.mxu0 0
        %4462 = vmatpush.bf16.xpose.msra.mxu0 0
        %4463 = vmatpush.bf16.xpose.msra.mxu0 0
        %4464 = vmatpush.bf16.xpose.msra.mxu0 0
        %4465 = vmatpush.bf16.xpose.msra.mxu0 0
        %4466 = vmatpush.bf16.xpose.msra.mxu0 0
        %4467 = vmatpush.bf16.xpose.msra.mxu0 %v4458
        %4468 = vmatmul.bf16.gmra.mxu0 %v4455
        %v4469 = vpop.f32.mrf.mxu0
        %v4470 = vadd.f32 0.0, %v4469
        %v4471 = vpop.f32.mrf.mxu0
        %4472 = vdwg.mxu0
        %v4473 = vmul.f32 %v4470, 0.35355338
        %v4474 = vadd.f32 %v4473, %v2915
        %v4475 = vsel %vm2893, %v4474, -inf
        %4476 = vmax.xlane.f32.xlu0 %v4475
        %v4477 = vpop.xlane.xlu0 %4476
        %v4478 = vsub.f32 %v4474, %v4477
        %v4479 = vmul.f32 %v4478, 1.442695
        %v4480 = vpow.pop %v4479
        %v4481 = vsel %vm2893, %v4480, 0.0
        %4482 = vadd.xlane.f32.xlu0 %v4481
        %v4483 = vpop.xlane.xlu0 %4482
        %v4484 = vrcp.pop %v4483
        %v4485 = vmul.f32 %v4480, %v4484
        %v4486 = vpack.c.bf16 %v4485, %v4485
        %v4488 = vunpack.c.l.b16 %v4453
        %v4489 = vpack.c.b16 %v4488, %v4488
        %4490 = vrot.lane.b32.xlu0 %v4489, 64
        %v4491 = vpop.permute.xlu0 %4490
        %v4493 = vsel %vm2893, %v4486, 0
        %v4496 = vsel %vm2933, %v4491, 0
        %4498 = vmatpush.bf16.msra.mxu0 0
        %4499 = vmatpush.bf16.msra.mxu0 0
        %4500 = vmatpush.bf16.msra.mxu0 0
        %4501 = vmatpush.bf16.msra.mxu0 0
        %4502 = vmatpush.bf16.msra.mxu0 0
        %4503 = vmatpush.bf16.msra.mxu0 0
        %4504 = vmatpush.bf16.msra.mxu0 0
        %4505 = vmatpush.bf16.msra.mxu0 %v4496
        %4506 = vmatmul.bf16.gmra.mxu0 %v4493
        %v4507 = vpop.f32.mrf.mxu0
        %v4508 = vadd.f32 0.0, %v4507
        %v4509 = vpop.f32.mrf.mxu0
        %4510 = vdwg.mxu0
        %v4512 = vunpack.c.l.b16 %v4452
        %v4513 = vpack.c.b16 %v4512, %v4512
        %4514 = vrot.lane.b32.xlu0 %v4513, 120
        %v4515 = vpop.permute.xlu0 %4514
        %4516 = vrot.lane.b32.xlu0 %v4489, 120
        %v4517 = vpop.permute.xlu0 %4516
        %v4519 = vsel %vm2893, %v4515, 0
        %v4522 = vsel %vm2893, %v4517, 0
        %4524 = vmatpush.bf16.xpose.msra.mxu0 0
        %4525 = vmatpush.bf16.xpose.msra.mxu0 0
        %4526 = vmatpush.bf16.xpose.msra.mxu0 0
        %4527 = vmatpush.bf16.xpose.msra.mxu0 0
        %4528 = vmatpush.bf16.xpose.msra.mxu0 0
        %4529 = vmatpush.bf16.xpose.msra.mxu0 0
        %4530 = vmatpush.bf16.xpose.msra.mxu0 0
        %4531 = vmatpush.bf16.xpose.msra.mxu0 %v4522
        %4532 = vmatmul.bf16.gmra.mxu0 %v4519
        %v4533 = vpop.f32.mrf.mxu0
        %v4534 = vadd.f32 0.0, %v4533
        %v4535 = vpop.f32.mrf.mxu0
        %4536 = vdwg.mxu0
        %v4537 = vmul.f32 %v4534, 0.35355338
        %v4538 = vadd.f32 %v4537, %v2915
        %v4539 = vsel %vm2893, %v4538, -inf
        %4540 = vmax.xlane.f32.xlu0 %v4539
        %v4541 = vpop.xlane.xlu0 %4540
        %v4542 = vsub.f32 %v4538, %v4541
        %v4543 = vmul.f32 %v4542, 1.442695
        %v4544 = vpow.pop %v4543
        %v4545 = vsel %vm2893, %v4544, 0.0
        %4546 = vadd.xlane.f32.xlu0 %v4545
        %v4547 = vpop.xlane.xlu0 %4546
        %v4548 = vrcp.pop %v4547
        %v4549 = vmul.f32 %v4544, %v4548
        %v4550 = vpack.c.bf16 %v4549, %v4549
        %4551 = vrot.lane.b32.xlu0 %v4489, 56
        %v4552 = vpop.permute.xlu0 %4551
        %v4554 = vsel %vm2893, %v4550, 0
        %v4557 = vsel %vm2933, %v4552, 0
        %4559 = vmatpush.bf16.msra.mxu0 0
        %4560 = vmatpush.bf16.msra.mxu0 0
        %4561 = vmatpush.bf16.msra.mxu0 0
        %4562 = vmatpush.bf16.msra.mxu0 0
        %4563 = vmatpush.bf16.msra.mxu0 0
        %4564 = vmatpush.bf16.msra.mxu0 0
        %4565 = vmatpush.bf16.msra.mxu0 0
        %4566 = vmatpush.bf16.msra.mxu0 %v4557
        %4567 = vmatmul.bf16.gmra.mxu0 %v4554
        %v4568 = vpop.f32.mrf.mxu0
        %v4569 = vadd.f32 0.0, %v4568
        %v4570 = vpop.f32.mrf.mxu0
        %4571 = vdwg.mxu0
        %4572 = vrot.lane.b32.xlu0 %v4513, 112
        %v4573 = vpop.permute.xlu0 %4572
        %4574 = vrot.lane.b32.xlu0 %v4489, 112
        %v4575 = vpop.permute.xlu0 %4574
        %v4577 = vsel %vm2893, %v4573, 0
        %v4580 = vsel %vm2893, %v4575, 0
        %4582 = vmatpush.bf16.xpose.msra.mxu0 0
        %4583 = vmatpush.bf16.xpose.msra.mxu0 0
        %4584 = vmatpush.bf16.xpose.msra.mxu0 0
        %4585 = vmatpush.bf16.xpose.msra.mxu0 0
        %4586 = vmatpush.bf16.xpose.msra.mxu0 0
        %4587 = vmatpush.bf16.xpose.msra.mxu0 0
        %4588 = vmatpush.bf16.xpose.msra.mxu0 0
        %4589 = vmatpush.bf16.xpose.msra.mxu0 %v4580
        %4590 = vmatmul.bf16.gmra.mxu0 %v4577
        %v4591 = vpop.f32.mrf.mxu0
        %v4592 = vadd.f32 0.0, %v4591
        %v4593 = vpop.f32.mrf.mxu0
        %4594 = vdwg.mxu0
        %v4595 = vmul.f32 %v4592, 0.35355338
        %v4596 = vadd.f32 %v4595, %v2915
        %v4597 = vsel %vm2893, %v4596, -inf
        %4598 = vmax.xlane.f32.xlu0 %v4597
        %v4599 = vpop.xlane.xlu0 %4598
        %v4600 = vsub.f32 %v4596, %v4599
        %v4601 = vmul.f32 %v4600, 1.442695
        %v4602 = vpow.pop %v4601
        %v4603 = vsel %vm2893, %v4602, 0.0
        %4604 = vadd.xlane.f32.xlu0 %v4603
        %v4605 = vpop.xlane.xlu0 %4604
        %v4606 = vrcp.pop %v4605
        %v4607 = vmul.f32 %v4602, %v4606
        %v4608 = vpack.c.bf16 %v4607, %v4607
        %4609 = vrot.lane.b32.xlu0 %v4489, 48
        %v4610 = vpop.permute.xlu0 %4609
        %v4612 = vsel %vm2893, %v4608, 0
        %v4615 = vsel %vm2933, %v4610, 0
        %4617 = vmatpush.bf16.msra.mxu0 0
        %4618 = vmatpush.bf16.msra.mxu0 0
        %4619 = vmatpush.bf16.msra.mxu0 0
        %4620 = vmatpush.bf16.msra.mxu0 0
        %4621 = vmatpush.bf16.msra.mxu0 0
        %4622 = vmatpush.bf16.msra.mxu0 0
        %4623 = vmatpush.bf16.msra.mxu0 0
        %4624 = vmatpush.bf16.msra.mxu0 %v4615
        %4625 = vmatmul.bf16.gmra.mxu0 %v4612
        %v4626 = vpop.f32.mrf.mxu0
        %v4627 = vadd.f32 0.0, %v4626
        %v4628 = vpop.f32.mrf.mxu0
        %4629 = vdwg.mxu0
        %4630 = vrot.lane.b32.xlu0 %v4513, 104
        %v4631 = vpop.permute.xlu0 %4630
        %4632 = vrot.lane.b32.xlu0 %v4489, 104
        %v4633 = vpop.permute.xlu0 %4632
        %v4635 = vsel %vm2893, %v4631, 0
        %v4638 = vsel %vm2893, %v4633, 0
        %4640 = vmatpush.bf16.xpose.msra.mxu0 0
        %4641 = vmatpush.bf16.xpose.msra.mxu0 0
        %4642 = vmatpush.bf16.xpose.msra.mxu0 0
        %4643 = vmatpush.bf16.xpose.msra.mxu0 0
        %4644 = vmatpush.bf16.xpose.msra.mxu0 0
        %4645 = vmatpush.bf16.xpose.msra.mxu0 0
        %4646 = vmatpush.bf16.xpose.msra.mxu0 0
        %4647 = vmatpush.bf16.xpose.msra.mxu0 %v4638
        %4648 = vmatmul.bf16.gmra.mxu0 %v4635
        %v4649 = vpop.f32.mrf.mxu0
        %v4650 = vadd.f32 0.0, %v4649
        %v4651 = vpop.f32.mrf.mxu0
        %4652 = vdwg.mxu0
        %v4653 = vmul.f32 %v4650, 0.35355338
        %v4654 = vadd.f32 %v4653, %v2915
        %v4655 = vsel %vm2893, %v4654, -inf
        %4656 = vmax.xlane.f32.xlu0 %v4655
        %v4657 = vpop.xlane.xlu0 %4656
        %v4658 = vsub.f32 %v4654, %v4657
        %v4659 = vmul.f32 %v4658, 1.442695
        %v4660 = vpow.pop %v4659
        %v4661 = vsel %vm2893, %v4660, 0.0
        %4662 = vadd.xlane.f32.xlu0 %v4661
        %v4663 = vpop.xlane.xlu0 %4662
        %v4664 = vrcp.pop %v4663
        %v4665 = vmul.f32 %v4660, %v4664
        %v4666 = vpack.c.bf16 %v4665, %v4665
        %4667 = vrot.lane.b32.xlu0 %v4489, 40
        %v4668 = vpop.permute.xlu0 %4667
        %v4670 = vsel %vm2893, %v4666, 0
        %v4673 = vsel %vm2933, %v4668, 0
        %4675 = vmatpush.bf16.msra.mxu0 0
        %4676 = vmatpush.bf16.msra.mxu0 0
        %4677 = vmatpush.bf16.msra.mxu0 0
        %4678 = vmatpush.bf16.msra.mxu0 0
        %4679 = vmatpush.bf16.msra.mxu0 0
        %4680 = vmatpush.bf16.msra.mxu0 0
        %4681 = vmatpush.bf16.msra.mxu0 0
        %4682 = vmatpush.bf16.msra.mxu0 %v4673
        %4683 = vmatmul.bf16.gmra.mxu0 %v4670
        %v4684 = vpop.f32.mrf.mxu0
        %v4685 = vadd.f32 0.0, %v4684
        %v4686 = vpop.f32.mrf.mxu0
        %4687 = vdwg.mxu0
        %4688 = vrot.lane.b32.xlu0 %v4513, 96
        %v4689 = vpop.permute.xlu0 %4688
        %4690 = vrot.lane.b32.xlu0 %v4489, 96
        %v4691 = vpop.permute.xlu0 %4690
        %v4693 = vsel %vm2893, %v4689, 0
        %v4696 = vsel %vm2893, %v4691, 0
        %4698 = vmatpush.bf16.xpose.msra.mxu0 0
        %4699 = vmatpush.bf16.xpose.msra.mxu0 0
        %4700 = vmatpush.bf16.xpose.msra.mxu0 0
        %4701 = vmatpush.bf16.xpose.msra.mxu0 0
        %4702 = vmatpush.bf16.xpose.msra.mxu0 0
        %4703 = vmatpush.bf16.xpose.msra.mxu0 0
        %4704 = vmatpush.bf16.xpose.msra.mxu0 0
        %4705 = vmatpush.bf16.xpose.msra.mxu0 %v4696
        %4706 = vmatmul.bf16.gmra.mxu0 %v4693
        %v4707 = vpop.f32.mrf.mxu0
        %v4708 = vadd.f32 0.0, %v4707
        %v4709 = vpop.f32.mrf.mxu0
        %4710 = vdwg.mxu0
        %v4711 = vmul.f32 %v4708, 0.35355338
        %v4712 = vadd.f32 %v4711, %v2915
        %v4713 = vsel %vm2893, %v4712, -inf
        %4714 = vmax.xlane.f32.xlu0 %v4713
        %v4715 = vpop.xlane.xlu0 %4714
        %v4716 = vsub.f32 %v4712, %v4715
        %v4717 = vmul.f32 %v4716, 1.442695
        %v4718 = vpow.pop %v4717
        %v4719 = vsel %vm2893, %v4718, 0.0
        %4720 = vadd.xlane.f32.xlu0 %v4719
        %v4721 = vpop.xlane.xlu0 %4720
        %v4722 = vrcp.pop %v4721
        %v4723 = vmul.f32 %v4718, %v4722
        %v4724 = vpack.c.bf16 %v4723, %v4723
        %4725 = vrot.lane.b32.xlu0 %v4489, 32
        %v4726 = vpop.permute.xlu0 %4725
        %v4728 = vsel %vm2893, %v4724, 0
        %v4731 = vsel %vm2933, %v4726, 0
        %4733 = vmatpush.bf16.msra.mxu0 0
        %4734 = vmatpush.bf16.msra.mxu0 0
        %4735 = vmatpush.bf16.msra.mxu0 0
        %4736 = vmatpush.bf16.msra.mxu0 0
        %4737 = vmatpush.bf16.msra.mxu0 0
        %4738 = vmatpush.bf16.msra.mxu0 0
        %4739 = vmatpush.bf16.msra.mxu0 0
        %4740 = vmatpush.bf16.msra.mxu0 %v4731
        %4741 = vmatmul.bf16.gmra.mxu0 %v4728
        %v4742 = vpop.f32.mrf.mxu0
        %v4743 = vadd.f32 0.0, %v4742
        %v4744 = vpop.f32.mrf.mxu0
        %4745 = vdwg.mxu0
        %4746 = vrot.lane.b32.xlu0 %v4513, 88
        %v4747 = vpop.permute.xlu0 %4746
        %4748 = vrot.lane.b32.xlu0 %v4489, 88
        %v4749 = vpop.permute.xlu0 %4748
        %v4751 = vsel %vm2893, %v4747, 0
        %v4754 = vsel %vm2893, %v4749, 0
        %4756 = vmatpush.bf16.xpose.msra.mxu0 0
        %4757 = vmatpush.bf16.xpose.msra.mxu0 0
        %4758 = vmatpush.bf16.xpose.msra.mxu0 0
        %4759 = vmatpush.bf16.xpose.msra.mxu0 0
        %4760 = vmatpush.bf16.xpose.msra.mxu0 0
        %4761 = vmatpush.bf16.xpose.msra.mxu0 0
        %4762 = vmatpush.bf16.xpose.msra.mxu0 0
        %4763 = vmatpush.bf16.xpose.msra.mxu0 %v4754
        %4764 = vmatmul.bf16.gmra.mxu0 %v4751
        %v4765 = vpop.f32.mrf.mxu0
        %v4766 = vadd.f32 0.0, %v4765
        %v4767 = vpop.f32.mrf.mxu0
        %4768 = vdwg.mxu0
        %v4769 = vmul.f32 %v4766, 0.35355338
        %v4770 = vadd.f32 %v4769, %v2915
        %v4771 = vsel %vm2893, %v4770, -inf
        %4772 = vmax.xlane.f32.xlu0 %v4771
        %v4773 = vpop.xlane.xlu0 %4772
        %v4774 = vsub.f32 %v4770, %v4773
        %v4775 = vmul.f32 %v4774, 1.442695
        %v4776 = vpow.pop %v4775
        %v4777 = vsel %vm2893, %v4776, 0.0
        %4778 = vadd.xlane.f32.xlu0 %v4777
        %v4779 = vpop.xlane.xlu0 %4778
        %v4780 = vrcp.pop %v4779
        %v4781 = vmul.f32 %v4776, %v4780
        %v4782 = vpack.c.bf16 %v4781, %v4781
        %4783 = vrot.lane.b32.xlu0 %v4489, 24
        %v4784 = vpop.permute.xlu0 %4783
        %v4786 = vsel %vm2893, %v4782, 0
        %v4789 = vsel %vm2933, %v4784, 0
        %4791 = vmatpush.bf16.msra.mxu0 0
        %4792 = vmatpush.bf16.msra.mxu0 0
        %4793 = vmatpush.bf16.msra.mxu0 0
        %4794 = vmatpush.bf16.msra.mxu0 0
        %4795 = vmatpush.bf16.msra.mxu0 0
        %4796 = vmatpush.bf16.msra.mxu0 0
        %4797 = vmatpush.bf16.msra.mxu0 0
        %4798 = vmatpush.bf16.msra.mxu0 %v4789
        %4799 = vmatmul.bf16.gmra.mxu0 %v4786
        %v4800 = vpop.f32.mrf.mxu0
        %v4801 = vadd.f32 0.0, %v4800
        %v4802 = vpop.f32.mrf.mxu0
        %4803 = vdwg.mxu0
        %4804 = vrot.lane.b32.xlu0 %v4513, 80
        %v4805 = vpop.permute.xlu0 %4804
        %4806 = vrot.lane.b32.xlu0 %v4489, 80
        %v4807 = vpop.permute.xlu0 %4806
        %v4809 = vsel %vm2893, %v4805, 0
        %v4812 = vsel %vm2893, %v4807, 0
        %4814 = vmatpush.bf16.xpose.msra.mxu0 0
        %4815 = vmatpush.bf16.xpose.msra.mxu0 0
        %4816 = vmatpush.bf16.xpose.msra.mxu0 0
        %4817 = vmatpush.bf16.xpose.msra.mxu0 0
        %4818 = vmatpush.bf16.xpose.msra.mxu0 0
        %4819 = vmatpush.bf16.xpose.msra.mxu0 0
        %4820 = vmatpush.bf16.xpose.msra.mxu0 0
        %4821 = vmatpush.bf16.xpose.msra.mxu0 %v4812
        %4822 = vmatmul.bf16.gmra.mxu0 %v4809
        %v4823 = vpop.f32.mrf.mxu0
        %v4824 = vadd.f32 0.0, %v4823
        %v4825 = vpop.f32.mrf.mxu0
        %4826 = vdwg.mxu0
        %v4827 = vmul.f32 %v4824, 0.35355338
        %v4828 = vadd.f32 %v4827, %v2915
        %v4829 = vsel %vm2893, %v4828, -inf
        %4830 = vmax.xlane.f32.xlu0 %v4829
        %v4831 = vpop.xlane.xlu0 %4830
        %v4832 = vsub.f32 %v4828, %v4831
        %v4833 = vmul.f32 %v4832, 1.442695
        %v4834 = vpow.pop %v4833
        %v4835 = vsel %vm2893, %v4834, 0.0
        %4836 = vadd.xlane.f32.xlu0 %v4835
        %v4837 = vpop.xlane.xlu0 %4836
        %v4838 = vrcp.pop %v4837
        %v4839 = vmul.f32 %v4834, %v4838
        %v4840 = vpack.c.bf16 %v4839, %v4839
        %4841 = vrot.lane.b32.xlu0 %v4489, 16
        %v4842 = vpop.permute.xlu0 %4841
        %v4844 = vsel %vm2893, %v4840, 0
        %v4847 = vsel %vm2933, %v4842, 0
        %4849 = vmatpush.bf16.msra.mxu0 0
        %4850 = vmatpush.bf16.msra.mxu0 0
        %4851 = vmatpush.bf16.msra.mxu0 0
        %4852 = vmatpush.bf16.msra.mxu0 0
        %4853 = vmatpush.bf16.msra.mxu0 0
        %4854 = vmatpush.bf16.msra.mxu0 0
        %4855 = vmatpush.bf16.msra.mxu0 0
        %4856 = vmatpush.bf16.msra.mxu0 %v4847
        %4857 = vmatmul.bf16.gmra.mxu0 %v4844
        %v4858 = vpop.f32.mrf.mxu0
        %v4859 = vadd.f32 0.0, %v4858
        %v4860 = vpop.f32.mrf.mxu0
        %4861 = vdwg.mxu0
        %4862 = vrot.lane.b32.xlu0 %v4513, 72
        %v4863 = vpop.permute.xlu0 %4862
        %4864 = vrot.lane.b32.xlu0 %v4489, 72
        %v4865 = vpop.permute.xlu0 %4864
        %v4867 = vsel %vm2893, %v4863, 0
        %v4870 = vsel %vm2893, %v4865, 0
        %4872 = vmatpush.bf16.xpose.msra.mxu0 0
        %4873 = vmatpush.bf16.xpose.msra.mxu0 0
        %4874 = vmatpush.bf16.xpose.msra.mxu0 0
        %4875 = vmatpush.bf16.xpose.msra.mxu0 0
        %4876 = vmatpush.bf16.xpose.msra.mxu0 0
        %4877 = vmatpush.bf16.xpose.msra.mxu0 0
        %4878 = vmatpush.bf16.xpose.msra.mxu0 0
        %4879 = vmatpush.bf16.xpose.msra.mxu0 %v4870
        %4880 = vmatmul.bf16.gmra.mxu0 %v4867
        %v4881 = vpop.f32.mrf.mxu0
        %v4882 = vadd.f32 0.0, %v4881
        %v4883 = vpop.f32.mrf.mxu0
        %4884 = vdwg.mxu0
        %v4885 = vmul.f32 %v4882, 0.35355338
        %v4886 = vadd.f32 %v4885, %v2915
        %v4887 = vsel %vm2893, %v4886, -inf
        %4888 = vmax.xlane.f32.xlu0 %v4887
        %v4889 = vpop.xlane.xlu0 %4888
        %v4890 = vsub.f32 %v4886, %v4889
        %v4891 = vmul.f32 %v4890, 1.442695
        %v4892 = vpow.pop %v4891
        %v4893 = vsel %vm2893, %v4892, 0.0
        %4894 = vadd.xlane.f32.xlu0 %v4893
        %v4895 = vpop.xlane.xlu0 %4894
        %v4896 = vrcp.pop %v4895
        %v4897 = vmul.f32 %v4892, %v4896
        %v4898 = vpack.c.bf16 %v4897, %v4897
        %4899 = vrot.lane.b32.xlu0 %v4489, 8
        %v4900 = vpop.permute.xlu0 %4899
        %v4902 = vsel %vm2893, %v4898, 0
        %v4905 = vsel %vm2933, %v4900, 0
        %4907 = vmatpush.bf16.msra.mxu0 0
        %4908 = vmatpush.bf16.msra.mxu0 0
        %4909 = vmatpush.bf16.msra.mxu0 0
        %4910 = vmatpush.bf16.msra.mxu0 0
        %4911 = vmatpush.bf16.msra.mxu0 0
        %4912 = vmatpush.bf16.msra.mxu0 0
        %4913 = vmatpush.bf16.msra.mxu0 0
        %4914 = vmatpush.bf16.msra.mxu0 %v4905
        %4915 = vmatmul.bf16.gmra.mxu0 %v4902
        %v4916 = vpop.f32.mrf.mxu0
        %v4917 = vadd.f32 0.0, %v4916
        %v4918 = vpop.f32.mrf.mxu0
        %4919 = vdwg.mxu0
        %4921 = vrot.lane.b32.xlu0 %v4569, 8
        %v4922 = vpop.permute.xlu0 %4921
        %4925 = vrot.lane.b32.xlu0 %v4627, 16
        %v4926 = vpop.permute.xlu0 %4925
        %4929 = vrot.lane.b32.xlu0 %v4685, 24
        %v4930 = vpop.permute.xlu0 %4929
        %4933 = vrot.lane.b32.xlu0 %v4743, 32
        %v4934 = vpop.permute.xlu0 %4933
        %4937 = vrot.lane.b32.xlu0 %v4801, 40
        %v4938 = vpop.permute.xlu0 %4937
        %4941 = vrot.lane.b32.xlu0 %v4859, 48
        %v4942 = vpop.permute.xlu0 %4941
        %4945 = vrot.lane.b32.xlu0 %v4917, 56
        %v4946 = vpop.permute.xlu0 %4945
        %v4948 = vsel %vm2893, %v4508, %v4922
        %v4949 = vsel %vm3388, %v4948, %v4926
        %v4950 = vsel %vm3390, %v4949, %v4930
        %v4951 = vsel %vm3392, %v4950, %v4934
        %v4952 = vsel %vm3394, %v4951, %v4938
        %v4953 = vsel %vm3396, %v4952, %v4942
        %v4954 = vsel %vm3398, %v4953, %v4946
        %v4955 = vpack.c.bf16 %v4954, %v4954
        %v4956 = vld [vmem:[%s53] sm:$0xf]
        %v4957 = vld [vmem:[%s53 + $0x4] sm:$0xf]
        %v4958 = vld [vmem:[%s53 + $0x8] sm:$0xf]
        %v4959 = vld [vmem:[%s53 + $0xc] sm:$0xf]
        %v4960 = vld [vmem:[%s53 + $0x10] sm:$0xf]
        %v4961 = vld [vmem:[%s53 + $0x14] sm:$0xf]
        %v4962 = vld [vmem:[%s53 + $0x18] sm:$0xf]
        %v4963 = vld [vmem:[%s53 + $0x1c] sm:$0xf]
        %v4964 = vld [vmem:[%s55] sm:$0x1]
        %v4966 = vperm.slane %v4964, 0
        %v4976 = vunpack.c.l.b16 %v4956
        %v4977 = vunpack.c.l.b16 %v4957
        %v4978 = vunpack.c.l.b16 %v4958
        %v4979 = vunpack.c.l.b16 %v4959
        %v4980 = vunpack.c.l.b16 %v4960
        %v4981 = vunpack.c.l.b16 %v4961
        %v4982 = vunpack.c.l.b16 %v4962
        %v4983 = vunpack.c.l.b16 %v4963
        %v4984 = vpack.c.b16 %v4977, %v4976
        %v4985 = vpack.c.b16 %v4979, %v4978
        %v4986 = vpack.c.b16 %v4981, %v4980
        %v4987 = vpack.c.b16 %v4983, %v4982
        %v4993 = vsel %vm2856, %v4955, 0
        %4995 = vmatpush.bf16.msra.mxu0 0
        %4996 = vmatpush.bf16.msra.mxu0 0
        %4997 = vmatpush.bf16.msra.mxu0 0
        %4998 = vmatpush.bf16.msra.mxu0 0
        %4999 = vmatpush.bf16.msra.mxu0 %v4987
        %5000 = vmatpush.bf16.msra.mxu0 %v4986
        %5001 = vmatpush.bf16.msra.mxu0 %v4985
        %5002 = vmatpush.bf16.msra.mxu0 %v4984
        %5003 = vmatmul.bf16.gmra.mxu0 %v4993
        %v5004 = vpop.f32.mrf.mxu0
        %v5005 = vadd.f32 %v4966, %v5004
        %v5006 = vpop.f32.mrf.mxu0
        %5007 = vdwg.mxu0
        %v5008 = vadd.f32 %v4337, %v5005
        %v5009 = vsel %vm2856, %v5008, 0.0
        %5010 = vadd.xlane.f32.xlu0 %v5009
        %v5011 = vpop.xlane.xlu0 %5010
        %v5012 = vmul.f32 %v5011, %v3463
        %v5013 = vsub.f32 %v5008, %v5012
        %v5014 = vmul.f32 %v5013, %v5013
        %v5015 = vsel %vm2856, %v5014, 0.0
        %5016 = vadd.xlane.f32.xlu0 %v5015
        %v5017 = vpop.xlane.xlu0 %5016
        %v5018 = vmul.f32 %v5017, %v3463
        %v5019 = vadd.f32 %v5018, 1e-05
        %v5020 = vrsqrt.pop %v5019
        %v5021 = vmul.f32 %v5020, %v5019
        %v5022 = vmul.f32 %v5021, %v5020
        %v5023 = vmul.f32 0.5, %v5022
        %v5024 = vsub.f32 1.5, %v5023
        %v5025 = vmul.f32 %v5020, %v5024
        %vm5026 = vweird.f32 %v5019
        %vm5027 = vweird.f32 %v5020
        %vm5028 = vmor %vm5026, %vm5027
        %v5029 = vsel %vm5028, %v5020, %v5025
        %v5030 = vmul.f32 %v5013, %v5029
        %v5031 = vld [vmem:[#allocation19] sm:$0x1]
        %v5033 = vperm.slane %v5031, 0
        %v5035 = vmul.f32 %v5030, %v5033
        %v5036 = vld [vmem:[#allocation20] sm:$0x1]
        %v5038 = vperm.slane %v5036, 0
        %v5040 = vadd.f32 %v5035, %v5038
        %v5041 = vpack.c.bf16 %v5040, %v5040
        %v5042 = vld [vmem:[%s61] sm:$0xf]
        %v5043 = vld [vmem:[%s61 + $0x4] sm:$0xf]
        %v5044 = vld [vmem:[%s61 + $0x8] sm:$0xf]
        %v5045 = vld [vmem:[%s61 + $0xc] sm:$0xf]
        %v5046 = vld [vmem:[%s61 + $0x10] sm:$0xf]
        %v5047 = vld [vmem:[%s61 + $0x14] sm:$0xf]
        %v5048 = vld [vmem:[%s61 + $0x18] sm:$0xf]
        %v5049 = vld [vmem:[%s61 + $0x1c] sm:$0xf]
        %v5050 = vld [vmem:[#allocation22] sm:$0x1]
        %v5052 = vperm.slane %v5050, 0
        %v5062 = vunpack.c.l.b16 %v5042
        %v5063 = vunpack.c.l.b16 %v5043
        %v5064 = vunpack.c.l.b16 %v5044
        %v5065 = vunpack.c.l.b16 %v5045
        %v5066 = vunpack.c.l.b16 %v5046
        %v5067 = vunpack.c.l.b16 %v5047
        %v5068 = vunpack.c.l.b16 %v5048
        %v5069 = vunpack.c.l.b16 %v5049
        %v5070 = vpack.c.b16 %v5063, %v5062
        %v5071 = vpack.c.b16 %v5065, %v5064
        %v5072 = vpack.c.b16 %v5067, %v5066
        %v5073 = vpack.c.b16 %v5069, %v5068
        %v5079 = vsel %vm2856, %v5041, 0
        %5081 = vmatpush.bf16.msra.mxu0 0
        %5082 = vmatpush.bf16.msra.mxu0 0
        %5083 = vmatpush.bf16.msra.mxu0 0
        %5084 = vmatpush.bf16.msra.mxu0 0
        %5085 = vmatpush.bf16.msra.mxu0 %v5073
        %5086 = vmatpush.bf16.msra.mxu0 %v5072
        %5087 = vmatpush.bf16.msra.mxu0 %v5071
        %5088 = vmatpush.bf16.msra.mxu0 %v5070
        %5089 = vmatmul.bf16.gmra.mxu0 %v5079
        %v5090 = vpop.f32.mrf.mxu0
        %v5091 = vadd.f32 %v5052, %v5090
        %v5092 = vpop.f32.mrf.mxu0
        %5093 = vdwg.mxu0
        %v5094 = vmax.f32 %v5091, 0.0
        %v5095 = vpack.c.bf16 %v5094, %v5094
        %v5096 = vld [vmem:[%s65] sm:$0xf]
        %v5097 = vld [vmem:[%s65 + $0x4] sm:$0xf]
        %v5098 = vld [vmem:[%s65 + $0x8] sm:$0xf]
        %v5099 = vld [vmem:[%s65 + $0xc] sm:$0xf]
        %v5100 = vld [vmem:[%s65 + $0x10] sm:$0xf]
        %v5101 = vld [vmem:[%s65 + $0x14] sm:$0xf]
        %v5102 = vld [vmem:[%s65 + $0x18] sm:$0xf]
        %v5103 = vld [vmem:[%s65 + $0x1c] sm:$0xf]
        %v5104 = vld [vmem:[%s65 + $0x20] sm:$0xf]
        %v5105 = vld [vmem:[%s65 + $0x24] sm:$0xf]
        %v5106 = vld [vmem:[%s65 + $0x28] sm:$0xf]
        %v5107 = vld [vmem:[%s65 + $0x2c] sm:$0xf]
        %v5108 = vld [vmem:[%s65 + $0x30] sm:$0xf]
        %v5109 = vld [vmem:[%s65 + $0x34] sm:$0xf]
        %v5110 = vld [vmem:[%s65 + $0x38] sm:$0xf]
        %v5111 = vld [vmem:[%s65 + $0x3c] sm:$0xf]
        %v5112 = vld [vmem:[#allocation23] sm:$0x1]
        %v5114 = vperm.slane %v5112, 0
        %v5132 = vunpack.c.l.b16 %v5096
        %v5133 = vunpack.c.l.b16 %v5097
        %v5134 = vunpack.c.l.b16 %v5098
        %v5135 = vunpack.c.l.b16 %v5099
        %v5136 = vunpack.c.l.b16 %v5100
        %v5137 = vunpack.c.l.b16 %v5101
        %v5138 = vunpack.c.l.b16 %v5102
        %v5139 = vunpack.c.l.b16 %v5103
        %v5140 = vunpack.c.l.b16 %v5104
        %v5141 = vunpack.c.l.b16 %v5105
        %v5142 = vunpack.c.l.b16 %v5106
        %v5143 = vunpack.c.l.b16 %v5107
        %v5144 = vunpack.c.l.b16 %v5108
        %v5145 = vunpack.c.l.b16 %v5109
        %v5146 = vunpack.c.l.b16 %v5110
        %v5147 = vunpack.c.l.b16 %v5111
        %v5148 = vpack.c.b16 %v5133, %v5132
        %v5149 = vpack.c.b16 %v5135, %v5134
        %v5150 = vpack.c.b16 %v5137, %v5136
        %v5151 = vpack.c.b16 %v5139, %v5138
        %v5152 = vpack.c.b16 %v5141, %v5140
        %v5153 = vpack.c.b16 %v5143, %v5142
        %v5154 = vpack.c.b16 %v5145, %v5144
        %v5155 = vpack.c.b16 %v5147, %v5146
        %5164 = vmatpush.bf16.msra.mxu0 %v5155
        %5165 = vmatpush.bf16.msra.mxu0 %v5154
        %5166 = vmatpush.bf16.msra.mxu0 %v5153
        %5167 = vmatpush.bf16.msra.mxu0 %v5152
        %5168 = vmatpush.bf16.msra.mxu0 %v5151
        %5169 = vmatpush.bf16.msra.mxu0 %v5150
        %5170 = vmatpush.bf16.msra.mxu0 %v5149
        %5171 = vmatpush.bf16.msra.mxu0 %v5148
        %5172 = vmatmul.bf16.gmra.mxu0 %v5095
        %v5173 = vpop.f32.mrf.mxu0
        %v5174 = vadd.f32 %v5114, %v5173
        %v5175 = vpop.f32.mrf.mxu0
        %5176 = vdwg.mxu0
        %v5177 = vadd.f32 %v5040, %v5174
        %v5178 = vsel %vm2856, %v5177, 0.0
        %5179 = vadd.xlane.f32.xlu0 %v5178
        %v5180 = vpop.xlane.xlu0 %5179
        %v5181 = vmul.f32 %v5180, %v3463
        %v5182 = vsub.f32 %v5177, %v5181
        %v5183 = vmul.f32 %v5182, %v5182
        %v5184 = vsel %vm2856, %v5183, 0.0
        %5185 = vadd.xlane.f32.xlu0 %v5184
        %v5186 = vpop.xlane.xlu0 %5185
        %v5187 = vmul.f32 %v5186, %v3463
        %v5188 = vadd.f32 %v5187, 1e-05
        %v5189 = vrsqrt.pop %v5188
        %v5190 = vmul.f32 %v5189, %v5188
        %v5191 = vmul.f32 %v5190, %v5189
        %v5192 = vmul.f32 0.5, %v5191
        %v5193 = vsub.f32 1.5, %v5192
        %v5194 = vmul.f32 %v5189, %v5193
        %vm5195 = vweird.f32 %v5188
        %vm5196 = vweird.f32 %v5189
        %vm5197 = vmor %vm5195, %vm5196
        %v5198 = vsel %vm5197, %v5189, %v5194
        %v5199 = vmul.f32 %v5182, %v5198
        %v5200 = vld [vmem:[#allocation25] sm:$0x1]
        %v5202 = vperm.slane %v5200, 0
        %v5204 = vmul.f32 %v5199, %v5202
        %v5205 = vld [vmem:[#allocation26] sm:$0x1]
        %v5207 = vperm.slane %v5205, 0
        %v5209 = vadd.f32 %v5204, %v5207
        %v5210 = vpack.c.bf16 %v5209, %v5209
        %v5212 = vsel %vm2856, %v5210, 0
        %5214 = vmatpush.bf16.xpose.msra.mxu0 0
        %5215 = vmatpush.bf16.xpose.msra.mxu0 0
        %5216 = vmatpush.bf16.xpose.msra.mxu0 0
        %5217 = vmatpush.bf16.xpose.msra.mxu0 0
        %5218 = vmatpush.bf16.xpose.msra.mxu0 0
        %5219 = vmatpush.bf16.xpose.msra.mxu0 0
        %5220 = vmatpush.bf16.xpose.msra.mxu0 0
        %5221 = vmatpush.bf16.xpose.msra.mxu0 %v4437
        %5222 = vmatmul.bf16.gmra.mxu0 %v5212
        %v5223 = vpop.f32.mrf.mxu0
        %v5224 = vadd.f32 0.0, %v5223
        %v5225 = vpop.f32.mrf.mxu0
        %5226 = vdwg.mxu0
        %v5227 = vmul.f32 %v5224, 0.125
        %v5228 = vadd.f32 %v5227, %v2915
        %v5229 = vsel %vm2893, %v5228, -inf
        %5230 = vmax.xlane.f32.xlu0 %v5229
        %v5231 = vpop.xlane.xlu0 %5230
        %v5232 = vsub.f32 %v5228, %v5231
        %v5233 = vmul.f32 %v5232, 1.442695
        %v5234 = vpow.pop %v5233
        %v5235 = vsel %vm2893, %v5234, 0.0
        %5236 = vadd.xlane.f32.xlu0 %v5235
        %v5237 = vpop.xlane.xlu0 %5236
        %v5238 = vrcp.pop %v5237
        %v5239 = vmul.f32 %v5237, %v5238
        %v5240 = vsub.f32 1.0, %v5239
        %v5241 = vmul.f32 %v5238, %v5240
        %v5242 = vadd.f32 %v5238, %v5241
        %vm5243 = vweird.f32 %v5237
        %vm5244 = vweird.f32 %v5238
        %vm5245 = vmor %vm5243, %vm5244
        %v5246 = vsel %vm5245, %v5238, %v5242
        %v5247 = vand.u32 2147483647, %v5237
        %vm5248 = vcmp.eq.f32.partialorder %v5247, 8.507059e+37
        %v5249 = vand.u32 %v5237, 2147483648
        %v5250 = vor.u32 1.1754944e-38, %v5249
        %v5251 = vsel %vm5248, %v5250, %v5246
        %v5252 = vmul.f32 %v5234, %v5251
        %v5253 = vpack.c.bf16 %v5252, %v5252
        %v5255 = vsel %vm2893, %v5253, 0
        %v5257 = vsel %vm2933, %v4391, 0
        %5259 = vmatpush.bf16.msra.mxu0 0
        %5260 = vmatpush.bf16.msra.mxu0 0
        %5261 = vmatpush.bf16.msra.mxu0 0
        %5262 = vmatpush.bf16.msra.mxu0 0
        %5263 = vmatpush.bf16.msra.mxu0 0
        %5264 = vmatpush.bf16.msra.mxu0 0
        %5265 = vmatpush.bf16.msra.mxu0 0
        %5266 = vmatpush.bf16.msra.mxu0 %v5257
        %5267 = vmatmul.bf16.gmra.mxu0 %v5255
        %v5268 = vpop.f32.mrf.mxu0
        %v5269 = vadd.f32 0.0, %v5268
        %v5270 = vpop.f32.mrf.mxu0
        %5271 = vdwg.mxu0
        %v5272 = vpack.c.bf16 %v5269, %v5269
        %v5273 = vld [vmem:[%s73] sm:$0xf]
        %v5274 = vld [vmem:[%s73 + $0x4] sm:$0xf]
        %v5275 = vld [vmem:[%s73 + $0x8] sm:$0xf]
        %v5276 = vld [vmem:[%s73 + $0xc] sm:$0xf]
        %v5277 = vld [vmem:[%s73 + $0x10] sm:$0xf]
        %v5278 = vld [vmem:[%s73 + $0x14] sm:$0xf]
        %v5279 = vld [vmem:[%s73 + $0x18] sm:$0xf]
        %v5280 = vld [vmem:[%s73 + $0x1c] sm:$0xf]
        %v5281 = vld [vmem:[#allocation28] sm:$0x1]
        %v5283 = vperm.slane %v5281, 0
        %v5293 = vunpack.c.l.b16 %v5273
        %v5294 = vunpack.c.l.b16 %v5274
        %v5295 = vunpack.c.l.b16 %v5275
        %v5296 = vunpack.c.l.b16 %v5276
        %v5297 = vunpack.c.l.b16 %v5277
        %v5298 = vunpack.c.l.b16 %v5278
        %v5299 = vunpack.c.l.b16 %v5279
        %v5300 = vunpack.c.l.b16 %v5280
        %v5301 = vpack.c.b16 %v5294, %v5293
        %v5302 = vpack.c.b16 %v5296, %v5295
        %v5303 = vpack.c.b16 %v5298, %v5297
        %v5304 = vpack.c.b16 %v5300, %v5299
        %v5310 = vsel %vm2856, %v5272, 0
        %5312 = vmatpush.bf16.msra.mxu0 0
        %5313 = vmatpush.bf16.msra.mxu0 0
        %5314 = vmatpush.bf16.msra.mxu0 0
        %5315 = vmatpush.bf16.msra.mxu0 0
        %5316 = vmatpush.bf16.msra.mxu0 %v5304
        %5317 = vmatpush.bf16.msra.mxu0 %v5303
        %5318 = vmatpush.bf16.msra.mxu0 %v5302
        %5319 = vmatpush.bf16.msra.mxu0 %v5301
        %5320 = vmatmul.bf16.gmra.mxu0 %v5310
        %v5321 = vpop.f32.mrf.mxu0
        %v5322 = vadd.f32 %v5283, %v5321
        %v5323 = vpop.f32.mrf.mxu0
        %5324 = vdwg.mxu0
        %v5325 = vmax.f32 %v5322, 0.0
        %v5326 = vpack.c.bf16 %v5325, %v5325
        %v5327 = vld [vmem:[%s77] sm:$0xf]
        %v5328 = vld [vmem:[%s77 + $0x4] sm:$0xf]
        %v5329 = vld [vmem:[%s77 + $0x8] sm:$0xf]
        %v5330 = vld [vmem:[%s77 + $0xc] sm:$0xf]
        %v5331 = vld [vmem:[%s77 + $0x10] sm:$0xf]
        %v5332 = vld [vmem:[%s77 + $0x14] sm:$0xf]
        %v5333 = vld [vmem:[%s77 + $0x18] sm:$0xf]
        %v5334 = vld [vmem:[%s77 + $0x1c] sm:$0xf]
        %v5335 = vld [vmem:[%s77 + $0x20] sm:$0xf]
        %v5336 = vld [vmem:[%s77 + $0x24] sm:$0xf]
        %v5337 = vld [vmem:[%s77 + $0x28] sm:$0xf]
        %v5338 = vld [vmem:[%s77 + $0x2c] sm:$0xf]
        %v5339 = vld [vmem:[%s77 + $0x30] sm:$0xf]
        %v5340 = vld [vmem:[%s77 + $0x34] sm:$0xf]
        %v5341 = vld [vmem:[%s77 + $0x38] sm:$0xf]
        %v5342 = vld [vmem:[%s77 + $0x3c] sm:$0xf]
        %v5343 = vld [vmem:[#allocation2] sm:$0x1]
        %v5345 = vperm.slane %v5343, 0
        %v5363 = vunpack.c.l.b16 %v5327
        %v5364 = vunpack.c.l.b16 %v5328
        %v5365 = vunpack.c.l.b16 %v5329
        %v5366 = vunpack.c.l.b16 %v5330
        %v5367 = vunpack.c.l.b16 %v5331
        %v5368 = vunpack.c.l.b16 %v5332
        %v5369 = vunpack.c.l.b16 %v5333
        %v5370 = vunpack.c.l.b16 %v5334
        %v5371 = vunpack.c.l.b16 %v5335
        %v5372 = vunpack.c.l.b16 %v5336
        %v5373 = vunpack.c.l.b16 %v5337
        %v5374 = vunpack.c.l.b16 %v5338
        %v5375 = vunpack.c.l.b16 %v5339
        %v5376 = vunpack.c.l.b16 %v5340
        %v5377 = vunpack.c.l.b16 %v5341
        %v5378 = vunpack.c.l.b16 %v5342
        %v5379 = vpack.c.b16 %v5364, %v5363
        %v5380 = vpack.c.b16 %v5366, %v5365
        %v5381 = vpack.c.b16 %v5368, %v5367
        %v5382 = vpack.c.b16 %v5370, %v5369
        %v5383 = vpack.c.b16 %v5372, %v5371
        %v5384 = vpack.c.b16 %v5374, %v5373
        %v5385 = vpack.c.b16 %v5376, %v5375
        %v5386 = vpack.c.b16 %v5378, %v5377
        %5395 = vmatpush.bf16.msra.mxu0 %v5386
        %5396 = vmatpush.bf16.msra.mxu0 %v5385
        %5397 = vmatpush.bf16.msra.mxu0 %v5384
        %5398 = vmatpush.bf16.msra.mxu0 %v5383
        %5399 = vmatpush.bf16.msra.mxu0 %v5382
        %5400 = vmatpush.bf16.msra.mxu0 %v5381
        %5401 = vmatpush.bf16.msra.mxu0 %v5380
        %5402 = vmatpush.bf16.msra.mxu0 %v5379
        %5403 = vmatmul.bf16.gmra.mxu0 %v5326
        %v5404 = vpop.f32.mrf.mxu0
        %v5405 = vadd.f32 %v5345, %v5404
        %v5406 = vpop.f32.mrf.mxu0
        %5407 = vdwg.mxu0
        %v5408 = vadd.f32 %v5405, %v2797
        %vm5409 = vcmask 7168
        %v5410 = vsel %vm5409, %v5408, -inf
        %v5411 = vrot.slane %v5410, 4
        %v5412 = vmax.f32 %v5410, %v5411
        %v5413 = vrot.slane %v5412, 2
        %v5414 = vmax.f32 %v5412, %v5413
        %v5415 = vrot.slane %v5414, 1
        %v5416 = vmax.f32 %v5414, %v5415
        %v5417 = vsub.f32 %v5408, %v5416
        %v5418 = vmul.f32 %v5417, 1.442695
        %v5419 = vpow.pop %v5418
        %v5420 = vsel %vm5409, %v5419, 0.0
        %v5421 = vrot.slane %v5420, 4
        %v5422 = vadd.f32 %v5420, %v5421
        %v5423 = vrot.slane %v5422, 2
        %v5424 = vadd.f32 %v5422, %v5423
        %v5425 = vrot.slane %v5424, 1
        %v5426 = vadd.f32 %v5424, %v5425
        %v5427 = vrcp.pop %v5426
        %v5428 = vmul.f32 %v5426, %v5427
        %v5429 = vsub.f32 1.0, %v5428
        %v5430 = vmul.f32 %v5427, %v5429
        %v5431 = vadd.f32 %v5427, %v5430
        %vm5432 = vweird.f32 %v5426
        %vm5433 = vweird.f32 %v5427
        %vm5434 = vmor %vm5432, %vm5433
        %v5435 = vsel %vm5434, %v5427, %v5431
        %v5436 = vand.u32 2147483647, %v5426
        %vm5437 = vcmp.eq.f32.partialorder %v5436, 8.507059e+37
        %v5438 = vand.u32 %v5426, 2147483648
        %v5439 = vor.u32 1.1754944e-38, %v5438
        %v5440 = vsel %vm5437, %v5439, %v5435
        %v5441 = vmul.f32 %v5419, %v5440
        %5443 = vset.pattern.permute.xlu0 0
        %5444 = vperm.xlu0 %5443, %v5441
        %v5445 = vpop.permute.xlu0 %5444
        %v5447 = vmul.f32 %v5445, %v5269
        %v5448 = vsel %vm2856, %v5447, 0.0
        %v5449 = vrot.slane %v5448, 4
        %v5450 = vadd.f32 %v5448, %v5449
        %v5451 = vrot.slane %v5450, 2
        %v5452 = vadd.f32 %v5450, %v5451
        %v5453 = vrot.slane %v5452, 1
        %v5454 = vadd.f32 %v5452, %v5453
        %v5455 = vpack.c.bf16 %v5454, %v5454
        %v5456 = vld [vmem:[%s81] sm:$0xf]
        %v5457 = vld [vmem:[%s81 + $0x4] sm:$0xf]
        %v5458 = vld [vmem:[%s81 + $0x8] sm:$0xf]
        %v5459 = vld [vmem:[%s81 + $0xc] sm:$0xf]
        %v5460 = vld [vmem:[%s81 + $0x10] sm:$0xf]
        %v5461 = vld [vmem:[%s81 + $0x14] sm:$0xf]
        %v5462 = vld [vmem:[%s81 + $0x18] sm:$0xf]
        %v5463 = vld [vmem:[%s81 + $0x1c] sm:$0xf]
        %v5464 = vld [vmem:[#allocation29] sm:$0x1]
        %v5473 = vunpack.c.l.b16 %v5456
        %v5474 = vunpack.c.l.b16 %v5457
        %v5475 = vunpack.c.l.b16 %v5458
        %v5476 = vunpack.c.l.b16 %v5459
        %v5477 = vunpack.c.l.b16 %v5460
        %v5478 = vunpack.c.l.b16 %v5461
        %v5479 = vunpack.c.l.b16 %v5462
        %v5480 = vunpack.c.l.b16 %v5463
        %v5481 = vpack.c.b16 %v5474, %v5473
        %v5482 = vpack.c.b16 %v5476, %v5475
        %v5483 = vpack.c.b16 %v5478, %v5477
        %v5484 = vpack.c.b16 %v5480, %v5479
        %v5490 = vsel %vm2856, %v5455, 0
        %5492 = vmatpush.bf16.msra.mxu0 0
        %5493 = vmatpush.bf16.msra.mxu0 0
        %5494 = vmatpush.bf16.msra.mxu0 0
        %5495 = vmatpush.bf16.msra.mxu0 0
        %5496 = vmatpush.bf16.msra.mxu0 %v5484
        %5497 = vmatpush.bf16.msra.mxu0 %v5483
        %5498 = vmatpush.bf16.msra.mxu0 %v5482
        %5499 = vmatpush.bf16.msra.mxu0 %v5481
        %5500 = vmatmul.bf16.gmra.mxu0 %v5490
        %v5501 = vpop.f32.mrf.mxu0
        %v5502 = vadd.f32 %v5464, %v5501
        %v5503 = vpop.f32.mrf.mxu0
        %5504 = vdwg.mxu0
        %5505 = vmatpush.bf16.xpose.msra.mxu0 0
        %5506 = vmatpush.bf16.xpose.msra.mxu0 0
        %5507 = vmatpush.bf16.xpose.msra.mxu0 0
        %5508 = vmatpush.bf16.xpose.msra.mxu0 0
        %5509 = vmatpush.bf16.xpose.msra.mxu0 0
        %5510 = vmatpush.bf16.xpose.msra.mxu0 0
        %5511 = vmatpush.bf16.xpose.msra.mxu0 0
        %5512 = vmatpush.bf16.xpose.msra.mxu0 %v5212
        %5513 = vmatmul.bf16.gmra.mxu0 %v4437
        %v5514 = vpop.f32.mrf.mxu0
        %v5515 = vadd.f32 0.0, %v5514
        %v5516 = vpop.f32.mrf.mxu0
        %5517 = vdwg.mxu0
        %v5518 = vmul.f32 %v5515, 0.125
        %v5519 = vadd.f32 %v5518, %v3774
        %v5520 = vsel %vm2893, %v5519, -inf
        %5521 = vmax.xlane.f32.xlu0 %v5520
        %v5522 = vpop.xlane.xlu0 %5521
        %v5523 = vsub.f32 %v5519, %v5522
        %v5524 = vmul.f32 %v5523, 1.442695
        %v5525 = vpow.pop %v5524
        %v5526 = vsel %vm2893, %v5525, 0.0
        %5527 = vadd.xlane.f32.xlu0 %v5526
        %v5528 = vpop.xlane.xlu0 %5527
        %v5529 = vrcp.pop %v5528
        %v5530 = vmul.f32 %v5528, %v5529
        %v5531 = vsub.f32 1.0, %v5530
        %v5532 = vmul.f32 %v5529, %v5531
        %v5533 = vadd.f32 %v5529, %v5532
        %vm5534 = vweird.f32 %v5528
        %vm5535 = vweird.f32 %v5529
        %vm5536 = vmor %vm5534, %vm5535
        %v5537 = vsel %vm5536, %v5529, %v5533
        %v5538 = vand.u32 2147483647, %v5528
        %vm5539 = vcmp.eq.f32.partialorder %v5538, 8.507059e+37
        %v5540 = vand.u32 %v5528, 2147483648
        %v5541 = vor.u32 1.1754944e-38, %v5540
        %v5542 = vsel %vm5539, %v5541, %v5537
        %v5543 = vmul.f32 %v5525, %v5542
        %v5544 = vpack.c.bf16 %v5543, %v5543
        %v5546 = vsel %vm2893, %v5544, 0
        %v5548 = vsel %vm2933, %v5210, 0
        %5550 = vmatpush.bf16.msra.mxu0 0
        %5551 = vmatpush.bf16.msra.mxu0 0
        %5552 = vmatpush.bf16.msra.mxu0 0
        %5553 = vmatpush.bf16.msra.mxu0 0
        %5554 = vmatpush.bf16.msra.mxu0 0
        %5555 = vmatpush.bf16.msra.mxu0 0
        %5556 = vmatpush.bf16.msra.mxu0 0
        %5557 = vmatpush.bf16.msra.mxu0 %v5548
        %5558 = vmatmul.bf16.gmra.mxu0 %v5546
        %v5559 = vpop.f32.mrf.mxu0
        %v5560 = vadd.f32 0.0, %v5559
        %v5561 = vpop.f32.mrf.mxu0
        %5562 = vdwg.mxu0
        %v5563 = vpack.c.bf16 %v5560, %v5560
        %v5564 = vld [vmem:[%s85] sm:$0xf]
        %v5565 = vld [vmem:[%s85 + $0x4] sm:$0xf]
        %v5566 = vld [vmem:[%s85 + $0x8] sm:$0xf]
        %v5567 = vld [vmem:[%s85 + $0xc] sm:$0xf]
        %v5568 = vld [vmem:[%s85 + $0x10] sm:$0xf]
        %v5569 = vld [vmem:[%s85 + $0x14] sm:$0xf]
        %v5570 = vld [vmem:[%s85 + $0x18] sm:$0xf]
        %v5571 = vld [vmem:[%s85 + $0x1c] sm:$0xf]
        %v5572 = vld [vmem:[#allocation31] sm:$0x1]
        %v5574 = vperm.slane %v5572, 0
        %v5584 = vunpack.c.l.b16 %v5564
        %v5585 = vunpack.c.l.b16 %v5565
        %v5586 = vunpack.c.l.b16 %v5566
        %v5587 = vunpack.c.l.b16 %v5567
        %v5588 = vunpack.c.l.b16 %v5568
        %v5589 = vunpack.c.l.b16 %v5569
        %v5590 = vunpack.c.l.b16 %v5570
        %v5591 = vunpack.c.l.b16 %v5571
        %v5592 = vpack.c.b16 %v5585, %v5584
        %v5593 = vpack.c.b16 %v5587, %v5586
        %v5594 = vpack.c.b16 %v5589, %v5588
        %v5595 = vpack.c.b16 %v5591, %v5590
        %v5601 = vsel %vm2856, %v5563, 0
        %5603 = vmatpush.bf16.msra.mxu0 0
        %5604 = vmatpush.bf16.msra.mxu0 0
        %5605 = vmatpush.bf16.msra.mxu0 0
        %5606 = vmatpush.bf16.msra.mxu0 0
        %5607 = vmatpush.bf16.msra.mxu0 %v5595
        %5608 = vmatpush.bf16.msra.mxu0 %v5594
        %5609 = vmatpush.bf16.msra.mxu0 %v5593
        %5610 = vmatpush.bf16.msra.mxu0 %v5592
        %5611 = vmatmul.bf16.gmra.mxu0 %v5601
        %v5612 = vpop.f32.mrf.mxu0
        %v5613 = vadd.f32 %v5574, %v5612
        %v5614 = vpop.f32.mrf.mxu0
        %5615 = vdwg.mxu0
        %v5616 = vmax.f32 %v5613, 0.0
        %v5617 = vpack.c.bf16 %v5616, %v5616
        %v5618 = vld [vmem:[%s89] sm:$0xf]
        %v5619 = vld [vmem:[%s89 + $0x4] sm:$0xf]
        %v5620 = vld [vmem:[%s89 + $0x8] sm:$0xf]
        %v5621 = vld [vmem:[%s89 + $0xc] sm:$0xf]
        %v5622 = vld [vmem:[%s89 + $0x10] sm:$0xf]
        %v5623 = vld [vmem:[%s89 + $0x14] sm:$0xf]
        %v5624 = vld [vmem:[%s89 + $0x18] sm:$0xf]
        %v5625 = vld [vmem:[%s89 + $0x1c] sm:$0xf]
        %v5626 = vld [vmem:[%s89 + $0x20] sm:$0xf]
        %v5627 = vld [vmem:[%s89 + $0x24] sm:$0xf]
        %v5628 = vld [vmem:[%s89 + $0x28] sm:$0xf]
        %v5629 = vld [vmem:[%s89 + $0x2c] sm:$0xf]
        %v5630 = vld [vmem:[%s89 + $0x30] sm:$0xf]
        %v5631 = vld [vmem:[%s89 + $0x34] sm:$0xf]
        %v5632 = vld [vmem:[%s89 + $0x38] sm:$0xf]
        %v5633 = vld [vmem:[%s89 + $0x3c] sm:$0xf]
        %v5634 = vld [vmem:[#allocation3] sm:$0x1]
        %v5636 = vperm.slane %v5634, 0
        %v5654 = vunpack.c.l.b16 %v5618
        %v5655 = vunpack.c.l.b16 %v5619
        %v5656 = vunpack.c.l.b16 %v5620
        %v5657 = vunpack.c.l.b16 %v5621
        %v5658 = vunpack.c.l.b16 %v5622
        %v5659 = vunpack.c.l.b16 %v5623
        %v5660 = vunpack.c.l.b16 %v5624
        %v5661 = vunpack.c.l.b16 %v5625
        %v5662 = vunpack.c.l.b16 %v5626
        %v5663 = vunpack.c.l.b16 %v5627
        %v5664 = vunpack.c.l.b16 %v5628
        %v5665 = vunpack.c.l.b16 %v5629
        %v5666 = vunpack.c.l.b16 %v5630
        %v5667 = vunpack.c.l.b16 %v5631
        %v5668 = vunpack.c.l.b16 %v5632
        %v5669 = vunpack.c.l.b16 %v5633
        %v5670 = vpack.c.b16 %v5655, %v5654
        %v5671 = vpack.c.b16 %v5657, %v5656
        %v5672 = vpack.c.b16 %v5659, %v5658
        %v5673 = vpack.c.b16 %v5661, %v5660
        %v5674 = vpack.c.b16 %v5663, %v5662
        %v5675 = vpack.c.b16 %v5665, %v5664
        %v5676 = vpack.c.b16 %v5667, %v5666
        %v5677 = vpack.c.b16 %v5669, %v5668
        %5686 = vmatpush.bf16.msra.mxu0 %v5677
        %5687 = vmatpush.bf16.msra.mxu0 %v5676
        %5688 = vmatpush.bf16.msra.mxu0 %v5675
        %5689 = vmatpush.bf16.msra.mxu0 %v5674
        %5690 = vmatpush.bf16.msra.mxu0 %v5673
        %5691 = vmatpush.bf16.msra.mxu0 %v5672
        %5692 = vmatpush.bf16.msra.mxu0 %v5671
        %5693 = vmatpush.bf16.msra.mxu0 %v5670
        %5694 = vmatmul.bf16.gmra.mxu0 %v5617
        %v5695 = vpop.f32.mrf.mxu0
        %v5696 = vadd.f32 %v5636, %v5695
        %v5697 = vpop.f32.mrf.mxu0
        %5698 = vdwg.mxu0
        %v5699 = vadd.f32 %v5696, %v2800
        %v5700 = vsel %vm5409, %v5699, -inf
        %v5701 = vrot.slane %v5700, 4
        %v5702 = vmax.f32 %v5700, %v5701
        %v5703 = vrot.slane %v5702, 2
        %v5704 = vmax.f32 %v5702, %v5703
        %v5705 = vrot.slane %v5704, 1
        %v5706 = vmax.f32 %v5704, %v5705
        %v5707 = vsub.f32 %v5699, %v5706
        %v5708 = vmul.f32 %v5707, 1.442695
        %v5709 = vpow.pop %v5708
        %v5710 = vsel %vm5409, %v5709, 0.0
        %v5711 = vrot.slane %v5710, 4
        %v5712 = vadd.f32 %v5710, %v5711
        %v5713 = vrot.slane %v5712, 2
        %v5714 = vadd.f32 %v5712, %v5713
        %v5715 = vrot.slane %v5714, 1
        %v5716 = vadd.f32 %v5714, %v5715
        %v5717 = vrcp.pop %v5716
        %v5718 = vmul.f32 %v5716, %v5717
        %v5719 = vsub.f32 1.0, %v5718
        %v5720 = vmul.f32 %v5717, %v5719
        %v5721 = vadd.f32 %v5717, %v5720
        %vm5722 = vweird.f32 %v5716
        %vm5723 = vweird.f32 %v5717
        %vm5724 = vmor %vm5722, %vm5723
        %v5725 = vsel %vm5724, %v5717, %v5721
        %v5726 = vand.u32 2147483647, %v5716
        %vm5727 = vcmp.eq.f32.partialorder %v5726, 8.507059e+37
        %v5728 = vand.u32 %v5716, 2147483648
        %v5729 = vor.u32 1.1754944e-38, %v5728
        %v5730 = vsel %vm5727, %v5729, %v5725
        %v5731 = vmul.f32 %v5709, %v5730
        %5733 = vset.pattern.permute.xlu0 0
        %5734 = vperm.xlu0 %5733, %v5731
        %v5735 = vpop.permute.xlu0 %5734
        %v5737 = vmul.f32 %v5735, %v5560
        %v5738 = vsel %vm2856, %v5737, 0.0
        %v5739 = vrot.slane %v5738, 4
        %v5740 = vadd.f32 %v5738, %v5739
        %v5741 = vrot.slane %v5740, 2
        %v5742 = vadd.f32 %v5740, %v5741
        %v5743 = vrot.slane %v5742, 1
        %v5744 = vadd.f32 %v5742, %v5743
        %v5745 = vpack.c.bf16 %v5744, %v5744
        %v5746 = vld [vmem:[%s93] sm:$0xf]
        %v5747 = vld [vmem:[%s93 + $0x4] sm:$0xf]
        %v5748 = vld [vmem:[%s93 + $0x8] sm:$0xf]
        %v5749 = vld [vmem:[%s93 + $0xc] sm:$0xf]
        %v5750 = vld [vmem:[%s93 + $0x10] sm:$0xf]
        %v5751 = vld [vmem:[%s93 + $0x14] sm:$0xf]
        %v5752 = vld [vmem:[%s93 + $0x18] sm:$0xf]
        %v5753 = vld [vmem:[%s93 + $0x1c] sm:$0xf]
        %v5754 = vld [vmem:[#allocation32] sm:$0x1]
        %v5763 = vunpack.c.l.b16 %v5746
        %v5764 = vunpack.c.l.b16 %v5747
        %v5765 = vunpack.c.l.b16 %v5748
        %v5766 = vunpack.c.l.b16 %v5749
        %v5767 = vunpack.c.l.b16 %v5750
        %v5768 = vunpack.c.l.b16 %v5751
        %v5769 = vunpack.c.l.b16 %v5752
        %v5770 = vunpack.c.l.b16 %v5753
        %v5771 = vpack.c.b16 %v5764, %v5763
        %v5772 = vpack.c.b16 %v5766, %v5765
        %v5773 = vpack.c.b16 %v5768, %v5767
        %v5774 = vpack.c.b16 %v5770, %v5769
        %v5780 = vsel %vm2856, %v5745, 0
        %5782 = vmatpush.bf16.msra.mxu0 0
        %5783 = vmatpush.bf16.msra.mxu0 0
        %5784 = vmatpush.bf16.msra.mxu0 0
        %5785 = vmatpush.bf16.msra.mxu0 0
        %5786 = vmatpush.bf16.msra.mxu0 %v5774
        %5787 = vmatpush.bf16.msra.mxu0 %v5773
        %5788 = vmatpush.bf16.msra.mxu0 %v5772
        %5789 = vmatpush.bf16.msra.mxu0 %v5771
        %5790 = vmatmul.bf16.gmra.mxu0 %v5780
        %v5791 = vpop.f32.mrf.mxu0
        %v5792 = vadd.f32 %v5754, %v5791
        %v5793 = vpop.f32.mrf.mxu0
        %5794 = vdwg.mxu0
        %v5795 = vpack.c.bf16 %v5792, %v5792
        %v5796 = vld [vmem:[%s97] sm:$0xf]
        %v5797 = vld [vmem:[%s97 + $0x4] sm:$0xf]
        %v5798 = vld [vmem:[%s97 + $0x8] sm:$0xf]
        %v5799 = vld [vmem:[%s97 + $0xc] sm:$0xf]
        %v5800 = vld [vmem:[%s97 + $0x10] sm:$0xf]
        %v5801 = vld [vmem:[%s97 + $0x14] sm:$0xf]
        %v5802 = vld [vmem:[%s97 + $0x18] sm:$0xf]
        %v5803 = vld [vmem:[%s97 + $0x1c] sm:$0xf]
        %v5804 = vpack.c.bf16 %v5502, %v5502
        %v5805 = vld [vmem:[%s99] sm:$0xf]
        %v5806 = vld [vmem:[%s99 + $0x4] sm:$0xf]
        %v5807 = vld [vmem:[%s99 + $0x8] sm:$0xf]
        %v5808 = vld [vmem:[%s99 + $0xc] sm:$0xf]
        %v5809 = vld [vmem:[%s99 + $0x10] sm:$0xf]
        %v5810 = vld [vmem:[%s99 + $0x14] sm:$0xf]
        %v5811 = vld [vmem:[%s99 + $0x18] sm:$0xf]
        %v5812 = vld [vmem:[%s99 + $0x1c] sm:$0xf]
        %v5821 = vunpack.c.l.b16 %v5805
        %v5822 = vunpack.c.l.b16 %v5806
        %v5823 = vunpack.c.l.b16 %v5807
        %v5824 = vunpack.c.l.b16 %v5808
        %v5825 = vunpack.c.l.b16 %v5809
        %v5826 = vunpack.c.l.b16 %v5810
        %v5827 = vunpack.c.l.b16 %v5811
        %v5828 = vunpack.c.l.b16 %v5812
        %v5829 = vpack.c.b16 %v5822, %v5821
        %v5830 = vpack.c.b16 %v5824, %v5823
        %v5831 = vpack.c.b16 %v5826, %v5825
        %v5832 = vpack.c.b16 %v5828, %v5827
        %v5838 = vsel %vm2856, %v5804, 0
        %5840 = vmatpush.bf16.msra.mxu0 0
        %5841 = vmatpush.bf16.msra.mxu0 0
        %5842 = vmatpush.bf16.msra.mxu0 0
        %5843 = vmatpush.bf16.msra.mxu0 0
        %5844 = vmatpush.bf16.msra.mxu0 %v5832
        %5845 = vmatpush.bf16.msra.mxu0 %v5831
        %5846 = vmatpush.bf16.msra.mxu0 %v5830
        %5847 = vmatpush.bf16.msra.mxu0 %v5829
        %5848 = vmatmul.bf16.gmra.mxu0 %v5838
        %v5849 = vpop.f32.mrf.mxu0
        %v5850 = vadd.f32 0.0, %v5849
        %v5851 = vpop.f32.mrf.mxu0
        %5852 = vdwg.mxu0
        %v5861 = vunpack.c.l.b16 %v5796
        %v5862 = vunpack.c.l.b16 %v5797
        %v5863 = vunpack.c.l.b16 %v5798
        %v5864 = vunpack.c.l.b16 %v5799
        %v5865 = vunpack.c.l.b16 %v5800
        %v5866 = vunpack.c.l.b16 %v5801
        %v5867 = vunpack.c.l.b16 %v5802
        %v5868 = vunpack.c.l.b16 %v5803
        %v5869 = vpack.c.b16 %v5862, %v5861
        %v5870 = vpack.c.b16 %v5864, %v5863
        %v5871 = vpack.c.b16 %v5866, %v5865
        %v5872 = vpack.c.b16 %v5868, %v5867
        %v5878 = vsel %vm2856, %v5795, 0
        %5880 = vmatpush.bf16.msra.mxu0 0
        %5881 = vmatpush.bf16.msra.mxu0 0
        %5882 = vmatpush.bf16.msra.mxu0 0
        %5883 = vmatpush.bf16.msra.mxu0 0
        %5884 = vmatpush.bf16.msra.mxu0 %v5872
        %5885 = vmatpush.bf16.msra.mxu0 %v5871
        %5886 = vmatpush.bf16.msra.mxu0 %v5870
        %5887 = vmatpush.bf16.msra.mxu0 %v5869
        %5888 = vmatmul.bf16.gmra.mxu0 %v5878
        %v5889 = vpop.f32.mrf.mxu0
        %v5890 = vadd.f32 %v5850, %v5889
        %v5891 = vpop.f32.mrf.mxu0
        %5892 = vdwg.mxu0
        %v5893 = vld [vmem:[%s101] sm:$0x1]
        %v5894 = vadd.f32 %v5890, %v5893
        %v5895 = vld [vmem:[%s103] sm:$0xf]
        %v5896 = vld [vmem:[%s103 + $0x4] sm:$0xf]
        %v5897 = vld [vmem:[%s103 + $0x8] sm:$0xf]
        %v5898 = vld [vmem:[%s103 + $0xc] sm:$0xf]
        %v5899 = vld [vmem:[%s103 + $0x10] sm:$0xf]
        %v5900 = vld [vmem:[%s103 + $0x14] sm:$0xf]
        %v5901 = vld [vmem:[%s103 + $0x18] sm:$0xf]
        %v5902 = vld [vmem:[%s103 + $0x1c] sm:$0xf]
        %v5903 = vld [vmem:[#allocation34] sm:$0x1]
        %v5905 = vperm.slane %v5903, 0
        %v5915 = vunpack.c.l.b16 %v5895
        %v5916 = vunpack.c.l.b16 %v5896
        %v5917 = vunpack.c.l.b16 %v5897
        %v5918 = vunpack.c.l.b16 %v5898
        %v5919 = vunpack.c.l.b16 %v5899
        %v5920 = vunpack.c.l.b16 %v5900
        %v5921 = vunpack.c.l.b16 %v5901
        %v5922 = vunpack.c.l.b16 %v5902
        %v5923 = vpack.c.b16 %v5916, %v5915
        %v5924 = vpack.c.b16 %v5918, %v5917
        %v5925 = vpack.c.b16 %v5920, %v5919
        %v5926 = vpack.c.b16 %v5922, %v5921
        %5931 = vmatpush.bf16.msra.mxu0 0
        %5932 = vmatpush.bf16.msra.mxu0 0
        %5933 = vmatpush.bf16.msra.mxu0 0
        %5934 = vmatpush.bf16.msra.mxu0 0
        %5935 = vmatpush.bf16.msra.mxu0 %v5926
        %5936 = vmatpush.bf16.msra.mxu0 %v5925
        %5937 = vmatpush.bf16.msra.mxu0 %v5924
        %5938 = vmatpush.bf16.msra.mxu0 %v5923
        %5939 = vmatmul.bf16.gmra.mxu0 %v4437
        %v5940 = vpop.f32.mrf.mxu0
        %v5941 = vadd.f32 %v5905, %v5940
        %v5942 = vpop.f32.mrf.mxu0
        %5943 = vdwg.mxu0
        %v5944 = vmax.f32 %v5941, 0.0
        %v5945 = vpack.c.bf16 %v5944, %v5944
        %v5946 = vld [vmem:[%s107] sm:$0xf]
        %v5947 = vld [vmem:[%s107 + $0x4] sm:$0xf]
        %v5948 = vld [vmem:[%s107 + $0x8] sm:$0xf]
        %v5949 = vld [vmem:[%s107 + $0xc] sm:$0xf]
        %v5950 = vld [vmem:[%s107 + $0x10] sm:$0xf]
        %v5951 = vld [vmem:[%s107 + $0x14] sm:$0xf]
        %v5952 = vld [vmem:[%s107 + $0x18] sm:$0xf]
        %v5953 = vld [vmem:[%s107 + $0x1c] sm:$0xf]
        %v5954 = vld [vmem:[%s107 + $0x20] sm:$0xf]
        %v5955 = vld [vmem:[%s107 + $0x24] sm:$0xf]
        %v5956 = vld [vmem:[%s107 + $0x28] sm:$0xf]
        %v5957 = vld [vmem:[%s107 + $0x2c] sm:$0xf]
        %v5958 = vld [vmem:[%s107 + $0x30] sm:$0xf]
        %v5959 = vld [vmem:[%s107 + $0x34] sm:$0xf]
        %v5960 = vld [vmem:[%s107 + $0x38] sm:$0xf]
        %v5961 = vld [vmem:[%s107 + $0x3c] sm:$0xf]
        %v5962 = vld [vmem:[#allocation4] sm:$0x1]
        %v5964 = vperm.slane %v5962, 0
        %v5982 = vunpack.c.l.b16 %v5946
        %v5983 = vunpack.c.l.b16 %v5947
        %v5984 = vunpack.c.l.b16 %v5948
        %v5985 = vunpack.c.l.b16 %v5949
        %v5986 = vunpack.c.l.b16 %v5950
        %v5987 = vunpack.c.l.b16 %v5951
        %v5988 = vunpack.c.l.b16 %v5952
        %v5989 = vunpack.c.l.b16 %v5953
        %v5990 = vunpack.c.l.b16 %v5954
        %v5991 = vunpack.c.l.b16 %v5955
        %v5992 = vunpack.c.l.b16 %v5956
        %v5993 = vunpack.c.l.b16 %v5957
        %v5994 = vunpack.c.l.b16 %v5958
        %v5995 = vunpack.c.l.b16 %v5959
        %v5996 = vunpack.c.l.b16 %v5960
        %v5997 = vunpack.c.l.b16 %v5961
        %v5998 = vpack.c.b16 %v5983, %v5982
        %v5999 = vpack.c.b16 %v5985, %v5984
        %v6000 = vpack.c.b16 %v5987, %v5986
        %v6001 = vpack.c.b16 %v5989, %v5988
        %v6002 = vpack.c.b16 %v5991, %v5990
        %v6003 = vpack.c.b16 %v5993, %v5992
        %v6004 = vpack.c.b16 %v5995, %v5994
        %v6005 = vpack.c.b16 %v5997, %v5996
        %6014 = vmatpush.bf16.msra.mxu0 %v6005
        %6015 = vmatpush.bf16.msra.mxu0 %v6004
        %6016 = vmatpush.bf16.msra.mxu0 %v6003
        %6017 = vmatpush.bf16.msra.mxu0 %v6002
        %6018 = vmatpush.bf16.msra.mxu0 %v6001
        %6019 = vmatpush.bf16.msra.mxu0 %v6000
        %6020 = vmatpush.bf16.msra.mxu0 %v5999
        %6021 = vmatpush.bf16.msra.mxu0 %v5998
        %6022 = vmatmul.bf16.gmra.mxu0 %v5945
        %v6023 = vpop.f32.mrf.mxu0
        %v6024 = vadd.f32 %v5964, %v6023
        %v6025 = vpop.f32.mrf.mxu0
        %6026 = vdwg.mxu0
        %v6027 = vadd.f32 %v6024, %v2800
        %v6028 = vsel %vm5409, %v6027, -inf
        %v6029 = vrot.slane %v6028, 4
        %v6030 = vmax.f32 %v6028, %v6029
        %v6031 = vrot.slane %v6030, 2
        %v6032 = vmax.f32 %v6030, %v6031
        %v6033 = vrot.slane %v6032, 1
        %v6034 = vmax.f32 %v6032, %v6033
        %v6035 = vsub.f32 %v6027, %v6034
        %v6036 = vmul.f32 %v6035, 1.442695
        %v6037 = vpow.pop %v6036
        %v6038 = vsel %vm5409, %v6037, 0.0
        %v6039 = vrot.slane %v6038, 4
        %v6040 = vadd.f32 %v6038, %v6039
        %v6041 = vrot.slane %v6040, 2
        %v6042 = vadd.f32 %v6040, %v6041
        %v6043 = vrot.slane %v6042, 1
        %v6044 = vadd.f32 %v6042, %v6043
        %v6045 = vrcp.pop %v6044
        %v6046 = vmul.f32 %v6044, %v6045
        %v6047 = vsub.f32 1.0, %v6046
        %v6048 = vmul.f32 %v6045, %v6047
        %v6049 = vadd.f32 %v6045, %v6048
        %vm6050 = vweird.f32 %v6044
        %vm6051 = vweird.f32 %v6045
        %vm6052 = vmor %vm6050, %vm6051
        %v6053 = vsel %vm6052, %v6045, %v6049
        %v6054 = vand.u32 2147483647, %v6044
        %vm6055 = vcmp.eq.f32.partialorder %v6054, 8.507059e+37
        %v6056 = vand.u32 %v6044, 2147483648
        %v6057 = vor.u32 1.1754944e-38, %v6056
        %v6058 = vsel %vm6055, %v6057, %v6053
        %v6059 = vmul.f32 %v6037, %v6058
        %6061 = vset.pattern.permute.xlu0 0
        %6062 = vperm.xlu0 %6061, %v6059
        %v6063 = vpop.permute.xlu0 %6062
        %v6065 = vmul.f32 %v6063, %v3661
        %v6066 = vsel %vm2856, %v6065, 0.0
        %v6067 = vrot.slane %v6066, 4
        %v6068 = vadd.f32 %v6066, %v6067
        %v6069 = vrot.slane %v6068, 2
        %v6070 = vadd.f32 %v6068, %v6069
        %v6071 = vrot.slane %v6070, 1
        %v6072 = vadd.f32 %v6070, %v6071
        %v6073 = vpack.c.bf16 %v6072, %v6072
        %v6074 = vld [vmem:[%s111] sm:$0xf]
        %v6075 = vld [vmem:[%s111 + $0x4] sm:$0xf]
        %v6076 = vld [vmem:[%s111 + $0x8] sm:$0xf]
        %v6077 = vld [vmem:[%s111 + $0xc] sm:$0xf]
        %v6078 = vld [vmem:[%s111 + $0x10] sm:$0xf]
        %v6079 = vld [vmem:[%s111 + $0x14] sm:$0xf]
        %v6080 = vld [vmem:[%s111 + $0x18] sm:$0xf]
        %v6081 = vld [vmem:[%s111 + $0x1c] sm:$0xf]
        %v6082 = vld [vmem:[#allocation35] sm:$0x1]
        %v6091 = vunpack.c.l.b16 %v6074
        %v6092 = vunpack.c.l.b16 %v6075
        %v6093 = vunpack.c.l.b16 %v6076
        %v6094 = vunpack.c.l.b16 %v6077
        %v6095 = vunpack.c.l.b16 %v6078
        %v6096 = vunpack.c.l.b16 %v6079
        %v6097 = vunpack.c.l.b16 %v6080
        %v6098 = vunpack.c.l.b16 %v6081
        %v6099 = vpack.c.b16 %v6092, %v6091
        %v6100 = vpack.c.b16 %v6094, %v6093
        %v6101 = vpack.c.b16 %v6096, %v6095
        %v6102 = vpack.c.b16 %v6098, %v6097
        %v6108 = vsel %vm2856, %v6073, 0
        %6110 = vmatpush.bf16.msra.mxu0 0
        %6111 = vmatpush.bf16.msra.mxu0 0
        %6112 = vmatpush.bf16.msra.mxu0 0
        %6113 = vmatpush.bf16.msra.mxu0 0
        %6114 = vmatpush.bf16.msra.mxu0 %v6102
        %6115 = vmatpush.bf16.msra.mxu0 %v6101
        %6116 = vmatpush.bf16.msra.mxu0 %v6100
        %6117 = vmatpush.bf16.msra.mxu0 %v6099
        %6118 = vmatmul.bf16.gmra.mxu0 %v6108
        %v6119 = vpop.f32.mrf.mxu0
        %v6120 = vadd.f32 %v6082, %v6119
        %v6121 = vpop.f32.mrf.mxu0
        %6122 = vdwg.mxu0
        %v6123 = vpack.c.bf16 %v6120, %v6120
        %v6124 = vld [vmem:[%s115] sm:$0xf]
        %v6125 = vld [vmem:[%s115 + $0x4] sm:$0xf]
        %v6126 = vld [vmem:[%s115 + $0x8] sm:$0xf]
        %v6127 = vld [vmem:[%s115 + $0xc] sm:$0xf]
        %v6128 = vld [vmem:[%s115 + $0x10] sm:$0xf]
        %v6129 = vld [vmem:[%s115 + $0x14] sm:$0xf]
        %v6130 = vld [vmem:[%s115 + $0x18] sm:$0xf]
        %v6131 = vld [vmem:[%s115 + $0x1c] sm:$0xf]
        %v6132 = vld [vmem:[%s115 + $0x20] sm:$0xf]
        %v6133 = vld [vmem:[%s115 + $0x24] sm:$0xf]
        %v6134 = vld [vmem:[%s115 + $0x28] sm:$0xf]
        %v6135 = vld [vmem:[%s115 + $0x2c] sm:$0xf]
        %v6136 = vld [vmem:[%s115 + $0x30] sm:$0xf]
        %v6137 = vld [vmem:[%s115 + $0x34] sm:$0xf]
        %v6138 = vld [vmem:[%s115 + $0x38] sm:$0xf]
        %v6139 = vld [vmem:[%s115 + $0x3c] sm:$0xf]
        %v6140 = vld [vmem:[#allocation37] sm:$0x1]
        %v6157 = vunpack.c.l.b16 %v6124
        %v6158 = vunpack.c.l.b16 %v6125
        %v6159 = vunpack.c.l.b16 %v6126
        %v6160 = vunpack.c.l.b16 %v6127
        %v6161 = vunpack.c.l.b16 %v6128
        %v6162 = vunpack.c.l.b16 %v6129
        %v6163 = vunpack.c.l.b16 %v6130
        %v6164 = vunpack.c.l.b16 %v6131
        %v6165 = vunpack.c.l.b16 %v6132
        %v6166 = vunpack.c.l.b16 %v6133
        %v6167 = vunpack.c.l.b16 %v6134
        %v6168 = vunpack.c.l.b16 %v6135
        %v6169 = vunpack.c.l.b16 %v6136
        %v6170 = vunpack.c.l.b16 %v6137
        %v6171 = vunpack.c.l.b16 %v6138
        %v6172 = vunpack.c.l.b16 %v6139
        %v6173 = vpack.c.b16 %v6158, %v6157
        %v6174 = vpack.c.b16 %v6160, %v6159
        %v6175 = vpack.c.b16 %v6162, %v6161
        %v6176 = vpack.c.b16 %v6164, %v6163
        %v6177 = vpack.c.b16 %v6166, %v6165
        %v6178 = vpack.c.b16 %v6168, %v6167
        %v6179 = vpack.c.b16 %v6170, %v6169
        %v6180 = vpack.c.b16 %v6172, %v6171
        %6189 = vmatpush.bf16.msra.mxu0 %v6180
        %6190 = vmatpush.bf16.msra.mxu0 %v6179
        %6191 = vmatpush.bf16.msra.mxu0 %v6178
        %6192 = vmatpush.bf16.msra.mxu0 %v6177
        %6193 = vmatpush.bf16.msra.mxu0 %v6176
        %6194 = vmatpush.bf16.msra.mxu0 %v6175
        %6195 = vmatpush.bf16.msra.mxu0 %v6174
        %6196 = vmatpush.bf16.msra.mxu0 %v6173
        %6197 = vmatmul.bf16.gmra.mxu0 %v6123
        %v6198 = vpop.f32.mrf.mxu0
        %v6199 = vadd.f32 %v6140, %v6198
        %v6200 = vpop.f32.mrf.mxu0
        %6201 = vdwg.mxu0
        %v6202 = vadd.f32 %v5894, %v6199
        %v6203 = vld [vmem:[%s119] sm:$0xf]
        %v6204 = vld [vmem:[%s119 + $0x4] sm:$0xf]
        %v6205 = vld [vmem:[%s119 + $0x8] sm:$0xf]
        %v6206 = vld [vmem:[%s119 + $0xc] sm:$0xf]
        %v6207 = vld [vmem:[%s119 + $0x10] sm:$0xf]
        %v6208 = vld [vmem:[%s119 + $0x14] sm:$0xf]
        %v6209 = vld [vmem:[%s119 + $0x18] sm:$0xf]
        %v6210 = vld [vmem:[%s119 + $0x1c] sm:$0xf]
        %v6211 = vld [vmem:[#allocation38] sm:$0x1]
        %v6213 = vperm.slane %v6211, 0
        %v6223 = vunpack.c.l.b16 %v6203
        %v6224 = vunpack.c.l.b16 %v6204
        %v6225 = vunpack.c.l.b16 %v6205
        %v6226 = vunpack.c.l.b16 %v6206
        %v6227 = vunpack.c.l.b16 %v6207
        %v6228 = vunpack.c.l.b16 %v6208
        %v6229 = vunpack.c.l.b16 %v6209
        %v6230 = vunpack.c.l.b16 %v6210
        %v6231 = vpack.c.b16 %v6224, %v6223
        %v6232 = vpack.c.b16 %v6226, %v6225
        %v6233 = vpack.c.b16 %v6228, %v6227
        %v6234 = vpack.c.b16 %v6230, %v6229
        %6239 = vmatpush.bf16.msra.mxu0 0
        %6240 = vmatpush.bf16.msra.mxu0 0
        %6241 = vmatpush.bf16.msra.mxu0 0
        %6242 = vmatpush.bf16.msra.mxu0 0
        %6243 = vmatpush.bf16.msra.mxu0 %v6234
        %6244 = vmatpush.bf16.msra.mxu0 %v6233
        %6245 = vmatpush.bf16.msra.mxu0 %v6232
        %6246 = vmatpush.bf16.msra.mxu0 %v6231
        %6247 = vmatmul.bf16.gmra.mxu0 %v3718
        %v6248 = vpop.f32.mrf.mxu0
        %v6249 = vadd.f32 %v6213, %v6248
        %v6250 = vpop.f32.mrf.mxu0
        %6251 = vdwg.mxu0
        %v6252 = vmax.f32 %v6249, 0.0
        %v6253 = vpack.c.bf16 %v6252, %v6252
        %v6254 = vld [vmem:[%s123] sm:$0xf]
        %v6255 = vld [vmem:[%s123 + $0x4] sm:$0xf]
        %v6256 = vld [vmem:[%s123 + $0x8] sm:$0xf]
        %v6257 = vld [vmem:[%s123 + $0xc] sm:$0xf]
        %v6258 = vld [vmem:[%s123 + $0x10] sm:$0xf]
        %v6259 = vld [vmem:[%s123 + $0x14] sm:$0xf]
        %v6260 = vld [vmem:[%s123 + $0x18] sm:$0xf]
        %v6261 = vld [vmem:[%s123 + $0x1c] sm:$0xf]
        %v6262 = vld [vmem:[%s123 + $0x20] sm:$0xf]
        %v6263 = vld [vmem:[%s123 + $0x24] sm:$0xf]
        %v6264 = vld [vmem:[%s123 + $0x28] sm:$0xf]
        %v6265 = vld [vmem:[%s123 + $0x2c] sm:$0xf]
        %v6266 = vld [vmem:[%s123 + $0x30] sm:$0xf]
        %v6267 = vld [vmem:[%s123 + $0x34] sm:$0xf]
        %v6268 = vld [vmem:[%s123 + $0x38] sm:$0xf]
        %v6269 = vld [vmem:[%s123 + $0x3c] sm:$0xf]
        %v6270 = vld [vmem:[#allocation40] sm:$0x1]
        %v6272 = vperm.slane %v6270, 0
        %v6290 = vunpack.c.l.b16 %v6254
        %v6291 = vunpack.c.l.b16 %v6255
        %v6292 = vunpack.c.l.b16 %v6256
        %v6293 = vunpack.c.l.b16 %v6257
        %v6294 = vunpack.c.l.b16 %v6258
        %v6295 = vunpack.c.l.b16 %v6259
        %v6296 = vunpack.c.l.b16 %v6260
        %v6297 = vunpack.c.l.b16 %v6261
        %v6298 = vunpack.c.l.b16 %v6262
        %v6299 = vunpack.c.l.b16 %v6263
        %v6300 = vunpack.c.l.b16 %v6264
        %v6301 = vunpack.c.l.b16 %v6265
        %v6302 = vunpack.c.l.b16 %v6266
        %v6303 = vunpack.c.l.b16 %v6267
        %v6304 = vunpack.c.l.b16 %v6268
        %v6305 = vunpack.c.l.b16 %v6269
        %v6306 = vpack.c.b16 %v6291, %v6290
        %v6307 = vpack.c.b16 %v6293, %v6292
        %v6308 = vpack.c.b16 %v6295, %v6294
        %v6309 = vpack.c.b16 %v6297, %v6296
        %v6310 = vpack.c.b16 %v6299, %v6298
        %v6311 = vpack.c.b16 %v6301, %v6300
        %v6312 = vpack.c.b16 %v6303, %v6302
        %v6313 = vpack.c.b16 %v6305, %v6304
        %6322 = vmatpush.bf16.msra.mxu0 %v6313
        %6323 = vmatpush.bf16.msra.mxu0 %v6312
        %6324 = vmatpush.bf16.msra.mxu0 %v6311
        %6325 = vmatpush.bf16.msra.mxu0 %v6310
        %6326 = vmatpush.bf16.msra.mxu0 %v6309
        %6327 = vmatpush.bf16.msra.mxu0 %v6308
        %6328 = vmatpush.bf16.msra.mxu0 %v6307
        %6329 = vmatpush.bf16.msra.mxu0 %v6306
        %6330 = vmatmul.bf16.gmra.mxu0 %v6253
        %v6331 = vpop.f32.mrf.mxu0
        %v6332 = vadd.f32 %v6272, %v6331
        %v6333 = vpop.f32.mrf.mxu0
        %6334 = vdwg.mxu0
        %v6335 = vpack.c.bf16 %v6202, %v6202
        %v6336 = vld [vmem:[%s127] sm:$0xf]
        %v6337 = vld [vmem:[%s127 + $0x4] sm:$0xf]
        %v6338 = vld [vmem:[%s127 + $0x8] sm:$0xf]
        %v6339 = vld [vmem:[%s127 + $0xc] sm:$0xf]
        %v6340 = vld [vmem:[%s127 + $0x10] sm:$0xf]
        %v6341 = vld [vmem:[%s127 + $0x14] sm:$0xf]
        %v6342 = vld [vmem:[%s127 + $0x18] sm:$0xf]
        %v6343 = vld [vmem:[%s127 + $0x1c] sm:$0xf]
        %v6344 = vld [vmem:[#allocation41] sm:$0x1]
        %v6353 = vunpack.c.l.b16 %v6336
        %v6354 = vunpack.c.l.b16 %v6337
        %v6355 = vunpack.c.l.b16 %v6338
        %v6356 = vunpack.c.l.b16 %v6339
        %v6357 = vunpack.c.l.b16 %v6340
        %v6358 = vunpack.c.l.b16 %v6341
        %v6359 = vunpack.c.l.b16 %v6342
        %v6360 = vunpack.c.l.b16 %v6343
        %v6361 = vpack.c.b16 %v6354, %v6353
        %v6362 = vpack.c.b16 %v6356, %v6355
        %v6363 = vpack.c.b16 %v6358, %v6357
        %v6364 = vpack.c.b16 %v6360, %v6359
        %v6370 = vsel %vm2856, %v6335, 0
        %6372 = vmatpush.bf16.msra.mxu0 0
        %6373 = vmatpush.bf16.msra.mxu0 0
        %6374 = vmatpush.bf16.msra.mxu0 0
        %6375 = vmatpush.bf16.msra.mxu0 0
        %6376 = vmatpush.bf16.msra.mxu0 %v6364
        %6377 = vmatpush.bf16.msra.mxu0 %v6363
        %6378 = vmatpush.bf16.msra.mxu0 %v6362
        %6379 = vmatpush.bf16.msra.mxu0 %v6361
        %6380 = vmatmul.bf16.gmra.mxu0 %v6370
        %v6381 = vpop.f32.mrf.mxu0
        %v6382 = vadd.f32 %v6344, %v6381
        %v6383 = vpop.f32.mrf.mxu0
        %6384 = vdwg.mxu0
        %v6385 = vmax.f32 %v6382, 0.0
        %v6386 = vpack.c.bf16 %v6385, %v6385
        %v6387 = vld [vmem:[%s131] sm:$0xf]
        %v6388 = vld [vmem:[%s131 + $0x4] sm:$0xf]
        %v6389 = vld [vmem:[%s131 + $0x8] sm:$0xf]
        %v6390 = vld [vmem:[%s131 + $0xc] sm:$0xf]
        %v6391 = vld [vmem:[%s131 + $0x10] sm:$0xf]
        %v6392 = vld [vmem:[%s131 + $0x14] sm:$0xf]
        %v6393 = vld [vmem:[%s131 + $0x18] sm:$0xf]
        %v6394 = vld [vmem:[%s131 + $0x1c] sm:$0xf]
        %v6395 = vld [vmem:[%s131 + $0x20] sm:$0xf]
        %v6396 = vld [vmem:[%s131 + $0x24] sm:$0xf]
        %v6397 = vld [vmem:[%s131 + $0x28] sm:$0xf]
        %v6398 = vld [vmem:[%s131 + $0x2c] sm:$0xf]
        %v6399 = vld [vmem:[%s131 + $0x30] sm:$0xf]
        %v6400 = vld [vmem:[%s131 + $0x34] sm:$0xf]
        %v6401 = vld [vmem:[%s131 + $0x38] sm:$0xf]
        %v6402 = vld [vmem:[%s131 + $0x3c] sm:$0xf]
        %v6403 = vld [vmem:[#allocation43] sm:$0x1]
        %v6420 = vunpack.c.l.b16 %v6387
        %v6421 = vunpack.c.l.b16 %v6388
        %v6422 = vunpack.c.l.b16 %v6389
        %v6423 = vunpack.c.l.b16 %v6390
        %v6424 = vunpack.c.l.b16 %v6391
        %v6425 = vunpack.c.l.b16 %v6392
        %v6426 = vunpack.c.l.b16 %v6393
        %v6427 = vunpack.c.l.b16 %v6394
        %v6428 = vunpack.c.l.b16 %v6395
        %v6429 = vunpack.c.l.b16 %v6396
        %v6430 = vunpack.c.l.b16 %v6397
        %v6431 = vunpack.c.l.b16 %v6398
        %v6432 = vunpack.c.l.b16 %v6399
        %v6433 = vunpack.c.l.b16 %v6400
        %v6434 = vunpack.c.l.b16 %v6401
        %v6435 = vunpack.c.l.b16 %v6402
        %v6436 = vpack.c.b16 %v6421, %v6420
        %v6437 = vpack.c.b16 %v6423, %v6422
        %v6438 = vpack.c.b16 %v6425, %v6424
        %v6439 = vpack.c.b16 %v6427, %v6426
        %v6440 = vpack.c.b16 %v6429, %v6428
        %v6441 = vpack.c.b16 %v6431, %v6430
        %v6442 = vpack.c.b16 %v6433, %v6432
        %v6443 = vpack.c.b16 %v6435, %v6434
        %6452 = vmatpush.bf16.msra.mxu0 %v6443
        %6453 = vmatpush.bf16.msra.mxu0 %v6442
        %6454 = vmatpush.bf16.msra.mxu0 %v6441
        %6455 = vmatpush.bf16.msra.mxu0 %v6440
        %6456 = vmatpush.bf16.msra.mxu0 %v6439
        %6457 = vmatpush.bf16.msra.mxu0 %v6438
        %6458 = vmatpush.bf16.msra.mxu0 %v6437
        %6459 = vmatpush.bf16.msra.mxu0 %v6436
        %6460 = vmatmul.bf16.gmra.mxu0 %v6386
        %v6461 = vpop.f32.mrf.mxu0
        %v6462 = vadd.f32 %v6403, %v6461
        %v6463 = vpop.f32.mrf.mxu0
        %6464 = vdwg.mxu0
        %v6465 = vperm.slane %v6462, 0
        %v6466 = vmul.f32 %v6332, %v6465
        %v6467 = vpack.c.bf16 %v6466, %v6466
        %v6468 = vld [vmem:[%s135] sm:$0xf]
        %v6469 = vld [vmem:[%s135 + $0x4] sm:$0xf]
        %v6470 = vld [vmem:[%s135 + $0x8] sm:$0xf]
        %v6471 = vld [vmem:[%s135 + $0xc] sm:$0xf]
        %v6472 = vld [vmem:[%s135 + $0x10] sm:$0xf]
        %v6473 = vld [vmem:[%s135 + $0x14] sm:$0xf]
        %v6474 = vld [vmem:[%s135 + $0x18] sm:$0xf]
        %v6475 = vld [vmem:[%s135 + $0x1c] sm:$0xf]
        %v6476 = vld [vmem:[#allocation44] sm:$0x1]
        %v6478 = vperm.slane %v6476, 0
        %v6488 = vunpack.c.l.b16 %v6468
        %v6489 = vunpack.c.l.b16 %v6469
        %v6490 = vunpack.c.l.b16 %v6470
        %v6491 = vunpack.c.l.b16 %v6471
        %v6492 = vunpack.c.l.b16 %v6472
        %v6493 = vunpack.c.l.b16 %v6473
        %v6494 = vunpack.c.l.b16 %v6474
        %v6495 = vunpack.c.l.b16 %v6475
        %v6496 = vpack.c.b16 %v6489, %v6488
        %v6497 = vpack.c.b16 %v6491, %v6490
        %v6498 = vpack.c.b16 %v6493, %v6492
        %v6499 = vpack.c.b16 %v6495, %v6494
        %v6505 = vsel %vm2856, %v6467, 0
        %6507 = vmatpush.bf16.msra.mxu0 0
        %6508 = vmatpush.bf16.msra.mxu0 0
        %6509 = vmatpush.bf16.msra.mxu0 0
        %6510 = vmatpush.bf16.msra.mxu0 0
        %6511 = vmatpush.bf16.msra.mxu0 %v6499
        %6512 = vmatpush.bf16.msra.mxu0 %v6498
        %6513 = vmatpush.bf16.msra.mxu0 %v6497
        %6514 = vmatpush.bf16.msra.mxu0 %v6496
        %6515 = vmatmul.bf16.gmra.mxu0 %v6505
        %v6516 = vpop.f32.mrf.mxu0
        %v6517 = vadd.f32 %v6478, %v6516
        %v6518 = vpop.f32.mrf.mxu0
        %6519 = vdwg.mxu0
        %v6520 = vmax.f32 %v6517, 0.0
        %v6521 = vpack.c.bf16 %v6520, %v6520
        %v6522 = vld [vmem:[%s139] sm:$0xf]
        %v6523 = vld [vmem:[%s139 + $0x4] sm:$0xf]
        %v6524 = vld [vmem:[%s139 + $0x8] sm:$0xf]
        %v6525 = vld [vmem:[%s139 + $0xc] sm:$0xf]
        %v6526 = vld [vmem:[%s139 + $0x10] sm:$0xf]
        %v6527 = vld [vmem:[%s139 + $0x14] sm:$0xf]
        %v6528 = vld [vmem:[%s139 + $0x18] sm:$0xf]
        %v6529 = vld [vmem:[%s139 + $0x1c] sm:$0xf]
        %v6530 = vld [vmem:[%s139 + $0x20] sm:$0xf]
        %v6531 = vld [vmem:[%s139 + $0x24] sm:$0xf]
        %v6532 = vld [vmem:[%s139 + $0x28] sm:$0xf]
        %v6533 = vld [vmem:[%s139 + $0x2c] sm:$0xf]
        %v6534 = vld [vmem:[%s139 + $0x30] sm:$0xf]
        %v6535 = vld [vmem:[%s139 + $0x34] sm:$0xf]
        %v6536 = vld [vmem:[%s139 + $0x38] sm:$0xf]
        %v6537 = vld [vmem:[%s139 + $0x3c] sm:$0xf]
        %v6538 = vld [vmem:[#allocation5] sm:$0x1]
        %v6540 = vperm.slane %v6538, 0
        %v6558 = vunpack.c.l.b16 %v6522
        %v6559 = vunpack.c.l.b16 %v6523
        %v6560 = vunpack.c.l.b16 %v6524
        %v6561 = vunpack.c.l.b16 %v6525
        %v6562 = vunpack.c.l.b16 %v6526
        %v6563 = vunpack.c.l.b16 %v6527
        %v6564 = vunpack.c.l.b16 %v6528
        %v6565 = vunpack.c.l.b16 %v6529
        %v6566 = vunpack.c.l.b16 %v6530
        %v6567 = vunpack.c.l.b16 %v6531
        %v6568 = vunpack.c.l.b16 %v6532
        %v6569 = vunpack.c.l.b16 %v6533
        %v6570 = vunpack.c.l.b16 %v6534
        %v6571 = vunpack.c.l.b16 %v6535
        %v6572 = vunpack.c.l.b16 %v6536
        %v6573 = vunpack.c.l.b16 %v6537
        %v6574 = vpack.c.b16 %v6559, %v6558
        %v6575 = vpack.c.b16 %v6561, %v6560
        %v6576 = vpack.c.b16 %v6563, %v6562
        %v6577 = vpack.c.b16 %v6565, %v6564
        %v6578 = vpack.c.b16 %v6567, %v6566
        %v6579 = vpack.c.b16 %v6569, %v6568
        %v6580 = vpack.c.b16 %v6571, %v6570
        %v6581 = vpack.c.b16 %v6573, %v6572
        %6590 = vmatpush.bf16.msra.mxu0 %v6581
        %6591 = vmatpush.bf16.msra.mxu0 %v6580
        %6592 = vmatpush.bf16.msra.mxu0 %v6579
        %6593 = vmatpush.bf16.msra.mxu0 %v6578
        %6594 = vmatpush.bf16.msra.mxu0 %v6577
        %6595 = vmatpush.bf16.msra.mxu0 %v6576
        %6596 = vmatpush.bf16.msra.mxu0 %v6575
        %6597 = vmatpush.bf16.msra.mxu0 %v6574
        %6598 = vmatmul.bf16.gmra.mxu0 %v6521
        %v6599 = vpop.f32.mrf.mxu0
        %v6600 = vadd.f32 %v6540, %v6599
        %v6601 = vpop.f32.mrf.mxu0
        %6602 = vdwg.mxu0
        %v6603 = vadd.f32 %v6600, %v2797
        %v6604 = vsel %vm5409, %v6603, -inf
        %v6605 = vrot.slane %v6604, 4
        %v6606 = vmax.f32 %v6604, %v6605
        %v6607 = vrot.slane %v6606, 2
        %v6608 = vmax.f32 %v6606, %v6607
        %v6609 = vrot.slane %v6608, 1
        %v6610 = vmax.f32 %v6608, %v6609
        %v6611 = vsub.f32 %v6603, %v6610
        %v6612 = vmul.f32 %v6611, 1.442695
        %v6613 = vpow.pop %v6612
        %v6614 = vsel %vm5409, %v6613, 0.0
        %v6615 = vrot.slane %v6614, 4
        %v6616 = vadd.f32 %v6614, %v6615
        %v6617 = vrot.slane %v6616, 2
        %v6618 = vadd.f32 %v6616, %v6617
        %v6619 = vrot.slane %v6618, 1
        %v6620 = vadd.f32 %v6618, %v6619
        %v6621 = vrcp.pop %v6620
        %v6622 = vmul.f32 %v6620, %v6621
        %v6623 = vsub.f32 1.0, %v6622
        %v6624 = vmul.f32 %v6621, %v6623
        %v6625 = vadd.f32 %v6621, %v6624
        %vm6626 = vweird.f32 %v6620
        %vm6627 = vweird.f32 %v6621
        %vm6628 = vmor %vm6626, %vm6627
        %v6629 = vsel %vm6628, %v6621, %v6625
        %v6630 = vand.u32 2147483647, %v6620
        %vm6631 = vcmp.eq.f32.partialorder %v6630, 8.507059e+37
        %v6632 = vand.u32 %v6620, 2147483648
        %v6633 = vor.u32 1.1754944e-38, %v6632
        %v6634 = vsel %vm6631, %v6633, %v6629
        %v6635 = vmul.f32 %v6613, %v6634
        %v6636 = vsel %vm5409, %v2789, 0.0
        %v6637 = vrot.slane %v6636, 4
        %v6638 = vadd.f32 %v6636, %v6637
        %v6639 = vrot.slane %v6638, 2
        %v6640 = vadd.f32 %v6638, %v6639
        %v6641 = vrot.slane %v6640, 1
        %v6642 = vadd.f32 %v6640, %v6641
        %v6643 = vsub.f32 8.0, %v6642
        %v6644 = vmax.f32 %v6643, 1.0
        %v6645 = vrcp.pop %v6644
        %v6646 = vmul.f32 %v6644, %v6645
        %v6647 = vsub.f32 1.0, %v6646
        %v6648 = vmul.f32 %v6645, %v6647
        %v6649 = vadd.f32 %v6645, %v6648
        %vm6650 = vweird.f32 %v6644
        %vm6651 = vweird.f32 %v6645
        %vm6652 = vmor %vm6650, %vm6651
        %v6653 = vsel %vm6652, %v6645, %v6649
        %v6654 = vand.u32 2147483647, %v6644
        %vm6655 = vcmp.eq.f32.partialorder %v6654, 8.507059e+37
        %v6656 = vand.u32 %v6644, 2147483648
        %v6657 = vor.u32 1.1754944e-38, %v6656
        %v6658 = vsel %vm6655, %v6657, %v6653
        %v6659 = vmul.f32 1.0, %v6658
        %v6660 = vsub.f32 0.0, %v6659
        %v6661 = vlog2.pop %v6659
        %v6662 = vmul.f32 %v6661, 0.6931472
        %v6663 = vmul.f32 %v6660, %v6662
        %v6664 = vmul.f32 %v6663, 8.0
        %v6665 = vmax.f32 %v5441, 1e-09
        %v6666 = vsub.f32 0.0, %v6665
        %v6667 = vlog2.pop %v6665
        %v6668 = vmul.f32 %v6667, 0.6931472
        %v6669 = vmul.f32 %v6666, %v6668
        %v6670 = vsel %vm5409, %v6669, 0.0
        %v6671 = vrot.slane %v6670, 4
        %v6672 = vadd.f32 %v6670, %v6671
        %v6673 = vrot.slane %v6672, 2
        %v6674 = vadd.f32 %v6672, %v6673
        %v6675 = vrot.slane %v6674, 1
        %v6676 = vadd.f32 %v6674, %v6675
        %vm6677 = vcmp.gt.f32.partialorder %v6676, %v6664
        %v6678 = vsel %vm6677, 1.0, 0.0
        %v6679 = vsub.f32 %v5441, %v6635
        %v6680 = vmul.f32 %v6679, %v6679
        %v6681 = vsel %vm5409, %v6680, 0.0
        %v6682 = vrot.slane %v6681, 4
        %v6683 = vadd.f32 %v6681, %v6682
        %v6684 = vrot.slane %v6683, 2
        %v6685 = vadd.f32 %v6683, %v6684
        %v6686 = vrot.slane %v6685, 1
        %v6687 = vadd.f32 %v6685, %v6686
        %v6688 = vmul.f32 %v6687, %v6678
        %v6689 = vpack.c.bf16 %v5894, %v5894
        %v6690 = vld [vmem:[#allocation46] sm:$0xf]
        %v6691 = vld [vmem:[#allocation46 + $0x4] sm:$0xf]
        %v6692 = vld [vmem:[#allocation46 + $0x8] sm:$0xf]
        %v6693 = vld [vmem:[#allocation46 + $0xc] sm:$0xf]
        %v6694 = vld [vmem:[#allocation46 + $0x10] sm:$0xf]
        %v6695 = vld [vmem:[#allocation46 + $0x14] sm:$0xf]
        %v6696 = vld [vmem:[#allocation46 + $0x18] sm:$0xf]
        %v6697 = vld [vmem:[#allocation46 + $0x1c] sm:$0xf]
        %v6698 = vld [vmem:[#allocation47] sm:$0x1]
        %v6707 = vunpack.c.l.b16 %v6690
        %v6708 = vunpack.c.l.b16 %v6691
        %v6709 = vunpack.c.l.b16 %v6692
        %v6710 = vunpack.c.l.b16 %v6693
        %v6711 = vunpack.c.l.b16 %v6694
        %v6712 = vunpack.c.l.b16 %v6695
        %v6713 = vunpack.c.l.b16 %v6696
        %v6714 = vunpack.c.l.b16 %v6697
        %v6715 = vpack.c.b16 %v6708, %v6707
        %v6716 = vpack.c.b16 %v6710, %v6709
        %v6717 = vpack.c.b16 %v6712, %v6711
        %v6718 = vpack.c.b16 %v6714, %v6713
        %v6724 = vsel %vm2856, %v6689, 0
        %6726 = vmatpush.bf16.msra.mxu0 0
        %6727 = vmatpush.bf16.msra.mxu0 0
        %6728 = vmatpush.bf16.msra.mxu0 0
        %6729 = vmatpush.bf16.msra.mxu0 0
        %6730 = vmatpush.bf16.msra.mxu0 %v6718
        %6731 = vmatpush.bf16.msra.mxu0 %v6717
        %6732 = vmatpush.bf16.msra.mxu0 %v6716
        %6733 = vmatpush.bf16.msra.mxu0 %v6715
        %6734 = vmatmul.bf16.gmra.mxu0 %v6724
        %v6735 = vpop.f32.mrf.mxu0
        %v6736 = vadd.f32 %v6698, %v6735
        %v6737 = vpop.f32.mrf.mxu0
        %6738 = vdwg.mxu0
        %vm6739 = vcmask 1040384
        %v6740 = vsel %vm6739, %v6736, 0.0
        %6741 = vadd.xlane.f32.xlu0 %v6740
        %v6742 = vpop.xlane.xlu0 %6741
        %v6743 = vrcp.pop 128.0
        %v6744 = vmul.f32 128.0, %v6743
        %v6745 = vsub.f32 1.0, %v6744
        %v6746 = vmul.f32 %v6743, %v6745
        %v6747 = vadd.f32 %v6743, %v6746
        %vm6748 = vweird.f32 %v6743
        %v6749 = vsel %vm6748, %v6743, %v6747
        %v6750 = vmul.f32 %v6742, %v6749
        %v6751 = vsub.f32 %v6736, %v6750
        %v6752 = vmul.f32 %v6751, %v6751
        %v6753 = vsel %vm6739, %v6752, 0.0
        %6754 = vadd.xlane.f32.xlu0 %v6753
        %v6755 = vpop.xlane.xlu0 %6754
        %v6756 = vmul.f32 %v6755, %v6749
        %v6757 = vadd.f32 %v6756, 1e-05
        %v6758 = vrsqrt.pop %v6757
        %v6759 = vmul.f32 %v6758, %v6757
        %v6760 = vmul.f32 %v6759, %v6758
        %v6761 = vmul.f32 0.5, %v6760
        %v6762 = vsub.f32 1.5, %v6761
        %v6763 = vmul.f32 %v6758, %v6762
        %vm6764 = vweird.f32 %v6757
        %vm6765 = vweird.f32 %v6758
        %vm6766 = vmor %vm6764, %vm6765
        %v6767 = vsel %vm6766, %v6758, %v6763
        %v6768 = vmul.f32 %v6751, %v6767
        %v6769 = vld [vmem:[#allocation49] sm:$0x1]
        %v6770 = vmul.f32 %v6768, %v6769
        %v6771 = vld [vmem:[#allocation50] sm:$0x1]
        %v6772 = vadd.f32 %v6770, %v6771
        %v6773 = vpack.c.bf16 %v6772, %v6772
        %v6774 = vld [vmem:[%s151] sm:$0xf]
        %v6775 = vld [vmem:[%s151 + $0x4] sm:$0xf]
        %v6776 = vld [vmem:[%s151 + $0x8] sm:$0xf]
        %v6777 = vld [vmem:[%s151 + $0xc] sm:$0xf]
        %v6778 = vld [vmem:[%s151 + $0x10] sm:$0xf]
        %v6779 = vld [vmem:[%s151 + $0x14] sm:$0xf]
        %v6780 = vld [vmem:[%s151 + $0x18] sm:$0xf]
        %v6781 = vld [vmem:[%s151 + $0x1c] sm:$0xf]
        %v6782 = vld [vmem:[%s151 + $0x20] sm:$0xf]
        %v6783 = vld [vmem:[%s151 + $0x24] sm:$0xf]
        %v6784 = vld [vmem:[%s151 + $0x28] sm:$0xf]
        %v6785 = vld [vmem:[%s151 + $0x2c] sm:$0xf]
        %v6786 = vld [vmem:[%s151 + $0x30] sm:$0xf]
        %v6787 = vld [vmem:[%s151 + $0x34] sm:$0xf]
        %v6788 = vld [vmem:[%s151 + $0x38] sm:$0xf]
        %v6789 = vld [vmem:[%s151 + $0x3c] sm:$0xf]
        %v6790 = vld [vmem:[#allocation52] sm:$0x1]
        %v6807 = vunpack.c.l.b16 %v6774
        %v6808 = vunpack.c.l.b16 %v6775
        %v6809 = vunpack.c.l.b16 %v6776
        %v6810 = vunpack.c.l.b16 %v6777
        %v6811 = vunpack.c.l.b16 %v6778
        %v6812 = vunpack.c.l.b16 %v6779
        %v6813 = vunpack.c.l.b16 %v6780
        %v6814 = vunpack.c.l.b16 %v6781
        %v6815 = vunpack.c.l.b16 %v6782
        %v6816 = vunpack.c.l.b16 %v6783
        %v6817 = vunpack.c.l.b16 %v6784
        %v6818 = vunpack.c.l.b16 %v6785
        %v6819 = vunpack.c.l.b16 %v6786
        %v6820 = vunpack.c.l.b16 %v6787
        %v6821 = vunpack.c.l.b16 %v6788
        %v6822 = vunpack.c.l.b16 %v6789
        %v6823 = vpack.c.b16 %v6808, %v6807
        %v6824 = vpack.c.b16 %v6810, %v6809
        %v6825 = vpack.c.b16 %v6812, %v6811
        %v6826 = vpack.c.b16 %v6814, %v6813
        %v6827 = vpack.c.b16 %v6816, %v6815
        %v6828 = vpack.c.b16 %v6818, %v6817
        %v6829 = vpack.c.b16 %v6820, %v6819
        %v6830 = vpack.c.b16 %v6822, %v6821
        %6839 = vmatpush.bf16.msra.mxu0 %v6830
        %6840 = vmatpush.bf16.msra.mxu0 %v6829
        %6841 = vmatpush.bf16.msra.mxu0 %v6828
        %6842 = vmatpush.bf16.msra.mxu0 %v6827
        %6843 = vmatpush.bf16.msra.mxu0 %v6826
        %6844 = vmatpush.bf16.msra.mxu0 %v6825
        %6845 = vmatpush.bf16.msra.mxu0 %v6824
        %6846 = vmatpush.bf16.msra.mxu0 %v6823
        %6847 = vmatmul.bf16.gmra.mxu0 %v6773
        %v6848 = vpop.f32.mrf.mxu0
        %v6849 = vadd.f32 %v6790, %v6848
        %v6850 = vpop.f32.mrf.mxu0
        %6851 = vdwg.mxu0
        %6853 = vrot.lane.b32.xlu0 %v6688, 64
        %v6854 = vpop.permute.xlu0 %6853
        %v6856 = vsel %vm2856, %v6849, %v6854
        %vm6857 = vcmask 531456
        %v6858 = vsel %vm6857, %v6856, 0.0
        %6859 = vst [vmem:[%s2785] sm:$0x1] %v6858
        %p6860 = scmp.lt.s32.totalorder %s192, 1
        %s6861 = scalar_select %p6860, %s192, 1
        %s6862 = scalar_lea.vmem %s155, %s6861
        // Predicated region
        $region453: #{transformer_forward.1} parent=327 // pred_check
          %p6863 = pneg %p1857
        $region454: #{transformer_forward.1} parent=327 // pred_check_branch
          %6865 = sbr.rel (%p6863) target = $region456
        $region455: #{transformer_forward.1} parent=327 // pred_region
          _
        $region456: #{transformer_forward.1} parent=327 // pred_fallthru
          _
      $region328: #{transformer_forward.1} parent=5 // pred_fallthru
        _
      %p6866 = scmp.le.s32.totalorder 2, %s187
      // Predicated region
      $region457: #{transformer_forward.1} parent=5 // pred_check
        %p6867 = pneg %p6866
      $region458: #{transformer_forward.1} parent=5 // pred_check_branch
        %6869 = sbr.rel (%p6867) target = $region460
      $region459: #{transformer_forward.1} parent=5 // pred_region
        %s6870 = ssub.s32 %s187, 2
        // Predicated region
        $region461: #{transformer_forward.1} parent=459 // pred_check
          %p6871 = pneg %p1863
        $region462: #{transformer_forward.1} parent=459 // pred_check_branch
          %6873 = sbr.rel (%p6871) target = $region464
        $region463: #{transformer_forward.1} parent=459 // pred_region
          %p6874 = scmp.lt.s32.totalorder %s193, 1
          %s6875 = scalar_select %p6874, %s193, 1
          %s6876 = scalar_lea.vmem %s155, %s6875
        $region464: #{transformer_forward.1} parent=459 // pred_fallthru
          _
      $region460: #{transformer_forward.1} parent=5 // pred_fallthru
        _
    $region6: #{transformer_forward.1} parent=1 // loop_footer
      %s191 = sadd.s32 1, %s187
    $region7: #{transformer_forward.1} parent=1 // loop_footer_branch
      %186 = sbr.rel target = $region3
    $region8: #{transformer_forward.1} parent=1 // loop_exit
      _
    %6877 = vsyncpa [#allocation7], 1
    %s6878 = scalar_lea.sflag [#allocation7], 1
    %6879 = vsyncpa %s6878, 1
    %6880 = vsyncpa [#allocation9], 1
    %6881 = vsyncpa [#allocation12], 1
    %6882 = vsyncpa [#allocation15], 1
    %6883 = vsyncpa [#allocation18], 1
    %6884 = vsyncpa [#allocation21], 1
    %6885 = vsyncpa [#allocation24], 1
    %6886 = vsyncpa [#allocation27], 1
    %6887 = vsyncpa [#allocation30], 1
    %6888 = vsyncpa [#allocation33], 1
    %6889 = vsyncpa [#allocation36], 1
    %6890 = vsyncpa [#allocation39], 1
    %6891 = vsyncpa [#allocation42], 1
    %6892 = vsyncpa [#allocation45], 1
    %6893 = vsyncpa [#allocation48], 1
    %6894 = vsyncpa [#allocation51], 1

</llo_original>
